<compile_context>
chip_gen: v6e
topology: v6e:2x2x1
jax: 0.10.0
libtpu: 0.0.40
codegen_flags: <defaults>
</compile_context>

<pallas_src>
import functools

import jax
import jax.numpy as jnp
from jax.experimental import pallas as pl
from jax.experimental.pallas import tpu as pltpu


def _round_up(x, m):
    return (x + m - 1) // m * m


def _topk_keep(feats, keys0, k):
    """Return `feats` with only the top-k entries per row kept (rest zeroed).

    `keys0` packs (value bits, low index-bits cleared) | (H-1-col) into int32:
    keys are unique per row, so exactly one element retires per iteration, and
    ties within the truncated value resolve toward the lowest column.  Valid
    keys are >= 0 (feats >= 0 after ReLU => float sign bit is clear), which
    makes int32 -1 a safe "already selected" sentinel.
    """
    def select_one(ks):
        kmax = jnp.max(ks, axis=1, keepdims=True)         # single reduce / iter
        return jnp.where(ks == kmax, jnp.int32(-1), ks)   # retire exactly one

    keys = keys0
    if k <= 8:
        for _ in range(k):                                # fully unrolled: one BB
            keys = select_one(keys)
    else:
        keys = jax.lax.fori_loop(0, k, lambda _, ks: select_one(ks), keys,
                                 unroll=8)
    return jnp.where(keys < 0, feats, 0.0)


def _sae_kernel(k, idx_bits, split, x_ref, we_ref, be_ref, wd_ref,
                sparse_ref, recon_ref):
    hp = we_ref.shape[1]
    tb = x_ref.shape[0]

    # Hoisted once per grid step (JAX does not CSE broadcast_in_dim).
    col_rev = (hp - 1) - jax.lax.broadcasted_iota(jnp.int32, (1, hp), 1)
    val_mask = jnp.int32(-1 << idx_bits)                  # clears low index bits

    def encode(xs):
        f = jnp.dot(xs, we_ref[...], preferred_element_type=jnp.float32)
        return jnp.maximum(f + be_ref[...], 0.0)          # (rows, hp) f32 >= 0

    def pack_keys(feats):
        # Non-negative f32 bit patterns are order-preserving as int32; clamp at
        # 0 so a stray -0.0 cannot flip the sign bit of a key.
        vbits = jnp.maximum(jax.lax.bitcast_convert_type(feats, jnp.int32), 0)
        return jnp.bitwise_or(jnp.bitwise_and(vbits, val_mask), col_rev)

    def finish(feats, row0, rows):
        sparse = _topk_keep(feats, pack_keys(feats), k)
        sparse_ref[pl.ds(row0, rows), :] = sparse.astype(sparse_ref.dtype)
        recon_ref[pl.ds(row0, rows), :] = jnp.dot(
            sparse.astype(wd_ref.dtype), wd_ref[...],
            preferred_element_type=jnp.float32).astype(recon_ref.dtype)

    if split:
        half = tb // 2
        # Issue both encoder matmuls up front: sub-tile 1's MXU pushes have no
        # data dependence on sub-tile 0's top-k, so the scheduler can overlap
        # them with the VPU/XLU top-k filler.
        feats0 = encode(x_ref[pl.ds(0, half), :])
        feats1 = encode(x_ref[pl.ds(half, half), :])
        finish(feats0, 0, half)
        finish(feats1, half, half)
    else:
        finish(encode(x_ref[...]), 0, tb)


def _vmem_cap_bytes():
    """Per-core VMEM capacity with ~25% headroom for Mosaic scratch/spills."""
    try:
        cap = int(pltpu.get_tpu_info().vmem_capacity_bytes)
    except Exception:
        cap = 64 * 2 ** 20          # conservative default: v7x has 64 MiB / TC
    return max(16 * 2 ** 20, (cap * 3) // 4)


def _pick_tile_b(b, requested):
    if requested is None:
        try:
            kind = jax.devices()[0].device_kind.lower()
        except Exception:
            kind = ""
        # v5e's MXU M-dim is 128; v6e/v7x want 256 to fill the 256-wide MXU.
        requested = 128 if "v5" in kind else 256
    tb = min(int(requested), _round_up(b, 32))
    tb = max(32, _round_up(tb, 32))            # halves stay 16-row (bf16) aligned
    # Prefer >= 2 grid steps so pipelining / megacore sharding (v7x: 2 TCs on
    # the "parallel" batch axis) have work to balance.
    while tb > 32 and _round_up(b, tb) // tb < 2:
        tb = _round_up(tb // 2, 32)
    return tb


def topk_sae_forward(x, w_enc, b_enc, w_dec, k, *, tile_b=None,
                     sparse_dtype=jnp.float32):
    """x: (B, D); w_enc: (D, H); b_enc: (H,) or (1, H); w_dec: (H, D).

    Returns (sparse_features (B, H) sparse_dtype, reconstruction (B, D) f32).
    """
    x = jnp.asarray(x, jnp.float32)
    w_enc = jnp.asarray(w_enc, jnp.float32)
    b_enc = jnp.asarray(b_enc, jnp.float32).reshape(1, -1)
    w_dec = jnp.asarray(w_dec, jnp.float32)

    b, d = x.shape
    h = w_enc.shape[1]
    assert w_enc.shape == (d, h) and b_enc.shape[1] == h and w_dec.shape == (h, d)
    assert 1 <= k <= h

    lane = 128
    dp, hp = _round_up(d, lane), _round_up(h, lane)
    tile_b = _pick_tile_b(b, tile_b)
    bp = _round_up(b, tile_b)
    idx_bits = max(1, (hp - 1).bit_length())   # low key bits carrying the column

    # Zero padding is semantics-preserving: padded hidden units are exactly 0
    # after ReLU (selecting one stores 0, same as torch.topk picking a zero),
    # and padded decoder rows/columns contribute 0 to the reconstruction.
    xp = jnp.pad(x, ((0, bp - b), (0, dp - d))).astype(jnp.bfloat16)
    wep = jnp.pad(w_enc, ((0, dp - d), (0, hp - h))).astype(jnp.bfloat16)
    bep = jnp.pad(b_enc, ((0, 0), (0, hp - h)))            # bias stays f32
    wdp = jnp.pad(w_dec, ((0, hp - h), (0, dp - d))).astype(jnp.bfloat16)

    grid = (bp // tile_b,)
    split = tile_b >= 64
    sparse_bytes = jnp.dtype(sparse_dtype).itemsize
    kernel = functools.partial(_sae_kernel, k, idx_bits, split)
    vmem_cap = _vmem_cap_bytes()

    def call(single_buffer_weights):
        wbuf = 1 if single_buffer_weights else 2
        weight_bytes = wbuf * (2 * dp * hp * 2 + hp * 4)           # bf16 W's + f32 bias
        block_bytes = 2 * (tile_b * dp * 2 + tile_b * hp * sparse_bytes
                           + tile_b * dp * 4)                       # pipelined tiles
        scratch_bytes = 4 * tile_b * hp * 4                         # feats/keys/sparse
        vmem_limit = int(min(vmem_cap,
                             max(weight_bytes + block_bytes + scratch_bytes
                                 + (8 << 20), 32 << 20)))

        def wspec(shape):
            if single_buffer_weights:
                # Constant index_map => double-buffering the resident weights is
                # pure VMEM waste (matters most on v7x with 64 MiB per core).
                return pl.BlockSpec(shape, lambda i: (0,) * len(shape),
                                    pipeline_mode=pl.Buffered(1))
            return pl.BlockSpec(shape, lambda i: (0,) * len(shape))

        return pl.pallas_call(
            kernel,
            out_shape=(
                jax.ShapeDtypeStruct((bp, hp), sparse_dtype),       # sparse feats
                jax.ShapeDtypeStruct((bp, dp), jnp.float32),        # reconstruction
            ),
            grid=grid,
            in_specs=[
                pl.BlockSpec((tile_b, dp), lambda i: (i, 0)),       # x (pipelined)
                wspec((dp, hp)),                                    # W_enc (resident)
                wspec((1, hp)),                                     # b_enc (resident)
                wspec((hp, dp)),                                    # W_dec (resident)
            ],
            out_specs=(
                pl.BlockSpec((tile_b, hp), lambda i: (i, 0)),
                pl.BlockSpec((tile_b, dp), lambda i: (i, 0)),
            ),
            compiler_params=pltpu.CompilerParams(
                dimension_semantics=("parallel",),
                vmem_limit_bytes=vmem_limit),
        )(xp, wep, bep, wdp)

    # TODO(synk): for SAE-scale hidden dims (2*D*H bf16 weights exceeding
    # per-core VMEM, hit first on v7x) add an H-streaming grid axis with a
    # running (TILE_B, k) top-k scratch and a K-reduction decoder instead of
    # keeping the full weights VMEM-resident.
    try:
        sparse_p, recon_p = call(single_buffer_weights=True)
    except Exception:
        # Fallback if pl.Buffered(1) single-buffering is not supported by the
        # installed JAX / Mosaic version.
        sparse_p, recon_p = call(single_buffer_weights=False)

    return sparse_p[:b, :h], recon_p[:b, :d]


if __name__ == "__main__":
    # Small, lane-aligned example consistent with the module's __init__.
    batch, input_dim, hidden_dim, k = 256, 128, 512, 4

    key = jax.random.PRNGKey(0)
    kx, kw1, kb1, kw2 = jax.random.split(key, 4)

    x = jax.random.normal(kx, (batch, input_dim), dtype=jnp.float32)
    # Deterministic synthetic "Linear" parameters.
    w_enc = jax.random.normal(kw1, (input_dim, hidden_dim), jnp.float32) * 0.05
    b_enc = jax.random.normal(kb1, (1, hidden_dim), jnp.float32) * 0.05
    w_dec = jax.random.normal(kw2, (hidden_dim, input_dim), jnp.float32) * 0.05

    sparse_features, reconstruction = topk_sae_forward(x, w_enc, b_enc, w_dec, k)
    jax.block_until_ready((sparse_features, reconstruction))

    assert sparse_features.shape == (batch, hidden_dim)
    assert reconstruction.shape == (batch, input_dim)
    # Each row keeps at most k nonzero features (exactly k selections; selected
    # zeros do not count as nonzero, same as torch.topk + scatter of zeros).
    assert int(jnp.max(jnp.sum(sparse_features != 0, axis=1))) <= k

    # ---- numerical sanity checks (same bf16-input / f32-accum precision) ----
    xb, web, wdb = (a.astype(jnp.bfloat16) for a in (x, w_enc, w_dec))
    feats_ref = jnp.maximum(
        jnp.dot(xb, web, preferred_element_type=jnp.float32) + b_enc, 0.0)
    kth = jax.lax.top_k(feats_ref, k)[0][:, -1:]             # per-row k-th largest

    sel_mask = sparse_features != 0
    # Kept values equal the encoder features at those positions.
    assert bool(jnp.all(jnp.abs(jnp.where(sel_mask,
                                          sparse_features - feats_ref,
                                          0.0)) <= 1e-2))
    # Every kept value is at least the k-th largest (tolerance for tie/boundary).
    assert bool(jnp.all(jnp.where(sel_mask, feats_ref, jnp.inf) >= kth - 1e-3))
    # Nothing clearly above the k-th largest was dropped.
    assert bool(jnp.all(jnp.where(~sel_mask, feats_ref, -jnp.inf) <= kth + 1e-3))
    # Decoder consistency: reconstruction == sparse_features @ W_dec (bf16 path).
    recon_check = jnp.dot(sparse_features.astype(jnp.bfloat16), wdb,
                          preferred_element_type=jnp.float32)
    assert bool(jnp.allclose(reconstruction, recon_check, atol=1e-2, rtol=1e-2))

    print("KERNEL_OK")
</pallas_src>

<mosaic_0001>
module attributes {stable_mosaic.version = 11 : i64} {
  func.func @_sae_kernel(%arg0: i32, %arg1: memref<128x128xbf16, #tpu.memory_space<vmem>>, %arg2: memref<128x512xbf16, #tpu.memory_space<vmem>>, %arg3: memref<1x512xf32, #tpu.memory_space<vmem>>, %arg4: memref<512x128xbf16, #tpu.memory_space<vmem>>, %arg5: memref<128x512xf32, #tpu.memory_space<vmem>>, %arg6: memref<128x128xf32, #tpu.memory_space<vmem>>) attributes {dimension_semantics = [#tpu.dimension_semantics<parallel>], iteration_bounds = array<i64: 2>, scalar_prefetch = 0 : i64, scratch_operands = 0 : i64, tpu.core_type = #tpu.core_type<tc>, window_params = [{transform_indices = @transform_0, window_bounds = array<i64: 128, 128>}, {pipeline_mode = #tpu.pipeline_mode<synchronous>, transform_indices = @transform_1, window_bounds = array<i64: 128, 512>}, {pipeline_mode = #tpu.pipeline_mode<synchronous>, transform_indices = @transform_2, window_bounds = array<i64: 1, 512>}, {pipeline_mode = #tpu.pipeline_mode<synchronous>, transform_indices = @transform_3, window_bounds = array<i64: 512, 128>}, {transform_indices = @transform_4, window_bounds = array<i64: 128, 512>}, {transform_indices = @transform_5, window_bounds = array<i64: 128, 128>}]} {
    %0 = tpu.iota {dimensions = array<i32: 1>} : vector<1x512xi32>
    %c511_i32 = arith.constant 511 : i32
    %1 = vector.broadcast %c511_i32 : i32 to vector<1x512xi32>
    %2 = arith.subi %1, %0 : vector<1x512xi32>
    %c0 = arith.constant 0 : index
    %c0_0 = arith.constant 0 : index
    %3 = vector.load %arg1[%c0, %c0_0] : memref<128x128xbf16, #tpu.memory_space<vmem>>, vector<64x128xbf16>
    %c0_1 = arith.constant 0 : index
    %c0_2 = arith.constant 0 : index
    %4 = vector.load %arg2[%c0_1, %c0_2] : memref<128x512xbf16, #tpu.memory_space<vmem>>, vector<128x512xbf16>
    %cst = arith.constant dense<0.000000e+00> : vector<64x512xf32>
    %5 = tpu.matmul %3, %4, %cst {dimension_numbers = #tpu.dot_dimension_numbers<[1], [0], [0], [1], [0, 0, 1, 1], [], []>} : vector<64x128xbf16>, vector<128x512xbf16>, vector<64x512xf32> -> vector<64x512xf32>
    %c0_3 = arith.constant 0 : index
    %c0_4 = arith.constant 0 : index
    %6 = vector.load %arg3[%c0_3, %c0_4] : memref<1x512xf32, #tpu.memory_space<vmem>>, vector<1x512xf32>
    %7 = vector.broadcast %6 : vector<1x512xf32> to vector<64x512xf32>
    %8 = arith.addf %5, %7 : vector<64x512xf32>
    %cst_5 = arith.constant 0.000000e+00 : f32
    %9 = vector.broadcast %cst_5 : f32 to vector<64x512xf32>
    %10 = arith.maximumf %8, %9 : vector<64x512xf32>
    %c64 = arith.constant 64 : index
    %c0_6 = arith.constant 0 : index
    %11 = vector.load %arg1[%c64, %c0_6] : memref<128x128xbf16, #tpu.memory_space<vmem>>, vector<64x128xbf16>
    %c0_7 = arith.constant 0 : index
    %c0_8 = arith.constant 0 : index
    %12 = vector.load %arg2[%c0_7, %c0_8] : memref<128x512xbf16, #tpu.memory_space<vmem>>, vector<128x512xbf16>
    %cst_9 = arith.constant dense<0.000000e+00> : vector<64x512xf32>
    %13 = tpu.matmul %11, %12, %cst_9 {dimension_numbers = #tpu.dot_dimension_numbers<[1], [0], [0], [1], [0, 0, 1, 1], [], []>} : vector<64x128xbf16>, vector<128x512xbf16>, vector<64x512xf32> -> vector<64x512xf32>
    %c0_10 = arith.constant 0 : index
    %c0_11 = arith.constant 0 : index
    %14 = vector.load %arg3[%c0_10, %c0_11] : memref<1x512xf32, #tpu.memory_space<vmem>>, vector<1x512xf32>
    %15 = vector.broadcast %14 : vector<1x512xf32> to vector<64x512xf32>
    %16 = arith.addf %13, %15 : vector<64x512xf32>
    %cst_12 = arith.constant 0.000000e+00 : f32
    %17 = vector.broadcast %cst_12 : f32 to vector<64x512xf32>
    %18 = arith.maximumf %16, %17 : vector<64x512xf32>
    %19 = tpu.bitcast %10 : vector<64x512xf32> -> vector<64x512xi32>
    %c0_i32 = arith.constant 0 : i32
    %20 = vector.broadcast %c0_i32 : i32 to vector<64x512xi32>
    %21 = arith.maxsi %19, %20 : vector<64x512xi32>
    %c-512_i32 = arith.constant -512 : i32
    %22 = vector.broadcast %c-512_i32 : i32 to vector<64x512xi32>
    %23 = arith.andi %21, %22 : vector<64x512xi32>
    %24 = vector.broadcast %2 : vector<1x512xi32> to vector<64x512xi32>
    %25 = arith.ori %23, %24 : vector<64x512xi32>
    %cst_13 = arith.constant dense<-2147483648> : vector<64xi32>
    %26 = vector.multi_reduction <maxsi>, %25, %cst_13 [1] : vector<64x512xi32> to vector<64xi32>
    %27 = vector.shape_cast %26 : vector<64xi32> to vector<64x1xi32>
    %28 = vector.broadcast %27 : vector<64x1xi32> to vector<64x512xi32>
    %29 = arith.cmpi eq, %25, %28 : vector<64x512xi32>
    %c-1_i32 = arith.constant -1 : i32
    %30 = vector.broadcast %c-1_i32 : i32 to vector<64x512xi32>
    %31 = arith.select %29, %30, %25 : vector<64x512xi1>, vector<64x512xi32>
    %cst_14 = arith.constant dense<-2147483648> : vector<64xi32>
    %32 = vector.multi_reduction <maxsi>, %31, %cst_14 [1] : vector<64x512xi32> to vector<64xi32>
    %33 = vector.shape_cast %32 : vector<64xi32> to vector<64x1xi32>
    %34 = vector.broadcast %33 : vector<64x1xi32> to vector<64x512xi32>
    %35 = arith.cmpi eq, %31, %34 : vector<64x512xi32>
    %c-1_i32_15 = arith.constant -1 : i32
    %36 = vector.broadcast %c-1_i32_15 : i32 to vector<64x512xi32>
    %37 = arith.select %35, %36, %31 : vector<64x512xi1>, vector<64x512xi32>
    %cst_16 = arith.constant dense<-2147483648> : vector<64xi32>
    %38 = vector.multi_reduction <maxsi>, %37, %cst_16 [1] : vector<64x512xi32> to vector<64xi32>
    %39 = vector.shape_cast %38 : vector<64xi32> to vector<64x1xi32>
    %40 = vector.broadcast %39 : vector<64x1xi32> to vector<64x512xi32>
    %41 = arith.cmpi eq, %37, %40 : vector<64x512xi32>
    %c-1_i32_17 = arith.constant -1 : i32
    %42 = vector.broadcast %c-1_i32_17 : i32 to vector<64x512xi32>
    %43 = arith.select %41, %42, %37 : vector<64x512xi1>, vector<64x512xi32>
    %cst_18 = arith.constant dense<-2147483648> : vector<64xi32>
    %44 = vector.multi_reduction <maxsi>, %43, %cst_18 [1] : vector<64x512xi32> to vector<64xi32>
    %45 = vector.shape_cast %44 : vector<64xi32> to vector<64x1xi32>
    %46 = vector.broadcast %45 : vector<64x1xi32> to vector<64x512xi32>
    %47 = arith.cmpi eq, %43, %46 : vector<64x512xi32>
    %c-1_i32_19 = arith.constant -1 : i32
    %48 = vector.broadcast %c-1_i32_19 : i32 to vector<64x512xi32>
    %49 = arith.select %47, %48, %43 : vector<64x512xi1>, vector<64x512xi32>
    %c0_i32_20 = arith.constant 0 : i32
    %50 = vector.broadcast %c0_i32_20 : i32 to vector<64x512xi32>
    %51 = arith.cmpi slt, %49, %50 : vector<64x512xi32>
    %cst_21 = arith.constant 0.000000e+00 : f32
    %52 = vector.broadcast %cst_21 : f32 to vector<64x512xf32>
    %53 = arith.select %51, %10, %52 : vector<64x512xi1>, vector<64x512xf32>
    %c0_22 = arith.constant 0 : index
    %c0_23 = arith.constant 0 : index
    %54 = vector.load %arg5[%c0_22, %c0_23] : memref<128x512xf32, #tpu.memory_space<vmem>>, vector<64x512xf32>
    tpu.vector_store %arg5[%c0_22, %c0_23], %53 {strides = array<i32>} : memref<128x512xf32, #tpu.memory_space<vmem>>, vector<64x512xf32>,
    %55 = arith.truncf %53 : vector<64x512xf32> to vector<64x512xbf16>
    %c0_24 = arith.constant 0 : index
    %c0_25 = arith.constant 0 : index
    %56 = vector.load %arg4[%c0_24, %c0_25] : memref<512x128xbf16, #tpu.memory_space<vmem>>, vector<512x128xbf16>
    %cst_26 = arith.constant dense<0.000000e+00> : vector<64x128xf32>
    %57 = tpu.matmul %55, %56, %cst_26 {dimension_numbers = #tpu.dot_dimension_numbers<[1], [0], [0], [1], [0, 0, 1, 1], [], []>} : vector<64x512xbf16>, vector<512x128xbf16>, vector<64x128xf32> -> vector<64x128xf32>
    %c0_27 = arith.constant 0 : index
    %c0_28 = arith.constant 0 : index
    %58 = vector.load %arg6[%c0_27, %c0_28] : memref<128x128xf32, #tpu.memory_space<vmem>>, vector<64x128xf32>
    tpu.vector_store %arg6[%c0_27, %c0_28], %57 {strides = array<i32>} : memref<128x128xf32, #tpu.memory_space<vmem>>, vector<64x128xf32>,
    %59 = tpu.bitcast %18 : vector<64x512xf32> -> vector<64x512xi32>
    %c0_i32_29 = arith.constant 0 : i32
    %60 = vector.broadcast %c0_i32_29 : i32 to vector<64x512xi32>
    %61 = arith.maxsi %59, %60 : vector<64x512xi32>
    %c-512_i32_30 = arith.constant -512 : i32
    %62 = vector.broadcast %c-512_i32_30 : i32 to vector<64x512xi32>
    %63 = arith.andi %61, %62 : vector<64x512xi32>
    %64 = vector.broadcast %2 : vector<1x512xi32> to vector<64x512xi32>
    %65 = arith.ori %63, %64 : vector<64x512xi32>
    %cst_31 = arith.constant dense<-2147483648> : vector<64xi32>
    %66 = vector.multi_reduction <maxsi>, %65, %cst_31 [1] : vector<64x512xi32> to vector<64xi32>
    %67 = vector.shape_cast %66 : vector<64xi32> to vector<64x1xi32>
    %68 = vector.broadcast %67 : vector<64x1xi32> to vector<64x512xi32>
    %69 = arith.cmpi eq, %65, %68 : vector<64x512xi32>
    %c-1_i32_32 = arith.constant -1 : i32
    %70 = vector.broadcast %c-1_i32_32 : i32 to vector<64x512xi32>
    %71 = arith.select %69, %70, %65 : vector<64x512xi1>, vector<64x512xi32>
    %cst_33 = arith.constant dense<-2147483648> : vector<64xi32>
    %72 = vector.multi_reduction <maxsi>, %71, %cst_33 [1] : vector<64x512xi32> to vector<64xi32>
    %73 = vector.shape_cast %72 : vector<64xi32> to vector<64x1xi32>
    %74 = vector.broadcast %73 : vector<64x1xi32> to vector<64x512xi32>
    %75 = arith.cmpi eq, %71, %74 : vector<64x512xi32>
    %c-1_i32_34 = arith.constant -1 : i32
    %76 = vector.broadcast %c-1_i32_34 : i32 to vector<64x512xi32>
    %77 = arith.select %75, %76, %71 : vector<64x512xi1>, vector<64x512xi32>
    %cst_35 = arith.constant dense<-2147483648> : vector<64xi32>
    %78 = vector.multi_reduction <maxsi>, %77, %cst_35 [1] : vector<64x512xi32> to vector<64xi32>
    %79 = vector.shape_cast %78 : vector<64xi32> to vector<64x1xi32>
    %80 = vector.broadcast %79 : vector<64x1xi32> to vector<64x512xi32>
    %81 = arith.cmpi eq, %77, %80 : vector<64x512xi32>
    %c-1_i32_36 = arith.constant -1 : i32
    %82 = vector.broadcast %c-1_i32_36 : i32 to vector<64x512xi32>
    %83 = arith.select %81, %82, %77 : vector<64x512xi1>, vector<64x512xi32>
    %cst_37 = arith.constant dense<-2147483648> : vector<64xi32>
    %84 = vector.multi_reduction <maxsi>, %83, %cst_37 [1] : vector<64x512xi32> to vector<64xi32>
    %85 = vector.shape_cast %84 : vector<64xi32> to vector<64x1xi32>
    %86 = vector.broadcast %85 : vector<64x1xi32> to vector<64x512xi32>
    %87 = arith.cmpi eq, %83, %86 : vector<64x512xi32>
    %c-1_i32_38 = arith.constant -1 : i32
    %88 = vector.broadcast %c-1_i32_38 : i32 to vector<64x512xi32>
    %89 = arith.select %87, %88, %83 : vector<64x512xi1>, vector<64x512xi32>
    %c0_i32_39 = arith.constant 0 : i32
    %90 = vector.broadcast %c0_i32_39 : i32 to vector<64x512xi32>
    %91 = arith.cmpi slt, %89, %90 : vector<64x512xi32>
    %cst_40 = arith.constant 0.000000e+00 : f32
    %92 = vector.broadcast %cst_40 : f32 to vector<64x512xf32>
    %93 = arith.select %91, %18, %92 : vector<64x512xi1>, vector<64x512xf32>
    %c64_41 = arith.constant 64 : index
    %c0_42 = arith.constant 0 : index
    %94 = vector.load %arg5[%c64_41, %c0_42] : memref<128x512xf32, #tpu.memory_space<vmem>>, vector<64x512xf32>
    tpu.vector_store %arg5[%c64_41, %c0_42], %93 {strides = array<i32>} : memref<128x512xf32, #tpu.memory_space<vmem>>, vector<64x512xf32>,
    %95 = arith.truncf %93 : vector<64x512xf32> to vector<64x512xbf16>
    %c0_43 = arith.constant 0 : index
    %c0_44 = arith.constant 0 : index
    %96 = vector.load %arg4[%c0_43, %c0_44] : memref<512x128xbf16, #tpu.memory_space<vmem>>, vector<512x128xbf16>
    %cst_45 = arith.constant dense<0.000000e+00> : vector<64x128xf32>
    %97 = tpu.matmul %95, %96, %cst_45 {dimension_numbers = #tpu.dot_dimension_numbers<[1], [0], [0], [1], [0, 0, 1, 1], [], []>} : vector<64x512xbf16>, vector<512x128xbf16>, vector<64x128xf32> -> vector<64x128xf32>
    %c64_46 = arith.constant 64 : index
    %c0_47 = arith.constant 0 : index
    %98 = vector.load %arg6[%c64_46, %c0_47] : memref<128x128xf32, #tpu.memory_space<vmem>>, vector<64x128xf32>
    tpu.vector_store %arg6[%c64_46, %c0_47], %97 {strides = array<i32>} : memref<128x128xf32, #tpu.memory_space<vmem>>, vector<64x128xf32>,
    return
  }
  func.func @transform_0(%arg0: i32) -> (i32, i32) {
    %c0_i32 = arith.constant 0 : i32
    %c0_i32_0 = arith.constant 0 : i32
    return %arg0, %c0_i32 : i32, i32
  }
  func.func @transform_1(%arg0: i32) -> (i32, i32) {
    %c0_i32 = arith.constant 0 : i32
    %c0_i32_0 = arith.constant 0 : i32
    %c0_i32_1 = arith.constant 0 : i32
    return %c0_i32, %c0_i32_0 : i32, i32
  }
  func.func @transform_2(%arg0: i32) -> (i32, i32) {
    %c0_i32 = arith.constant 0 : i32
    %c0_i32_0 = arith.constant 0 : i32
    %c0_i32_1 = arith.constant 0 : i32
    return %c0_i32, %c0_i32_0 : i32, i32
  }
  func.func @transform_3(%arg0: i32) -> (i32, i32) {
    %c0_i32 = arith.constant 0 : i32
    %c0_i32_0 = arith.constant 0 : i32
    %c0_i32_1 = arith.constant 0 : i32
    return %c0_i32, %c0_i32_0 : i32, i32
  }
  func.func @transform_4(%arg0: i32) -> (i32, i32) {
    %c0_i32 = arith.constant 0 : i32
    %c0_i32_0 = arith.constant 0 : i32
    return %arg0, %c0_i32 : i32, i32
  }
  func.func @transform_5(%arg0: i32) -> (i32, i32) {
    %c0_i32 = arith.constant 0 : i32
    %c0_i32_0 = arith.constant 0 : i32
    return %arg0, %c0_i32 : i32, i32
  }
}

module attributes {stable_mosaic.version = 11 : i64} {
  func.func @_sae_kernel(%arg0: i32, %arg1: memref<128x128xbf16, #tpu.memory_space<vmem>>, %arg2: memref<128x512xbf16, #tpu.memory_space<vmem>>, %arg3: memref<1x512xf32, #tpu.memory_space<vmem>>, %arg4: memref<512x128xbf16, #tpu.memory_space<vmem>>, %arg5: memref<128x512xf32, #tpu.memory_space<vmem>>, %arg6: memref<128x128xf32, #tpu.memory_space<vmem>>) attributes {dimension_semantics = [#tpu.dimension_semantics<parallel>], iteration_bounds = array<i64: 2>, scalar_prefetch = 0 : i64, scratch_operands = 0 : i64, tpu.core_type = #tpu.core_type<tc>, window_params = [{transform_indices = @transform_0, window_bounds = array<i64: 128, 128>}, {pipeline_mode = #tpu.pipeline_mode<synchronous>, transform_indices = @transform_1, window_bounds = array<i64: 128, 512>}, {pipeline_mode = #tpu.pipeline_mode<synchronous>, transform_indices = @transform_2, window_bounds = array<i64: 1, 512>}, {pipeline_mode = #tpu.pipeline_mode<synchronous>, transform_indices = @transform_3, window_bounds = array<i64: 512, 128>}, {transform_indices = @transform_4, window_bounds = array<i64: 128, 512>}, {transform_indices = @transform_5, window_bounds = array<i64: 128, 128>}]} {
    %0 = tpu.iota {dimensions = array<i32: 1>} : vector<1x512xi32>
    %c511_i32 = arith.constant 511 : i32
    %1 = vector.broadcast %c511_i32 : i32 to vector<1x512xi32>
    %2 = arith.subi %1, %0 : vector<1x512xi32>
    %c0 = arith.constant 0 : index
    %c0_0 = arith.constant 0 : index
    %3 = vector.load %arg1[%c0, %c0_0] : memref<128x128xbf16, #tpu.memory_space<vmem>>, vector<64x128xbf16>
    %c0_1 = arith.constant 0 : index
    %c0_2 = arith.constant 0 : index
    %4 = vector.load %arg2[%c0_1, %c0_2] : memref<128x512xbf16, #tpu.memory_space<vmem>>, vector<128x512xbf16>
    %cst = arith.constant dense<0.000000e+00> : vector<64x512xf32>
    %5 = tpu.matmul %3, %4, %cst {dimension_numbers = #tpu.dot_dimension_numbers<[1], [0], [0], [1], [0, 0, 1, 1], [], []>} : vector<64x128xbf16>, vector<128x512xbf16>, vector<64x512xf32> -> vector<64x512xf32>
    %c0_3 = arith.constant 0 : index
    %c0_4 = arith.constant 0 : index
    %6 = vector.load %arg3[%c0_3, %c0_4] : memref<1x512xf32, #tpu.memory_space<vmem>>, vector<1x512xf32>
    %7 = vector.broadcast %6 : vector<1x512xf32> to vector<64x512xf32>
    %8 = arith.addf %5, %7 : vector<64x512xf32>
    %cst_5 = arith.constant 0.000000e+00 : f32
    %9 = vector.broadcast %cst_5 : f32 to vector<64x512xf32>
    %10 = arith.maximumf %8, %9 : vector<64x512xf32>
    %c64 = arith.constant 64 : index
    %c0_6 = arith.constant 0 : index
    %11 = vector.load %arg1[%c64, %c0_6] : memref<128x128xbf16, #tpu.memory_space<vmem>>, vector<64x128xbf16>
    %c0_7 = arith.constant 0 : index
    %c0_8 = arith.constant 0 : index
    %12 = vector.load %arg2[%c0_7, %c0_8] : memref<128x512xbf16, #tpu.memory_space<vmem>>, vector<128x512xbf16>
    %cst_9 = arith.constant dense<0.000000e+00> : vector<64x512xf32>
    %13 = tpu.matmul %11, %12, %cst_9 {dimension_numbers = #tpu.dot_dimension_numbers<[1], [0], [0], [1], [0, 0, 1, 1], [], []>} : vector<64x128xbf16>, vector<128x512xbf16>, vector<64x512xf32> -> vector<64x512xf32>
    %c0_10 = arith.constant 0 : index
    %c0_11 = arith.constant 0 : index
    %14 = vector.load %arg3[%c0_10, %c0_11] : memref<1x512xf32, #tpu.memory_space<vmem>>, vector<1x512xf32>
    %15 = vector.broadcast %14 : vector<1x512xf32> to vector<64x512xf32>
    %16 = arith.addf %13, %15 : vector<64x512xf32>
    %cst_12 = arith.constant 0.000000e+00 : f32
    %17 = vector.broadcast %cst_12 : f32 to vector<64x512xf32>
    %18 = arith.maximumf %16, %17 : vector<64x512xf32>
    %19 = tpu.bitcast %10 : vector<64x512xf32> -> vector<64x512xi32>
    %c0_i32 = arith.constant 0 : i32
    %20 = vector.broadcast %c0_i32 : i32 to vector<64x512xi32>
    %21 = arith.maxsi %19, %20 : vector<64x512xi32>
    %c-512_i32 = arith.constant -512 : i32
    %22 = vector.broadcast %c-512_i32 : i32 to vector<64x512xi32>
    %23 = arith.andi %21, %22 : vector<64x512xi32>
    %24 = vector.broadcast %2 : vector<1x512xi32> to vector<64x512xi32>
    %25 = arith.ori %23, %24 : vector<64x512xi32>
    %cst_13 = arith.constant dense<-2147483648> : vector<64xi32>
    %26 = vector.multi_reduction <maxsi>, %25, %cst_13 [1] : vector<64x512xi32> to vector<64xi32>
    %27 = vector.shape_cast %26 : vector<64xi32> to vector<64x1xi32>
    %28 = vector.broadcast %27 : vector<64x1xi32> to vector<64x512xi32>
    %29 = arith.cmpi eq, %25, %28 : vector<64x512xi32>
    %c-1_i32 = arith.constant -1 : i32
    %30 = vector.broadcast %c-1_i32 : i32 to vector<64x512xi32>
    %31 = arith.select %29, %30, %25 : vector<64x512xi1>, vector<64x512xi32>
    %cst_14 = arith.constant dense<-2147483648> : vector<64xi32>
    %32 = vector.multi_reduction <maxsi>, %31, %cst_14 [1] : vector<64x512xi32> to vector<64xi32>
    %33 = vector.shape_cast %32 : vector<64xi32> to vector<64x1xi32>
    %34 = vector.broadcast %33 : vector<64x1xi32> to vector<64x512xi32>
    %35 = arith.cmpi eq, %31, %34 : vector<64x512xi32>
    %c-1_i32_15 = arith.constant -1 : i32
    %36 = vector.broadcast %c-1_i32_15 : i32 to vector<64x512xi32>
    %37 = arith.select %35, %36, %31 : vector<64x512xi1>, vector<64x512xi32>
    %cst_16 = arith.constant dense<-2147483648> : vector<64xi32>
    %38 = vector.multi_reduction <maxsi>, %37, %cst_16 [1] : vector<64x512xi32> to vector<64xi32>
    %39 = vector.shape_cast %38 : vector<64xi32> to vector<64x1xi32>
    %40 = vector.broadcast %39 : vector<64x1xi32> to vector<64x512xi32>
    %41 = arith.cmpi eq, %37, %40 : vector<64x512xi32>
    %c-1_i32_17 = arith.constant -1 : i32
    %42 = vector.broadcast %c-1_i32_17 : i32 to vector<64x512xi32>
    %43 = arith.select %41, %42, %37 : vector<64x512xi1>, vector<64x512xi32>
    %cst_18 = arith.constant dense<-2147483648> : vector<64xi32>
    %44 = vector.multi_reduction <maxsi>, %43, %cst_18 [1] : vector<64x512xi32> to vector<64xi32>
    %45 = vector.shape_cast %44 : vector<64xi32> to vector<64x1xi32>
    %46 = vector.broadcast %45 : vector<64x1xi32> to vector<64x512xi32>
    %47 = arith.cmpi eq, %43, %46 : vector<64x512xi32>
    %c-1_i32_19 = arith.constant -1 : i32
    %48 = vector.broadcast %c-1_i32_19 : i32 to vector<64x512xi32>
    %49 = arith.select %47, %48, %43 : vector<64x512xi1>, vector<64x512xi32>
    %c0_i32_20 = arith.constant 0 : i32
    %50 = vector.broadcast %c0_i32_20 : i32 to vector<64x512xi32>
    %51 = arith.cmpi slt, %49, %50 : vector<64x512xi32>
    %cst_21 = arith.constant 0.000000e+00 : f32
    %52 = vector.broadcast %cst_21 : f32 to vector<64x512xf32>
    %53 = arith.select %51, %10, %52 : vector<64x512xi1>, vector<64x512xf32>
    %c0_22 = arith.constant 0 : index
    %c0_23 = arith.constant 0 : index
    %54 = vector.load %arg5[%c0_22, %c0_23] : memref<128x512xf32, #tpu.memory_space<vmem>>, vector<64x512xf32>
    tpu.vector_store %arg5[%c0_22, %c0_23], %53 {strides = array<i32>} : memref<128x512xf32, #tpu.memory_space<vmem>>, vector<64x512xf32>,
    %55 = arith.truncf %53 : vector<64x512xf32> to vector<64x512xbf16>
    %c0_24 = arith.constant 0 : index
    %c0_25 = arith.constant 0 : index
    %56 = vector.load %arg4[%c0_24, %c0_25] : memref<512x128xbf16, #tpu.memory_space<vmem>>, vector<512x128xbf16>
    %cst_26 = arith.constant dense<0.000000e+00> : vector<64x128xf32>
    %57 = tpu.matmul %55, %56, %cst_26 {dimension_numbers = #tpu.dot_dimension_numbers<[1], [0], [0], [1], [0, 0, 1, 1], [], []>} : vector<64x512xbf16>, vector<512x128xbf16>, vector<64x128xf32> -> vector<64x128xf32>
    %c0_27 = arith.constant 0 : index
    %c0_28 = arith.constant 0 : index
    %58 = vector.load %arg6[%c0_27, %c0_28] : memref<128x128xf32, #tpu.memory_space<vmem>>, vector<64x128xf32>
    tpu.vector_store %arg6[%c0_27, %c0_28], %57 {strides = array<i32>} : memref<128x128xf32, #tpu.memory_space<vmem>>, vector<64x128xf32>,
    %59 = tpu.bitcast %18 : vector<64x512xf32> -> vector<64x512xi32>
    %c0_i32_29 = arith.constant 0 : i32
    %60 = vector.broadcast %c0_i32_29 : i32 to vector<64x512xi32>
    %61 = arith.maxsi %59, %60 : vector<64x512xi32>
    %c-512_i32_30 = arith.constant -512 : i32
    %62 = vector.broadcast %c-512_i32_30 : i32 to vector<64x512xi32>
    %63 = arith.andi %61, %62 : vector<64x512xi32>
    %64 = vector.broadcast %2 : vector<1x512xi32> to vector<64x512xi32>
    %65 = arith.ori %63, %64 : vector<64x512xi32>
    %cst_31 = arith.constant dense<-2147483648> : vector<64xi32>
    %66 = vector.multi_reduction <maxsi>, %65, %cst_31 [1] : vector<64x512xi32> to vector<64xi32>
    %67 = vector.shape_cast %66 : vector<64xi32> to vector<64x1xi32>
    %68 = vector.broadcast %67 : vector<64x1xi32> to vector<64x512xi32>
    %69 = arith.cmpi eq, %65, %68 : vector<64x512xi32>
    %c-1_i32_32 = arith.constant -1 : i32
    %70 = vector.broadcast %c-1_i32_32 : i32 to vector<64x512xi32>
    %71 = arith.select %69, %70, %65 : vector<64x512xi1>, vector<64x512xi32>
    %cst_33 = arith.constant dense<-2147483648> : vector<64xi32>
    %72 = vector.multi_reduction <maxsi>, %71, %cst_33 [1] : vector<64x512xi32> to vector<64xi32>
    %73 = vector.shape_cast %72 : vector<64xi32> to vector<64x1xi32>
    %74 = vector.broadcast %73 : vector<64x1xi32> to vector<64x512xi32>
    %75 = arith.cmpi eq, %71, %74 : vector<64x512xi32>
    %c-1_i32_34 = arith.constant -1 : i32
    %76 = vector.broadcast %c-1_i32_34 : i32 to vector<64x512xi32>
    %77 = arith.select %75, %76, %71 : vector<64x512xi1>, vector<64x512xi32>
    %cst_35 = arith.constant dense<-2147483648> : vector<64xi32>
    %78 = vector.multi_reduction <maxsi>, %77, %cst_35 [1] : vector<64x512xi32> to vector<64xi32>
    %79 = vector.shape_cast %78 : vector<64xi32> to vector<64x1xi32>
    %80 = vector.broadcast %79 : vector<64x1xi32> to vector<64x512xi32>
    %81 = arith.cmpi eq, %77, %80 : vector<64x512xi32>
    %c-1_i32_36 = arith.constant -1 : i32
    %82 = vector.broadcast %c-1_i32_36 : i32 to vector<64x512xi32>
    %83 = arith.select %81, %82, %77 : vector<64x512xi1>, vector<64x512xi32>
    %cst_37 = arith.constant dense<-2147483648> : vector<64xi32>
    %84 = vector.multi_reduction <maxsi>, %83, %cst_37 [1] : vector<64x512xi32> to vector<64xi32>
    %85 = vector.shape_cast %84 : vector<64xi32> to vector<64x1xi32>
    %86 = vector.broadcast %85 : vector<64x1xi32> to vector<64x512xi32>
    %87 = arith.cmpi eq, %83, %86 : vector<64x512xi32>
    %c-1_i32_38 = arith.constant -1 : i32
    %88 = vector.broadcast %c-1_i32_38 : i32 to vector<64x512xi32>
    %89 = arith.select %87, %88, %83 : vector<64x512xi1>, vector<64x512xi32>
    %c0_i32_39 = arith.constant 0 : i32
    %90 = vector.broadcast %c0_i32_39 : i32 to vector<64x512xi32>
    %91 = arith.cmpi slt, %89, %90 : vector<64x512xi32>
    %cst_40 = arith.constant 0.000000e+00 : f32
    %92 = vector.broadcast %cst_40 : f32 to vector<64x512xf32>
    %93 = arith.select %91, %18, %92 : vector<64x512xi1>, vector<64x512xf32>
    %c64_41 = arith.constant 64 : index
    %c0_42 = arith.constant 0 : index
    %94 = vector.load %arg5[%c64_41, %c0_42] : memref<128x512xf32, #tpu.memory_space<vmem>>, vector<64x512xf32>
    tpu.vector_store %arg5[%c64_41, %c0_42], %93 {strides = array<i32>} : memref<128x512xf32, #tpu.memory_space<vmem>>, vector<64x512xf32>,
    %95 = arith.truncf %93 : vector<64x512xf32> to vector<64x512xbf16>
    %c0_43 = arith.constant 0 : index
    %c0_44 = arith.constant 0 : index
    %96 = vector.load %arg4[%c0_43, %c0_44] : memref<512x128xbf16, #tpu.memory_space<vmem>>, vector<512x128xbf16>
    %cst_45 = arith.constant dense<0.000000e+00> : vector<64x128xf32>
    %97 = tpu.matmul %95, %96, %cst_45 {dimension_numbers = #tpu.dot_dimension_numbers<[1], [0], [0], [1], [0, 0, 1, 1], [], []>} : vector<64x512xbf16>, vector<512x128xbf16>, vector<64x128xf32> -> vector<64x128xf32>
    %c64_46 = arith.constant 64 : index
    %c0_47 = arith.constant 0 : index
    %98 = vector.load %arg6[%c64_46, %c0_47] : memref<128x128xf32, #tpu.memory_space<vmem>>, vector<64x128xf32>
    tpu.vector_store %arg6[%c64_46, %c0_47], %97 {strides = array<i32>} : memref<128x128xf32, #tpu.memory_space<vmem>>, vector<64x128xf32>,
    return
  }
  func.func @transform_0(%arg0: i32) -> (i32, i32) {
    %c0_i32 = arith.constant 0 : i32
    %c0_i32_0 = arith.constant 0 : i32
    return %arg0, %c0_i32 : i32, i32
  }
  func.func @transform_1(%arg0: i32) -> (i32, i32) {
    %c0_i32 = arith.constant 0 : i32
    %c0_i32_0 = arith.constant 0 : i32
    %c0_i32_1 = arith.constant 0 : i32
    return %c0_i32, %c0_i32_0 : i32, i32
  }
  func.func @transform_2(%arg0: i32) -> (i32, i32) {
    %c0_i32 = arith.constant 0 : i32
    %c0_i32_0 = arith.constant 0 : i32
    %c0_i32_1 = arith.constant 0 : i32
    return %c0_i32, %c0_i32_0 : i32, i32
  }
  func.func @transform_3(%arg0: i32) -> (i32, i32) {
    %c0_i32 = arith.constant 0 : i32
    %c0_i32_0 = arith.constant 0 : i32
    %c0_i32_1 = arith.constant 0 : i32
    return %c0_i32, %c0_i32_0 : i32, i32
  }
  func.func @transform_4(%arg0: i32) -> (i32, i32) {
    %c0_i32 = arith.constant 0 : i32
    %c0_i32_0 = arith.constant 0 : i32
    return %arg0, %c0_i32 : i32, i32
  }
  func.func @transform_5(%arg0: i32) -> (i32, i32) {
    %c0_i32 = arith.constant 0 : i32
    %c0_i32_0 = arith.constant 0 : i32
    return %arg0, %c0_i32 : i32, i32
  }
}

</mosaic_0001>

<llo_original>
// kernel: tpu_custom_call.1
$region0: #{tpu_custom_call.1}
  #allocation0 [shape = 'u32[]', space=smem, size = 0x4, offset = 0x4, fixed_abs, tag = 'smem constant byte address 0x4 - core index']
  #allocation1 [shape = 'u32[144,128]{1,0:T(1,128)}', space=vmem, size = 0x12000, scoped, tag = 'internal scratch']
  %s0 = inlined_call_operand.hbm [shape: bf16[256,128], index: 0, kind: input, shape index: {}]
  %s1 = inlined_call_operand.hbm [shape: bf16[128,512], index: 1, kind: input, shape index: {}]
  %s2 = inlined_call_operand.hbm [shape: f32[1,512], index: 2, kind: input, shape index: {}]
  %s3 = inlined_call_operand.hbm [shape: bf16[512,128], index: 3, kind: input, shape index: {}]
  %s4 = inlined_call_operand.hbm [shape: f32[256,512], index: 4, kind: output, shape index: {0}]
  %s5 = inlined_call_operand.hbm [shape: f32[256,128], index: 5, kind: output, shape index: {1}]
  %6 = xla_tuple %s4, %s5
  %s7 = sld [smem:[#allocation0]]
  $region73: #{tpu_custom_call.1} parent=0
    _
  %s9 = ssub.s32 1, %s7
  %s10 = scalar_select 0, %s9, %s7
  $region1: #{tpu_custom_call.1} parent=0
    #allocation2 [shape = 'u8[65536]{0}', space=vmem, size = 0x10000, scoped, tag = 'input window, operand 0']
    #allocation3 [shape = 's32[2]{0}', space=sflag, size = 0x8, scoped, tag = 'scoped memory for tpu_custom_call.1']
    #allocation4 [shape = 's32[2]{0}', space=sflag, size = 0x8, scoped, tag = 'scoped memory for tpu_custom_call.1']
    #allocation5 [shape = 'u8[131072]{0}', space=vmem, size = 0x20000, scoped, tag = 'input window, operand 1, single buffered']
    #allocation6 [shape = 's32[1]{0}', space=sflag, size = 0x4, scoped, tag = 'scoped memory for tpu_custom_call.1']
    #allocation7 [shape = 'u8[2048]{0}', space=vmem, size = 0x800, scoped, tag = 'input window, operand 2, single buffered']
    #allocation8 [shape = 'u8[131072]{0}', space=vmem, size = 0x20000, scoped, tag = 'input window, operand 3, single buffered']
    #allocation9 [shape = 's32[1]{0}', space=sflag, size = 0x4, scoped, tag = 'scoped memory for tpu_custom_call.1']
    #allocation10 [shape = 'u8[524288]{0}', space=vmem, size = 0x80000, scoped, tag = 'output window, operand 0']
    #allocation11 [shape = 'u8[131072]{0}', space=vmem, size = 0x20000, scoped, tag = 'output window, operand 1']
    #allocation12 [shape = 's32[2]{0}', space=sflag, size = 0x8, scoped, tag = 'scoped memory for tpu_custom_call.1']
    %11 = vsyncpa [#allocation3], 0
    %s12 = scalar_lea.sflag [#allocation3], 1
    %13 = vsyncpa %s12, 0
    %14 = vsyncpa [#allocation6], 0
    %15 = vsyncpa [#allocation9], 0
    %16 = vsyncpa [#allocation4], 0
    %s17 = scalar_lea.sflag [#allocation4], 1
    %18 = vsyncpa %s17, 0
    %19 = vsyncpa [#allocation12], 0
    %s20 = scalar_lea.sflag [#allocation12], 1
    %21 = vsyncpa %s20, 0
    loop: start=0, step=1, limit=4
    $region2: #{tpu_custom_call.1} parent=1 // loop_pre_header
      _
    $region3: #{tpu_custom_call.1} parent=1 // loop_header
      %s23 = sphi 0, %s27
      %p24 = scmp.ge.s32.totalorder %s23, 4
      %s33 = sphi 0, %s35
      %s36 = sphi 0, %s33
      %s37 = sphi 0, %s36
      %s53 = sphi 0, %s37
      %s57 = sphi 0, %s57
      %s59 = sphi 0, %s57
      %s60 = sphi 0, %s59
      %s74 = sphi 0, %s60
      %s78 = sphi 0, %s78
      %s80 = sphi 0, %s78
      %s81 = sphi 0, %s80
      %s95 = sphi 0, %s81
      %s99 = sphi 0, %s99
      %s101 = sphi 0, %s99
      %s102 = sphi 0, %s101
      %s116 = sphi 0, %s102
      %s122 = sphi 0, %s124
      %s125 = sphi 0, %s122
      %s126 = sphi 0, %s125
      %s142 = sphi 0, %s126
      %s148 = sphi 0, %s150
      %s151 = sphi 0, %s148
      %s152 = sphi 0, %s151
      %s168 = sphi 0, %s152
    $region4: #{tpu_custom_call.1} parent=1 // loop_header_branch
      %26 = sbr.rel (%p24) target = $region8
    $region5: #{tpu_custom_call.1} parent=1 // loop_body
      %s28 = ssub.s32 %s23, 1
      %s29 = ssub.s32 %s23, 2
      %s30 = sadd.s32 %s23, 1
      %s31 = ssub.s32 %s23, %s30
      %p32 = scmp.eq.s32.totalorder %s31, 0
      %s34 = sadd.s32 %s33, 1
      %s35 = scalar_select %p32, %s33, %s34
      %p38 = pneg %p32
      %p39 = scmp.eq.s32.totalorder %s23, 1
      %p40 = por %p38, %p39
      %p41 = scmp.ne.s32.totalorder %s33, %s36
      %p42 = scmp.eq.s32.totalorder %s23, 0
      %p43 = por %p41, %p42
      %p44 = scmp.ne.s32.totalorder %s33, %s36
      %p45 = scmp.eq.s32.totalorder %s28, 1
      %p46 = por %p44, %p45
      %p47 = scmp.ne.s32.totalorder %s36, %s37
      %p48 = scmp.eq.s32.totalorder %s28, 0
      %p49 = por %p47, %p48
      %p50 = scmp.ne.s32.totalorder %s36, %s37
      %p51 = scmp.eq.s32.totalorder %s29, 1
      %p52 = por %p50, %p51
      %p54 = scmp.ne.s32.totalorder %s37, %s53
      %p55 = scmp.eq.s32.totalorder %s29, 0
      %p56 = por %p54, %p55
      %s58 = sadd.s32 %s57, 1
      %p61 = scmp.eq.s32.totalorder %s23, 1
      %p62 = scmp.ne.s32.totalorder %s57, %s59
      %p63 = scmp.eq.s32.totalorder %s23, 0
      %p64 = por %p62, %p63
      %p65 = scmp.ne.s32.totalorder %s57, %s59
      %p66 = scmp.eq.s32.totalorder %s28, 1
      %p67 = por %p65, %p66
      %p68 = scmp.ne.s32.totalorder %s59, %s60
      %p69 = scmp.eq.s32.totalorder %s28, 0
      %p70 = por %p68, %p69
      %p71 = scmp.ne.s32.totalorder %s59, %s60
      %p72 = scmp.eq.s32.totalorder %s29, 1
      %p73 = por %p71, %p72
      %p75 = scmp.ne.s32.totalorder %s60, %s74
      %p76 = scmp.eq.s32.totalorder %s29, 0
      %p77 = por %p75, %p76
      %s79 = sadd.s32 %s78, 1
      %p82 = scmp.eq.s32.totalorder %s23, 1
      %p83 = scmp.ne.s32.totalorder %s78, %s80
      %p84 = scmp.eq.s32.totalorder %s23, 0
      %p85 = por %p83, %p84
      %p86 = scmp.ne.s32.totalorder %s78, %s80
      %p87 = scmp.eq.s32.totalorder %s28, 1
      %p88 = por %p86, %p87
      %p89 = scmp.ne.s32.totalorder %s80, %s81
      %p90 = scmp.eq.s32.totalorder %s28, 0
      %p91 = por %p89, %p90
      %p92 = scmp.ne.s32.totalorder %s80, %s81
      %p93 = scmp.eq.s32.totalorder %s29, 1
      %p94 = por %p92, %p93
      %p96 = scmp.ne.s32.totalorder %s81, %s95
      %p97 = scmp.eq.s32.totalorder %s29, 0
      %p98 = por %p96, %p97
      %s100 = sadd.s32 %s99, 1
      %p103 = scmp.eq.s32.totalorder %s23, 1
      %p104 = scmp.ne.s32.totalorder %s99, %s101
      %p105 = scmp.eq.s32.totalorder %s23, 0
      %p106 = por %p104, %p105
      %p107 = scmp.ne.s32.totalorder %s99, %s101
      %p108 = scmp.eq.s32.totalorder %s28, 1
      %p109 = por %p107, %p108
      %p110 = scmp.ne.s32.totalorder %s101, %s102
      %p111 = scmp.eq.s32.totalorder %s28, 0
      %p112 = por %p110, %p111
      %p113 = scmp.ne.s32.totalorder %s101, %s102
      %p114 = scmp.eq.s32.totalorder %s29, 1
      %p115 = por %p113, %p114
      %p117 = scmp.ne.s32.totalorder %s102, %s116
      %p118 = scmp.eq.s32.totalorder %s29, 0
      %p119 = por %p117, %p118
      %s120 = ssub.s32 %s23, %s30
      %p121 = scmp.eq.s32.totalorder %s120, 0
      %s123 = sadd.s32 %s122, 1
      %s124 = scalar_select %p121, %s122, %s123
      %p127 = pneg %p121
      %p128 = scmp.eq.s32.totalorder %s23, 1
      %p129 = por %p127, %p128
      %p130 = scmp.ne.s32.totalorder %s122, %s125
      %p131 = scmp.eq.s32.totalorder %s23, 0
      %p132 = por %p130, %p131
      %p133 = scmp.ne.s32.totalorder %s122, %s125
      %p134 = scmp.eq.s32.totalorder %s28, 1
      %p135 = por %p133, %p134
      %p136 = scmp.ne.s32.totalorder %s125, %s126
      %p137 = scmp.eq.s32.totalorder %s28, 0
      %p138 = por %p136, %p137
      %p139 = scmp.ne.s32.totalorder %s125, %s126
      %p140 = scmp.eq.s32.totalorder %s29, 1
      %p141 = por %p139, %p140
      %p143 = scmp.ne.s32.totalorder %s126, %s142
      %p144 = scmp.eq.s32.totalorder %s29, 0
      %p145 = por %p143, %p144
      %s146 = ssub.s32 %s23, %s30
      %p147 = scmp.eq.s32.totalorder %s146, 0
      %s149 = sadd.s32 %s148, 1
      %s150 = scalar_select %p147, %s148, %s149
      %p153 = pneg %p147
      %p154 = scmp.eq.s32.totalorder %s23, 1
      %p155 = por %p153, %p154
      %p156 = scmp.ne.s32.totalorder %s148, %s151
      %p157 = scmp.eq.s32.totalorder %s23, 0
      %p158 = por %p156, %p157
      %p159 = scmp.ne.s32.totalorder %s148, %s151
      %p160 = scmp.eq.s32.totalorder %s28, 1
      %p161 = por %p159, %p160
      %p162 = scmp.ne.s32.totalorder %s151, %s152
      %p163 = scmp.eq.s32.totalorder %s28, 0
      %p164 = por %p162, %p163
      %p165 = scmp.ne.s32.totalorder %s151, %s152
      %p166 = scmp.eq.s32.totalorder %s29, 1
      %p167 = por %p165, %p166
      %p169 = scmp.ne.s32.totalorder %s152, %s168
      %p170 = scmp.eq.s32.totalorder %s29, 0
      %p171 = por %p169, %p170
      %p172 = scmp.le.s32.totalorder 1, %s23
      %p173 = scmp.lt.s32.totalorder %s23, 3
      %p174 = pnand %p172, %p173
      %p175 = pneg %p174
      // Predicated region
      $region9: #{tpu_custom_call.1} parent=5 // pred_check
        _
      $region10: #{tpu_custom_call.1} parent=5 // pred_check_branch
        %177 = sbr.rel (%p174) target = $region12
      $region11: #{tpu_custom_call.1} parent=5 // pred_region
        %s178 = ssub.s32 %s23, 1
        // Predicated region
        $region13: #{tpu_custom_call.1} parent=11 // pred_check
          %p179 = pneg %p70
        $region14: #{tpu_custom_call.1} parent=11 // pred_check_branch
          %181 = sbr.rel (%p179) target = $region16
        $region15: #{tpu_custom_call.1} parent=11 // pred_region
          %s183 = ssub.s32 4096, 4096
          %184 = vsyncadd [#allocation6], %s183
          %s185 = sshll.u32 [#allocation5], 4
          %s186 = int_to_ptr.vmem [resolvable:$true] %s185
          %191 = dma.hbm_to_vmem [thread:$0]  %s1, 4096, %s186, [#allocation6], 256, 256, 16
        $region16: #{tpu_custom_call.1} parent=11 // pred_fallthru
          _
        // Predicated region
        $region17: #{tpu_custom_call.1} parent=11 // pred_check
          %p192 = pneg %p91
        $region18: #{tpu_custom_call.1} parent=11 // pred_check_branch
          %194 = sbr.rel (%p192) target = $region20
        $region19: #{tpu_custom_call.1} parent=11 // pred_region
          %s196 = ssub.s32 64, 64
          %197 = vsyncadd [#allocation6], %s196
          %s199 = sshll.u32 [#allocation7], 4
          %s200 = int_to_ptr.vmem [resolvable:$true] %s199
          %202 = dma.hbm_to_vmem [thread:$0]  %s2, 64, %s200, [#allocation6]
        $region20: #{tpu_custom_call.1} parent=11 // pred_fallthru
          _
        // Predicated region
        $region21: #{tpu_custom_call.1} parent=11 // pred_check
          %p203 = pneg %p112
        $region22: #{tpu_custom_call.1} parent=11 // pred_check_branch
          %205 = sbr.rel (%p203) target = $region24
        $region23: #{tpu_custom_call.1} parent=11 // pred_region
          %s207 = ssub.s32 4096, 4096
          %208 = vsyncadd [#allocation9], %s207
          %s209 = sshll.u32 [#allocation8], 4
          %s210 = int_to_ptr.vmem [resolvable:$true] %s209
          %215 = dma.hbm_to_vmem [thread:$0]  %s3, 4096, %s210, [#allocation9], 64, 64, 4
        $region24: #{tpu_custom_call.1} parent=11 // pred_fallthru
          _
      $region12: #{tpu_custom_call.1} parent=5 // pred_fallthru
        _
      %p216 = scmp.lt.s32.totalorder %s23, 2
      // Predicated region
      $region25: #{tpu_custom_call.1} parent=5 // pred_check
        %p217 = pneg %p216
      $region26: #{tpu_custom_call.1} parent=5 // pred_check_branch
        %219 = sbr.rel (%p217) target = $region28
      $region27: #{tpu_custom_call.1} parent=5 // pred_region
        // Predicated region
        $region29: #{tpu_custom_call.1} parent=27 // pred_check
          %p220 = pneg %p43
        $region30: #{tpu_custom_call.1} parent=27 // pred_check_branch
          %222 = sbr.rel (%p220) target = $region32
        $region31: #{tpu_custom_call.1} parent=27 // pred_region
          %s223 = sand.u32 %s33, 1
          %s224 = scalar_lea.sflag [#allocation3], %s223
          %s225 = sand.u32 %s33, 1
          %s226 = smul.addr %s225, 64
          %s227 = scalar_lea.vmem [#allocation2], %s226
          %s228 = smul.u32 16, %s23
          %s230 = ssub.s32 1024, 1024
          %231 = vsyncadd %s224, %s230
          %s232 = smul.addr %s228, 64
          %s233 = scalar_lea.hbm %s0, %s232
          %s234 = sshll.u32 %s227, 4
          %s235 = int_to_ptr.vmem [resolvable:$true] %s234
          %240 = dma.hbm_to_vmem [thread:$0]  %s233, 1024, %s235, %s224, 64, 64, 4
        $region32: #{tpu_custom_call.1} parent=27 // pred_fallthru
          _
      $region28: #{tpu_custom_call.1} parent=5 // pred_fallthru
        _
      %p241 = scmp.le.s32.totalorder 1, %s23
      %p242 = scmp.lt.s32.totalorder %s23, 3
      %p243 = pnand %p241, %p242
      %p244 = pneg %p243
      // Predicated region
      $region33: #{tpu_custom_call.1} parent=5 // pred_check
        _
      $region34: #{tpu_custom_call.1} parent=5 // pred_check_branch
        %246 = sbr.rel (%p243) target = $region36
      $region35: #{tpu_custom_call.1} parent=5 // pred_region
        %s247 = ssub.s32 %s23, 1
        %s248 = sand.u32 %s36, 1
        %s249 = scalar_lea.sflag [#allocation3], %s248
        %s250 = sand.u32 %s36, 1
        %s251 = smul.addr %s250, 64
        %s252 = scalar_lea.vmem [#allocation2], %s251
        // Predicated region
        $region37: #{tpu_custom_call.1} parent=35 // pred_check
          %p253 = pneg %p49
        $region38: #{tpu_custom_call.1} parent=35 // pred_check_branch
          %255 = sbr.rel (%p253) target = $region40
        $region39: #{tpu_custom_call.1} parent=35 // pred_region
          %256 = dma.done %s249, 1024
        $region40: #{tpu_custom_call.1} parent=35 // pred_fallthru
          _
        // Predicated region
        $region41: #{tpu_custom_call.1} parent=35 // pred_check
          %p257 = pneg %p70
        $region42: #{tpu_custom_call.1} parent=35 // pred_check_branch
          %259 = sbr.rel (%p257) target = $region44
        $region43: #{tpu_custom_call.1} parent=35 // pred_region
          %260 = dma.done [#allocation6], 4096
        $region44: #{tpu_custom_call.1} parent=35 // pred_fallthru
          _
        // Predicated region
        $region45: #{tpu_custom_call.1} parent=35 // pred_check
          %p261 = pneg %p91
        $region46: #{tpu_custom_call.1} parent=35 // pred_check_branch
          %263 = sbr.rel (%p261) target = $region48
        $region47: #{tpu_custom_call.1} parent=35 // pred_region
          %264 = dma.done [#allocation6], 64
        $region48: #{tpu_custom_call.1} parent=35 // pred_fallthru
          _
        // Predicated region
        $region49: #{tpu_custom_call.1} parent=35 // pred_check
          %p265 = pneg %p112
        $region50: #{tpu_custom_call.1} parent=35 // pred_check_branch
          %267 = sbr.rel (%p265) target = $region52
        $region51: #{tpu_custom_call.1} parent=35 // pred_region
          %268 = dma.done [#allocation9], 4096
        $region52: #{tpu_custom_call.1} parent=35 // pred_fallthru
          _
        %s269 = sand.u32 %s36, 1
        %s270 = scalar_lea.sflag [#allocation3], %s269
        %s271 = sand.u32 %s36, 1
        %s272 = smul.addr %s271, 64
        %s273 = scalar_lea.vmem [#allocation2], %s272
        %p274 = pneg %p49
        %p275 = pneg %p46
        %p276 = pneg %p70
        %p277 = pneg %p67
        %p278 = pneg %p91
        %p279 = pneg %p88
        %p280 = pneg %p112
        %p281 = pneg %p109
        %p282 = pneg %p138
        %p283 = pneg %p135
        %s284 = sand.u32 %s125, 1
        %s285 = scalar_lea.sflag [#allocation4], %s284
        %s286 = sand.u32 %s125, 1
        %s287 = smul.addr %s286, 512
        %s288 = scalar_lea.vmem [#allocation10], %s287
        %p289 = pneg %p164
        %p290 = pneg %p161
        %s291 = sand.u32 %s151, 1
        %s292 = scalar_lea.sflag [#allocation12], %s291
        %s293 = sand.u32 %s151, 1
        %s294 = smul.addr %s293, 128
        %s295 = scalar_lea.vmem [#allocation11], %s294
        %s296 = smul.u32 16, %s28
        %s297 = smul.u32 16, %s28
        %s298 = smul.u32 16, %s28
        %v300 = vlaneseq
        %v301 = vand.u32 %v300, 127
        %v302 = vadd.s32 %v301, 128
        %v303 = vadd.s32 %v301, 256
        %v304 = vadd.s32 %v301, 384
        %v305 = vsub.s32 511, %v301
        %v306 = vsub.s32 511, %v302
        %v307 = vsub.s32 511, %v303
        %v308 = vsub.s32 511, %v304
        %v309 = vld [vmem:[%s252] sm:$0xf]
        %v310 = vld [vmem:[%s252 + $0x4] sm:$0xf]
        %v311 = vld [vmem:[%s252 + $0x8] sm:$0xf]
        %v312 = vld [vmem:[%s252 + $0xc] sm:$0xf]
        %v313 = vld [vmem:[%s252 + $0x10] sm:$0xf]
        %v314 = vld [vmem:[%s252 + $0x14] sm:$0xf]
        %v315 = vld [vmem:[%s252 + $0x18] sm:$0xf]
        %v316 = vld [vmem:[%s252 + $0x1c] sm:$0xf]
        %v317 = vld [vmem:[#allocation5] sm:$0xff]
        %v318 = vld [vmem:[#allocation5 + $0x8] sm:$0xff]
        %v319 = vld [vmem:[#allocation5 + $0x10] sm:$0xff]
        %v320 = vld [vmem:[#allocation5 + $0x18] sm:$0xff]
        %v321 = vld [vmem:[#allocation5 + $0x20] sm:$0xff]
        %v322 = vld [vmem:[#allocation5 + $0x28] sm:$0xff]
        %v323 = vld [vmem:[#allocation5 + $0x30] sm:$0xff]
        %v324 = vld [vmem:[#allocation5 + $0x38] sm:$0xff]
        %v325 = vld [vmem:[#allocation5 + $0x40] sm:$0xff]
        %v326 = vld [vmem:[#allocation5 + $0x48] sm:$0xff]
        %v327 = vld [vmem:[#allocation5 + $0x50] sm:$0xff]
        %v328 = vld [vmem:[#allocation5 + $0x58] sm:$0xff]
        %v329 = vld [vmem:[#allocation5 + $0x60] sm:$0xff]
        %v330 = vld [vmem:[#allocation5 + $0x68] sm:$0xff]
        %v331 = vld [vmem:[#allocation5 + $0x70] sm:$0xff]
        %v332 = vld [vmem:[#allocation5 + $0x78] sm:$0xff]
        %v333 = vld [vmem:[#allocation5 + $0x80] sm:$0xff]
        %v334 = vld [vmem:[#allocation5 + $0x88] sm:$0xff]
        %v335 = vld [vmem:[#allocation5 + $0x90] sm:$0xff]
        %v336 = vld [vmem:[#allocation5 + $0x98] sm:$0xff]
        %v337 = vld [vmem:[#allocation5 + $0xa0] sm:$0xff]
        %v338 = vld [vmem:[#allocation5 + $0xa8] sm:$0xff]
        %v339 = vld [vmem:[#allocation5 + $0xb0] sm:$0xff]
        %v340 = vld [vmem:[#allocation5 + $0xb8] sm:$0xff]
        %v341 = vld [vmem:[#allocation5 + $0xc0] sm:$0xff]
        %v342 = vld [vmem:[#allocation5 + $0xc8] sm:$0xff]
        %v343 = vld [vmem:[#allocation5 + $0xd0] sm:$0xff]
        %v344 = vld [vmem:[#allocation5 + $0xd8] sm:$0xff]
        %v345 = vld [vmem:[#allocation5 + $0xe0] sm:$0xff]
        %v346 = vld [vmem:[#allocation5 + $0xe8] sm:$0xff]
        %v347 = vld [vmem:[#allocation5 + $0xf0] sm:$0xff]
        %v348 = vld [vmem:[#allocation5 + $0xf8] sm:$0xff]
        %v349 = vld [vmem:[#allocation7] sm:$0xf]
        %v351 = vlaneseq
        %v352 = vshrl.u32 %v351, 7
        %v353 = vsub.s32 0, %v352
        %v354 = vrot.slane %v349, %v353
        %v355 = vlaneseq
        %v356 = vshrl.u32 %v355, 7
        %v357 = vsub.s32 1, %v356
        %v358 = vrot.slane %v349, %v357
        %v359 = vlaneseq
        %v360 = vshrl.u32 %v359, 7
        %v361 = vsub.s32 2, %v360
        %v362 = vrot.slane %v349, %v361
        %v363 = vlaneseq
        %v364 = vshrl.u32 %v363, 7
        %v365 = vsub.s32 3, %v364
        %v366 = vrot.slane %v349, %v365
        %v379 = vunpack.c.l.b16 %v309
        %v380 = vunpack.c.l.b16 %v310
        %v381 = vunpack.c.l.b16 %v311
        %v382 = vunpack.c.l.b16 %v312
        %v383 = vunpack.c.l.b16 %v313
        %v384 = vunpack.c.l.b16 %v314
        %v385 = vunpack.c.l.b16 %v315
        %v386 = vunpack.c.l.b16 %v316
        %v387 = vpack.c.b16 %v380, %v379
        %v388 = vpack.c.b16 %v382, %v381
        %v389 = vpack.c.b16 %v384, %v383
        %v390 = vpack.c.b16 %v386, %v385
        %v427 = vunpack.c.l.b16 %v317
        %v428 = vunpack.c.h.b16 %v317
        %v429 = vunpack.c.l.b16 %v318
        %v430 = vunpack.c.h.b16 %v318
        %v431 = vunpack.c.l.b16 %v319
        %v432 = vunpack.c.h.b16 %v319
        %v433 = vunpack.c.l.b16 %v320
        %v434 = vunpack.c.h.b16 %v320
        %v435 = vunpack.c.l.b16 %v321
        %v436 = vunpack.c.h.b16 %v321
        %v437 = vunpack.c.l.b16 %v322
        %v438 = vunpack.c.h.b16 %v322
        %v439 = vunpack.c.l.b16 %v323
        %v440 = vunpack.c.h.b16 %v323
        %v441 = vunpack.c.l.b16 %v324
        %v442 = vunpack.c.h.b16 %v324
        %v443 = vunpack.c.l.b16 %v325
        %v444 = vunpack.c.h.b16 %v325
        %v445 = vunpack.c.l.b16 %v326
        %v446 = vunpack.c.h.b16 %v326
        %v447 = vunpack.c.l.b16 %v327
        %v448 = vunpack.c.h.b16 %v327
        %v449 = vunpack.c.l.b16 %v328
        %v450 = vunpack.c.h.b16 %v328
        %v451 = vunpack.c.l.b16 %v329
        %v452 = vunpack.c.h.b16 %v329
        %v453 = vunpack.c.l.b16 %v330
        %v454 = vunpack.c.h.b16 %v330
        %v455 = vunpack.c.l.b16 %v331
        %v456 = vunpack.c.h.b16 %v331
        %v457 = vunpack.c.l.b16 %v332
        %v458 = vunpack.c.h.b16 %v332
        %v459 = vunpack.c.l.b16 %v333
        %v460 = vunpack.c.h.b16 %v333
        %v461 = vunpack.c.l.b16 %v334
        %v462 = vunpack.c.h.b16 %v334
        %v463 = vunpack.c.l.b16 %v335
        %v464 = vunpack.c.h.b16 %v335
        %v465 = vunpack.c.l.b16 %v336
        %v466 = vunpack.c.h.b16 %v336
        %v467 = vunpack.c.l.b16 %v337
        %v468 = vunpack.c.h.b16 %v337
        %v469 = vunpack.c.l.b16 %v338
        %v470 = vunpack.c.h.b16 %v338
        %v471 = vunpack.c.l.b16 %v339
        %v472 = vunpack.c.h.b16 %v339
        %v473 = vunpack.c.l.b16 %v340
        %v474 = vunpack.c.h.b16 %v340
        %v475 = vunpack.c.l.b16 %v341
        %v476 = vunpack.c.h.b16 %v341
        %v477 = vunpack.c.l.b16 %v342
        %v478 = vunpack.c.h.b16 %v342
        %v479 = vunpack.c.l.b16 %v343
        %v480 = vunpack.c.h.b16 %v343
        %v481 = vunpack.c.l.b16 %v344
        %v482 = vunpack.c.h.b16 %v344
        %v483 = vunpack.c.l.b16 %v345
        %v484 = vunpack.c.h.b16 %v345
        %v485 = vunpack.c.l.b16 %v346
        %v486 = vunpack.c.h.b16 %v346
        %v487 = vunpack.c.l.b16 %v347
        %v488 = vunpack.c.h.b16 %v347
        %v489 = vunpack.c.l.b16 %v348
        %v490 = vunpack.c.h.b16 %v348
        %v491 = vpack.c.b16 %v431, %v427
        %v492 = vpack.c.b16 %v432, %v428
        %v493 = vpack.c.b16 %v433, %v429
        %v494 = vpack.c.b16 %v434, %v430
        %v495 = vpack.c.b16 %v439, %v435
        %v496 = vpack.c.b16 %v440, %v436
        %v497 = vpack.c.b16 %v441, %v437
        %v498 = vpack.c.b16 %v442, %v438
        %v499 = vpack.c.b16 %v447, %v443
        %v500 = vpack.c.b16 %v448, %v444
        %v501 = vpack.c.b16 %v449, %v445
        %v502 = vpack.c.b16 %v450, %v446
        %v503 = vpack.c.b16 %v455, %v451
        %v504 = vpack.c.b16 %v456, %v452
        %v505 = vpack.c.b16 %v457, %v453
        %v506 = vpack.c.b16 %v458, %v454
        %v507 = vpack.c.b16 %v463, %v459
        %v508 = vpack.c.b16 %v464, %v460
        %v509 = vpack.c.b16 %v465, %v461
        %v510 = vpack.c.b16 %v466, %v462
        %v511 = vpack.c.b16 %v471, %v467
        %v512 = vpack.c.b16 %v472, %v468
        %v513 = vpack.c.b16 %v473, %v469
        %v514 = vpack.c.b16 %v474, %v470
        %v515 = vpack.c.b16 %v479, %v475
        %v516 = vpack.c.b16 %v480, %v476
        %v517 = vpack.c.b16 %v481, %v477
        %v518 = vpack.c.b16 %v482, %v478
        %v519 = vpack.c.b16 %v487, %v483
        %v520 = vpack.c.b16 %v488, %v484
        %v521 = vpack.c.b16 %v489, %v485
        %v522 = vpack.c.b16 %v490, %v486
        %555 = vmatprep.subr.bf16.mxu0 %v520
        %556 = vmatpush1.bf16.msra.mxu0 %v519
        %557 = vmatprep.subr.bf16.mxu0 %v516
        %558 = vmatpush1.bf16.msra.mxu0 %v515
        %559 = vmatprep.subr.bf16.mxu0 %v512
        %560 = vmatpush1.bf16.msra.mxu0 %v511
        %561 = vmatprep.subr.bf16.mxu0 %v508
        %562 = vmatpush1.bf16.msra.mxu0 %v507
        %563 = vmatprep.subr.bf16.mxu0 %v504
        %564 = vmatpush1.bf16.msra.mxu0 %v503
        %565 = vmatprep.subr.bf16.mxu0 %v500
        %566 = vmatpush1.bf16.msra.mxu0 %v499
        %567 = vmatprep.subr.bf16.mxu0 %v496
        %568 = vmatpush1.bf16.msra.mxu0 %v495
        %569 = vmatprep.subr.bf16.mxu0 %v492
        %570 = vmatpush1.bf16.msra.mxu0 %v491
        %571 = vmatprep.subr.bf16.mxu0 0
        %572 = vmatpush2.bf16.msra.mxu0 0
        %573 = vmatprep.subr.bf16.mxu0 0
        %574 = vmatpush2.bf16.msra.mxu0 0
        %575 = vmatprep.subr.bf16.mxu0 0
        %576 = vmatpush2.bf16.msra.mxu0 0
        %577 = vmatprep.subr.bf16.mxu0 0
        %578 = vmatpush2.bf16.msra.mxu0 0
        %579 = vmatprep.subr.bf16.mxu0 0
        %580 = vmatpush2.bf16.msra.mxu0 0
        %581 = vmatprep.subr.bf16.mxu0 0
        %582 = vmatpush2.bf16.msra.mxu0 0
        %583 = vmatprep.subr.bf16.mxu0 0
        %584 = vmatpush2.bf16.msra.mxu0 0
        %585 = vmatprep.subr.bf16.mxu0 0
        %586 = vmatpush2.bf16.msra.mxu0 0
        %587 = vmatprep.mubr.bf16.mxu0 0
        %588 = vmatmul.mubr.bf16.gmra.mxu0 %v387
        %v589 = vpop.f32.mrf.mxu0
        %v590 = vadd.f32 %v354, %v589
        %v591 = vpop.f32.mrf.mxu0
        %v592 = vadd.f32 %v358, %v591
        %v593 = vpop.f32.mrf.mxu0
        %v594 = vadd.f32 %v354, %v593
        %v595 = vpop.f32.mrf.mxu0
        %v596 = vadd.f32 %v358, %v595
        %597 = vmatprep.mubr.bf16.mxu0 0
        %598 = vmatmul.mubr.bf16.gmra.mxu0 %v388
        %v599 = vpop.f32.mrf.mxu0
        %v600 = vadd.f32 %v354, %v599
        %v601 = vpop.f32.mrf.mxu0
        %v602 = vadd.f32 %v358, %v601
        %v603 = vpop.f32.mrf.mxu0
        %v604 = vadd.f32 %v354, %v603
        %v605 = vpop.f32.mrf.mxu0
        %v606 = vadd.f32 %v358, %v605
        %607 = vmatprep.mubr.bf16.mxu0 0
        %608 = vmatmul.mubr.bf16.gmra.mxu0 %v389
        %v609 = vpop.f32.mrf.mxu0
        %v610 = vadd.f32 %v354, %v609
        %v611 = vpop.f32.mrf.mxu0
        %v612 = vadd.f32 %v358, %v611
        %v613 = vpop.f32.mrf.mxu0
        %v614 = vadd.f32 %v354, %v613
        %v615 = vpop.f32.mrf.mxu0
        %v616 = vadd.f32 %v358, %v615
        %617 = vmatprep.mubr.bf16.mxu0 0
        %618 = vmatmul.mubr.bf16.gmra.mxu0 %v390
        %v619 = vpop.f32.mrf.mxu0
        %v620 = vadd.f32 %v354, %v619
        %v621 = vpop.f32.mrf.mxu0
        %v622 = vadd.f32 %v358, %v621
        %v623 = vpop.f32.mrf.mxu0
        %v624 = vadd.f32 %v354, %v623
        %v625 = vpop.f32.mrf.mxu0
        %v626 = vadd.f32 %v358, %v625
        %627 = vdwg.mxu0
        %628 = vmatprep.subr.bf16.mxu0 %v522
        %629 = vmatpush1.bf16.msra.mxu0 %v521
        %630 = vmatprep.subr.bf16.mxu0 %v518
        %631 = vmatpush1.bf16.msra.mxu0 %v517
        %632 = vmatprep.subr.bf16.mxu0 %v514
        %633 = vmatpush1.bf16.msra.mxu0 %v513
        %634 = vmatprep.subr.bf16.mxu0 %v510
        %635 = vmatpush1.bf16.msra.mxu0 %v509
        %636 = vmatprep.subr.bf16.mxu0 %v506
        %637 = vmatpush1.bf16.msra.mxu0 %v505
        %638 = vmatprep.subr.bf16.mxu0 %v502
        %639 = vmatpush1.bf16.msra.mxu0 %v501
        %640 = vmatprep.subr.bf16.mxu0 %v498
        %641 = vmatpush1.bf16.msra.mxu0 %v497
        %642 = vmatprep.subr.bf16.mxu0 %v494
        %643 = vmatpush1.bf16.msra.mxu0 %v493
        %644 = vmatprep.subr.bf16.mxu0 0
        %645 = vmatpush2.bf16.msra.mxu0 0
        %646 = vmatprep.subr.bf16.mxu0 0
        %647 = vmatpush2.bf16.msra.mxu0 0
        %648 = vmatprep.subr.bf16.mxu0 0
        %649 = vmatpush2.bf16.msra.mxu0 0
        %650 = vmatprep.subr.bf16.mxu0 0
        %651 = vmatpush2.bf16.msra.mxu0 0
        %652 = vmatprep.subr.bf16.mxu0 0
        %653 = vmatpush2.bf16.msra.mxu0 0
        %654 = vmatprep.subr.bf16.mxu0 0
        %655 = vmatpush2.bf16.msra.mxu0 0
        %656 = vmatprep.subr.bf16.mxu0 0
        %657 = vmatpush2.bf16.msra.mxu0 0
        %658 = vmatprep.subr.bf16.mxu0 0
        %659 = vmatpush2.bf16.msra.mxu0 0
        %660 = vmatprep.mubr.bf16.mxu0 0
        %661 = vmatmul.mubr.bf16.gmra.mxu0 %v387
        %v662 = vpop.f32.mrf.mxu0
        %v663 = vadd.f32 %v362, %v662
        %v664 = vpop.f32.mrf.mxu0
        %v665 = vadd.f32 %v366, %v664
        %v666 = vpop.f32.mrf.mxu0
        %v667 = vadd.f32 %v362, %v666
        %v668 = vpop.f32.mrf.mxu0
        %v669 = vadd.f32 %v366, %v668
        %670 = vmatprep.mubr.bf16.mxu0 0
        %671 = vmatmul.mubr.bf16.gmra.mxu0 %v388
        %v672 = vpop.f32.mrf.mxu0
        %v673 = vadd.f32 %v362, %v672
        %v674 = vpop.f32.mrf.mxu0
        %v675 = vadd.f32 %v366, %v674
        %v676 = vpop.f32.mrf.mxu0
        %v677 = vadd.f32 %v362, %v676
        %v678 = vpop.f32.mrf.mxu0
        %v679 = vadd.f32 %v366, %v678
        %680 = vmatprep.mubr.bf16.mxu0 0
        %681 = vmatmul.mubr.bf16.gmra.mxu0 %v389
        %v682 = vpop.f32.mrf.mxu0
        %v683 = vadd.f32 %v362, %v682
        %v684 = vpop.f32.mrf.mxu0
        %v685 = vadd.f32 %v366, %v684
        %v686 = vpop.f32.mrf.mxu0
        %v687 = vadd.f32 %v362, %v686
        %v688 = vpop.f32.mrf.mxu0
        %v689 = vadd.f32 %v366, %v688
        %690 = vmatprep.mubr.bf16.mxu0 0
        %691 = vmatmul.mubr.bf16.gmra.mxu0 %v390
        %v692 = vpop.f32.mrf.mxu0
        %v693 = vadd.f32 %v362, %v692
        %v694 = vpop.f32.mrf.mxu0
        %v695 = vadd.f32 %v366, %v694
        %v696 = vpop.f32.mrf.mxu0
        %v697 = vadd.f32 %v362, %v696
        %v698 = vpop.f32.mrf.mxu0
        %v699 = vadd.f32 %v366, %v698
        %700 = vdwg.mxu0
        %v701 = vmax.f32 %v590, 0.0
        %v702 = vmax.f32 %v592, 0.0
        %v703 = vmax.f32 %v663, 0.0
        %v704 = vmax.f32 %v665, 0.0
        %v705 = vmax.f32 %v594, 0.0
        %v706 = vmax.f32 %v596, 0.0
        %v707 = vmax.f32 %v667, 0.0
        %v708 = vmax.f32 %v669, 0.0
        %v709 = vmax.f32 %v600, 0.0
        %v710 = vmax.f32 %v602, 0.0
        %v711 = vmax.f32 %v673, 0.0
        %v712 = vmax.f32 %v675, 0.0
        %v713 = vmax.f32 %v604, 0.0
        %v714 = vmax.f32 %v606, 0.0
        %v715 = vmax.f32 %v677, 0.0
        %v716 = vmax.f32 %v679, 0.0
        %v717 = vmax.f32 %v610, 0.0
        %v718 = vmax.f32 %v612, 0.0
        %v719 = vmax.f32 %v683, 0.0
        %v720 = vmax.f32 %v685, 0.0
        %v721 = vmax.f32 %v614, 0.0
        %v722 = vmax.f32 %v616, 0.0
        %v723 = vmax.f32 %v687, 0.0
        %v724 = vmax.f32 %v689, 0.0
        %v725 = vmax.f32 %v620, 0.0
        %v726 = vmax.f32 %v622, 0.0
        %v727 = vmax.f32 %v693, 0.0
        %v728 = vmax.f32 %v695, 0.0
        %v729 = vmax.f32 %v624, 0.0
        %v730 = vmax.f32 %v626, 0.0
        %v731 = vmax.f32 %v697, 0.0
        %v732 = vmax.f32 %v699, 0.0
        %v733 = vld [vmem:[%s252 + $0x20] sm:$0xf]
        %v734 = vld [vmem:[%s252 + $0x24] sm:$0xf]
        %v735 = vld [vmem:[%s252 + $0x28] sm:$0xf]
        %v736 = vld [vmem:[%s252 + $0x2c] sm:$0xf]
        %v737 = vld [vmem:[%s252 + $0x30] sm:$0xf]
        %v738 = vld [vmem:[%s252 + $0x34] sm:$0xf]
        %v739 = vld [vmem:[%s252 + $0x38] sm:$0xf]
        %v740 = vld [vmem:[%s252 + $0x3c] sm:$0xf]
        %v749 = vunpack.c.l.b16 %v733
        %v750 = vunpack.c.l.b16 %v734
        %v751 = vunpack.c.l.b16 %v735
        %v752 = vunpack.c.l.b16 %v736
        %v753 = vunpack.c.l.b16 %v737
        %v754 = vunpack.c.l.b16 %v738
        %v755 = vunpack.c.l.b16 %v739
        %v756 = vunpack.c.l.b16 %v740
        %v757 = vpack.c.b16 %v750, %v749
        %v758 = vpack.c.b16 %v752, %v751
        %v759 = vpack.c.b16 %v754, %v753
        %v760 = vpack.c.b16 %v756, %v755
        %765 = vmatprep.subr.bf16.mxu0 %v520
        %766 = vmatpush1.bf16.msra.mxu0 %v519
        %767 = vmatprep.subr.bf16.mxu0 %v516
        %768 = vmatpush1.bf16.msra.mxu0 %v515
        %769 = vmatprep.subr.bf16.mxu0 %v512
        %770 = vmatpush1.bf16.msra.mxu0 %v511
        %771 = vmatprep.subr.bf16.mxu0 %v508
        %772 = vmatpush1.bf16.msra.mxu0 %v507
        %773 = vmatprep.subr.bf16.mxu0 %v504
        %774 = vmatpush1.bf16.msra.mxu0 %v503
        %775 = vmatprep.subr.bf16.mxu0 %v500
        %776 = vmatpush1.bf16.msra.mxu0 %v499
        %777 = vmatprep.subr.bf16.mxu0 %v496
        %778 = vmatpush1.bf16.msra.mxu0 %v495
        %779 = vmatprep.subr.bf16.mxu0 %v492
        %780 = vmatpush1.bf16.msra.mxu0 %v491
        %781 = vmatprep.subr.bf16.mxu0 0
        %782 = vmatpush2.bf16.msra.mxu0 0
        %783 = vmatprep.subr.bf16.mxu0 0
        %784 = vmatpush2.bf16.msra.mxu0 0
        %785 = vmatprep.subr.bf16.mxu0 0
        %786 = vmatpush2.bf16.msra.mxu0 0
        %787 = vmatprep.subr.bf16.mxu0 0
        %788 = vmatpush2.bf16.msra.mxu0 0
        %789 = vmatprep.subr.bf16.mxu0 0
        %790 = vmatpush2.bf16.msra.mxu0 0
        %791 = vmatprep.subr.bf16.mxu0 0
        %792 = vmatpush2.bf16.msra.mxu0 0
        %793 = vmatprep.subr.bf16.mxu0 0
        %794 = vmatpush2.bf16.msra.mxu0 0
        %795 = vmatprep.subr.bf16.mxu0 0
        %796 = vmatpush2.bf16.msra.mxu0 0
        %797 = vmatprep.mubr.bf16.mxu0 0
        %798 = vmatmul.mubr.bf16.gmra.mxu0 %v757
        %v799 = vpop.f32.mrf.mxu0
        %v800 = vadd.f32 %v354, %v799
        %v801 = vpop.f32.mrf.mxu0
        %v802 = vadd.f32 %v358, %v801
        %v803 = vpop.f32.mrf.mxu0
        %v804 = vadd.f32 %v354, %v803
        %v805 = vpop.f32.mrf.mxu0
        %v806 = vadd.f32 %v358, %v805
        %807 = vmatprep.mubr.bf16.mxu0 0
        %808 = vmatmul.mubr.bf16.gmra.mxu0 %v758
        %v809 = vpop.f32.mrf.mxu0
        %v810 = vadd.f32 %v354, %v809
        %v811 = vpop.f32.mrf.mxu0
        %v812 = vadd.f32 %v358, %v811
        %v813 = vpop.f32.mrf.mxu0
        %v814 = vadd.f32 %v354, %v813
        %v815 = vpop.f32.mrf.mxu0
        %v816 = vadd.f32 %v358, %v815
        %817 = vmatprep.mubr.bf16.mxu0 0
        %818 = vmatmul.mubr.bf16.gmra.mxu0 %v759
        %v819 = vpop.f32.mrf.mxu0
        %v820 = vadd.f32 %v354, %v819
        %v821 = vpop.f32.mrf.mxu0
        %v822 = vadd.f32 %v358, %v821
        %v823 = vpop.f32.mrf.mxu0
        %v824 = vadd.f32 %v354, %v823
        %v825 = vpop.f32.mrf.mxu0
        %v826 = vadd.f32 %v358, %v825
        %827 = vmatprep.mubr.bf16.mxu0 0
        %828 = vmatmul.mubr.bf16.gmra.mxu0 %v760
        %v829 = vpop.f32.mrf.mxu0
        %v830 = vadd.f32 %v354, %v829
        %v831 = vpop.f32.mrf.mxu0
        %v832 = vadd.f32 %v358, %v831
        %v833 = vpop.f32.mrf.mxu0
        %v834 = vadd.f32 %v354, %v833
        %v835 = vpop.f32.mrf.mxu0
        %v836 = vadd.f32 %v358, %v835
        %837 = vdwg.mxu0
        %838 = vmatprep.subr.bf16.mxu0 %v522
        %839 = vmatpush1.bf16.msra.mxu0 %v521
        %840 = vmatprep.subr.bf16.mxu0 %v518
        %841 = vmatpush1.bf16.msra.mxu0 %v517
        %842 = vmatprep.subr.bf16.mxu0 %v514
        %843 = vmatpush1.bf16.msra.mxu0 %v513
        %844 = vmatprep.subr.bf16.mxu0 %v510
        %845 = vmatpush1.bf16.msra.mxu0 %v509
        %846 = vmatprep.subr.bf16.mxu0 %v506
        %847 = vmatpush1.bf16.msra.mxu0 %v505
        %848 = vmatprep.subr.bf16.mxu0 %v502
        %849 = vmatpush1.bf16.msra.mxu0 %v501
        %850 = vmatprep.subr.bf16.mxu0 %v498
        %851 = vmatpush1.bf16.msra.mxu0 %v497
        %852 = vmatprep.subr.bf16.mxu0 %v494
        %853 = vmatpush1.bf16.msra.mxu0 %v493
        %854 = vmatprep.subr.bf16.mxu0 0
        %855 = vmatpush2.bf16.msra.mxu0 0
        %856 = vmatprep.subr.bf16.mxu0 0
        %857 = vmatpush2.bf16.msra.mxu0 0
        %858 = vmatprep.subr.bf16.mxu0 0
        %859 = vmatpush2.bf16.msra.mxu0 0
        %860 = vmatprep.subr.bf16.mxu0 0
        %861 = vmatpush2.bf16.msra.mxu0 0
        %862 = vmatprep.subr.bf16.mxu0 0
        %863 = vmatpush2.bf16.msra.mxu0 0
        %864 = vmatprep.subr.bf16.mxu0 0
        %865 = vmatpush2.bf16.msra.mxu0 0
        %866 = vmatprep.subr.bf16.mxu0 0
        %867 = vmatpush2.bf16.msra.mxu0 0
        %868 = vmatprep.subr.bf16.mxu0 0
        %869 = vmatpush2.bf16.msra.mxu0 0
        %870 = vmatprep.mubr.bf16.mxu0 0
        %871 = vmatmul.mubr.bf16.gmra.mxu0 %v757
        %v872 = vpop.f32.mrf.mxu0
        %v873 = vadd.f32 %v362, %v872
        %v874 = vpop.f32.mrf.mxu0
        %v875 = vadd.f32 %v366, %v874
        %v876 = vpop.f32.mrf.mxu0
        %v877 = vadd.f32 %v362, %v876
        %v878 = vpop.f32.mrf.mxu0
        %v879 = vadd.f32 %v366, %v878
        %880 = vmatprep.mubr.bf16.mxu0 0
        %881 = vmatmul.mubr.bf16.gmra.mxu0 %v758
        %v882 = vpop.f32.mrf.mxu0
        %v883 = vadd.f32 %v362, %v882
        %v884 = vpop.f32.mrf.mxu0
        %v885 = vadd.f32 %v366, %v884
        %v886 = vpop.f32.mrf.mxu0
        %v887 = vadd.f32 %v362, %v886
        %v888 = vpop.f32.mrf.mxu0
        %v889 = vadd.f32 %v366, %v888
        %890 = vmatprep.mubr.bf16.mxu0 0
        %891 = vmatmul.mubr.bf16.gmra.mxu0 %v759
        %v892 = vpop.f32.mrf.mxu0
        %v893 = vadd.f32 %v362, %v892
        %v894 = vpop.f32.mrf.mxu0
        %v895 = vadd.f32 %v366, %v894
        %v896 = vpop.f32.mrf.mxu0
        %v897 = vadd.f32 %v362, %v896
        %v898 = vpop.f32.mrf.mxu0
        %v899 = vadd.f32 %v366, %v898
        %900 = vmatprep.mubr.bf16.mxu0 0
        %901 = vmatmul.mubr.bf16.gmra.mxu0 %v760
        %v902 = vpop.f32.mrf.mxu0
        %v903 = vadd.f32 %v362, %v902
        %v904 = vpop.f32.mrf.mxu0
        %v905 = vadd.f32 %v366, %v904
        %v906 = vpop.f32.mrf.mxu0
        %v907 = vadd.f32 %v362, %v906
        %v908 = vpop.f32.mrf.mxu0
        %v909 = vadd.f32 %v366, %v908
        %910 = vdwg.mxu0
        %v911 = vmax.f32 %v800, 0.0
        %v912 = vmax.f32 %v802, 0.0
        %v913 = vmax.f32 %v873, 0.0
        %v914 = vmax.f32 %v875, 0.0
        %v915 = vmax.f32 %v804, 0.0
        %v916 = vmax.f32 %v806, 0.0
        %v917 = vmax.f32 %v877, 0.0
        %v918 = vmax.f32 %v879, 0.0
        %v919 = vmax.f32 %v810, 0.0
        %v920 = vmax.f32 %v812, 0.0
        %v921 = vmax.f32 %v883, 0.0
        %v922 = vmax.f32 %v885, 0.0
        %v923 = vmax.f32 %v814, 0.0
        %v924 = vmax.f32 %v816, 0.0
        %v925 = vmax.f32 %v887, 0.0
        %v926 = vmax.f32 %v889, 0.0
        %v927 = vmax.f32 %v820, 0.0
        %v928 = vmax.f32 %v822, 0.0
        %v929 = vmax.f32 %v893, 0.0
        %v930 = vmax.f32 %v895, 0.0
        %v931 = vmax.f32 %v824, 0.0
        %v932 = vmax.f32 %v826, 0.0
        %v933 = vmax.f32 %v897, 0.0
        %v934 = vmax.f32 %v899, 0.0
        %v935 = vmax.f32 %v830, 0.0
        %v936 = vmax.f32 %v832, 0.0
        %v937 = vmax.f32 %v903, 0.0
        %v938 = vmax.f32 %v905, 0.0
        %v939 = vmax.f32 %v834, 0.0
        %v940 = vmax.f32 %v836, 0.0
        %v941 = vmax.f32 %v907, 0.0
        %v942 = vmax.f32 %v909, 0.0
        %vm975 = vcmp.gt.s32.totalorder %v701, 0
        %v976 = vsel %vm975, %v701, 0
        %vm977 = vcmp.gt.s32.totalorder %v702, 0
        %v978 = vsel %vm977, %v702, 0
        %vm979 = vcmp.gt.s32.totalorder %v703, 0
        %v980 = vsel %vm979, %v703, 0
        %vm981 = vcmp.gt.s32.totalorder %v704, 0
        %v982 = vsel %vm981, %v704, 0
        %vm983 = vcmp.gt.s32.totalorder %v705, 0
        %v984 = vsel %vm983, %v705, 0
        %vm985 = vcmp.gt.s32.totalorder %v706, 0
        %v986 = vsel %vm985, %v706, 0
        %vm987 = vcmp.gt.s32.totalorder %v707, 0
        %v988 = vsel %vm987, %v707, 0
        %vm989 = vcmp.gt.s32.totalorder %v708, 0
        %v990 = vsel %vm989, %v708, 0
        %vm991 = vcmp.gt.s32.totalorder %v709, 0
        %v992 = vsel %vm991, %v709, 0
        %vm993 = vcmp.gt.s32.totalorder %v710, 0
        %v994 = vsel %vm993, %v710, 0
        %vm995 = vcmp.gt.s32.totalorder %v711, 0
        %v996 = vsel %vm995, %v711, 0
        %vm997 = vcmp.gt.s32.totalorder %v712, 0
        %v998 = vsel %vm997, %v712, 0
        %vm999 = vcmp.gt.s32.totalorder %v713, 0
        %v1000 = vsel %vm999, %v713, 0
        %vm1001 = vcmp.gt.s32.totalorder %v714, 0
        %v1002 = vsel %vm1001, %v714, 0
        %vm1003 = vcmp.gt.s32.totalorder %v715, 0
        %v1004 = vsel %vm1003, %v715, 0
        %vm1005 = vcmp.gt.s32.totalorder %v716, 0
        %v1006 = vsel %vm1005, %v716, 0
        %vm1007 = vcmp.gt.s32.totalorder %v717, 0
        %v1008 = vsel %vm1007, %v717, 0
        %vm1009 = vcmp.gt.s32.totalorder %v718, 0
        %v1010 = vsel %vm1009, %v718, 0
        %vm1011 = vcmp.gt.s32.totalorder %v719, 0
        %v1012 = vsel %vm1011, %v719, 0
        %vm1013 = vcmp.gt.s32.totalorder %v720, 0
        %v1014 = vsel %vm1013, %v720, 0
        %vm1015 = vcmp.gt.s32.totalorder %v721, 0
        %v1016 = vsel %vm1015, %v721, 0
        %vm1017 = vcmp.gt.s32.totalorder %v722, 0
        %v1018 = vsel %vm1017, %v722, 0
        %vm1019 = vcmp.gt.s32.totalorder %v723, 0
        %v1020 = vsel %vm1019, %v723, 0
        %vm1021 = vcmp.gt.s32.totalorder %v724, 0
        %v1022 = vsel %vm1021, %v724, 0
        %vm1023 = vcmp.gt.s32.totalorder %v725, 0
        %v1024 = vsel %vm1023, %v725, 0
        %vm1025 = vcmp.gt.s32.totalorder %v726, 0
        %v1026 = vsel %vm1025, %v726, 0
        %vm1027 = vcmp.gt.s32.totalorder %v727, 0
        %v1028 = vsel %vm1027, %v727, 0
        %vm1029 = vcmp.gt.s32.totalorder %v728, 0
        %v1030 = vsel %vm1029, %v728, 0
        %vm1031 = vcmp.gt.s32.totalorder %v729, 0
        %v1032 = vsel %vm1031, %v729, 0
        %vm1033 = vcmp.gt.s32.totalorder %v730, 0
        %v1034 = vsel %vm1033, %v730, 0
        %vm1035 = vcmp.gt.s32.totalorder %v731, 0
        %v1036 = vsel %vm1035, %v731, 0
        %vm1037 = vcmp.gt.s32.totalorder %v732, 0
        %v1038 = vsel %vm1037, %v732, 0
        %v1039 = vand.u32 %v976, 4294966784
        %v1040 = vand.u32 %v978, 4294966784
        %v1041 = vand.u32 %v980, 4294966784
        %v1042 = vand.u32 %v982, 4294966784
        %v1043 = vand.u32 %v984, 4294966784
        %v1044 = vand.u32 %v986, 4294966784
        %v1045 = vand.u32 %v988, 4294966784
        %v1046 = vand.u32 %v990, 4294966784
        %v1047 = vand.u32 %v992, 4294966784
        %v1048 = vand.u32 %v994, 4294966784
        %v1049 = vand.u32 %v996, 4294966784
        %v1050 = vand.u32 %v998, 4294966784
        %v1051 = vand.u32 %v1000, 4294966784
        %v1052 = vand.u32 %v1002, 4294966784
        %v1053 = vand.u32 %v1004, 4294966784
        %v1054 = vand.u32 %v1006, 4294966784
        %v1055 = vand.u32 %v1008, 4294966784
        %v1056 = vand.u32 %v1010, 4294966784
        %v1057 = vand.u32 %v1012, 4294966784
        %v1058 = vand.u32 %v1014, 4294966784
        %v1059 = vand.u32 %v1016, 4294966784
        %v1060 = vand.u32 %v1018, 4294966784
        %v1061 = vand.u32 %v1020, 4294966784
        %v1062 = vand.u32 %v1022, 4294966784
        %v1063 = vand.u32 %v1024, 4294966784
        %v1064 = vand.u32 %v1026, 4294966784
        %v1065 = vand.u32 %v1028, 4294966784
        %v1066 = vand.u32 %v1030, 4294966784
        %v1067 = vand.u32 %v1032, 4294966784
        %v1068 = vand.u32 %v1034, 4294966784
        %v1069 = vand.u32 %v1036, 4294966784
        %v1070 = vand.u32 %v1038, 4294966784
        %v1071 = vor.u32 %v1039, %v305
        %v1072 = vor.u32 %v1040, %v306
        %v1073 = vor.u32 %v1041, %v307
        %v1074 = vor.u32 %v1042, %v308
        %v1075 = vor.u32 %v1043, %v305
        %v1076 = vor.u32 %v1044, %v306
        %v1077 = vor.u32 %v1045, %v307
        %v1078 = vor.u32 %v1046, %v308
        %v1079 = vor.u32 %v1047, %v305
        %v1080 = vor.u32 %v1048, %v306
        %v1081 = vor.u32 %v1049, %v307
        %v1082 = vor.u32 %v1050, %v308
        %v1083 = vor.u32 %v1051, %v305
        %v1084 = vor.u32 %v1052, %v306
        %v1085 = vor.u32 %v1053, %v307
        %v1086 = vor.u32 %v1054, %v308
        %v1087 = vor.u32 %v1055, %v305
        %v1088 = vor.u32 %v1056, %v306
        %v1089 = vor.u32 %v1057, %v307
        %v1090 = vor.u32 %v1058, %v308
        %v1091 = vor.u32 %v1059, %v305
        %v1092 = vor.u32 %v1060, %v306
        %v1093 = vor.u32 %v1061, %v307
        %v1094 = vor.u32 %v1062, %v308
        %v1095 = vor.u32 %v1063, %v305
        %v1096 = vor.u32 %v1064, %v306
        %v1097 = vor.u32 %v1065, %v307
        %v1098 = vor.u32 %v1066, %v308
        %v1099 = vor.u32 %v1067, %v305
        %v1100 = vor.u32 %v1068, %v306
        %v1101 = vor.u32 %v1069, %v307
        %v1102 = vor.u32 %v1070, %v308
        %vm1103 = vcmp.gt.s32.totalorder %v1071, %v1072
        %v1104 = vsel %vm1103, %v1071, %v1072
        %vm1105 = vcmp.gt.s32.totalorder %v1104, %v1073
        %v1106 = vsel %vm1105, %v1104, %v1073
        %vm1107 = vcmp.gt.s32.totalorder %v1106, %v1074
        %v1108 = vsel %vm1107, %v1106, %v1074
        %v1109 = vand.u32 %v1108, 65535
        %v1110 = vshra.s32 %v1108, 16
        %v1111 = vcvt.s32.f32 %v1109
        %v1112 = vcvt.s32.f32 %v1110
        %1113 = vmax.xlane.f32.xlu0 %v1112
        %v1114 = vpop.xlane.xlu0 %1113
        %vm1115 = vcmp.eq.f32.partialorder %v1112, %v1114
        %v1116 = vsel %vm1115, %v1111, -inf
        %1117 = vmax.xlane.f32.xlu0 %v1116
        %v1118 = vpop.xlane.xlu0 %1117
        %v1119 = vcvt.f32.s32 %v1118
        %v1120 = vcvt.f32.s32 %v1114
        %v1121 = vshll.u32 %v1120, 16
        %v1122 = vadd.s32 %v1121, %v1119
        %vm1123 = vcmp.gt.s32.totalorder %v1075, %v1076
        %v1124 = vsel %vm1123, %v1075, %v1076
        %vm1125 = vcmp.gt.s32.totalorder %v1124, %v1077
        %v1126 = vsel %vm1125, %v1124, %v1077
        %vm1127 = vcmp.gt.s32.totalorder %v1126, %v1078
        %v1128 = vsel %vm1127, %v1126, %v1078
        %v1129 = vand.u32 %v1128, 65535
        %v1130 = vshra.s32 %v1128, 16
        %v1131 = vcvt.s32.f32 %v1129
        %v1132 = vcvt.s32.f32 %v1130
        %1133 = vmax.xlane.f32.xlu0 %v1132
        %v1134 = vpop.xlane.xlu0 %1133
        %vm1135 = vcmp.eq.f32.partialorder %v1132, %v1134
        %v1136 = vsel %vm1135, %v1131, -inf
        %1137 = vmax.xlane.f32.xlu0 %v1136
        %v1138 = vpop.xlane.xlu0 %1137
        %v1139 = vcvt.f32.s32 %v1138
        %v1140 = vcvt.f32.s32 %v1134
        %v1141 = vshll.u32 %v1140, 16
        %v1142 = vadd.s32 %v1141, %v1139
        %vm1143 = vcmp.gt.s32.totalorder %v1079, %v1080
        %v1144 = vsel %vm1143, %v1079, %v1080
        %vm1145 = vcmp.gt.s32.totalorder %v1144, %v1081
        %v1146 = vsel %vm1145, %v1144, %v1081
        %vm1147 = vcmp.gt.s32.totalorder %v1146, %v1082
        %v1148 = vsel %vm1147, %v1146, %v1082
        %v1149 = vand.u32 %v1148, 65535
        %v1150 = vshra.s32 %v1148, 16
        %v1151 = vcvt.s32.f32 %v1149
        %v1152 = vcvt.s32.f32 %v1150
        %1153 = vmax.xlane.f32.xlu0 %v1152
        %v1154 = vpop.xlane.xlu0 %1153
        %vm1155 = vcmp.eq.f32.partialorder %v1152, %v1154
        %v1156 = vsel %vm1155, %v1151, -inf
        %1157 = vmax.xlane.f32.xlu0 %v1156
        %v1158 = vpop.xlane.xlu0 %1157
        %v1159 = vcvt.f32.s32 %v1158
        %v1160 = vcvt.f32.s32 %v1154
        %v1161 = vshll.u32 %v1160, 16
        %v1162 = vadd.s32 %v1161, %v1159
        %vm1163 = vcmp.gt.s32.totalorder %v1083, %v1084
        %v1164 = vsel %vm1163, %v1083, %v1084
        %vm1165 = vcmp.gt.s32.totalorder %v1164, %v1085
        %v1166 = vsel %vm1165, %v1164, %v1085
        %vm1167 = vcmp.gt.s32.totalorder %v1166, %v1086
        %v1168 = vsel %vm1167, %v1166, %v1086
        %v1169 = vand.u32 %v1168, 65535
        %v1170 = vshra.s32 %v1168, 16
        %v1171 = vcvt.s32.f32 %v1169
        %v1172 = vcvt.s32.f32 %v1170
        %1173 = vmax.xlane.f32.xlu0 %v1172
        %v1174 = vpop.xlane.xlu0 %1173
        %vm1175 = vcmp.eq.f32.partialorder %v1172, %v1174
        %v1176 = vsel %vm1175, %v1171, -inf
        %1177 = vmax.xlane.f32.xlu0 %v1176
        %v1178 = vpop.xlane.xlu0 %1177
        %v1179 = vcvt.f32.s32 %v1178
        %v1180 = vcvt.f32.s32 %v1174
        %v1181 = vshll.u32 %v1180, 16
        %v1182 = vadd.s32 %v1181, %v1179
        %vm1183 = vcmp.gt.s32.totalorder %v1087, %v1088
        %v1184 = vsel %vm1183, %v1087, %v1088
        %vm1185 = vcmp.gt.s32.totalorder %v1184, %v1089
        %v1186 = vsel %vm1185, %v1184, %v1089
        %vm1187 = vcmp.gt.s32.totalorder %v1186, %v1090
        %v1188 = vsel %vm1187, %v1186, %v1090
        %v1189 = vand.u32 %v1188, 65535
        %v1190 = vshra.s32 %v1188, 16
        %v1191 = vcvt.s32.f32 %v1189
        %v1192 = vcvt.s32.f32 %v1190
        %1193 = vmax.xlane.f32.xlu0 %v1192
        %v1194 = vpop.xlane.xlu0 %1193
        %vm1195 = vcmp.eq.f32.partialorder %v1192, %v1194
        %v1196 = vsel %vm1195, %v1191, -inf
        %1197 = vmax.xlane.f32.xlu0 %v1196
        %v1198 = vpop.xlane.xlu0 %1197
        %v1199 = vcvt.f32.s32 %v1198
        %v1200 = vcvt.f32.s32 %v1194
        %v1201 = vshll.u32 %v1200, 16
        %v1202 = vadd.s32 %v1201, %v1199
        %vm1203 = vcmp.gt.s32.totalorder %v1091, %v1092
        %v1204 = vsel %vm1203, %v1091, %v1092
        %vm1205 = vcmp.gt.s32.totalorder %v1204, %v1093
        %v1206 = vsel %vm1205, %v1204, %v1093
        %vm1207 = vcmp.gt.s32.totalorder %v1206, %v1094
        %v1208 = vsel %vm1207, %v1206, %v1094
        %v1209 = vand.u32 %v1208, 65535
        %v1210 = vshra.s32 %v1208, 16
        %v1211 = vcvt.s32.f32 %v1209
        %v1212 = vcvt.s32.f32 %v1210
        %1213 = vmax.xlane.f32.xlu0 %v1212
        %v1214 = vpop.xlane.xlu0 %1213
        %vm1215 = vcmp.eq.f32.partialorder %v1212, %v1214
        %v1216 = vsel %vm1215, %v1211, -inf
        %1217 = vmax.xlane.f32.xlu0 %v1216
        %v1218 = vpop.xlane.xlu0 %1217
        %v1219 = vcvt.f32.s32 %v1218
        %v1220 = vcvt.f32.s32 %v1214
        %v1221 = vshll.u32 %v1220, 16
        %v1222 = vadd.s32 %v1221, %v1219
        %vm1223 = vcmp.gt.s32.totalorder %v1095, %v1096
        %v1224 = vsel %vm1223, %v1095, %v1096
        %vm1225 = vcmp.gt.s32.totalorder %v1224, %v1097
        %v1226 = vsel %vm1225, %v1224, %v1097
        %vm1227 = vcmp.gt.s32.totalorder %v1226, %v1098
        %v1228 = vsel %vm1227, %v1226, %v1098
        %v1229 = vand.u32 %v1228, 65535
        %v1230 = vshra.s32 %v1228, 16
        %v1231 = vcvt.s32.f32 %v1229
        %v1232 = vcvt.s32.f32 %v1230
        %1233 = vmax.xlane.f32.xlu0 %v1232
        %v1234 = vpop.xlane.xlu0 %1233
        %vm1235 = vcmp.eq.f32.partialorder %v1232, %v1234
        %v1236 = vsel %vm1235, %v1231, -inf
        %1237 = vmax.xlane.f32.xlu0 %v1236
        %v1238 = vpop.xlane.xlu0 %1237
        %v1239 = vcvt.f32.s32 %v1238
        %v1240 = vcvt.f32.s32 %v1234
        %v1241 = vshll.u32 %v1240, 16
        %v1242 = vadd.s32 %v1241, %v1239
        %vm1243 = vcmp.gt.s32.totalorder %v1099, %v1100
        %v1244 = vsel %vm1243, %v1099, %v1100
        %vm1245 = vcmp.gt.s32.totalorder %v1244, %v1101
        %v1246 = vsel %vm1245, %v1244, %v1101
        %vm1247 = vcmp.gt.s32.totalorder %v1246, %v1102
        %v1248 = vsel %vm1247, %v1246, %v1102
        %v1249 = vand.u32 %v1248, 65535
        %v1250 = vshra.s32 %v1248, 16
        %v1251 = vcvt.s32.f32 %v1249
        %v1252 = vcvt.s32.f32 %v1250
        %1253 = vmax.xlane.f32.xlu0 %v1252
        %v1254 = vpop.xlane.xlu0 %1253
        %vm1255 = vcmp.eq.f32.partialorder %v1252, %v1254
        %v1256 = vsel %vm1255, %v1251, -inf
        %1257 = vmax.xlane.f32.xlu0 %v1256
        %v1258 = vpop.xlane.xlu0 %1257
        %v1259 = vcvt.f32.s32 %v1258
        %v1260 = vcvt.f32.s32 %v1254
        %v1261 = vshll.u32 %v1260, 16
        %v1262 = vadd.s32 %v1261, %v1259
        %vm1263 = vcmp.eq.s32.totalorder %v1071, %v1122
        %vm1264 = vcmp.eq.s32.totalorder %v1072, %v1122
        %vm1265 = vcmp.eq.s32.totalorder %v1073, %v1122
        %vm1266 = vcmp.eq.s32.totalorder %v1074, %v1122
        %vm1267 = vcmp.eq.s32.totalorder %v1075, %v1142
        %vm1268 = vcmp.eq.s32.totalorder %v1076, %v1142
        %vm1269 = vcmp.eq.s32.totalorder %v1077, %v1142
        %vm1270 = vcmp.eq.s32.totalorder %v1078, %v1142
        %vm1271 = vcmp.eq.s32.totalorder %v1079, %v1162
        %vm1272 = vcmp.eq.s32.totalorder %v1080, %v1162
        %vm1273 = vcmp.eq.s32.totalorder %v1081, %v1162
        %vm1274 = vcmp.eq.s32.totalorder %v1082, %v1162
        %vm1275 = vcmp.eq.s32.totalorder %v1083, %v1182
        %vm1276 = vcmp.eq.s32.totalorder %v1084, %v1182
        %vm1277 = vcmp.eq.s32.totalorder %v1085, %v1182
        %vm1278 = vcmp.eq.s32.totalorder %v1086, %v1182
        %vm1279 = vcmp.eq.s32.totalorder %v1087, %v1202
        %vm1280 = vcmp.eq.s32.totalorder %v1088, %v1202
        %vm1281 = vcmp.eq.s32.totalorder %v1089, %v1202
        %vm1282 = vcmp.eq.s32.totalorder %v1090, %v1202
        %vm1283 = vcmp.eq.s32.totalorder %v1091, %v1222
        %vm1284 = vcmp.eq.s32.totalorder %v1092, %v1222
        %vm1285 = vcmp.eq.s32.totalorder %v1093, %v1222
        %vm1286 = vcmp.eq.s32.totalorder %v1094, %v1222
        %vm1287 = vcmp.eq.s32.totalorder %v1095, %v1242
        %vm1288 = vcmp.eq.s32.totalorder %v1096, %v1242
        %vm1289 = vcmp.eq.s32.totalorder %v1097, %v1242
        %vm1290 = vcmp.eq.s32.totalorder %v1098, %v1242
        %vm1291 = vcmp.eq.s32.totalorder %v1099, %v1262
        %vm1292 = vcmp.eq.s32.totalorder %v1100, %v1262
        %vm1293 = vcmp.eq.s32.totalorder %v1101, %v1262
        %vm1294 = vcmp.eq.s32.totalorder %v1102, %v1262
        %v1295 = vsel %vm1263, 4294967295, %v1071
        %v1296 = vsel %vm1264, 4294967295, %v1072
        %v1297 = vsel %vm1265, 4294967295, %v1073
        %v1298 = vsel %vm1266, 4294967295, %v1074
        %v1299 = vsel %vm1267, 4294967295, %v1075
        %v1300 = vsel %vm1268, 4294967295, %v1076
        %v1301 = vsel %vm1269, 4294967295, %v1077
        %v1302 = vsel %vm1270, 4294967295, %v1078
        %v1303 = vsel %vm1271, 4294967295, %v1079
        %v1304 = vsel %vm1272, 4294967295, %v1080
        %v1305 = vsel %vm1273, 4294967295, %v1081
        %v1306 = vsel %vm1274, 4294967295, %v1082
        %v1307 = vsel %vm1275, 4294967295, %v1083
        %v1308 = vsel %vm1276, 4294967295, %v1084
        %v1309 = vsel %vm1277, 4294967295, %v1085
        %v1310 = vsel %vm1278, 4294967295, %v1086
        %v1311 = vsel %vm1279, 4294967295, %v1087
        %v1312 = vsel %vm1280, 4294967295, %v1088
        %v1313 = vsel %vm1281, 4294967295, %v1089
        %v1314 = vsel %vm1282, 4294967295, %v1090
        %v1315 = vsel %vm1283, 4294967295, %v1091
        %v1316 = vsel %vm1284, 4294967295, %v1092
        %v1317 = vsel %vm1285, 4294967295, %v1093
        %v1318 = vsel %vm1286, 4294967295, %v1094
        %v1319 = vsel %vm1287, 4294967295, %v1095
        %v1320 = vsel %vm1288, 4294967295, %v1096
        %v1321 = vsel %vm1289, 4294967295, %v1097
        %v1322 = vsel %vm1290, 4294967295, %v1098
        %v1323 = vsel %vm1291, 4294967295, %v1099
        %v1324 = vsel %vm1292, 4294967295, %v1100
        %v1325 = vsel %vm1293, 4294967295, %v1101
        %v1326 = vsel %vm1294, 4294967295, %v1102
        %vm1327 = vcmp.gt.s32.totalorder %v1295, %v1296
        %v1328 = vsel %vm1327, %v1295, %v1296
        %vm1329 = vcmp.gt.s32.totalorder %v1328, %v1297
        %v1330 = vsel %vm1329, %v1328, %v1297
        %vm1331 = vcmp.gt.s32.totalorder %v1330, %v1298
        %v1332 = vsel %vm1331, %v1330, %v1298
        %v1333 = vand.u32 %v1332, 65535
        %v1334 = vshra.s32 %v1332, 16
        %v1335 = vcvt.s32.f32 %v1333
        %v1336 = vcvt.s32.f32 %v1334
        %1337 = vmax.xlane.f32.xlu0 %v1336
        %v1338 = vpop.xlane.xlu0 %1337
        %vm1339 = vcmp.eq.f32.partialorder %v1336, %v1338
        %v1340 = vsel %vm1339, %v1335, -inf
        %1341 = vmax.xlane.f32.xlu0 %v1340
        %v1342 = vpop.xlane.xlu0 %1341
        %v1343 = vcvt.f32.s32 %v1342
        %v1344 = vcvt.f32.s32 %v1338
        %v1345 = vshll.u32 %v1344, 16
        %v1346 = vadd.s32 %v1345, %v1343
        %vm1347 = vcmp.gt.s32.totalorder %v1299, %v1300
        %v1348 = vsel %vm1347, %v1299, %v1300
        %vm1349 = vcmp.gt.s32.totalorder %v1348, %v1301
        %v1350 = vsel %vm1349, %v1348, %v1301
        %vm1351 = vcmp.gt.s32.totalorder %v1350, %v1302
        %v1352 = vsel %vm1351, %v1350, %v1302
        %v1353 = vand.u32 %v1352, 65535
        %v1354 = vshra.s32 %v1352, 16
        %v1355 = vcvt.s32.f32 %v1353
        %v1356 = vcvt.s32.f32 %v1354
        %1357 = vmax.xlane.f32.xlu0 %v1356
        %v1358 = vpop.xlane.xlu0 %1357
        %vm1359 = vcmp.eq.f32.partialorder %v1356, %v1358
        %v1360 = vsel %vm1359, %v1355, -inf
        %1361 = vmax.xlane.f32.xlu0 %v1360
        %v1362 = vpop.xlane.xlu0 %1361
        %v1363 = vcvt.f32.s32 %v1362
        %v1364 = vcvt.f32.s32 %v1358
        %v1365 = vshll.u32 %v1364, 16
        %v1366 = vadd.s32 %v1365, %v1363
        %vm1367 = vcmp.gt.s32.totalorder %v1303, %v1304
        %v1368 = vsel %vm1367, %v1303, %v1304
        %vm1369 = vcmp.gt.s32.totalorder %v1368, %v1305
        %v1370 = vsel %vm1369, %v1368, %v1305
        %vm1371 = vcmp.gt.s32.totalorder %v1370, %v1306
        %v1372 = vsel %vm1371, %v1370, %v1306
        %v1373 = vand.u32 %v1372, 65535
        %v1374 = vshra.s32 %v1372, 16
        %v1375 = vcvt.s32.f32 %v1373
        %v1376 = vcvt.s32.f32 %v1374
        %1377 = vmax.xlane.f32.xlu0 %v1376
        %v1378 = vpop.xlane.xlu0 %1377
        %vm1379 = vcmp.eq.f32.partialorder %v1376, %v1378
        %v1380 = vsel %vm1379, %v1375, -inf
        %1381 = vmax.xlane.f32.xlu0 %v1380
        %v1382 = vpop.xlane.xlu0 %1381
        %v1383 = vcvt.f32.s32 %v1382
        %v1384 = vcvt.f32.s32 %v1378
        %v1385 = vshll.u32 %v1384, 16
        %v1386 = vadd.s32 %v1385, %v1383
        %vm1387 = vcmp.gt.s32.totalorder %v1307, %v1308
        %v1388 = vsel %vm1387, %v1307, %v1308
        %vm1389 = vcmp.gt.s32.totalorder %v1388, %v1309
        %v1390 = vsel %vm1389, %v1388, %v1309
        %vm1391 = vcmp.gt.s32.totalorder %v1390, %v1310
        %v1392 = vsel %vm1391, %v1390, %v1310
        %v1393 = vand.u32 %v1392, 65535
        %v1394 = vshra.s32 %v1392, 16
        %v1395 = vcvt.s32.f32 %v1393
        %v1396 = vcvt.s32.f32 %v1394
        %1397 = vmax.xlane.f32.xlu0 %v1396
        %v1398 = vpop.xlane.xlu0 %1397
        %vm1399 = vcmp.eq.f32.partialorder %v1396, %v1398
        %v1400 = vsel %vm1399, %v1395, -inf
        %1401 = vmax.xlane.f32.xlu0 %v1400
        %v1402 = vpop.xlane.xlu0 %1401
        %v1403 = vcvt.f32.s32 %v1402
        %v1404 = vcvt.f32.s32 %v1398
        %v1405 = vshll.u32 %v1404, 16
        %v1406 = vadd.s32 %v1405, %v1403
        %vm1407 = vcmp.gt.s32.totalorder %v1311, %v1312
        %v1408 = vsel %vm1407, %v1311, %v1312
        %vm1409 = vcmp.gt.s32.totalorder %v1408, %v1313
        %v1410 = vsel %vm1409, %v1408, %v1313
        %vm1411 = vcmp.gt.s32.totalorder %v1410, %v1314
        %v1412 = vsel %vm1411, %v1410, %v1314
        %v1413 = vand.u32 %v1412, 65535
        %v1414 = vshra.s32 %v1412, 16
        %v1415 = vcvt.s32.f32 %v1413
        %v1416 = vcvt.s32.f32 %v1414
        %1417 = vmax.xlane.f32.xlu0 %v1416
        %v1418 = vpop.xlane.xlu0 %1417
        %vm1419 = vcmp.eq.f32.partialorder %v1416, %v1418
        %v1420 = vsel %vm1419, %v1415, -inf
        %1421 = vmax.xlane.f32.xlu0 %v1420
        %v1422 = vpop.xlane.xlu0 %1421
        %v1423 = vcvt.f32.s32 %v1422
        %v1424 = vcvt.f32.s32 %v1418
        %v1425 = vshll.u32 %v1424, 16
        %v1426 = vadd.s32 %v1425, %v1423
        %vm1427 = vcmp.gt.s32.totalorder %v1315, %v1316
        %v1428 = vsel %vm1427, %v1315, %v1316
        %vm1429 = vcmp.gt.s32.totalorder %v1428, %v1317
        %v1430 = vsel %vm1429, %v1428, %v1317
        %vm1431 = vcmp.gt.s32.totalorder %v1430, %v1318
        %v1432 = vsel %vm1431, %v1430, %v1318
        %v1433 = vand.u32 %v1432, 65535
        %v1434 = vshra.s32 %v1432, 16
        %v1435 = vcvt.s32.f32 %v1433
        %v1436 = vcvt.s32.f32 %v1434
        %1437 = vmax.xlane.f32.xlu0 %v1436
        %v1438 = vpop.xlane.xlu0 %1437
        %vm1439 = vcmp.eq.f32.partialorder %v1436, %v1438
        %v1440 = vsel %vm1439, %v1435, -inf
        %1441 = vmax.xlane.f32.xlu0 %v1440
        %v1442 = vpop.xlane.xlu0 %1441
        %v1443 = vcvt.f32.s32 %v1442
        %v1444 = vcvt.f32.s32 %v1438
        %v1445 = vshll.u32 %v1444, 16
        %v1446 = vadd.s32 %v1445, %v1443
        %vm1447 = vcmp.gt.s32.totalorder %v1319, %v1320
        %v1448 = vsel %vm1447, %v1319, %v1320
        %vm1449 = vcmp.gt.s32.totalorder %v1448, %v1321
        %v1450 = vsel %vm1449, %v1448, %v1321
        %vm1451 = vcmp.gt.s32.totalorder %v1450, %v1322
        %v1452 = vsel %vm1451, %v1450, %v1322
        %v1453 = vand.u32 %v1452, 65535
        %v1454 = vshra.s32 %v1452, 16
        %v1455 = vcvt.s32.f32 %v1453
        %v1456 = vcvt.s32.f32 %v1454
        %1457 = vmax.xlane.f32.xlu0 %v1456
        %v1458 = vpop.xlane.xlu0 %1457
        %vm1459 = vcmp.eq.f32.partialorder %v1456, %v1458
        %v1460 = vsel %vm1459, %v1455, -inf
        %1461 = vmax.xlane.f32.xlu0 %v1460
        %v1462 = vpop.xlane.xlu0 %1461
        %v1463 = vcvt.f32.s32 %v1462
        %v1464 = vcvt.f32.s32 %v1458
        %v1465 = vshll.u32 %v1464, 16
        %v1466 = vadd.s32 %v1465, %v1463
        %vm1467 = vcmp.gt.s32.totalorder %v1323, %v1324
        %v1468 = vsel %vm1467, %v1323, %v1324
        %vm1469 = vcmp.gt.s32.totalorder %v1468, %v1325
        %v1470 = vsel %vm1469, %v1468, %v1325
        %vm1471 = vcmp.gt.s32.totalorder %v1470, %v1326
        %v1472 = vsel %vm1471, %v1470, %v1326
        %v1473 = vand.u32 %v1472, 65535
        %v1474 = vshra.s32 %v1472, 16
        %v1475 = vcvt.s32.f32 %v1473
        %v1476 = vcvt.s32.f32 %v1474
        %1477 = vmax.xlane.f32.xlu0 %v1476
        %v1478 = vpop.xlane.xlu0 %1477
        %vm1479 = vcmp.eq.f32.partialorder %v1476, %v1478
        %v1480 = vsel %vm1479, %v1475, -inf
        %1481 = vmax.xlane.f32.xlu0 %v1480
        %v1482 = vpop.xlane.xlu0 %1481
        %v1483 = vcvt.f32.s32 %v1482
        %v1484 = vcvt.f32.s32 %v1478
        %v1485 = vshll.u32 %v1484, 16
        %v1486 = vadd.s32 %v1485, %v1483
        %vm1487 = vcmp.eq.s32.totalorder %v1295, %v1346
        %vm1488 = vcmp.eq.s32.totalorder %v1296, %v1346
        %vm1489 = vcmp.eq.s32.totalorder %v1297, %v1346
        %vm1490 = vcmp.eq.s32.totalorder %v1298, %v1346
        %vm1491 = vcmp.eq.s32.totalorder %v1299, %v1366
        %vm1492 = vcmp.eq.s32.totalorder %v1300, %v1366
        %vm1493 = vcmp.eq.s32.totalorder %v1301, %v1366
        %vm1494 = vcmp.eq.s32.totalorder %v1302, %v1366
        %vm1495 = vcmp.eq.s32.totalorder %v1303, %v1386
        %vm1496 = vcmp.eq.s32.totalorder %v1304, %v1386
        %vm1497 = vcmp.eq.s32.totalorder %v1305, %v1386
        %vm1498 = vcmp.eq.s32.totalorder %v1306, %v1386
        %vm1499 = vcmp.eq.s32.totalorder %v1307, %v1406
        %vm1500 = vcmp.eq.s32.totalorder %v1308, %v1406
        %vm1501 = vcmp.eq.s32.totalorder %v1309, %v1406
        %vm1502 = vcmp.eq.s32.totalorder %v1310, %v1406
        %vm1503 = vcmp.eq.s32.totalorder %v1311, %v1426
        %vm1504 = vcmp.eq.s32.totalorder %v1312, %v1426
        %vm1505 = vcmp.eq.s32.totalorder %v1313, %v1426
        %vm1506 = vcmp.eq.s32.totalorder %v1314, %v1426
        %vm1507 = vcmp.eq.s32.totalorder %v1315, %v1446
        %vm1508 = vcmp.eq.s32.totalorder %v1316, %v1446
        %vm1509 = vcmp.eq.s32.totalorder %v1317, %v1446
        %vm1510 = vcmp.eq.s32.totalorder %v1318, %v1446
        %vm1511 = vcmp.eq.s32.totalorder %v1319, %v1466
        %vm1512 = vcmp.eq.s32.totalorder %v1320, %v1466
        %vm1513 = vcmp.eq.s32.totalorder %v1321, %v1466
        %vm1514 = vcmp.eq.s32.totalorder %v1322, %v1466
        %vm1515 = vcmp.eq.s32.totalorder %v1323, %v1486
        %vm1516 = vcmp.eq.s32.totalorder %v1324, %v1486
        %vm1517 = vcmp.eq.s32.totalorder %v1325, %v1486
        %vm1518 = vcmp.eq.s32.totalorder %v1326, %v1486
        %v1519 = vsel %vm1487, 4294967295, %v1295
        %v1520 = vsel %vm1488, 4294967295, %v1296
        %v1521 = vsel %vm1489, 4294967295, %v1297
        %v1522 = vsel %vm1490, 4294967295, %v1298
        %v1523 = vsel %vm1491, 4294967295, %v1299
        %v1524 = vsel %vm1492, 4294967295, %v1300
        %v1525 = vsel %vm1493, 4294967295, %v1301
        %v1526 = vsel %vm1494, 4294967295, %v1302
        %v1527 = vsel %vm1495, 4294967295, %v1303
        %v1528 = vsel %vm1496, 4294967295, %v1304
        %v1529 = vsel %vm1497, 4294967295, %v1305
        %v1530 = vsel %vm1498, 4294967295, %v1306
        %v1531 = vsel %vm1499, 4294967295, %v1307
        %v1532 = vsel %vm1500, 4294967295, %v1308
        %v1533 = vsel %vm1501, 4294967295, %v1309
        %v1534 = vsel %vm1502, 4294967295, %v1310
        %v1535 = vsel %vm1503, 4294967295, %v1311
        %v1536 = vsel %vm1504, 4294967295, %v1312
        %v1537 = vsel %vm1505, 4294967295, %v1313
        %v1538 = vsel %vm1506, 4294967295, %v1314
        %v1539 = vsel %vm1507, 4294967295, %v1315
        %v1540 = vsel %vm1508, 4294967295, %v1316
        %v1541 = vsel %vm1509, 4294967295, %v1317
        %v1542 = vsel %vm1510, 4294967295, %v1318
        %v1543 = vsel %vm1511, 4294967295, %v1319
        %v1544 = vsel %vm1512, 4294967295, %v1320
        %v1545 = vsel %vm1513, 4294967295, %v1321
        %v1546 = vsel %vm1514, 4294967295, %v1322
        %v1547 = vsel %vm1515, 4294967295, %v1323
        %v1548 = vsel %vm1516, 4294967295, %v1324
        %v1549 = vsel %vm1517, 4294967295, %v1325
        %v1550 = vsel %vm1518, 4294967295, %v1326
        %vm1551 = vcmp.gt.s32.totalorder %v1519, %v1520
        %v1552 = vsel %vm1551, %v1519, %v1520
        %vm1553 = vcmp.gt.s32.totalorder %v1552, %v1521
        %v1554 = vsel %vm1553, %v1552, %v1521
        %vm1555 = vcmp.gt.s32.totalorder %v1554, %v1522
        %v1556 = vsel %vm1555, %v1554, %v1522
        %v1557 = vand.u32 %v1556, 65535
        %v1558 = vshra.s32 %v1556, 16
        %v1559 = vcvt.s32.f32 %v1557
        %v1560 = vcvt.s32.f32 %v1558
        %1561 = vmax.xlane.f32.xlu0 %v1560
        %v1562 = vpop.xlane.xlu0 %1561
        %vm1563 = vcmp.eq.f32.partialorder %v1560, %v1562
        %v1564 = vsel %vm1563, %v1559, -inf
        %1565 = vmax.xlane.f32.xlu0 %v1564
        %v1566 = vpop.xlane.xlu0 %1565
        %v1567 = vcvt.f32.s32 %v1566
        %v1568 = vcvt.f32.s32 %v1562
        %v1569 = vshll.u32 %v1568, 16
        %v1570 = vadd.s32 %v1569, %v1567
        %vm1571 = vcmp.gt.s32.totalorder %v1523, %v1524
        %v1572 = vsel %vm1571, %v1523, %v1524
        %vm1573 = vcmp.gt.s32.totalorder %v1572, %v1525
        %v1574 = vsel %vm1573, %v1572, %v1525
        %vm1575 = vcmp.gt.s32.totalorder %v1574, %v1526
        %v1576 = vsel %vm1575, %v1574, %v1526
        %v1577 = vand.u32 %v1576, 65535
        %v1578 = vshra.s32 %v1576, 16
        %v1579 = vcvt.s32.f32 %v1577
        %v1580 = vcvt.s32.f32 %v1578
        %1581 = vmax.xlane.f32.xlu0 %v1580
        %v1582 = vpop.xlane.xlu0 %1581
        %vm1583 = vcmp.eq.f32.partialorder %v1580, %v1582
        %v1584 = vsel %vm1583, %v1579, -inf
        %1585 = vmax.xlane.f32.xlu0 %v1584
        %v1586 = vpop.xlane.xlu0 %1585
        %v1587 = vcvt.f32.s32 %v1586
        %v1588 = vcvt.f32.s32 %v1582
        %v1589 = vshll.u32 %v1588, 16
        %v1590 = vadd.s32 %v1589, %v1587
        %vm1591 = vcmp.gt.s32.totalorder %v1527, %v1528
        %v1592 = vsel %vm1591, %v1527, %v1528
        %vm1593 = vcmp.gt.s32.totalorder %v1592, %v1529
        %v1594 = vsel %vm1593, %v1592, %v1529
        %vm1595 = vcmp.gt.s32.totalorder %v1594, %v1530
        %v1596 = vsel %vm1595, %v1594, %v1530
        %v1597 = vand.u32 %v1596, 65535
        %v1598 = vshra.s32 %v1596, 16
        %v1599 = vcvt.s32.f32 %v1597
        %v1600 = vcvt.s32.f32 %v1598
        %1601 = vmax.xlane.f32.xlu0 %v1600
        %v1602 = vpop.xlane.xlu0 %1601
        %vm1603 = vcmp.eq.f32.partialorder %v1600, %v1602
        %v1604 = vsel %vm1603, %v1599, -inf
        %1605 = vmax.xlane.f32.xlu0 %v1604
        %v1606 = vpop.xlane.xlu0 %1605
        %v1607 = vcvt.f32.s32 %v1606
        %v1608 = vcvt.f32.s32 %v1602
        %v1609 = vshll.u32 %v1608, 16
        %v1610 = vadd.s32 %v1609, %v1607
        %vm1611 = vcmp.gt.s32.totalorder %v1531, %v1532
        %v1612 = vsel %vm1611, %v1531, %v1532
        %vm1613 = vcmp.gt.s32.totalorder %v1612, %v1533
        %v1614 = vsel %vm1613, %v1612, %v1533
        %vm1615 = vcmp.gt.s32.totalorder %v1614, %v1534
        %v1616 = vsel %vm1615, %v1614, %v1534
        %v1617 = vand.u32 %v1616, 65535
        %v1618 = vshra.s32 %v1616, 16
        %v1619 = vcvt.s32.f32 %v1617
        %v1620 = vcvt.s32.f32 %v1618
        %1621 = vmax.xlane.f32.xlu0 %v1620
        %v1622 = vpop.xlane.xlu0 %1621
        %vm1623 = vcmp.eq.f32.partialorder %v1620, %v1622
        %v1624 = vsel %vm1623, %v1619, -inf
        %1625 = vmax.xlane.f32.xlu0 %v1624
        %v1626 = vpop.xlane.xlu0 %1625
        %v1627 = vcvt.f32.s32 %v1626
        %v1628 = vcvt.f32.s32 %v1622
        %v1629 = vshll.u32 %v1628, 16
        %v1630 = vadd.s32 %v1629, %v1627
        %vm1631 = vcmp.gt.s32.totalorder %v1535, %v1536
        %v1632 = vsel %vm1631, %v1535, %v1536
        %vm1633 = vcmp.gt.s32.totalorder %v1632, %v1537
        %v1634 = vsel %vm1633, %v1632, %v1537
        %vm1635 = vcmp.gt.s32.totalorder %v1634, %v1538
        %v1636 = vsel %vm1635, %v1634, %v1538
        %v1637 = vand.u32 %v1636, 65535
        %v1638 = vshra.s32 %v1636, 16
        %v1639 = vcvt.s32.f32 %v1637
        %v1640 = vcvt.s32.f32 %v1638
        %1641 = vmax.xlane.f32.xlu0 %v1640
        %v1642 = vpop.xlane.xlu0 %1641
        %vm1643 = vcmp.eq.f32.partialorder %v1640, %v1642
        %v1644 = vsel %vm1643, %v1639, -inf
        %1645 = vmax.xlane.f32.xlu0 %v1644
        %v1646 = vpop.xlane.xlu0 %1645
        %v1647 = vcvt.f32.s32 %v1646
        %v1648 = vcvt.f32.s32 %v1642
        %v1649 = vshll.u32 %v1648, 16
        %v1650 = vadd.s32 %v1649, %v1647
        %vm1651 = vcmp.gt.s32.totalorder %v1539, %v1540
        %v1652 = vsel %vm1651, %v1539, %v1540
        %vm1653 = vcmp.gt.s32.totalorder %v1652, %v1541
        %v1654 = vsel %vm1653, %v1652, %v1541
        %vm1655 = vcmp.gt.s32.totalorder %v1654, %v1542
        %v1656 = vsel %vm1655, %v1654, %v1542
        %v1657 = vand.u32 %v1656, 65535
        %v1658 = vshra.s32 %v1656, 16
        %v1659 = vcvt.s32.f32 %v1657
        %v1660 = vcvt.s32.f32 %v1658
        %1661 = vmax.xlane.f32.xlu0 %v1660
        %v1662 = vpop.xlane.xlu0 %1661
        %vm1663 = vcmp.eq.f32.partialorder %v1660, %v1662
        %v1664 = vsel %vm1663, %v1659, -inf
        %1665 = vmax.xlane.f32.xlu0 %v1664
        %v1666 = vpop.xlane.xlu0 %1665
        %v1667 = vcvt.f32.s32 %v1666
        %v1668 = vcvt.f32.s32 %v1662
        %v1669 = vshll.u32 %v1668, 16
        %v1670 = vadd.s32 %v1669, %v1667
        %vm1671 = vcmp.gt.s32.totalorder %v1543, %v1544
        %v1672 = vsel %vm1671, %v1543, %v1544
        %vm1673 = vcmp.gt.s32.totalorder %v1672, %v1545
        %v1674 = vsel %vm1673, %v1672, %v1545
        %vm1675 = vcmp.gt.s32.totalorder %v1674, %v1546
        %v1676 = vsel %vm1675, %v1674, %v1546
        %v1677 = vand.u32 %v1676, 65535
        %v1678 = vshra.s32 %v1676, 16
        %v1679 = vcvt.s32.f32 %v1677
        %v1680 = vcvt.s32.f32 %v1678
        %1681 = vmax.xlane.f32.xlu0 %v1680
        %v1682 = vpop.xlane.xlu0 %1681
        %vm1683 = vcmp.eq.f32.partialorder %v1680, %v1682
        %v1684 = vsel %vm1683, %v1679, -inf
        %1685 = vmax.xlane.f32.xlu0 %v1684
        %v1686 = vpop.xlane.xlu0 %1685
        %v1687 = vcvt.f32.s32 %v1686
        %v1688 = vcvt.f32.s32 %v1682
        %v1689 = vshll.u32 %v1688, 16
        %v1690 = vadd.s32 %v1689, %v1687
        %vm1691 = vcmp.gt.s32.totalorder %v1547, %v1548
        %v1692 = vsel %vm1691, %v1547, %v1548
        %vm1693 = vcmp.gt.s32.totalorder %v1692, %v1549
        %v1694 = vsel %vm1693, %v1692, %v1549
        %vm1695 = vcmp.gt.s32.totalorder %v1694, %v1550
        %v1696 = vsel %vm1695, %v1694, %v1550
        %v1697 = vand.u32 %v1696, 65535
        %v1698 = vshra.s32 %v1696, 16
        %v1699 = vcvt.s32.f32 %v1697
        %v1700 = vcvt.s32.f32 %v1698
        %1701 = vmax.xlane.f32.xlu0 %v1700
        %v1702 = vpop.xlane.xlu0 %1701
        %vm1703 = vcmp.eq.f32.partialorder %v1700, %v1702
        %v1704 = vsel %vm1703, %v1699, -inf
        %1705 = vmax.xlane.f32.xlu0 %v1704
        %v1706 = vpop.xlane.xlu0 %1705
        %v1707 = vcvt.f32.s32 %v1706
        %v1708 = vcvt.f32.s32 %v1702
        %v1709 = vshll.u32 %v1708, 16
        %v1710 = vadd.s32 %v1709, %v1707
        %vm1711 = vcmp.eq.s32.totalorder %v1519, %v1570
        %vm1712 = vcmp.eq.s32.totalorder %v1520, %v1570
        %vm1713 = vcmp.eq.s32.totalorder %v1521, %v1570
        %vm1714 = vcmp.eq.s32.totalorder %v1522, %v1570
        %vm1715 = vcmp.eq.s32.totalorder %v1523, %v1590
        %vm1716 = vcmp.eq.s32.totalorder %v1524, %v1590
        %vm1717 = vcmp.eq.s32.totalorder %v1525, %v1590
        %vm1718 = vcmp.eq.s32.totalorder %v1526, %v1590
        %vm1719 = vcmp.eq.s32.totalorder %v1527, %v1610
        %vm1720 = vcmp.eq.s32.totalorder %v1528, %v1610
        %vm1721 = vcmp.eq.s32.totalorder %v1529, %v1610
        %vm1722 = vcmp.eq.s32.totalorder %v1530, %v1610
        %vm1723 = vcmp.eq.s32.totalorder %v1531, %v1630
        %vm1724 = vcmp.eq.s32.totalorder %v1532, %v1630
        %vm1725 = vcmp.eq.s32.totalorder %v1533, %v1630
        %vm1726 = vcmp.eq.s32.totalorder %v1534, %v1630
        %vm1727 = vcmp.eq.s32.totalorder %v1535, %v1650
        %vm1728 = vcmp.eq.s32.totalorder %v1536, %v1650
        %vm1729 = vcmp.eq.s32.totalorder %v1537, %v1650
        %vm1730 = vcmp.eq.s32.totalorder %v1538, %v1650
        %vm1731 = vcmp.eq.s32.totalorder %v1539, %v1670
        %vm1732 = vcmp.eq.s32.totalorder %v1540, %v1670
        %vm1733 = vcmp.eq.s32.totalorder %v1541, %v1670
        %vm1734 = vcmp.eq.s32.totalorder %v1542, %v1670
        %vm1735 = vcmp.eq.s32.totalorder %v1543, %v1690
        %vm1736 = vcmp.eq.s32.totalorder %v1544, %v1690
        %vm1737 = vcmp.eq.s32.totalorder %v1545, %v1690
        %vm1738 = vcmp.eq.s32.totalorder %v1546, %v1690
        %vm1739 = vcmp.eq.s32.totalorder %v1547, %v1710
        %vm1740 = vcmp.eq.s32.totalorder %v1548, %v1710
        %vm1741 = vcmp.eq.s32.totalorder %v1549, %v1710
        %vm1742 = vcmp.eq.s32.totalorder %v1550, %v1710
        %v1743 = vsel %vm1711, 4294967295, %v1519
        %v1744 = vsel %vm1712, 4294967295, %v1520
        %v1745 = vsel %vm1713, 4294967295, %v1521
        %v1746 = vsel %vm1714, 4294967295, %v1522
        %v1747 = vsel %vm1715, 4294967295, %v1523
        %v1748 = vsel %vm1716, 4294967295, %v1524
        %v1749 = vsel %vm1717, 4294967295, %v1525
        %v1750 = vsel %vm1718, 4294967295, %v1526
        %v1751 = vsel %vm1719, 4294967295, %v1527
        %v1752 = vsel %vm1720, 4294967295, %v1528
        %v1753 = vsel %vm1721, 4294967295, %v1529
        %v1754 = vsel %vm1722, 4294967295, %v1530
        %v1755 = vsel %vm1723, 4294967295, %v1531
        %v1756 = vsel %vm1724, 4294967295, %v1532
        %v1757 = vsel %vm1725, 4294967295, %v1533
        %v1758 = vsel %vm1726, 4294967295, %v1534
        %v1759 = vsel %vm1727, 4294967295, %v1535
        %v1760 = vsel %vm1728, 4294967295, %v1536
        %v1761 = vsel %vm1729, 4294967295, %v1537
        %v1762 = vsel %vm1730, 4294967295, %v1538
        %v1763 = vsel %vm1731, 4294967295, %v1539
        %v1764 = vsel %vm1732, 4294967295, %v1540
        %v1765 = vsel %vm1733, 4294967295, %v1541
        %v1766 = vsel %vm1734, 4294967295, %v1542
        %v1767 = vsel %vm1735, 4294967295, %v1543
        %v1768 = vsel %vm1736, 4294967295, %v1544
        %v1769 = vsel %vm1737, 4294967295, %v1545
        %v1770 = vsel %vm1738, 4294967295, %v1546
        %v1771 = vsel %vm1739, 4294967295, %v1547
        %v1772 = vsel %vm1740, 4294967295, %v1548
        %v1773 = vsel %vm1741, 4294967295, %v1549
        %v1774 = vsel %vm1742, 4294967295, %v1550
        %vm1775 = vcmp.gt.s32.totalorder %v1743, %v1744
        %v1776 = vsel %vm1775, %v1743, %v1744
        %vm1777 = vcmp.gt.s32.totalorder %v1776, %v1745
        %v1778 = vsel %vm1777, %v1776, %v1745
        %vm1779 = vcmp.gt.s32.totalorder %v1778, %v1746
        %v1780 = vsel %vm1779, %v1778, %v1746
        %v1781 = vand.u32 %v1780, 65535
        %v1782 = vshra.s32 %v1780, 16
        %v1783 = vcvt.s32.f32 %v1781
        %v1784 = vcvt.s32.f32 %v1782
        %1785 = vmax.xlane.f32.xlu0 %v1784
        %v1786 = vpop.xlane.xlu0 %1785
        %vm1787 = vcmp.eq.f32.partialorder %v1784, %v1786
        %v1788 = vsel %vm1787, %v1783, -inf
        %1789 = vmax.xlane.f32.xlu0 %v1788
        %v1790 = vpop.xlane.xlu0 %1789
        %v1791 = vcvt.f32.s32 %v1790
        %v1792 = vcvt.f32.s32 %v1786
        %v1793 = vshll.u32 %v1792, 16
        %v1794 = vadd.s32 %v1793, %v1791
        %vm1795 = vcmp.gt.s32.totalorder %v1747, %v1748
        %v1796 = vsel %vm1795, %v1747, %v1748
        %vm1797 = vcmp.gt.s32.totalorder %v1796, %v1749
        %v1798 = vsel %vm1797, %v1796, %v1749
        %vm1799 = vcmp.gt.s32.totalorder %v1798, %v1750
        %v1800 = vsel %vm1799, %v1798, %v1750
        %v1801 = vand.u32 %v1800, 65535
        %v1802 = vshra.s32 %v1800, 16
        %v1803 = vcvt.s32.f32 %v1801
        %v1804 = vcvt.s32.f32 %v1802
        %1805 = vmax.xlane.f32.xlu0 %v1804
        %v1806 = vpop.xlane.xlu0 %1805
        %vm1807 = vcmp.eq.f32.partialorder %v1804, %v1806
        %v1808 = vsel %vm1807, %v1803, -inf
        %1809 = vmax.xlane.f32.xlu0 %v1808
        %v1810 = vpop.xlane.xlu0 %1809
        %v1811 = vcvt.f32.s32 %v1810
        %v1812 = vcvt.f32.s32 %v1806
        %v1813 = vshll.u32 %v1812, 16
        %v1814 = vadd.s32 %v1813, %v1811
        %vm1815 = vcmp.gt.s32.totalorder %v1751, %v1752
        %v1816 = vsel %vm1815, %v1751, %v1752
        %vm1817 = vcmp.gt.s32.totalorder %v1816, %v1753
        %v1818 = vsel %vm1817, %v1816, %v1753
        %vm1819 = vcmp.gt.s32.totalorder %v1818, %v1754
        %v1820 = vsel %vm1819, %v1818, %v1754
        %v1821 = vand.u32 %v1820, 65535
        %v1822 = vshra.s32 %v1820, 16
        %v1823 = vcvt.s32.f32 %v1821
        %v1824 = vcvt.s32.f32 %v1822
        %1825 = vmax.xlane.f32.xlu0 %v1824
        %v1826 = vpop.xlane.xlu0 %1825
        %vm1827 = vcmp.eq.f32.partialorder %v1824, %v1826
        %v1828 = vsel %vm1827, %v1823, -inf
        %1829 = vmax.xlane.f32.xlu0 %v1828
        %v1830 = vpop.xlane.xlu0 %1829
        %v1831 = vcvt.f32.s32 %v1830
        %v1832 = vcvt.f32.s32 %v1826
        %v1833 = vshll.u32 %v1832, 16
        %v1834 = vadd.s32 %v1833, %v1831
        %vm1835 = vcmp.gt.s32.totalorder %v1755, %v1756
        %v1836 = vsel %vm1835, %v1755, %v1756
        %vm1837 = vcmp.gt.s32.totalorder %v1836, %v1757
        %v1838 = vsel %vm1837, %v1836, %v1757
        %vm1839 = vcmp.gt.s32.totalorder %v1838, %v1758
        %v1840 = vsel %vm1839, %v1838, %v1758
        %v1841 = vand.u32 %v1840, 65535
        %v1842 = vshra.s32 %v1840, 16
        %v1843 = vcvt.s32.f32 %v1841
        %v1844 = vcvt.s32.f32 %v1842
        %1845 = vmax.xlane.f32.xlu0 %v1844
        %v1846 = vpop.xlane.xlu0 %1845
        %vm1847 = vcmp.eq.f32.partialorder %v1844, %v1846
        %v1848 = vsel %vm1847, %v1843, -inf
        %1849 = vmax.xlane.f32.xlu0 %v1848
        %v1850 = vpop.xlane.xlu0 %1849
        %v1851 = vcvt.f32.s32 %v1850
        %v1852 = vcvt.f32.s32 %v1846
        %v1853 = vshll.u32 %v1852, 16
        %v1854 = vadd.s32 %v1853, %v1851
        %vm1855 = vcmp.gt.s32.totalorder %v1759, %v1760
        %v1856 = vsel %vm1855, %v1759, %v1760
        %vm1857 = vcmp.gt.s32.totalorder %v1856, %v1761
        %v1858 = vsel %vm1857, %v1856, %v1761
        %vm1859 = vcmp.gt.s32.totalorder %v1858, %v1762
        %v1860 = vsel %vm1859, %v1858, %v1762
        %v1861 = vand.u32 %v1860, 65535
        %v1862 = vshra.s32 %v1860, 16
        %v1863 = vcvt.s32.f32 %v1861
        %v1864 = vcvt.s32.f32 %v1862
        %1865 = vmax.xlane.f32.xlu0 %v1864
        %v1866 = vpop.xlane.xlu0 %1865
        %vm1867 = vcmp.eq.f32.partialorder %v1864, %v1866
        %v1868 = vsel %vm1867, %v1863, -inf
        %1869 = vmax.xlane.f32.xlu0 %v1868
        %v1870 = vpop.xlane.xlu0 %1869
        %v1871 = vcvt.f32.s32 %v1870
        %v1872 = vcvt.f32.s32 %v1866
        %v1873 = vshll.u32 %v1872, 16
        %v1874 = vadd.s32 %v1873, %v1871
        %vm1875 = vcmp.gt.s32.totalorder %v1763, %v1764
        %v1876 = vsel %vm1875, %v1763, %v1764
        %vm1877 = vcmp.gt.s32.totalorder %v1876, %v1765
        %v1878 = vsel %vm1877, %v1876, %v1765
        %vm1879 = vcmp.gt.s32.totalorder %v1878, %v1766
        %v1880 = vsel %vm1879, %v1878, %v1766
        %v1881 = vand.u32 %v1880, 65535
        %v1882 = vshra.s32 %v1880, 16
        %v1883 = vcvt.s32.f32 %v1881
        %v1884 = vcvt.s32.f32 %v1882
        %1885 = vmax.xlane.f32.xlu0 %v1884
        %v1886 = vpop.xlane.xlu0 %1885
        %vm1887 = vcmp.eq.f32.partialorder %v1884, %v1886
        %v1888 = vsel %vm1887, %v1883, -inf
        %1889 = vmax.xlane.f32.xlu0 %v1888
        %v1890 = vpop.xlane.xlu0 %1889
        %v1891 = vcvt.f32.s32 %v1890
        %v1892 = vcvt.f32.s32 %v1886
        %v1893 = vshll.u32 %v1892, 16
        %v1894 = vadd.s32 %v1893, %v1891
        %vm1895 = vcmp.gt.s32.totalorder %v1767, %v1768
        %v1896 = vsel %vm1895, %v1767, %v1768
        %vm1897 = vcmp.gt.s32.totalorder %v1896, %v1769
        %v1898 = vsel %vm1897, %v1896, %v1769
        %vm1899 = vcmp.gt.s32.totalorder %v1898, %v1770
        %v1900 = vsel %vm1899, %v1898, %v1770
        %v1901 = vand.u32 %v1900, 65535
        %v1902 = vshra.s32 %v1900, 16
        %v1903 = vcvt.s32.f32 %v1901
        %v1904 = vcvt.s32.f32 %v1902
        %1905 = vmax.xlane.f32.xlu0 %v1904
        %v1906 = vpop.xlane.xlu0 %1905
        %vm1907 = vcmp.eq.f32.partialorder %v1904, %v1906
        %v1908 = vsel %vm1907, %v1903, -inf
        %1909 = vmax.xlane.f32.xlu0 %v1908
        %v1910 = vpop.xlane.xlu0 %1909
        %v1911 = vcvt.f32.s32 %v1910
        %v1912 = vcvt.f32.s32 %v1906
        %v1913 = vshll.u32 %v1912, 16
        %v1914 = vadd.s32 %v1913, %v1911
        %vm1915 = vcmp.gt.s32.totalorder %v1771, %v1772
        %v1916 = vsel %vm1915, %v1771, %v1772
        %vm1917 = vcmp.gt.s32.totalorder %v1916, %v1773
        %v1918 = vsel %vm1917, %v1916, %v1773
        %vm1919 = vcmp.gt.s32.totalorder %v1918, %v1774
        %v1920 = vsel %vm1919, %v1918, %v1774
        %v1921 = vand.u32 %v1920, 65535
        %v1922 = vshra.s32 %v1920, 16
        %v1923 = vcvt.s32.f32 %v1921
        %v1924 = vcvt.s32.f32 %v1922
        %1925 = vmax.xlane.f32.xlu0 %v1924
        %v1926 = vpop.xlane.xlu0 %1925
        %vm1927 = vcmp.eq.f32.partialorder %v1924, %v1926
        %v1928 = vsel %vm1927, %v1923, -inf
        %1929 = vmax.xlane.f32.xlu0 %v1928
        %v1930 = vpop.xlane.xlu0 %1929
        %v1931 = vcvt.f32.s32 %v1930
        %v1932 = vcvt.f32.s32 %v1926
        %v1933 = vshll.u32 %v1932, 16
        %v1934 = vadd.s32 %v1933, %v1931
        %vm1935 = vcmp.eq.s32.totalorder %v1743, %v1794
        %vm1936 = vcmp.eq.s32.totalorder %v1744, %v1794
        %vm1937 = vcmp.eq.s32.totalorder %v1745, %v1794
        %vm1938 = vcmp.eq.s32.totalorder %v1746, %v1794
        %vm1939 = vcmp.eq.s32.totalorder %v1747, %v1814
        %vm1940 = vcmp.eq.s32.totalorder %v1748, %v1814
        %vm1941 = vcmp.eq.s32.totalorder %v1749, %v1814
        %vm1942 = vcmp.eq.s32.totalorder %v1750, %v1814
        %vm1943 = vcmp.eq.s32.totalorder %v1751, %v1834
        %vm1944 = vcmp.eq.s32.totalorder %v1752, %v1834
        %vm1945 = vcmp.eq.s32.totalorder %v1753, %v1834
        %vm1946 = vcmp.eq.s32.totalorder %v1754, %v1834
        %vm1947 = vcmp.eq.s32.totalorder %v1755, %v1854
        %vm1948 = vcmp.eq.s32.totalorder %v1756, %v1854
        %vm1949 = vcmp.eq.s32.totalorder %v1757, %v1854
        %vm1950 = vcmp.eq.s32.totalorder %v1758, %v1854
        %vm1951 = vcmp.eq.s32.totalorder %v1759, %v1874
        %vm1952 = vcmp.eq.s32.totalorder %v1760, %v1874
        %vm1953 = vcmp.eq.s32.totalorder %v1761, %v1874
        %vm1954 = vcmp.eq.s32.totalorder %v1762, %v1874
        %vm1955 = vcmp.eq.s32.totalorder %v1763, %v1894
        %vm1956 = vcmp.eq.s32.totalorder %v1764, %v1894
        %vm1957 = vcmp.eq.s32.totalorder %v1765, %v1894
        %vm1958 = vcmp.eq.s32.totalorder %v1766, %v1894
        %vm1959 = vcmp.eq.s32.totalorder %v1767, %v1914
        %vm1960 = vcmp.eq.s32.totalorder %v1768, %v1914
        %vm1961 = vcmp.eq.s32.totalorder %v1769, %v1914
        %vm1962 = vcmp.eq.s32.totalorder %v1770, %v1914
        %vm1963 = vcmp.eq.s32.totalorder %v1771, %v1934
        %vm1964 = vcmp.eq.s32.totalorder %v1772, %v1934
        %vm1965 = vcmp.eq.s32.totalorder %v1773, %v1934
        %vm1966 = vcmp.eq.s32.totalorder %v1774, %v1934
        %v1967 = vsel %vm1935, 4294967295, %v1743
        %v1968 = vsel %vm1936, 4294967295, %v1744
        %v1969 = vsel %vm1937, 4294967295, %v1745
        %v1970 = vsel %vm1938, 4294967295, %v1746
        %v1971 = vsel %vm1939, 4294967295, %v1747
        %v1972 = vsel %vm1940, 4294967295, %v1748
        %v1973 = vsel %vm1941, 4294967295, %v1749
        %v1974 = vsel %vm1942, 4294967295, %v1750
        %v1975 = vsel %vm1943, 4294967295, %v1751
        %v1976 = vsel %vm1944, 4294967295, %v1752
        %v1977 = vsel %vm1945, 4294967295, %v1753
        %v1978 = vsel %vm1946, 4294967295, %v1754
        %v1979 = vsel %vm1947, 4294967295, %v1755
        %v1980 = vsel %vm1948, 4294967295, %v1756
        %v1981 = vsel %vm1949, 4294967295, %v1757
        %v1982 = vsel %vm1950, 4294967295, %v1758
        %v1983 = vsel %vm1951, 4294967295, %v1759
        %v1984 = vsel %vm1952, 4294967295, %v1760
        %v1985 = vsel %vm1953, 4294967295, %v1761
        %v1986 = vsel %vm1954, 4294967295, %v1762
        %v1987 = vsel %vm1955, 4294967295, %v1763
        %v1988 = vsel %vm1956, 4294967295, %v1764
        %v1989 = vsel %vm1957, 4294967295, %v1765
        %v1990 = vsel %vm1958, 4294967295, %v1766
        %v1991 = vsel %vm1959, 4294967295, %v1767
        %v1992 = vsel %vm1960, 4294967295, %v1768
        %v1993 = vsel %vm1961, 4294967295, %v1769
        %v1994 = vsel %vm1962, 4294967295, %v1770
        %v1995 = vsel %vm1963, 4294967295, %v1771
        %v1996 = vsel %vm1964, 4294967295, %v1772
        %v1997 = vsel %vm1965, 4294967295, %v1773
        %v1998 = vsel %vm1966, 4294967295, %v1774
        %vm1999 = vcmp.lt.s32.totalorder %v1967, 0
        %vm2000 = vcmp.lt.s32.totalorder %v1968, 0
        %vm2001 = vcmp.lt.s32.totalorder %v1969, 0
        %vm2002 = vcmp.lt.s32.totalorder %v1970, 0
        %vm2003 = vcmp.lt.s32.totalorder %v1971, 0
        %vm2004 = vcmp.lt.s32.totalorder %v1972, 0
        %vm2005 = vcmp.lt.s32.totalorder %v1973, 0
        %vm2006 = vcmp.lt.s32.totalorder %v1974, 0
        %vm2007 = vcmp.lt.s32.totalorder %v1975, 0
        %vm2008 = vcmp.lt.s32.totalorder %v1976, 0
        %vm2009 = vcmp.lt.s32.totalorder %v1977, 0
        %vm2010 = vcmp.lt.s32.totalorder %v1978, 0
        %vm2011 = vcmp.lt.s32.totalorder %v1979, 0
        %vm2012 = vcmp.lt.s32.totalorder %v1980, 0
        %vm2013 = vcmp.lt.s32.totalorder %v1981, 0
        %vm2014 = vcmp.lt.s32.totalorder %v1982, 0
        %vm2015 = vcmp.lt.s32.totalorder %v1983, 0
        %vm2016 = vcmp.lt.s32.totalorder %v1984, 0
        %vm2017 = vcmp.lt.s32.totalorder %v1985, 0
        %vm2018 = vcmp.lt.s32.totalorder %v1986, 0
        %vm2019 = vcmp.lt.s32.totalorder %v1987, 0
        %vm2020 = vcmp.lt.s32.totalorder %v1988, 0
        %vm2021 = vcmp.lt.s32.totalorder %v1989, 0
        %vm2022 = vcmp.lt.s32.totalorder %v1990, 0
        %vm2023 = vcmp.lt.s32.totalorder %v1991, 0
        %vm2024 = vcmp.lt.s32.totalorder %v1992, 0
        %vm2025 = vcmp.lt.s32.totalorder %v1993, 0
        %vm2026 = vcmp.lt.s32.totalorder %v1994, 0
        %vm2027 = vcmp.lt.s32.totalorder %v1995, 0
        %vm2028 = vcmp.lt.s32.totalorder %v1996, 0
        %vm2029 = vcmp.lt.s32.totalorder %v1997, 0
        %vm2030 = vcmp.lt.s32.totalorder %v1998, 0
        %v2031 = vsel %vm1999, %v701, 0.0
        %v2032 = vsel %vm2000, %v702, 0.0
        %v2033 = vsel %vm2001, %v703, 0.0
        %v2034 = vsel %vm2002, %v704, 0.0
        %v2035 = vsel %vm2003, %v705, 0.0
        %v2036 = vsel %vm2004, %v706, 0.0
        %v2037 = vsel %vm2005, %v707, 0.0
        %v2038 = vsel %vm2006, %v708, 0.0
        %v2039 = vsel %vm2007, %v709, 0.0
        %v2040 = vsel %vm2008, %v710, 0.0
        %v2041 = vsel %vm2009, %v711, 0.0
        %v2042 = vsel %vm2010, %v712, 0.0
        %v2043 = vsel %vm2011, %v713, 0.0
        %v2044 = vsel %vm2012, %v714, 0.0
        %v2045 = vsel %vm2013, %v715, 0.0
        %v2046 = vsel %vm2014, %v716, 0.0
        %v2047 = vsel %vm2015, %v717, 0.0
        %v2048 = vsel %vm2016, %v718, 0.0
        %v2049 = vsel %vm2017, %v719, 0.0
        %v2050 = vsel %vm2018, %v720, 0.0
        %v2051 = vsel %vm2019, %v721, 0.0
        %v2052 = vsel %vm2020, %v722, 0.0
        %v2053 = vsel %vm2021, %v723, 0.0
        %v2054 = vsel %vm2022, %v724, 0.0
        %v2055 = vsel %vm2023, %v725, 0.0
        %v2056 = vsel %vm2024, %v726, 0.0
        %v2057 = vsel %vm2025, %v727, 0.0
        %v2058 = vsel %vm2026, %v728, 0.0
        %v2059 = vsel %vm2027, %v729, 0.0
        %v2060 = vsel %vm2028, %v730, 0.0
        %v2061 = vsel %vm2029, %v731, 0.0
        %v2062 = vsel %vm2030, %v732, 0.0
        %2063 = vst [vmem:[%s288] sm:$0xff] %v2031
        %2064 = vst [vmem:[%s288 + $0x8] sm:$0xff] %v2032
        %2065 = vst [vmem:[%s288 + $0x10] sm:$0xff] %v2033
        %2066 = vst [vmem:[%s288 + $0x18] sm:$0xff] %v2034
        %2067 = vst [vmem:[%s288 + $0x20] sm:$0xff] %v2035
        %2068 = vst [vmem:[%s288 + $0x28] sm:$0xff] %v2036
        %2069 = vst [vmem:[%s288 + $0x30] sm:$0xff] %v2037
        %2070 = vst [vmem:[%s288 + $0x38] sm:$0xff] %v2038
        %2071 = vst [vmem:[%s288 + $0x40] sm:$0xff] %v2039
        %2072 = vst [vmem:[%s288 + $0x48] sm:$0xff] %v2040
        %2073 = vst [vmem:[%s288 + $0x50] sm:$0xff] %v2041
        %2074 = vst [vmem:[%s288 + $0x58] sm:$0xff] %v2042
        %2075 = vst [vmem:[%s288 + $0x60] sm:$0xff] %v2043
        %2076 = vst [vmem:[%s288 + $0x68] sm:$0xff] %v2044
        %2077 = vst [vmem:[%s288 + $0x70] sm:$0xff] %v2045
        %2078 = vst [vmem:[%s288 + $0x78] sm:$0xff] %v2046
        %2079 = vst [vmem:[%s288 + $0x80] sm:$0xff] %v2047
        %2080 = vst [vmem:[%s288 + $0x88] sm:$0xff] %v2048
        %2081 = vst [vmem:[%s288 + $0x90] sm:$0xff] %v2049
        %2082 = vst [vmem:[%s288 + $0x98] sm:$0xff] %v2050
        %2083 = vst [vmem:[%s288 + $0xa0] sm:$0xff] %v2051
        %2084 = vst [vmem:[%s288 + $0xa8] sm:$0xff] %v2052
        %2085 = vst [vmem:[%s288 + $0xb0] sm:$0xff] %v2053
        %2086 = vst [vmem:[%s288 + $0xb8] sm:$0xff] %v2054
        %2087 = vst [vmem:[%s288 + $0xc0] sm:$0xff] %v2055
        %2088 = vst [vmem:[%s288 + $0xc8] sm:$0xff] %v2056
        %2089 = vst [vmem:[%s288 + $0xd0] sm:$0xff] %v2057
        %2090 = vst [vmem:[%s288 + $0xd8] sm:$0xff] %v2058
        %2091 = vst [vmem:[%s288 + $0xe0] sm:$0xff] %v2059
        %2092 = vst [vmem:[%s288 + $0xe8] sm:$0xff] %v2060
        %2093 = vst [vmem:[%s288 + $0xf0] sm:$0xff] %v2061
        %2094 = vst [vmem:[%s288 + $0xf8] sm:$0xff] %v2062
        %v2095 = vpack.c.bf16 %v2035, %v2031
        %v2096 = vpack.c.bf16 %v2036, %v2032
        %v2097 = vpack.c.bf16 %v2037, %v2033
        %v2098 = vpack.c.bf16 %v2038, %v2034
        %v2099 = vpack.c.bf16 %v2043, %v2039
        %v2100 = vpack.c.bf16 %v2044, %v2040
        %v2101 = vpack.c.bf16 %v2045, %v2041
        %v2102 = vpack.c.bf16 %v2046, %v2042
        %v2103 = vpack.c.bf16 %v2051, %v2047
        %v2104 = vpack.c.bf16 %v2052, %v2048
        %v2105 = vpack.c.bf16 %v2053, %v2049
        %v2106 = vpack.c.bf16 %v2054, %v2050
        %v2107 = vpack.c.bf16 %v2059, %v2055
        %v2108 = vpack.c.bf16 %v2060, %v2056
        %v2109 = vpack.c.bf16 %v2061, %v2057
        %v2110 = vpack.c.bf16 %v2062, %v2058
        %v2111 = vld [vmem:[#allocation8] sm:$0xf]
        %v2112 = vld [vmem:[#allocation8 + $0x4] sm:$0xf]
        %v2113 = vld [vmem:[#allocation8 + $0x8] sm:$0xf]
        %v2114 = vld [vmem:[#allocation8 + $0xc] sm:$0xf]
        %v2115 = vld [vmem:[#allocation8 + $0x10] sm:$0xf]
        %v2116 = vld [vmem:[#allocation8 + $0x14] sm:$0xf]
        %v2117 = vld [vmem:[#allocation8 + $0x18] sm:$0xf]
        %v2118 = vld [vmem:[#allocation8 + $0x1c] sm:$0xf]
        %v2119 = vld [vmem:[#allocation8 + $0x20] sm:$0xf]
        %v2120 = vld [vmem:[#allocation8 + $0x24] sm:$0xf]
        %v2121 = vld [vmem:[#allocation8 + $0x28] sm:$0xf]
        %v2122 = vld [vmem:[#allocation8 + $0x2c] sm:$0xf]
        %v2123 = vld [vmem:[#allocation8 + $0x30] sm:$0xf]
        %v2124 = vld [vmem:[#allocation8 + $0x34] sm:$0xf]
        %v2125 = vld [vmem:[#allocation8 + $0x38] sm:$0xf]
        %v2126 = vld [vmem:[#allocation8 + $0x3c] sm:$0xf]
        %v2127 = vld [vmem:[#allocation8 + $0x40] sm:$0xf]
        %v2128 = vld [vmem:[#allocation8 + $0x44] sm:$0xf]
        %v2129 = vld [vmem:[#allocation8 + $0x48] sm:$0xf]
        %v2130 = vld [vmem:[#allocation8 + $0x4c] sm:$0xf]
        %v2131 = vld [vmem:[#allocation8 + $0x50] sm:$0xf]
        %v2132 = vld [vmem:[#allocation8 + $0x54] sm:$0xf]
        %v2133 = vld [vmem:[#allocation8 + $0x58] sm:$0xf]
        %v2134 = vld [vmem:[#allocation8 + $0x5c] sm:$0xf]
        %v2135 = vld [vmem:[#allocation8 + $0x60] sm:$0xf]
        %v2136 = vld [vmem:[#allocation8 + $0x64] sm:$0xf]
        %v2137 = vld [vmem:[#allocation8 + $0x68] sm:$0xf]
        %v2138 = vld [vmem:[#allocation8 + $0x6c] sm:$0xf]
        %v2139 = vld [vmem:[#allocation8 + $0x70] sm:$0xf]
        %v2140 = vld [vmem:[#allocation8 + $0x74] sm:$0xf]
        %v2141 = vld [vmem:[#allocation8 + $0x78] sm:$0xf]
        %v2142 = vld [vmem:[#allocation8 + $0x7c] sm:$0xf]
        %v2143 = vld [vmem:[#allocation8 + $0x80] sm:$0xf]
        %v2144 = vld [vmem:[#allocation8 + $0x84] sm:$0xf]
        %v2145 = vld [vmem:[#allocation8 + $0x88] sm:$0xf]
        %v2146 = vld [vmem:[#allocation8 + $0x8c] sm:$0xf]
        %v2147 = vld [vmem:[#allocation8 + $0x90] sm:$0xf]
        %v2148 = vld [vmem:[#allocation8 + $0x94] sm:$0xf]
        %v2149 = vld [vmem:[#allocation8 + $0x98] sm:$0xf]
        %v2150 = vld [vmem:[#allocation8 + $0x9c] sm:$0xf]
        %v2151 = vld [vmem:[#allocation8 + $0xa0] sm:$0xf]
        %v2152 = vld [vmem:[#allocation8 + $0xa4] sm:$0xf]
        %v2153 = vld [vmem:[#allocation8 + $0xa8] sm:$0xf]
        %v2154 = vld [vmem:[#allocation8 + $0xac] sm:$0xf]
        %v2155 = vld [vmem:[#allocation8 + $0xb0] sm:$0xf]
        %v2156 = vld [vmem:[#allocation8 + $0xb4] sm:$0xf]
        %v2157 = vld [vmem:[#allocation8 + $0xb8] sm:$0xf]
        %v2158 = vld [vmem:[#allocation8 + $0xbc] sm:$0xf]
        %v2159 = vld [vmem:[#allocation8 + $0xc0] sm:$0xf]
        %v2160 = vld [vmem:[#allocation8 + $0xc4] sm:$0xf]
        %v2161 = vld [vmem:[#allocation8 + $0xc8] sm:$0xf]
        %v2162 = vld [vmem:[#allocation8 + $0xcc] sm:$0xf]
        %v2163 = vld [vmem:[#allocation8 + $0xd0] sm:$0xf]
        %v2164 = vld [vmem:[#allocation8 + $0xd4] sm:$0xf]
        %v2165 = vld [vmem:[#allocation8 + $0xd8] sm:$0xf]
        %v2166 = vld [vmem:[#allocation8 + $0xdc] sm:$0xf]
        %v2167 = vld [vmem:[#allocation8 + $0xe0] sm:$0xf]
        %v2168 = vld [vmem:[#allocation8 + $0xe4] sm:$0xf]
        %v2169 = vld [vmem:[#allocation8 + $0xe8] sm:$0xf]
        %v2170 = vld [vmem:[#allocation8 + $0xec] sm:$0xf]
        %v2171 = vld [vmem:[#allocation8 + $0xf0] sm:$0xf]
        %v2172 = vld [vmem:[#allocation8 + $0xf4] sm:$0xf]
        %v2173 = vld [vmem:[#allocation8 + $0xf8] sm:$0xf]
        %v2174 = vld [vmem:[#allocation8 + $0xfc] sm:$0xf]
        %v2239 = vunpack.c.l.b16 %v2111
        %v2240 = vunpack.c.l.b16 %v2112
        %v2241 = vunpack.c.l.b16 %v2113
        %v2242 = vunpack.c.l.b16 %v2114
        %v2243 = vunpack.c.l.b16 %v2115
        %v2244 = vunpack.c.l.b16 %v2116
        %v2245 = vunpack.c.l.b16 %v2117
        %v2246 = vunpack.c.l.b16 %v2118
        %v2247 = vunpack.c.l.b16 %v2119
        %v2248 = vunpack.c.l.b16 %v2120
        %v2249 = vunpack.c.l.b16 %v2121
        %v2250 = vunpack.c.l.b16 %v2122
        %v2251 = vunpack.c.l.b16 %v2123
        %v2252 = vunpack.c.l.b16 %v2124
        %v2253 = vunpack.c.l.b16 %v2125
        %v2254 = vunpack.c.l.b16 %v2126
        %v2255 = vunpack.c.l.b16 %v2127
        %v2256 = vunpack.c.l.b16 %v2128
        %v2257 = vunpack.c.l.b16 %v2129
        %v2258 = vunpack.c.l.b16 %v2130
        %v2259 = vunpack.c.l.b16 %v2131
        %v2260 = vunpack.c.l.b16 %v2132
        %v2261 = vunpack.c.l.b16 %v2133
        %v2262 = vunpack.c.l.b16 %v2134
        %v2263 = vunpack.c.l.b16 %v2135
        %v2264 = vunpack.c.l.b16 %v2136
        %v2265 = vunpack.c.l.b16 %v2137
        %v2266 = vunpack.c.l.b16 %v2138
        %v2267 = vunpack.c.l.b16 %v2139
        %v2268 = vunpack.c.l.b16 %v2140
        %v2269 = vunpack.c.l.b16 %v2141
        %v2270 = vunpack.c.l.b16 %v2142
        %v2271 = vunpack.c.l.b16 %v2143
        %v2272 = vunpack.c.l.b16 %v2144
        %v2273 = vunpack.c.l.b16 %v2145
        %v2274 = vunpack.c.l.b16 %v2146
        %v2275 = vunpack.c.l.b16 %v2147
        %v2276 = vunpack.c.l.b16 %v2148
        %v2277 = vunpack.c.l.b16 %v2149
        %v2278 = vunpack.c.l.b16 %v2150
        %v2279 = vunpack.c.l.b16 %v2151
        %v2280 = vunpack.c.l.b16 %v2152
        %v2281 = vunpack.c.l.b16 %v2153
        %v2282 = vunpack.c.l.b16 %v2154
        %v2283 = vunpack.c.l.b16 %v2155
        %v2284 = vunpack.c.l.b16 %v2156
        %v2285 = vunpack.c.l.b16 %v2157
        %v2286 = vunpack.c.l.b16 %v2158
        %v2287 = vunpack.c.l.b16 %v2159
        %v2288 = vunpack.c.l.b16 %v2160
        %v2289 = vunpack.c.l.b16 %v2161
        %v2290 = vunpack.c.l.b16 %v2162
        %v2291 = vunpack.c.l.b16 %v2163
        %v2292 = vunpack.c.l.b16 %v2164
        %v2293 = vunpack.c.l.b16 %v2165
        %v2294 = vunpack.c.l.b16 %v2166
        %v2295 = vunpack.c.l.b16 %v2167
        %v2296 = vunpack.c.l.b16 %v2168
        %v2297 = vunpack.c.l.b16 %v2169
        %v2298 = vunpack.c.l.b16 %v2170
        %v2299 = vunpack.c.l.b16 %v2171
        %v2300 = vunpack.c.l.b16 %v2172
        %v2301 = vunpack.c.l.b16 %v2173
        %v2302 = vunpack.c.l.b16 %v2174
        %v2303 = vpack.c.b16 %v2240, %v2239
        %v2304 = vpack.c.b16 %v2242, %v2241
        %v2305 = vpack.c.b16 %v2244, %v2243
        %v2306 = vpack.c.b16 %v2246, %v2245
        %v2307 = vpack.c.b16 %v2248, %v2247
        %v2308 = vpack.c.b16 %v2250, %v2249
        %v2309 = vpack.c.b16 %v2252, %v2251
        %v2310 = vpack.c.b16 %v2254, %v2253
        %v2311 = vpack.c.b16 %v2256, %v2255
        %v2312 = vpack.c.b16 %v2258, %v2257
        %v2313 = vpack.c.b16 %v2260, %v2259
        %v2314 = vpack.c.b16 %v2262, %v2261
        %v2315 = vpack.c.b16 %v2264, %v2263
        %v2316 = vpack.c.b16 %v2266, %v2265
        %v2317 = vpack.c.b16 %v2268, %v2267
        %v2318 = vpack.c.b16 %v2270, %v2269
        %v2319 = vpack.c.b16 %v2272, %v2271
        %v2320 = vpack.c.b16 %v2274, %v2273
        %v2321 = vpack.c.b16 %v2276, %v2275
        %v2322 = vpack.c.b16 %v2278, %v2277
        %v2323 = vpack.c.b16 %v2280, %v2279
        %v2324 = vpack.c.b16 %v2282, %v2281
        %v2325 = vpack.c.b16 %v2284, %v2283
        %v2326 = vpack.c.b16 %v2286, %v2285
        %v2327 = vpack.c.b16 %v2288, %v2287
        %v2328 = vpack.c.b16 %v2290, %v2289
        %v2329 = vpack.c.b16 %v2292, %v2291
        %v2330 = vpack.c.b16 %v2294, %v2293
        %v2331 = vpack.c.b16 %v2296, %v2295
        %v2332 = vpack.c.b16 %v2298, %v2297
        %v2333 = vpack.c.b16 %v2300, %v2299
        %v2334 = vpack.c.b16 %v2302, %v2301
        %2367 = vmatprep.subr.bf16.mxu0 0
        %2368 = vmatpush1.bf16.msra.mxu0 %v2310
        %2369 = vmatprep.subr.bf16.mxu0 0
        %2370 = vmatpush1.bf16.msra.mxu0 %v2309
        %2371 = vmatprep.subr.bf16.mxu0 0
        %2372 = vmatpush1.bf16.msra.mxu0 %v2308
        %2373 = vmatprep.subr.bf16.mxu0 0
        %2374 = vmatpush1.bf16.msra.mxu0 %v2307
        %2375 = vmatprep.subr.bf16.mxu0 0
        %2376 = vmatpush1.bf16.msra.mxu0 %v2306
        %2377 = vmatprep.subr.bf16.mxu0 0
        %2378 = vmatpush1.bf16.msra.mxu0 %v2305
        %2379 = vmatprep.subr.bf16.mxu0 0
        %2380 = vmatpush1.bf16.msra.mxu0 %v2304
        %2381 = vmatprep.subr.bf16.mxu0 0
        %2382 = vmatpush1.bf16.msra.mxu0 %v2303
        %2383 = vmatprep.subr.bf16.mxu0 0
        %2384 = vmatpush2.bf16.msra.mxu0 %v2318
        %2385 = vmatprep.subr.bf16.mxu0 0
        %2386 = vmatpush2.bf16.msra.mxu0 %v2317
        %2387 = vmatprep.subr.bf16.mxu0 0
        %2388 = vmatpush2.bf16.msra.mxu0 %v2316
        %2389 = vmatprep.subr.bf16.mxu0 0
        %2390 = vmatpush2.bf16.msra.mxu0 %v2315
        %2391 = vmatprep.subr.bf16.mxu0 0
        %2392 = vmatpush2.bf16.msra.mxu0 %v2314
        %2393 = vmatprep.subr.bf16.mxu0 0
        %2394 = vmatpush2.bf16.msra.mxu0 %v2313
        %2395 = vmatprep.subr.bf16.mxu0 0
        %2396 = vmatpush2.bf16.msra.mxu0 %v2312
        %2397 = vmatprep.subr.bf16.mxu0 0
        %2398 = vmatpush2.bf16.msra.mxu0 %v2311
        %2399 = vmatprep.mubr.bf16.mxu0 %v2096
        %2400 = vmatmul.mubr.bf16.gmra.mxu0 %v2095
        %v2401 = vpop.f32.mrf.mxu0
        %v2402 = vadd.f32 0.0, %v2401
        %v2403 = vpop.f32.mrf.mxu0
        %v2404 = vpop.f32.mrf.mxu0
        %v2405 = vadd.f32 0.0, %v2404
        %v2406 = vpop.f32.mrf.mxu0
        %2407 = vmatprep.mubr.bf16.mxu0 %v2100
        %2408 = vmatmul.mubr.bf16.gmra.mxu0 %v2099
        %v2409 = vpop.f32.mrf.mxu0
        %v2410 = vadd.f32 0.0, %v2409
        %v2411 = vpop.f32.mrf.mxu0
        %v2412 = vpop.f32.mrf.mxu0
        %v2413 = vadd.f32 0.0, %v2412
        %v2414 = vpop.f32.mrf.mxu0
        %2415 = vmatprep.mubr.bf16.mxu0 %v2104
        %2416 = vmatmul.mubr.bf16.gmra.mxu0 %v2103
        %v2417 = vpop.f32.mrf.mxu0
        %v2418 = vadd.f32 0.0, %v2417
        %v2419 = vpop.f32.mrf.mxu0
        %v2420 = vpop.f32.mrf.mxu0
        %v2421 = vadd.f32 0.0, %v2420
        %v2422 = vpop.f32.mrf.mxu0
        %2423 = vmatprep.mubr.bf16.mxu0 %v2108
        %2424 = vmatmul.mubr.bf16.gmra.mxu0 %v2107
        %v2425 = vpop.f32.mrf.mxu0
        %v2426 = vadd.f32 0.0, %v2425
        %v2427 = vpop.f32.mrf.mxu0
        %v2428 = vpop.f32.mrf.mxu0
        %v2429 = vadd.f32 0.0, %v2428
        %v2430 = vpop.f32.mrf.mxu0
        %2431 = vdwg.mxu0
        %2432 = vmatprep.subr.bf16.mxu0 0
        %2433 = vmatpush1.bf16.msra.mxu0 %v2326
        %2434 = vmatprep.subr.bf16.mxu0 0
        %2435 = vmatpush1.bf16.msra.mxu0 %v2325
        %2436 = vmatprep.subr.bf16.mxu0 0
        %2437 = vmatpush1.bf16.msra.mxu0 %v2324
        %2438 = vmatprep.subr.bf16.mxu0 0
        %2439 = vmatpush1.bf16.msra.mxu0 %v2323
        %2440 = vmatprep.subr.bf16.mxu0 0
        %2441 = vmatpush1.bf16.msra.mxu0 %v2322
        %2442 = vmatprep.subr.bf16.mxu0 0
        %2443 = vmatpush1.bf16.msra.mxu0 %v2321
        %2444 = vmatprep.subr.bf16.mxu0 0
        %2445 = vmatpush1.bf16.msra.mxu0 %v2320
        %2446 = vmatprep.subr.bf16.mxu0 0
        %2447 = vmatpush1.bf16.msra.mxu0 %v2319
        %2448 = vmatprep.subr.bf16.mxu0 0
        %2449 = vmatpush2.bf16.msra.mxu0 %v2334
        %2450 = vmatprep.subr.bf16.mxu0 0
        %2451 = vmatpush2.bf16.msra.mxu0 %v2333
        %2452 = vmatprep.subr.bf16.mxu0 0
        %2453 = vmatpush2.bf16.msra.mxu0 %v2332
        %2454 = vmatprep.subr.bf16.mxu0 0
        %2455 = vmatpush2.bf16.msra.mxu0 %v2331
        %2456 = vmatprep.subr.bf16.mxu0 0
        %2457 = vmatpush2.bf16.msra.mxu0 %v2330
        %2458 = vmatprep.subr.bf16.mxu0 0
        %2459 = vmatpush2.bf16.msra.mxu0 %v2329
        %2460 = vmatprep.subr.bf16.mxu0 0
        %2461 = vmatpush2.bf16.msra.mxu0 %v2328
        %2462 = vmatprep.subr.bf16.mxu0 0
        %2463 = vmatpush2.bf16.msra.mxu0 %v2327
        %2464 = vmatprep.mubr.bf16.mxu0 %v2098
        %2465 = vmatmul.mubr.bf16.gmra.mxu0 %v2097
        %v2466 = vpop.f32.mrf.mxu0
        %v2467 = vadd.f32 %v2402, %v2466
        %v2468 = vpop.f32.mrf.mxu0
        %v2469 = vpop.f32.mrf.mxu0
        %v2470 = vadd.f32 %v2405, %v2469
        %v2471 = vpop.f32.mrf.mxu0
        %2472 = vmatprep.mubr.bf16.mxu0 %v2102
        %2473 = vmatmul.mubr.bf16.gmra.mxu0 %v2101
        %v2474 = vpop.f32.mrf.mxu0
        %v2475 = vadd.f32 %v2410, %v2474
        %v2476 = vpop.f32.mrf.mxu0
        %v2477 = vpop.f32.mrf.mxu0
        %v2478 = vadd.f32 %v2413, %v2477
        %v2479 = vpop.f32.mrf.mxu0
        %2480 = vmatprep.mubr.bf16.mxu0 %v2106
        %2481 = vmatmul.mubr.bf16.gmra.mxu0 %v2105
        %v2482 = vpop.f32.mrf.mxu0
        %v2483 = vadd.f32 %v2418, %v2482
        %v2484 = vpop.f32.mrf.mxu0
        %v2485 = vpop.f32.mrf.mxu0
        %v2486 = vadd.f32 %v2421, %v2485
        %v2487 = vpop.f32.mrf.mxu0
        %2488 = vmatprep.mubr.bf16.mxu0 %v2110
        %2489 = vmatmul.mubr.bf16.gmra.mxu0 %v2109
        %v2490 = vpop.f32.mrf.mxu0
        %v2491 = vadd.f32 %v2426, %v2490
        %v2492 = vpop.f32.mrf.mxu0
        %v2493 = vpop.f32.mrf.mxu0
        %v2494 = vadd.f32 %v2429, %v2493
        %v2495 = vpop.f32.mrf.mxu0
        %2496 = vdwg.mxu0
        %2497 = vst [vmem:[%s295] sm:$0xff] %v2467
        %2498 = vst [vmem:[%s295 + $0x8] sm:$0xff] %v2470
        %2499 = vst [vmem:[%s295 + $0x10] sm:$0xff] %v2475
        %2500 = vst [vmem:[%s295 + $0x18] sm:$0xff] %v2478
        %2501 = vst [vmem:[%s295 + $0x20] sm:$0xff] %v2483
        %2502 = vst [vmem:[%s295 + $0x28] sm:$0xff] %v2486
        %2503 = vst [vmem:[%s295 + $0x30] sm:$0xff] %v2491
        %2504 = vst [vmem:[%s295 + $0x38] sm:$0xff] %v2494
        %vm2537 = vcmp.gt.s32.totalorder %v911, 0
        %v2538 = vsel %vm2537, %v911, 0
        %vm2539 = vcmp.gt.s32.totalorder %v912, 0
        %v2540 = vsel %vm2539, %v912, 0
        %vm2541 = vcmp.gt.s32.totalorder %v913, 0
        %v2542 = vsel %vm2541, %v913, 0
        %vm2543 = vcmp.gt.s32.totalorder %v914, 0
        %v2544 = vsel %vm2543, %v914, 0
        %vm2545 = vcmp.gt.s32.totalorder %v915, 0
        %v2546 = vsel %vm2545, %v915, 0
        %vm2547 = vcmp.gt.s32.totalorder %v916, 0
        %v2548 = vsel %vm2547, %v916, 0
        %vm2549 = vcmp.gt.s32.totalorder %v917, 0
        %v2550 = vsel %vm2549, %v917, 0
        %vm2551 = vcmp.gt.s32.totalorder %v918, 0
        %v2552 = vsel %vm2551, %v918, 0
        %vm2553 = vcmp.gt.s32.totalorder %v919, 0
        %v2554 = vsel %vm2553, %v919, 0
        %vm2555 = vcmp.gt.s32.totalorder %v920, 0
        %v2556 = vsel %vm2555, %v920, 0
        %vm2557 = vcmp.gt.s32.totalorder %v921, 0
        %v2558 = vsel %vm2557, %v921, 0
        %vm2559 = vcmp.gt.s32.totalorder %v922, 0
        %v2560 = vsel %vm2559, %v922, 0
        %vm2561 = vcmp.gt.s32.totalorder %v923, 0
        %v2562 = vsel %vm2561, %v923, 0
        %vm2563 = vcmp.gt.s32.totalorder %v924, 0
        %v2564 = vsel %vm2563, %v924, 0
        %vm2565 = vcmp.gt.s32.totalorder %v925, 0
        %v2566 = vsel %vm2565, %v925, 0
        %vm2567 = vcmp.gt.s32.totalorder %v926, 0
        %v2568 = vsel %vm2567, %v926, 0
        %vm2569 = vcmp.gt.s32.totalorder %v927, 0
        %v2570 = vsel %vm2569, %v927, 0
        %vm2571 = vcmp.gt.s32.totalorder %v928, 0
        %v2572 = vsel %vm2571, %v928, 0
        %vm2573 = vcmp.gt.s32.totalorder %v929, 0
        %v2574 = vsel %vm2573, %v929, 0
        %vm2575 = vcmp.gt.s32.totalorder %v930, 0
        %v2576 = vsel %vm2575, %v930, 0
        %vm2577 = vcmp.gt.s32.totalorder %v931, 0
        %v2578 = vsel %vm2577, %v931, 0
        %vm2579 = vcmp.gt.s32.totalorder %v932, 0
        %v2580 = vsel %vm2579, %v932, 0
        %vm2581 = vcmp.gt.s32.totalorder %v933, 0
        %v2582 = vsel %vm2581, %v933, 0
        %vm2583 = vcmp.gt.s32.totalorder %v934, 0
        %v2584 = vsel %vm2583, %v934, 0
        %vm2585 = vcmp.gt.s32.totalorder %v935, 0
        %v2586 = vsel %vm2585, %v935, 0
        %vm2587 = vcmp.gt.s32.totalorder %v936, 0
        %v2588 = vsel %vm2587, %v936, 0
        %vm2589 = vcmp.gt.s32.totalorder %v937, 0
        %v2590 = vsel %vm2589, %v937, 0
        %vm2591 = vcmp.gt.s32.totalorder %v938, 0
        %v2592 = vsel %vm2591, %v938, 0
        %vm2593 = vcmp.gt.s32.totalorder %v939, 0
        %v2594 = vsel %vm2593, %v939, 0
        %vm2595 = vcmp.gt.s32.totalorder %v940, 0
        %v2596 = vsel %vm2595, %v940, 0
        %vm2597 = vcmp.gt.s32.totalorder %v941, 0
        %v2598 = vsel %vm2597, %v941, 0
        %vm2599 = vcmp.gt.s32.totalorder %v942, 0
        %v2600 = vsel %vm2599, %v942, 0
        %v2601 = vand.u32 %v2538, 4294966784
        %v2602 = vand.u32 %v2540, 4294966784
        %v2603 = vand.u32 %v2542, 4294966784
        %v2604 = vand.u32 %v2544, 4294966784
        %v2605 = vand.u32 %v2546, 4294966784
        %v2606 = vand.u32 %v2548, 4294966784
        %v2607 = vand.u32 %v2550, 4294966784
        %v2608 = vand.u32 %v2552, 4294966784
        %v2609 = vand.u32 %v2554, 4294966784
        %v2610 = vand.u32 %v2556, 4294966784
        %v2611 = vand.u32 %v2558, 4294966784
        %v2612 = vand.u32 %v2560, 4294966784
        %v2613 = vand.u32 %v2562, 4294966784
        %v2614 = vand.u32 %v2564, 4294966784
        %v2615 = vand.u32 %v2566, 4294966784
        %v2616 = vand.u32 %v2568, 4294966784
        %v2617 = vand.u32 %v2570, 4294966784
        %v2618 = vand.u32 %v2572, 4294966784
        %v2619 = vand.u32 %v2574, 4294966784
        %v2620 = vand.u32 %v2576, 4294966784
        %v2621 = vand.u32 %v2578, 4294966784
        %v2622 = vand.u32 %v2580, 4294966784
        %v2623 = vand.u32 %v2582, 4294966784
        %v2624 = vand.u32 %v2584, 4294966784
        %v2625 = vand.u32 %v2586, 4294966784
        %v2626 = vand.u32 %v2588, 4294966784
        %v2627 = vand.u32 %v2590, 4294966784
        %v2628 = vand.u32 %v2592, 4294966784
        %v2629 = vand.u32 %v2594, 4294966784
        %v2630 = vand.u32 %v2596, 4294966784
        %v2631 = vand.u32 %v2598, 4294966784
        %v2632 = vand.u32 %v2600, 4294966784
        %v2633 = vor.u32 %v2601, %v305
        %v2634 = vor.u32 %v2602, %v306
        %v2635 = vor.u32 %v2603, %v307
        %v2636 = vor.u32 %v2604, %v308
        %v2637 = vor.u32 %v2605, %v305
        %v2638 = vor.u32 %v2606, %v306
        %v2639 = vor.u32 %v2607, %v307
        %v2640 = vor.u32 %v2608, %v308
        %v2641 = vor.u32 %v2609, %v305
        %v2642 = vor.u32 %v2610, %v306
        %v2643 = vor.u32 %v2611, %v307
        %v2644 = vor.u32 %v2612, %v308
        %v2645 = vor.u32 %v2613, %v305
        %v2646 = vor.u32 %v2614, %v306
        %v2647 = vor.u32 %v2615, %v307
        %v2648 = vor.u32 %v2616, %v308
        %v2649 = vor.u32 %v2617, %v305
        %v2650 = vor.u32 %v2618, %v306
        %v2651 = vor.u32 %v2619, %v307
        %v2652 = vor.u32 %v2620, %v308
        %v2653 = vor.u32 %v2621, %v305
        %v2654 = vor.u32 %v2622, %v306
        %v2655 = vor.u32 %v2623, %v307
        %v2656 = vor.u32 %v2624, %v308
        %v2657 = vor.u32 %v2625, %v305
        %v2658 = vor.u32 %v2626, %v306
        %v2659 = vor.u32 %v2627, %v307
        %v2660 = vor.u32 %v2628, %v308
        %v2661 = vor.u32 %v2629, %v305
        %v2662 = vor.u32 %v2630, %v306
        %v2663 = vor.u32 %v2631, %v307
        %v2664 = vor.u32 %v2632, %v308
        %vm2665 = vcmp.gt.s32.totalorder %v2633, %v2634
        %v2666 = vsel %vm2665, %v2633, %v2634
        %vm2667 = vcmp.gt.s32.totalorder %v2666, %v2635
        %v2668 = vsel %vm2667, %v2666, %v2635
        %vm2669 = vcmp.gt.s32.totalorder %v2668, %v2636
        %v2670 = vsel %vm2669, %v2668, %v2636
        %v2671 = vand.u32 %v2670, 65535
        %v2672 = vshra.s32 %v2670, 16
        %v2673 = vcvt.s32.f32 %v2671
        %v2674 = vcvt.s32.f32 %v2672
        %2675 = vmax.xlane.f32.xlu0 %v2674
        %v2676 = vpop.xlane.xlu0 %2675
        %vm2677 = vcmp.eq.f32.partialorder %v2674, %v2676
        %v2678 = vsel %vm2677, %v2673, -inf
        %2679 = vmax.xlane.f32.xlu0 %v2678
        %v2680 = vpop.xlane.xlu0 %2679
        %v2681 = vcvt.f32.s32 %v2680
        %v2682 = vcvt.f32.s32 %v2676
        %v2683 = vshll.u32 %v2682, 16
        %v2684 = vadd.s32 %v2683, %v2681
        %vm2685 = vcmp.gt.s32.totalorder %v2637, %v2638
        %v2686 = vsel %vm2685, %v2637, %v2638
        %vm2687 = vcmp.gt.s32.totalorder %v2686, %v2639
        %v2688 = vsel %vm2687, %v2686, %v2639
        %vm2689 = vcmp.gt.s32.totalorder %v2688, %v2640
        %v2690 = vsel %vm2689, %v2688, %v2640
        %v2691 = vand.u32 %v2690, 65535
        %v2692 = vshra.s32 %v2690, 16
        %v2693 = vcvt.s32.f32 %v2691
        %v2694 = vcvt.s32.f32 %v2692
        %2695 = vmax.xlane.f32.xlu0 %v2694
        %v2696 = vpop.xlane.xlu0 %2695
        %vm2697 = vcmp.eq.f32.partialorder %v2694, %v2696
        %v2698 = vsel %vm2697, %v2693, -inf
        %2699 = vmax.xlane.f32.xlu0 %v2698
        %v2700 = vpop.xlane.xlu0 %2699
        %v2701 = vcvt.f32.s32 %v2700
        %v2702 = vcvt.f32.s32 %v2696
        %v2703 = vshll.u32 %v2702, 16
        %v2704 = vadd.s32 %v2703, %v2701
        %vm2705 = vcmp.gt.s32.totalorder %v2641, %v2642
        %v2706 = vsel %vm2705, %v2641, %v2642
        %vm2707 = vcmp.gt.s32.totalorder %v2706, %v2643
        %v2708 = vsel %vm2707, %v2706, %v2643
        %vm2709 = vcmp.gt.s32.totalorder %v2708, %v2644
        %v2710 = vsel %vm2709, %v2708, %v2644
        %v2711 = vand.u32 %v2710, 65535
        %v2712 = vshra.s32 %v2710, 16
        %v2713 = vcvt.s32.f32 %v2711
        %v2714 = vcvt.s32.f32 %v2712
        %2715 = vmax.xlane.f32.xlu0 %v2714
        %v2716 = vpop.xlane.xlu0 %2715
        %vm2717 = vcmp.eq.f32.partialorder %v2714, %v2716
        %v2718 = vsel %vm2717, %v2713, -inf
        %2719 = vmax.xlane.f32.xlu0 %v2718
        %v2720 = vpop.xlane.xlu0 %2719
        %v2721 = vcvt.f32.s32 %v2720
        %v2722 = vcvt.f32.s32 %v2716
        %v2723 = vshll.u32 %v2722, 16
        %v2724 = vadd.s32 %v2723, %v2721
        %vm2725 = vcmp.gt.s32.totalorder %v2645, %v2646
        %v2726 = vsel %vm2725, %v2645, %v2646
        %vm2727 = vcmp.gt.s32.totalorder %v2726, %v2647
        %v2728 = vsel %vm2727, %v2726, %v2647
        %vm2729 = vcmp.gt.s32.totalorder %v2728, %v2648
        %v2730 = vsel %vm2729, %v2728, %v2648
        %v2731 = vand.u32 %v2730, 65535
        %v2732 = vshra.s32 %v2730, 16
        %v2733 = vcvt.s32.f32 %v2731
        %v2734 = vcvt.s32.f32 %v2732
        %2735 = vmax.xlane.f32.xlu0 %v2734
        %v2736 = vpop.xlane.xlu0 %2735
        %vm2737 = vcmp.eq.f32.partialorder %v2734, %v2736
        %v2738 = vsel %vm2737, %v2733, -inf
        %2739 = vmax.xlane.f32.xlu0 %v2738
        %v2740 = vpop.xlane.xlu0 %2739
        %v2741 = vcvt.f32.s32 %v2740
        %v2742 = vcvt.f32.s32 %v2736
        %v2743 = vshll.u32 %v2742, 16
        %v2744 = vadd.s32 %v2743, %v2741
        %vm2745 = vcmp.gt.s32.totalorder %v2649, %v2650
        %v2746 = vsel %vm2745, %v2649, %v2650
        %vm2747 = vcmp.gt.s32.totalorder %v2746, %v2651
        %v2748 = vsel %vm2747, %v2746, %v2651
        %vm2749 = vcmp.gt.s32.totalorder %v2748, %v2652
        %v2750 = vsel %vm2749, %v2748, %v2652
        %v2751 = vand.u32 %v2750, 65535
        %v2752 = vshra.s32 %v2750, 16
        %v2753 = vcvt.s32.f32 %v2751
        %v2754 = vcvt.s32.f32 %v2752
        %2755 = vmax.xlane.f32.xlu0 %v2754
        %v2756 = vpop.xlane.xlu0 %2755
        %vm2757 = vcmp.eq.f32.partialorder %v2754, %v2756
        %v2758 = vsel %vm2757, %v2753, -inf
        %2759 = vmax.xlane.f32.xlu0 %v2758
        %v2760 = vpop.xlane.xlu0 %2759
        %v2761 = vcvt.f32.s32 %v2760
        %v2762 = vcvt.f32.s32 %v2756
        %v2763 = vshll.u32 %v2762, 16
        %v2764 = vadd.s32 %v2763, %v2761
        %vm2765 = vcmp.gt.s32.totalorder %v2653, %v2654
        %v2766 = vsel %vm2765, %v2653, %v2654
        %vm2767 = vcmp.gt.s32.totalorder %v2766, %v2655
        %v2768 = vsel %vm2767, %v2766, %v2655
        %vm2769 = vcmp.gt.s32.totalorder %v2768, %v2656
        %v2770 = vsel %vm2769, %v2768, %v2656
        %v2771 = vand.u32 %v2770, 65535
        %v2772 = vshra.s32 %v2770, 16
        %v2773 = vcvt.s32.f32 %v2771
        %v2774 = vcvt.s32.f32 %v2772
        %2775 = vmax.xlane.f32.xlu0 %v2774
        %v2776 = vpop.xlane.xlu0 %2775
        %vm2777 = vcmp.eq.f32.partialorder %v2774, %v2776
        %v2778 = vsel %vm2777, %v2773, -inf
        %2779 = vmax.xlane.f32.xlu0 %v2778
        %v2780 = vpop.xlane.xlu0 %2779
        %v2781 = vcvt.f32.s32 %v2780
        %v2782 = vcvt.f32.s32 %v2776
        %v2783 = vshll.u32 %v2782, 16
        %v2784 = vadd.s32 %v2783, %v2781
        %vm2785 = vcmp.gt.s32.totalorder %v2657, %v2658
        %v2786 = vsel %vm2785, %v2657, %v2658
        %vm2787 = vcmp.gt.s32.totalorder %v2786, %v2659
        %v2788 = vsel %vm2787, %v2786, %v2659
        %vm2789 = vcmp.gt.s32.totalorder %v2788, %v2660
        %v2790 = vsel %vm2789, %v2788, %v2660
        %v2791 = vand.u32 %v2790, 65535
        %v2792 = vshra.s32 %v2790, 16
        %v2793 = vcvt.s32.f32 %v2791
        %v2794 = vcvt.s32.f32 %v2792
        %2795 = vmax.xlane.f32.xlu0 %v2794
        %v2796 = vpop.xlane.xlu0 %2795
        %vm2797 = vcmp.eq.f32.partialorder %v2794, %v2796
        %v2798 = vsel %vm2797, %v2793, -inf
        %2799 = vmax.xlane.f32.xlu0 %v2798
        %v2800 = vpop.xlane.xlu0 %2799
        %v2801 = vcvt.f32.s32 %v2800
        %v2802 = vcvt.f32.s32 %v2796
        %v2803 = vshll.u32 %v2802, 16
        %v2804 = vadd.s32 %v2803, %v2801
        %vm2805 = vcmp.gt.s32.totalorder %v2661, %v2662
        %v2806 = vsel %vm2805, %v2661, %v2662
        %vm2807 = vcmp.gt.s32.totalorder %v2806, %v2663
        %v2808 = vsel %vm2807, %v2806, %v2663
        %vm2809 = vcmp.gt.s32.totalorder %v2808, %v2664
        %v2810 = vsel %vm2809, %v2808, %v2664
        %v2811 = vand.u32 %v2810, 65535
        %v2812 = vshra.s32 %v2810, 16
        %v2813 = vcvt.s32.f32 %v2811
        %v2814 = vcvt.s32.f32 %v2812
        %2815 = vmax.xlane.f32.xlu0 %v2814
        %v2816 = vpop.xlane.xlu0 %2815
        %vm2817 = vcmp.eq.f32.partialorder %v2814, %v2816
        %v2818 = vsel %vm2817, %v2813, -inf
        %2819 = vmax.xlane.f32.xlu0 %v2818
        %v2820 = vpop.xlane.xlu0 %2819
        %v2821 = vcvt.f32.s32 %v2820
        %v2822 = vcvt.f32.s32 %v2816
        %v2823 = vshll.u32 %v2822, 16
        %v2824 = vadd.s32 %v2823, %v2821
        %vm2825 = vcmp.eq.s32.totalorder %v2633, %v2684
        %vm2826 = vcmp.eq.s32.totalorder %v2634, %v2684
        %vm2827 = vcmp.eq.s32.totalorder %v2635, %v2684
        %vm2828 = vcmp.eq.s32.totalorder %v2636, %v2684
        %vm2829 = vcmp.eq.s32.totalorder %v2637, %v2704
        %vm2830 = vcmp.eq.s32.totalorder %v2638, %v2704
        %vm2831 = vcmp.eq.s32.totalorder %v2639, %v2704
        %vm2832 = vcmp.eq.s32.totalorder %v2640, %v2704
        %vm2833 = vcmp.eq.s32.totalorder %v2641, %v2724
        %vm2834 = vcmp.eq.s32.totalorder %v2642, %v2724
        %vm2835 = vcmp.eq.s32.totalorder %v2643, %v2724
        %vm2836 = vcmp.eq.s32.totalorder %v2644, %v2724
        %vm2837 = vcmp.eq.s32.totalorder %v2645, %v2744
        %vm2838 = vcmp.eq.s32.totalorder %v2646, %v2744
        %vm2839 = vcmp.eq.s32.totalorder %v2647, %v2744
        %vm2840 = vcmp.eq.s32.totalorder %v2648, %v2744
        %vm2841 = vcmp.eq.s32.totalorder %v2649, %v2764
        %vm2842 = vcmp.eq.s32.totalorder %v2650, %v2764
        %vm2843 = vcmp.eq.s32.totalorder %v2651, %v2764
        %vm2844 = vcmp.eq.s32.totalorder %v2652, %v2764
        %vm2845 = vcmp.eq.s32.totalorder %v2653, %v2784
        %vm2846 = vcmp.eq.s32.totalorder %v2654, %v2784
        %vm2847 = vcmp.eq.s32.totalorder %v2655, %v2784
        %vm2848 = vcmp.eq.s32.totalorder %v2656, %v2784
        %vm2849 = vcmp.eq.s32.totalorder %v2657, %v2804
        %vm2850 = vcmp.eq.s32.totalorder %v2658, %v2804
        %vm2851 = vcmp.eq.s32.totalorder %v2659, %v2804
        %vm2852 = vcmp.eq.s32.totalorder %v2660, %v2804
        %vm2853 = vcmp.eq.s32.totalorder %v2661, %v2824
        %vm2854 = vcmp.eq.s32.totalorder %v2662, %v2824
        %vm2855 = vcmp.eq.s32.totalorder %v2663, %v2824
        %vm2856 = vcmp.eq.s32.totalorder %v2664, %v2824
        %v2857 = vsel %vm2825, 4294967295, %v2633
        %v2858 = vsel %vm2826, 4294967295, %v2634
        %v2859 = vsel %vm2827, 4294967295, %v2635
        %v2860 = vsel %vm2828, 4294967295, %v2636
        %v2861 = vsel %vm2829, 4294967295, %v2637
        %v2862 = vsel %vm2830, 4294967295, %v2638
        %v2863 = vsel %vm2831, 4294967295, %v2639
        %v2864 = vsel %vm2832, 4294967295, %v2640
        %v2865 = vsel %vm2833, 4294967295, %v2641
        %v2866 = vsel %vm2834, 4294967295, %v2642
        %v2867 = vsel %vm2835, 4294967295, %v2643
        %v2868 = vsel %vm2836, 4294967295, %v2644
        %v2869 = vsel %vm2837, 4294967295, %v2645
        %v2870 = vsel %vm2838, 4294967295, %v2646
        %v2871 = vsel %vm2839, 4294967295, %v2647
        %v2872 = vsel %vm2840, 4294967295, %v2648
        %v2873 = vsel %vm2841, 4294967295, %v2649
        %v2874 = vsel %vm2842, 4294967295, %v2650
        %v2875 = vsel %vm2843, 4294967295, %v2651
        %v2876 = vsel %vm2844, 4294967295, %v2652
        %v2877 = vsel %vm2845, 4294967295, %v2653
        %v2878 = vsel %vm2846, 4294967295, %v2654
        %v2879 = vsel %vm2847, 4294967295, %v2655
        %v2880 = vsel %vm2848, 4294967295, %v2656
        %v2881 = vsel %vm2849, 4294967295, %v2657
        %v2882 = vsel %vm2850, 4294967295, %v2658
        %v2883 = vsel %vm2851, 4294967295, %v2659
        %v2884 = vsel %vm2852, 4294967295, %v2660
        %v2885 = vsel %vm2853, 4294967295, %v2661
        %v2886 = vsel %vm2854, 4294967295, %v2662
        %v2887 = vsel %vm2855, 4294967295, %v2663
        %v2888 = vsel %vm2856, 4294967295, %v2664
        %vm2889 = vcmp.gt.s32.totalorder %v2857, %v2858
        %v2890 = vsel %vm2889, %v2857, %v2858
        %vm2891 = vcmp.gt.s32.totalorder %v2890, %v2859
        %v2892 = vsel %vm2891, %v2890, %v2859
        %vm2893 = vcmp.gt.s32.totalorder %v2892, %v2860
        %v2894 = vsel %vm2893, %v2892, %v2860
        %v2895 = vand.u32 %v2894, 65535
        %v2896 = vshra.s32 %v2894, 16
        %v2897 = vcvt.s32.f32 %v2895
        %v2898 = vcvt.s32.f32 %v2896
        %2899 = vmax.xlane.f32.xlu0 %v2898
        %v2900 = vpop.xlane.xlu0 %2899
        %vm2901 = vcmp.eq.f32.partialorder %v2898, %v2900
        %v2902 = vsel %vm2901, %v2897, -inf
        %2903 = vmax.xlane.f32.xlu0 %v2902
        %v2904 = vpop.xlane.xlu0 %2903
        %v2905 = vcvt.f32.s32 %v2904
        %v2906 = vcvt.f32.s32 %v2900
        %v2907 = vshll.u32 %v2906, 16
        %v2908 = vadd.s32 %v2907, %v2905
        %vm2909 = vcmp.gt.s32.totalorder %v2861, %v2862
        %v2910 = vsel %vm2909, %v2861, %v2862
        %vm2911 = vcmp.gt.s32.totalorder %v2910, %v2863
        %v2912 = vsel %vm2911, %v2910, %v2863
        %vm2913 = vcmp.gt.s32.totalorder %v2912, %v2864
        %v2914 = vsel %vm2913, %v2912, %v2864
        %v2915 = vand.u32 %v2914, 65535
        %v2916 = vshra.s32 %v2914, 16
        %v2917 = vcvt.s32.f32 %v2915
        %v2918 = vcvt.s32.f32 %v2916
        %2919 = vmax.xlane.f32.xlu0 %v2918
        %v2920 = vpop.xlane.xlu0 %2919
        %vm2921 = vcmp.eq.f32.partialorder %v2918, %v2920
        %v2922 = vsel %vm2921, %v2917, -inf
        %2923 = vmax.xlane.f32.xlu0 %v2922
        %v2924 = vpop.xlane.xlu0 %2923
        %v2925 = vcvt.f32.s32 %v2924
        %v2926 = vcvt.f32.s32 %v2920
        %v2927 = vshll.u32 %v2926, 16
        %v2928 = vadd.s32 %v2927, %v2925
        %vm2929 = vcmp.gt.s32.totalorder %v2865, %v2866
        %v2930 = vsel %vm2929, %v2865, %v2866
        %vm2931 = vcmp.gt.s32.totalorder %v2930, %v2867
        %v2932 = vsel %vm2931, %v2930, %v2867
        %vm2933 = vcmp.gt.s32.totalorder %v2932, %v2868
        %v2934 = vsel %vm2933, %v2932, %v2868
        %v2935 = vand.u32 %v2934, 65535
        %v2936 = vshra.s32 %v2934, 16
        %v2937 = vcvt.s32.f32 %v2935
        %v2938 = vcvt.s32.f32 %v2936
        %2939 = vmax.xlane.f32.xlu0 %v2938
        %v2940 = vpop.xlane.xlu0 %2939
        %vm2941 = vcmp.eq.f32.partialorder %v2938, %v2940
        %v2942 = vsel %vm2941, %v2937, -inf
        %2943 = vmax.xlane.f32.xlu0 %v2942
        %v2944 = vpop.xlane.xlu0 %2943
        %v2945 = vcvt.f32.s32 %v2944
        %v2946 = vcvt.f32.s32 %v2940
        %v2947 = vshll.u32 %v2946, 16
        %v2948 = vadd.s32 %v2947, %v2945
        %vm2949 = vcmp.gt.s32.totalorder %v2869, %v2870
        %v2950 = vsel %vm2949, %v2869, %v2870
        %vm2951 = vcmp.gt.s32.totalorder %v2950, %v2871
        %v2952 = vsel %vm2951, %v2950, %v2871
        %vm2953 = vcmp.gt.s32.totalorder %v2952, %v2872
        %v2954 = vsel %vm2953, %v2952, %v2872
        %v2955 = vand.u32 %v2954, 65535
        %v2956 = vshra.s32 %v2954, 16
        %v2957 = vcvt.s32.f32 %v2955
        %v2958 = vcvt.s32.f32 %v2956
        %2959 = vmax.xlane.f32.xlu0 %v2958
        %v2960 = vpop.xlane.xlu0 %2959
        %vm2961 = vcmp.eq.f32.partialorder %v2958, %v2960
        %v2962 = vsel %vm2961, %v2957, -inf
        %2963 = vmax.xlane.f32.xlu0 %v2962
        %v2964 = vpop.xlane.xlu0 %2963
        %v2965 = vcvt.f32.s32 %v2964
        %v2966 = vcvt.f32.s32 %v2960
        %v2967 = vshll.u32 %v2966, 16
        %v2968 = vadd.s32 %v2967, %v2965
        %vm2969 = vcmp.gt.s32.totalorder %v2873, %v2874
        %v2970 = vsel %vm2969, %v2873, %v2874
        %vm2971 = vcmp.gt.s32.totalorder %v2970, %v2875
        %v2972 = vsel %vm2971, %v2970, %v2875
        %vm2973 = vcmp.gt.s32.totalorder %v2972, %v2876
        %v2974 = vsel %vm2973, %v2972, %v2876
        %v2975 = vand.u32 %v2974, 65535
        %v2976 = vshra.s32 %v2974, 16
        %v2977 = vcvt.s32.f32 %v2975
        %v2978 = vcvt.s32.f32 %v2976
        %2979 = vmax.xlane.f32.xlu0 %v2978
        %v2980 = vpop.xlane.xlu0 %2979
        %vm2981 = vcmp.eq.f32.partialorder %v2978, %v2980
        %v2982 = vsel %vm2981, %v2977, -inf
        %2983 = vmax.xlane.f32.xlu0 %v2982
        %v2984 = vpop.xlane.xlu0 %2983
        %v2985 = vcvt.f32.s32 %v2984
        %v2986 = vcvt.f32.s32 %v2980
        %v2987 = vshll.u32 %v2986, 16
        %v2988 = vadd.s32 %v2987, %v2985
        %vm2989 = vcmp.gt.s32.totalorder %v2877, %v2878
        %v2990 = vsel %vm2989, %v2877, %v2878
        %vm2991 = vcmp.gt.s32.totalorder %v2990, %v2879
        %v2992 = vsel %vm2991, %v2990, %v2879
        %vm2993 = vcmp.gt.s32.totalorder %v2992, %v2880
        %v2994 = vsel %vm2993, %v2992, %v2880
        %v2995 = vand.u32 %v2994, 65535
        %v2996 = vshra.s32 %v2994, 16
        %v2997 = vcvt.s32.f32 %v2995
        %v2998 = vcvt.s32.f32 %v2996
        %2999 = vmax.xlane.f32.xlu0 %v2998
        %v3000 = vpop.xlane.xlu0 %2999
        %vm3001 = vcmp.eq.f32.partialorder %v2998, %v3000
        %v3002 = vsel %vm3001, %v2997, -inf
        %3003 = vmax.xlane.f32.xlu0 %v3002
        %v3004 = vpop.xlane.xlu0 %3003
        %v3005 = vcvt.f32.s32 %v3004
        %v3006 = vcvt.f32.s32 %v3000
        %v3007 = vshll.u32 %v3006, 16
        %v3008 = vadd.s32 %v3007, %v3005
        %vm3009 = vcmp.gt.s32.totalorder %v2881, %v2882
        %v3010 = vsel %vm3009, %v2881, %v2882
        %vm3011 = vcmp.gt.s32.totalorder %v3010, %v2883
        %v3012 = vsel %vm3011, %v3010, %v2883
        %vm3013 = vcmp.gt.s32.totalorder %v3012, %v2884
        %v3014 = vsel %vm3013, %v3012, %v2884
        %v3015 = vand.u32 %v3014, 65535
        %v3016 = vshra.s32 %v3014, 16
        %v3017 = vcvt.s32.f32 %v3015
        %v3018 = vcvt.s32.f32 %v3016
        %3019 = vmax.xlane.f32.xlu0 %v3018
        %v3020 = vpop.xlane.xlu0 %3019
        %vm3021 = vcmp.eq.f32.partialorder %v3018, %v3020
        %v3022 = vsel %vm3021, %v3017, -inf
        %3023 = vmax.xlane.f32.xlu0 %v3022
        %v3024 = vpop.xlane.xlu0 %3023
        %v3025 = vcvt.f32.s32 %v3024
        %v3026 = vcvt.f32.s32 %v3020
        %v3027 = vshll.u32 %v3026, 16
        %v3028 = vadd.s32 %v3027, %v3025
        %vm3029 = vcmp.gt.s32.totalorder %v2885, %v2886
        %v3030 = vsel %vm3029, %v2885, %v2886
        %vm3031 = vcmp.gt.s32.totalorder %v3030, %v2887
        %v3032 = vsel %vm3031, %v3030, %v2887
        %vm3033 = vcmp.gt.s32.totalorder %v3032, %v2888
        %v3034 = vsel %vm3033, %v3032, %v2888
        %v3035 = vand.u32 %v3034, 65535
        %v3036 = vshra.s32 %v3034, 16
        %v3037 = vcvt.s32.f32 %v3035
        %v3038 = vcvt.s32.f32 %v3036
        %3039 = vmax.xlane.f32.xlu0 %v3038
        %v3040 = vpop.xlane.xlu0 %3039
        %vm3041 = vcmp.eq.f32.partialorder %v3038, %v3040
        %v3042 = vsel %vm3041, %v3037, -inf
        %3043 = vmax.xlane.f32.xlu0 %v3042
        %v3044 = vpop.xlane.xlu0 %3043
        %v3045 = vcvt.f32.s32 %v3044
        %v3046 = vcvt.f32.s32 %v3040
        %v3047 = vshll.u32 %v3046, 16
        %v3048 = vadd.s32 %v3047, %v3045
        %vm3049 = vcmp.eq.s32.totalorder %v2857, %v2908
        %vm3050 = vcmp.eq.s32.totalorder %v2858, %v2908
        %vm3051 = vcmp.eq.s32.totalorder %v2859, %v2908
        %vm3052 = vcmp.eq.s32.totalorder %v2860, %v2908
        %vm3053 = vcmp.eq.s32.totalorder %v2861, %v2928
        %vm3054 = vcmp.eq.s32.totalorder %v2862, %v2928
        %vm3055 = vcmp.eq.s32.totalorder %v2863, %v2928
        %vm3056 = vcmp.eq.s32.totalorder %v2864, %v2928
        %vm3057 = vcmp.eq.s32.totalorder %v2865, %v2948
        %vm3058 = vcmp.eq.s32.totalorder %v2866, %v2948
        %vm3059 = vcmp.eq.s32.totalorder %v2867, %v2948
        %vm3060 = vcmp.eq.s32.totalorder %v2868, %v2948
        %vm3061 = vcmp.eq.s32.totalorder %v2869, %v2968
        %vm3062 = vcmp.eq.s32.totalorder %v2870, %v2968
        %vm3063 = vcmp.eq.s32.totalorder %v2871, %v2968
        %vm3064 = vcmp.eq.s32.totalorder %v2872, %v2968
        %vm3065 = vcmp.eq.s32.totalorder %v2873, %v2988
        %vm3066 = vcmp.eq.s32.totalorder %v2874, %v2988
        %vm3067 = vcmp.eq.s32.totalorder %v2875, %v2988
        %vm3068 = vcmp.eq.s32.totalorder %v2876, %v2988
        %vm3069 = vcmp.eq.s32.totalorder %v2877, %v3008
        %vm3070 = vcmp.eq.s32.totalorder %v2878, %v3008
        %vm3071 = vcmp.eq.s32.totalorder %v2879, %v3008
        %vm3072 = vcmp.eq.s32.totalorder %v2880, %v3008
        %vm3073 = vcmp.eq.s32.totalorder %v2881, %v3028
        %vm3074 = vcmp.eq.s32.totalorder %v2882, %v3028
        %vm3075 = vcmp.eq.s32.totalorder %v2883, %v3028
        %vm3076 = vcmp.eq.s32.totalorder %v2884, %v3028
        %vm3077 = vcmp.eq.s32.totalorder %v2885, %v3048
        %vm3078 = vcmp.eq.s32.totalorder %v2886, %v3048
        %vm3079 = vcmp.eq.s32.totalorder %v2887, %v3048
        %vm3080 = vcmp.eq.s32.totalorder %v2888, %v3048
        %v3081 = vsel %vm3049, 4294967295, %v2857
        %v3082 = vsel %vm3050, 4294967295, %v2858
        %v3083 = vsel %vm3051, 4294967295, %v2859
        %v3084 = vsel %vm3052, 4294967295, %v2860
        %v3085 = vsel %vm3053, 4294967295, %v2861
        %v3086 = vsel %vm3054, 4294967295, %v2862
        %v3087 = vsel %vm3055, 4294967295, %v2863
        %v3088 = vsel %vm3056, 4294967295, %v2864
        %v3089 = vsel %vm3057, 4294967295, %v2865
        %v3090 = vsel %vm3058, 4294967295, %v2866
        %v3091 = vsel %vm3059, 4294967295, %v2867
        %v3092 = vsel %vm3060, 4294967295, %v2868
        %v3093 = vsel %vm3061, 4294967295, %v2869
        %v3094 = vsel %vm3062, 4294967295, %v2870
        %v3095 = vsel %vm3063, 4294967295, %v2871
        %v3096 = vsel %vm3064, 4294967295, %v2872
        %v3097 = vsel %vm3065, 4294967295, %v2873
        %v3098 = vsel %vm3066, 4294967295, %v2874
        %v3099 = vsel %vm3067, 4294967295, %v2875
        %v3100 = vsel %vm3068, 4294967295, %v2876
        %v3101 = vsel %vm3069, 4294967295, %v2877
        %v3102 = vsel %vm3070, 4294967295, %v2878
        %v3103 = vsel %vm3071, 4294967295, %v2879
        %v3104 = vsel %vm3072, 4294967295, %v2880
        %v3105 = vsel %vm3073, 4294967295, %v2881
        %v3106 = vsel %vm3074, 4294967295, %v2882
        %v3107 = vsel %vm3075, 4294967295, %v2883
        %v3108 = vsel %vm3076, 4294967295, %v2884
        %v3109 = vsel %vm3077, 4294967295, %v2885
        %v3110 = vsel %vm3078, 4294967295, %v2886
        %v3111 = vsel %vm3079, 4294967295, %v2887
        %v3112 = vsel %vm3080, 4294967295, %v2888
        %vm3113 = vcmp.gt.s32.totalorder %v3081, %v3082
        %v3114 = vsel %vm3113, %v3081, %v3082
        %vm3115 = vcmp.gt.s32.totalorder %v3114, %v3083
        %v3116 = vsel %vm3115, %v3114, %v3083
        %vm3117 = vcmp.gt.s32.totalorder %v3116, %v3084
        %v3118 = vsel %vm3117, %v3116, %v3084
        %v3119 = vand.u32 %v3118, 65535
        %v3120 = vshra.s32 %v3118, 16
        %v3121 = vcvt.s32.f32 %v3119
        %v3122 = vcvt.s32.f32 %v3120
        %3123 = vmax.xlane.f32.xlu0 %v3122
        %v3124 = vpop.xlane.xlu0 %3123
        %vm3125 = vcmp.eq.f32.partialorder %v3122, %v3124
        %v3126 = vsel %vm3125, %v3121, -inf
        %3127 = vmax.xlane.f32.xlu0 %v3126
        %v3128 = vpop.xlane.xlu0 %3127
        %v3129 = vcvt.f32.s32 %v3128
        %v3130 = vcvt.f32.s32 %v3124
        %v3131 = vshll.u32 %v3130, 16
        %v3132 = vadd.s32 %v3131, %v3129
        %vm3133 = vcmp.gt.s32.totalorder %v3085, %v3086
        %v3134 = vsel %vm3133, %v3085, %v3086
        %vm3135 = vcmp.gt.s32.totalorder %v3134, %v3087
        %v3136 = vsel %vm3135, %v3134, %v3087
        %vm3137 = vcmp.gt.s32.totalorder %v3136, %v3088
        %v3138 = vsel %vm3137, %v3136, %v3088
        %v3139 = vand.u32 %v3138, 65535
        %v3140 = vshra.s32 %v3138, 16
        %v3141 = vcvt.s32.f32 %v3139
        %v3142 = vcvt.s32.f32 %v3140
        %3143 = vmax.xlane.f32.xlu0 %v3142
        %v3144 = vpop.xlane.xlu0 %3143
        %vm3145 = vcmp.eq.f32.partialorder %v3142, %v3144
        %v3146 = vsel %vm3145, %v3141, -inf
        %3147 = vmax.xlane.f32.xlu0 %v3146
        %v3148 = vpop.xlane.xlu0 %3147
        %v3149 = vcvt.f32.s32 %v3148
        %v3150 = vcvt.f32.s32 %v3144
        %v3151 = vshll.u32 %v3150, 16
        %v3152 = vadd.s32 %v3151, %v3149
        %vm3153 = vcmp.gt.s32.totalorder %v3089, %v3090
        %v3154 = vsel %vm3153, %v3089, %v3090
        %vm3155 = vcmp.gt.s32.totalorder %v3154, %v3091
        %v3156 = vsel %vm3155, %v3154, %v3091
        %vm3157 = vcmp.gt.s32.totalorder %v3156, %v3092
        %v3158 = vsel %vm3157, %v3156, %v3092
        %v3159 = vand.u32 %v3158, 65535
        %v3160 = vshra.s32 %v3158, 16
        %v3161 = vcvt.s32.f32 %v3159
        %v3162 = vcvt.s32.f32 %v3160
        %3163 = vmax.xlane.f32.xlu0 %v3162
        %v3164 = vpop.xlane.xlu0 %3163
        %vm3165 = vcmp.eq.f32.partialorder %v3162, %v3164
        %v3166 = vsel %vm3165, %v3161, -inf
        %3167 = vmax.xlane.f32.xlu0 %v3166
        %v3168 = vpop.xlane.xlu0 %3167
        %v3169 = vcvt.f32.s32 %v3168
        %v3170 = vcvt.f32.s32 %v3164
        %v3171 = vshll.u32 %v3170, 16
        %v3172 = vadd.s32 %v3171, %v3169
        %vm3173 = vcmp.gt.s32.totalorder %v3093, %v3094
        %v3174 = vsel %vm3173, %v3093, %v3094
        %vm3175 = vcmp.gt.s32.totalorder %v3174, %v3095
        %v3176 = vsel %vm3175, %v3174, %v3095
        %vm3177 = vcmp.gt.s32.totalorder %v3176, %v3096
        %v3178 = vsel %vm3177, %v3176, %v3096
        %v3179 = vand.u32 %v3178, 65535
        %v3180 = vshra.s32 %v3178, 16
        %v3181 = vcvt.s32.f32 %v3179
        %v3182 = vcvt.s32.f32 %v3180
        %3183 = vmax.xlane.f32.xlu0 %v3182
        %v3184 = vpop.xlane.xlu0 %3183
        %vm3185 = vcmp.eq.f32.partialorder %v3182, %v3184
        %v3186 = vsel %vm3185, %v3181, -inf
        %3187 = vmax.xlane.f32.xlu0 %v3186
        %v3188 = vpop.xlane.xlu0 %3187
        %v3189 = vcvt.f32.s32 %v3188
        %v3190 = vcvt.f32.s32 %v3184
        %v3191 = vshll.u32 %v3190, 16
        %v3192 = vadd.s32 %v3191, %v3189
        %vm3193 = vcmp.gt.s32.totalorder %v3097, %v3098
        %v3194 = vsel %vm3193, %v3097, %v3098
        %vm3195 = vcmp.gt.s32.totalorder %v3194, %v3099
        %v3196 = vsel %vm3195, %v3194, %v3099
        %vm3197 = vcmp.gt.s32.totalorder %v3196, %v3100
        %v3198 = vsel %vm3197, %v3196, %v3100
        %v3199 = vand.u32 %v3198, 65535
        %v3200 = vshra.s32 %v3198, 16
        %v3201 = vcvt.s32.f32 %v3199
        %v3202 = vcvt.s32.f32 %v3200
        %3203 = vmax.xlane.f32.xlu0 %v3202
        %v3204 = vpop.xlane.xlu0 %3203
        %vm3205 = vcmp.eq.f32.partialorder %v3202, %v3204
        %v3206 = vsel %vm3205, %v3201, -inf
        %3207 = vmax.xlane.f32.xlu0 %v3206
        %v3208 = vpop.xlane.xlu0 %3207
        %v3209 = vcvt.f32.s32 %v3208
        %v3210 = vcvt.f32.s32 %v3204
        %v3211 = vshll.u32 %v3210, 16
        %v3212 = vadd.s32 %v3211, %v3209
        %vm3213 = vcmp.gt.s32.totalorder %v3101, %v3102
        %v3214 = vsel %vm3213, %v3101, %v3102
        %vm3215 = vcmp.gt.s32.totalorder %v3214, %v3103
        %v3216 = vsel %vm3215, %v3214, %v3103
        %vm3217 = vcmp.gt.s32.totalorder %v3216, %v3104
        %v3218 = vsel %vm3217, %v3216, %v3104
        %v3219 = vand.u32 %v3218, 65535
        %v3220 = vshra.s32 %v3218, 16
        %v3221 = vcvt.s32.f32 %v3219
        %v3222 = vcvt.s32.f32 %v3220
        %3223 = vmax.xlane.f32.xlu0 %v3222
        %v3224 = vpop.xlane.xlu0 %3223
        %vm3225 = vcmp.eq.f32.partialorder %v3222, %v3224
        %v3226 = vsel %vm3225, %v3221, -inf
        %3227 = vmax.xlane.f32.xlu0 %v3226
        %v3228 = vpop.xlane.xlu0 %3227
        %v3229 = vcvt.f32.s32 %v3228
        %v3230 = vcvt.f32.s32 %v3224
        %v3231 = vshll.u32 %v3230, 16
        %v3232 = vadd.s32 %v3231, %v3229
        %vm3233 = vcmp.gt.s32.totalorder %v3105, %v3106
        %v3234 = vsel %vm3233, %v3105, %v3106
        %vm3235 = vcmp.gt.s32.totalorder %v3234, %v3107
        %v3236 = vsel %vm3235, %v3234, %v3107
        %vm3237 = vcmp.gt.s32.totalorder %v3236, %v3108
        %v3238 = vsel %vm3237, %v3236, %v3108
        %v3239 = vand.u32 %v3238, 65535
        %v3240 = vshra.s32 %v3238, 16
        %v3241 = vcvt.s32.f32 %v3239
        %v3242 = vcvt.s32.f32 %v3240
        %3243 = vmax.xlane.f32.xlu0 %v3242
        %v3244 = vpop.xlane.xlu0 %3243
        %vm3245 = vcmp.eq.f32.partialorder %v3242, %v3244
        %v3246 = vsel %vm3245, %v3241, -inf
        %3247 = vmax.xlane.f32.xlu0 %v3246
        %v3248 = vpop.xlane.xlu0 %3247
        %v3249 = vcvt.f32.s32 %v3248
        %v3250 = vcvt.f32.s32 %v3244
        %v3251 = vshll.u32 %v3250, 16
        %v3252 = vadd.s32 %v3251, %v3249
        %vm3253 = vcmp.gt.s32.totalorder %v3109, %v3110
        %v3254 = vsel %vm3253, %v3109, %v3110
        %vm3255 = vcmp.gt.s32.totalorder %v3254, %v3111
        %v3256 = vsel %vm3255, %v3254, %v3111
        %vm3257 = vcmp.gt.s32.totalorder %v3256, %v3112
        %v3258 = vsel %vm3257, %v3256, %v3112
        %v3259 = vand.u32 %v3258, 65535
        %v3260 = vshra.s32 %v3258, 16
        %v3261 = vcvt.s32.f32 %v3259
        %v3262 = vcvt.s32.f32 %v3260
        %3263 = vmax.xlane.f32.xlu0 %v3262
        %v3264 = vpop.xlane.xlu0 %3263
        %vm3265 = vcmp.eq.f32.partialorder %v3262, %v3264
        %v3266 = vsel %vm3265, %v3261, -inf
        %3267 = vmax.xlane.f32.xlu0 %v3266
        %v3268 = vpop.xlane.xlu0 %3267
        %v3269 = vcvt.f32.s32 %v3268
        %v3270 = vcvt.f32.s32 %v3264
        %v3271 = vshll.u32 %v3270, 16
        %v3272 = vadd.s32 %v3271, %v3269
        %vm3273 = vcmp.eq.s32.totalorder %v3081, %v3132
        %vm3274 = vcmp.eq.s32.totalorder %v3082, %v3132
        %vm3275 = vcmp.eq.s32.totalorder %v3083, %v3132
        %vm3276 = vcmp.eq.s32.totalorder %v3084, %v3132
        %vm3277 = vcmp.eq.s32.totalorder %v3085, %v3152
        %vm3278 = vcmp.eq.s32.totalorder %v3086, %v3152
        %vm3279 = vcmp.eq.s32.totalorder %v3087, %v3152
        %vm3280 = vcmp.eq.s32.totalorder %v3088, %v3152
        %vm3281 = vcmp.eq.s32.totalorder %v3089, %v3172
        %vm3282 = vcmp.eq.s32.totalorder %v3090, %v3172
        %vm3283 = vcmp.eq.s32.totalorder %v3091, %v3172
        %vm3284 = vcmp.eq.s32.totalorder %v3092, %v3172
        %vm3285 = vcmp.eq.s32.totalorder %v3093, %v3192
        %vm3286 = vcmp.eq.s32.totalorder %v3094, %v3192
        %vm3287 = vcmp.eq.s32.totalorder %v3095, %v3192
        %vm3288 = vcmp.eq.s32.totalorder %v3096, %v3192
        %vm3289 = vcmp.eq.s32.totalorder %v3097, %v3212
        %vm3290 = vcmp.eq.s32.totalorder %v3098, %v3212
        %vm3291 = vcmp.eq.s32.totalorder %v3099, %v3212
        %vm3292 = vcmp.eq.s32.totalorder %v3100, %v3212
        %vm3293 = vcmp.eq.s32.totalorder %v3101, %v3232
        %vm3294 = vcmp.eq.s32.totalorder %v3102, %v3232
        %vm3295 = vcmp.eq.s32.totalorder %v3103, %v3232
        %vm3296 = vcmp.eq.s32.totalorder %v3104, %v3232
        %vm3297 = vcmp.eq.s32.totalorder %v3105, %v3252
        %vm3298 = vcmp.eq.s32.totalorder %v3106, %v3252
        %vm3299 = vcmp.eq.s32.totalorder %v3107, %v3252
        %vm3300 = vcmp.eq.s32.totalorder %v3108, %v3252
        %vm3301 = vcmp.eq.s32.totalorder %v3109, %v3272
        %vm3302 = vcmp.eq.s32.totalorder %v3110, %v3272
        %vm3303 = vcmp.eq.s32.totalorder %v3111, %v3272
        %vm3304 = vcmp.eq.s32.totalorder %v3112, %v3272
        %v3305 = vsel %vm3273, 4294967295, %v3081
        %v3306 = vsel %vm3274, 4294967295, %v3082
        %v3307 = vsel %vm3275, 4294967295, %v3083
        %v3308 = vsel %vm3276, 4294967295, %v3084
        %v3309 = vsel %vm3277, 4294967295, %v3085
        %v3310 = vsel %vm3278, 4294967295, %v3086
        %v3311 = vsel %vm3279, 4294967295, %v3087
        %v3312 = vsel %vm3280, 4294967295, %v3088
        %v3313 = vsel %vm3281, 4294967295, %v3089
        %v3314 = vsel %vm3282, 4294967295, %v3090
        %v3315 = vsel %vm3283, 4294967295, %v3091
        %v3316 = vsel %vm3284, 4294967295, %v3092
        %v3317 = vsel %vm3285, 4294967295, %v3093
        %v3318 = vsel %vm3286, 4294967295, %v3094
        %v3319 = vsel %vm3287, 4294967295, %v3095
        %v3320 = vsel %vm3288, 4294967295, %v3096
        %v3321 = vsel %vm3289, 4294967295, %v3097
        %v3322 = vsel %vm3290, 4294967295, %v3098
        %v3323 = vsel %vm3291, 4294967295, %v3099
        %v3324 = vsel %vm3292, 4294967295, %v3100
        %v3325 = vsel %vm3293, 4294967295, %v3101
        %v3326 = vsel %vm3294, 4294967295, %v3102
        %v3327 = vsel %vm3295, 4294967295, %v3103
        %v3328 = vsel %vm3296, 4294967295, %v3104
        %v3329 = vsel %vm3297, 4294967295, %v3105
        %v3330 = vsel %vm3298, 4294967295, %v3106
        %v3331 = vsel %vm3299, 4294967295, %v3107
        %v3332 = vsel %vm3300, 4294967295, %v3108
        %v3333 = vsel %vm3301, 4294967295, %v3109
        %v3334 = vsel %vm3302, 4294967295, %v3110
        %v3335 = vsel %vm3303, 4294967295, %v3111
        %v3336 = vsel %vm3304, 4294967295, %v3112
        %vm3337 = vcmp.gt.s32.totalorder %v3305, %v3306
        %v3338 = vsel %vm3337, %v3305, %v3306
        %vm3339 = vcmp.gt.s32.totalorder %v3338, %v3307
        %v3340 = vsel %vm3339, %v3338, %v3307
        %vm3341 = vcmp.gt.s32.totalorder %v3340, %v3308
        %v3342 = vsel %vm3341, %v3340, %v3308
        %v3343 = vand.u32 %v3342, 65535
        %v3344 = vshra.s32 %v3342, 16
        %v3345 = vcvt.s32.f32 %v3343
        %v3346 = vcvt.s32.f32 %v3344
        %3347 = vmax.xlane.f32.xlu0 %v3346
        %v3348 = vpop.xlane.xlu0 %3347
        %vm3349 = vcmp.eq.f32.partialorder %v3346, %v3348
        %v3350 = vsel %vm3349, %v3345, -inf
        %3351 = vmax.xlane.f32.xlu0 %v3350
        %v3352 = vpop.xlane.xlu0 %3351
        %v3353 = vcvt.f32.s32 %v3352
        %v3354 = vcvt.f32.s32 %v3348
        %v3355 = vshll.u32 %v3354, 16
        %v3356 = vadd.s32 %v3355, %v3353
        %vm3357 = vcmp.gt.s32.totalorder %v3309, %v3310
        %v3358 = vsel %vm3357, %v3309, %v3310
        %vm3359 = vcmp.gt.s32.totalorder %v3358, %v3311
        %v3360 = vsel %vm3359, %v3358, %v3311
        %vm3361 = vcmp.gt.s32.totalorder %v3360, %v3312
        %v3362 = vsel %vm3361, %v3360, %v3312
        %v3363 = vand.u32 %v3362, 65535
        %v3364 = vshra.s32 %v3362, 16
        %v3365 = vcvt.s32.f32 %v3363
        %v3366 = vcvt.s32.f32 %v3364
        %3367 = vmax.xlane.f32.xlu0 %v3366
        %v3368 = vpop.xlane.xlu0 %3367
        %vm3369 = vcmp.eq.f32.partialorder %v3366, %v3368
        %v3370 = vsel %vm3369, %v3365, -inf
        %3371 = vmax.xlane.f32.xlu0 %v3370
        %v3372 = vpop.xlane.xlu0 %3371
        %v3373 = vcvt.f32.s32 %v3372
        %v3374 = vcvt.f32.s32 %v3368
        %v3375 = vshll.u32 %v3374, 16
        %v3376 = vadd.s32 %v3375, %v3373
        %vm3377 = vcmp.gt.s32.totalorder %v3313, %v3314
        %v3378 = vsel %vm3377, %v3313, %v3314
        %vm3379 = vcmp.gt.s32.totalorder %v3378, %v3315
        %v3380 = vsel %vm3379, %v3378, %v3315
        %vm3381 = vcmp.gt.s32.totalorder %v3380, %v3316
        %v3382 = vsel %vm3381, %v3380, %v3316
        %v3383 = vand.u32 %v3382, 65535
        %v3384 = vshra.s32 %v3382, 16
        %v3385 = vcvt.s32.f32 %v3383
        %v3386 = vcvt.s32.f32 %v3384
        %3387 = vmax.xlane.f32.xlu0 %v3386
        %v3388 = vpop.xlane.xlu0 %3387
        %vm3389 = vcmp.eq.f32.partialorder %v3386, %v3388
        %v3390 = vsel %vm3389, %v3385, -inf
        %3391 = vmax.xlane.f32.xlu0 %v3390
        %v3392 = vpop.xlane.xlu0 %3391
        %v3393 = vcvt.f32.s32 %v3392
        %v3394 = vcvt.f32.s32 %v3388
        %v3395 = vshll.u32 %v3394, 16
        %v3396 = vadd.s32 %v3395, %v3393
        %vm3397 = vcmp.gt.s32.totalorder %v3317, %v3318
        %v3398 = vsel %vm3397, %v3317, %v3318
        %vm3399 = vcmp.gt.s32.totalorder %v3398, %v3319
        %v3400 = vsel %vm3399, %v3398, %v3319
        %vm3401 = vcmp.gt.s32.totalorder %v3400, %v3320
        %v3402 = vsel %vm3401, %v3400, %v3320
        %v3403 = vand.u32 %v3402, 65535
        %v3404 = vshra.s32 %v3402, 16
        %v3405 = vcvt.s32.f32 %v3403
        %v3406 = vcvt.s32.f32 %v3404
        %3407 = vmax.xlane.f32.xlu0 %v3406
        %v3408 = vpop.xlane.xlu0 %3407
        %vm3409 = vcmp.eq.f32.partialorder %v3406, %v3408
        %v3410 = vsel %vm3409, %v3405, -inf
        %3411 = vmax.xlane.f32.xlu0 %v3410
        %v3412 = vpop.xlane.xlu0 %3411
        %v3413 = vcvt.f32.s32 %v3412
        %v3414 = vcvt.f32.s32 %v3408
        %v3415 = vshll.u32 %v3414, 16
        %v3416 = vadd.s32 %v3415, %v3413
        %vm3417 = vcmp.gt.s32.totalorder %v3321, %v3322
        %v3418 = vsel %vm3417, %v3321, %v3322
        %vm3419 = vcmp.gt.s32.totalorder %v3418, %v3323
        %v3420 = vsel %vm3419, %v3418, %v3323
        %vm3421 = vcmp.gt.s32.totalorder %v3420, %v3324
        %v3422 = vsel %vm3421, %v3420, %v3324
        %v3423 = vand.u32 %v3422, 65535
        %v3424 = vshra.s32 %v3422, 16
        %v3425 = vcvt.s32.f32 %v3423
        %v3426 = vcvt.s32.f32 %v3424
        %3427 = vmax.xlane.f32.xlu0 %v3426
        %v3428 = vpop.xlane.xlu0 %3427
        %vm3429 = vcmp.eq.f32.partialorder %v3426, %v3428
        %v3430 = vsel %vm3429, %v3425, -inf
        %3431 = vmax.xlane.f32.xlu0 %v3430
        %v3432 = vpop.xlane.xlu0 %3431
        %v3433 = vcvt.f32.s32 %v3432
        %v3434 = vcvt.f32.s32 %v3428
        %v3435 = vshll.u32 %v3434, 16
        %v3436 = vadd.s32 %v3435, %v3433
        %vm3437 = vcmp.gt.s32.totalorder %v3325, %v3326
        %v3438 = vsel %vm3437, %v3325, %v3326
        %vm3439 = vcmp.gt.s32.totalorder %v3438, %v3327
        %v3440 = vsel %vm3439, %v3438, %v3327
        %vm3441 = vcmp.gt.s32.totalorder %v3440, %v3328
        %v3442 = vsel %vm3441, %v3440, %v3328
        %v3443 = vand.u32 %v3442, 65535
        %v3444 = vshra.s32 %v3442, 16
        %v3445 = vcvt.s32.f32 %v3443
        %v3446 = vcvt.s32.f32 %v3444
        %3447 = vmax.xlane.f32.xlu0 %v3446
        %v3448 = vpop.xlane.xlu0 %3447
        %vm3449 = vcmp.eq.f32.partialorder %v3446, %v3448
        %v3450 = vsel %vm3449, %v3445, -inf
        %3451 = vmax.xlane.f32.xlu0 %v3450
        %v3452 = vpop.xlane.xlu0 %3451
        %v3453 = vcvt.f32.s32 %v3452
        %v3454 = vcvt.f32.s32 %v3448
        %v3455 = vshll.u32 %v3454, 16
        %v3456 = vadd.s32 %v3455, %v3453
        %vm3457 = vcmp.gt.s32.totalorder %v3329, %v3330
        %v3458 = vsel %vm3457, %v3329, %v3330
        %vm3459 = vcmp.gt.s32.totalorder %v3458, %v3331
        %v3460 = vsel %vm3459, %v3458, %v3331
        %vm3461 = vcmp.gt.s32.totalorder %v3460, %v3332
        %v3462 = vsel %vm3461, %v3460, %v3332
        %v3463 = vand.u32 %v3462, 65535
        %v3464 = vshra.s32 %v3462, 16
        %v3465 = vcvt.s32.f32 %v3463
        %v3466 = vcvt.s32.f32 %v3464
        %3467 = vmax.xlane.f32.xlu0 %v3466
        %v3468 = vpop.xlane.xlu0 %3467
        %vm3469 = vcmp.eq.f32.partialorder %v3466, %v3468
        %v3470 = vsel %vm3469, %v3465, -inf
        %3471 = vmax.xlane.f32.xlu0 %v3470
        %v3472 = vpop.xlane.xlu0 %3471
        %v3473 = vcvt.f32.s32 %v3472
        %v3474 = vcvt.f32.s32 %v3468
        %v3475 = vshll.u32 %v3474, 16
        %v3476 = vadd.s32 %v3475, %v3473
        %vm3477 = vcmp.gt.s32.totalorder %v3333, %v3334
        %v3478 = vsel %vm3477, %v3333, %v3334
        %vm3479 = vcmp.gt.s32.totalorder %v3478, %v3335
        %v3480 = vsel %vm3479, %v3478, %v3335
        %vm3481 = vcmp.gt.s32.totalorder %v3480, %v3336
        %v3482 = vsel %vm3481, %v3480, %v3336
        %v3483 = vand.u32 %v3482, 65535
        %v3484 = vshra.s32 %v3482, 16
        %v3485 = vcvt.s32.f32 %v3483
        %v3486 = vcvt.s32.f32 %v3484
        %3487 = vmax.xlane.f32.xlu0 %v3486
        %v3488 = vpop.xlane.xlu0 %3487
        %vm3489 = vcmp.eq.f32.partialorder %v3486, %v3488
        %v3490 = vsel %vm3489, %v3485, -inf
        %3491 = vmax.xlane.f32.xlu0 %v3490
        %v3492 = vpop.xlane.xlu0 %3491
        %v3493 = vcvt.f32.s32 %v3492
        %v3494 = vcvt.f32.s32 %v3488
        %v3495 = vshll.u32 %v3494, 16
        %v3496 = vadd.s32 %v3495, %v3493
        %vm3497 = vcmp.eq.s32.totalorder %v3305, %v3356
        %vm3498 = vcmp.eq.s32.totalorder %v3306, %v3356
        %vm3499 = vcmp.eq.s32.totalorder %v3307, %v3356
        %vm3500 = vcmp.eq.s32.totalorder %v3308, %v3356
        %vm3501 = vcmp.eq.s32.totalorder %v3309, %v3376
        %vm3502 = vcmp.eq.s32.totalorder %v3310, %v3376
        %vm3503 = vcmp.eq.s32.totalorder %v3311, %v3376
        %vm3504 = vcmp.eq.s32.totalorder %v3312, %v3376
        %vm3505 = vcmp.eq.s32.totalorder %v3313, %v3396
        %vm3506 = vcmp.eq.s32.totalorder %v3314, %v3396
        %vm3507 = vcmp.eq.s32.totalorder %v3315, %v3396
        %vm3508 = vcmp.eq.s32.totalorder %v3316, %v3396
        %vm3509 = vcmp.eq.s32.totalorder %v3317, %v3416
        %vm3510 = vcmp.eq.s32.totalorder %v3318, %v3416
        %vm3511 = vcmp.eq.s32.totalorder %v3319, %v3416
        %vm3512 = vcmp.eq.s32.totalorder %v3320, %v3416
        %vm3513 = vcmp.eq.s32.totalorder %v3321, %v3436
        %vm3514 = vcmp.eq.s32.totalorder %v3322, %v3436
        %vm3515 = vcmp.eq.s32.totalorder %v3323, %v3436
        %vm3516 = vcmp.eq.s32.totalorder %v3324, %v3436
        %vm3517 = vcmp.eq.s32.totalorder %v3325, %v3456
        %vm3518 = vcmp.eq.s32.totalorder %v3326, %v3456
        %vm3519 = vcmp.eq.s32.totalorder %v3327, %v3456
        %vm3520 = vcmp.eq.s32.totalorder %v3328, %v3456
        %vm3521 = vcmp.eq.s32.totalorder %v3329, %v3476
        %vm3522 = vcmp.eq.s32.totalorder %v3330, %v3476
        %vm3523 = vcmp.eq.s32.totalorder %v3331, %v3476
        %vm3524 = vcmp.eq.s32.totalorder %v3332, %v3476
        %vm3525 = vcmp.eq.s32.totalorder %v3333, %v3496
        %vm3526 = vcmp.eq.s32.totalorder %v3334, %v3496
        %vm3527 = vcmp.eq.s32.totalorder %v3335, %v3496
        %vm3528 = vcmp.eq.s32.totalorder %v3336, %v3496
        %v3529 = vsel %vm3497, 4294967295, %v3305
        %v3530 = vsel %vm3498, 4294967295, %v3306
        %v3531 = vsel %vm3499, 4294967295, %v3307
        %v3532 = vsel %vm3500, 4294967295, %v3308
        %v3533 = vsel %vm3501, 4294967295, %v3309
        %v3534 = vsel %vm3502, 4294967295, %v3310
        %v3535 = vsel %vm3503, 4294967295, %v3311
        %v3536 = vsel %vm3504, 4294967295, %v3312
        %v3537 = vsel %vm3505, 4294967295, %v3313
        %v3538 = vsel %vm3506, 4294967295, %v3314
        %v3539 = vsel %vm3507, 4294967295, %v3315
        %v3540 = vsel %vm3508, 4294967295, %v3316
        %v3541 = vsel %vm3509, 4294967295, %v3317
        %v3542 = vsel %vm3510, 4294967295, %v3318
        %v3543 = vsel %vm3511, 4294967295, %v3319
        %v3544 = vsel %vm3512, 4294967295, %v3320
        %v3545 = vsel %vm3513, 4294967295, %v3321
        %v3546 = vsel %vm3514, 4294967295, %v3322
        %v3547 = vsel %vm3515, 4294967295, %v3323
        %v3548 = vsel %vm3516, 4294967295, %v3324
        %v3549 = vsel %vm3517, 4294967295, %v3325
        %v3550 = vsel %vm3518, 4294967295, %v3326
        %v3551 = vsel %vm3519, 4294967295, %v3327
        %v3552 = vsel %vm3520, 4294967295, %v3328
        %v3553 = vsel %vm3521, 4294967295, %v3329
        %v3554 = vsel %vm3522, 4294967295, %v3330
        %v3555 = vsel %vm3523, 4294967295, %v3331
        %v3556 = vsel %vm3524, 4294967295, %v3332
        %v3557 = vsel %vm3525, 4294967295, %v3333
        %v3558 = vsel %vm3526, 4294967295, %v3334
        %v3559 = vsel %vm3527, 4294967295, %v3335
        %v3560 = vsel %vm3528, 4294967295, %v3336
        %vm3561 = vcmp.lt.s32.totalorder %v3529, 0
        %vm3562 = vcmp.lt.s32.totalorder %v3530, 0
        %vm3563 = vcmp.lt.s32.totalorder %v3531, 0
        %vm3564 = vcmp.lt.s32.totalorder %v3532, 0
        %vm3565 = vcmp.lt.s32.totalorder %v3533, 0
        %vm3566 = vcmp.lt.s32.totalorder %v3534, 0
        %vm3567 = vcmp.lt.s32.totalorder %v3535, 0
        %vm3568 = vcmp.lt.s32.totalorder %v3536, 0
        %vm3569 = vcmp.lt.s32.totalorder %v3537, 0
        %vm3570 = vcmp.lt.s32.totalorder %v3538, 0
        %vm3571 = vcmp.lt.s32.totalorder %v3539, 0
        %vm3572 = vcmp.lt.s32.totalorder %v3540, 0
        %vm3573 = vcmp.lt.s32.totalorder %v3541, 0
        %vm3574 = vcmp.lt.s32.totalorder %v3542, 0
        %vm3575 = vcmp.lt.s32.totalorder %v3543, 0
        %vm3576 = vcmp.lt.s32.totalorder %v3544, 0
        %vm3577 = vcmp.lt.s32.totalorder %v3545, 0
        %vm3578 = vcmp.lt.s32.totalorder %v3546, 0
        %vm3579 = vcmp.lt.s32.totalorder %v3547, 0
        %vm3580 = vcmp.lt.s32.totalorder %v3548, 0
        %vm3581 = vcmp.lt.s32.totalorder %v3549, 0
        %vm3582 = vcmp.lt.s32.totalorder %v3550, 0
        %vm3583 = vcmp.lt.s32.totalorder %v3551, 0
        %vm3584 = vcmp.lt.s32.totalorder %v3552, 0
        %vm3585 = vcmp.lt.s32.totalorder %v3553, 0
        %vm3586 = vcmp.lt.s32.totalorder %v3554, 0
        %vm3587 = vcmp.lt.s32.totalorder %v3555, 0
        %vm3588 = vcmp.lt.s32.totalorder %v3556, 0
        %vm3589 = vcmp.lt.s32.totalorder %v3557, 0
        %vm3590 = vcmp.lt.s32.totalorder %v3558, 0
        %vm3591 = vcmp.lt.s32.totalorder %v3559, 0
        %vm3592 = vcmp.lt.s32.totalorder %v3560, 0
        %v3593 = vsel %vm3561, %v911, 0.0
        %v3594 = vsel %vm3562, %v912, 0.0
        %v3595 = vsel %vm3563, %v913, 0.0
        %v3596 = vsel %vm3564, %v914, 0.0
        %v3597 = vsel %vm3565, %v915, 0.0
        %v3598 = vsel %vm3566, %v916, 0.0
        %v3599 = vsel %vm3567, %v917, 0.0
        %v3600 = vsel %vm3568, %v918, 0.0
        %v3601 = vsel %vm3569, %v919, 0.0
        %v3602 = vsel %vm3570, %v920, 0.0
        %v3603 = vsel %vm3571, %v921, 0.0
        %v3604 = vsel %vm3572, %v922, 0.0
        %v3605 = vsel %vm3573, %v923, 0.0
        %v3606 = vsel %vm3574, %v924, 0.0
        %v3607 = vsel %vm3575, %v925, 0.0
        %v3608 = vsel %vm3576, %v926, 0.0
        %v3609 = vsel %vm3577, %v927, 0.0
        %v3610 = vsel %vm3578, %v928, 0.0
        %v3611 = vsel %vm3579, %v929, 0.0
        %v3612 = vsel %vm3580, %v930, 0.0
        %v3613 = vsel %vm3581, %v931, 0.0
        %v3614 = vsel %vm3582, %v932, 0.0
        %v3615 = vsel %vm3583, %v933, 0.0
        %v3616 = vsel %vm3584, %v934, 0.0
        %v3617 = vsel %vm3585, %v935, 0.0
        %v3618 = vsel %vm3586, %v936, 0.0
        %v3619 = vsel %vm3587, %v937, 0.0
        %v3620 = vsel %vm3588, %v938, 0.0
        %v3621 = vsel %vm3589, %v939, 0.0
        %v3622 = vsel %vm3590, %v940, 0.0
        %v3623 = vsel %vm3591, %v941, 0.0
        %v3624 = vsel %vm3592, %v942, 0.0
        %3625 = vst [vmem:[%s288 + $0x100] sm:$0xff] %v3593
        %3626 = vst [vmem:[%s288 + $0x108] sm:$0xff] %v3594
        %3627 = vst [vmem:[%s288 + $0x110] sm:$0xff] %v3595
        %3628 = vst [vmem:[%s288 + $0x118] sm:$0xff] %v3596
        %3629 = vst [vmem:[%s288 + $0x120] sm:$0xff] %v3597
        %3630 = vst [vmem:[%s288 + $0x128] sm:$0xff] %v3598
        %3631 = vst [vmem:[%s288 + $0x130] sm:$0xff] %v3599
        %3632 = vst [vmem:[%s288 + $0x138] sm:$0xff] %v3600
        %3633 = vst [vmem:[%s288 + $0x140] sm:$0xff] %v3601
        %3634 = vst [vmem:[%s288 + $0x148] sm:$0xff] %v3602
        %3635 = vst [vmem:[%s288 + $0x150] sm:$0xff] %v3603
        %3636 = vst [vmem:[%s288 + $0x158] sm:$0xff] %v3604
        %3637 = vst [vmem:[%s288 + $0x160] sm:$0xff] %v3605
        %3638 = vst [vmem:[%s288 + $0x168] sm:$0xff] %v3606
        %3639 = vst [vmem:[%s288 + $0x170] sm:$0xff] %v3607
        %3640 = vst [vmem:[%s288 + $0x178] sm:$0xff] %v3608
        %3641 = vst [vmem:[%s288 + $0x180] sm:$0xff] %v3609
        %3642 = vst [vmem:[%s288 + $0x188] sm:$0xff] %v3610
        %3643 = vst [vmem:[%s288 + $0x190] sm:$0xff] %v3611
        %3644 = vst [vmem:[%s288 + $0x198] sm:$0xff] %v3612
        %3645 = vst [vmem:[%s288 + $0x1a0] sm:$0xff] %v3613
        %3646 = vst [vmem:[%s288 + $0x1a8] sm:$0xff] %v3614
        %3647 = vst [vmem:[%s288 + $0x1b0] sm:$0xff] %v3615
        %3648 = vst [vmem:[%s288 + $0x1b8] sm:$0xff] %v3616
        %3649 = vst [vmem:[%s288 + $0x1c0] sm:$0xff] %v3617
        %3650 = vst [vmem:[%s288 + $0x1c8] sm:$0xff] %v3618
        %3651 = vst [vmem:[%s288 + $0x1d0] sm:$0xff] %v3619
        %3652 = vst [vmem:[%s288 + $0x1d8] sm:$0xff] %v3620
        %3653 = vst [vmem:[%s288 + $0x1e0] sm:$0xff] %v3621
        %3654 = vst [vmem:[%s288 + $0x1e8] sm:$0xff] %v3622
        %3655 = vst [vmem:[%s288 + $0x1f0] sm:$0xff] %v3623
        %3656 = vst [vmem:[%s288 + $0x1f8] sm:$0xff] %v3624
        %v3657 = vpack.c.bf16 %v3597, %v3593
        %v3658 = vpack.c.bf16 %v3598, %v3594
        %v3659 = vpack.c.bf16 %v3599, %v3595
        %v3660 = vpack.c.bf16 %v3600, %v3596
        %v3661 = vpack.c.bf16 %v3605, %v3601
        %v3662 = vpack.c.bf16 %v3606, %v3602
        %v3663 = vpack.c.bf16 %v3607, %v3603
        %v3664 = vpack.c.bf16 %v3608, %v3604
        %v3665 = vpack.c.bf16 %v3613, %v3609
        %v3666 = vpack.c.bf16 %v3614, %v3610
        %v3667 = vpack.c.bf16 %v3615, %v3611
        %v3668 = vpack.c.bf16 %v3616, %v3612
        %v3669 = vpack.c.bf16 %v3621, %v3617
        %v3670 = vpack.c.bf16 %v3622, %v3618
        %v3671 = vpack.c.bf16 %v3623, %v3619
        %v3672 = vpack.c.bf16 %v3624, %v3620
        %v3673 = vld [vmem:[#allocation8] sm:$0xf]
        %v3674 = vld [vmem:[#allocation8 + $0x4] sm:$0xf]
        %v3675 = vld [vmem:[#allocation8 + $0x8] sm:$0xf]
        %v3676 = vld [vmem:[#allocation8 + $0xc] sm:$0xf]
        %v3677 = vld [vmem:[#allocation8 + $0x10] sm:$0xf]
        %v3678 = vld [vmem:[#allocation8 + $0x14] sm:$0xf]
        %v3679 = vld [vmem:[#allocation8 + $0x18] sm:$0xf]
        %v3680 = vld [vmem:[#allocation8 + $0x1c] sm:$0xf]
        %v3681 = vld [vmem:[#allocation8 + $0x20] sm:$0xf]
        %v3682 = vld [vmem:[#allocation8 + $0x24] sm:$0xf]
        %v3683 = vld [vmem:[#allocation8 + $0x28] sm:$0xf]
        %v3684 = vld [vmem:[#allocation8 + $0x2c] sm:$0xf]
        %v3685 = vld [vmem:[#allocation8 + $0x30] sm:$0xf]
        %v3686 = vld [vmem:[#allocation8 + $0x34] sm:$0xf]
        %v3687 = vld [vmem:[#allocation8 + $0x38] sm:$0xf]
        %v3688 = vld [vmem:[#allocation8 + $0x3c] sm:$0xf]
        %v3689 = vld [vmem:[#allocation8 + $0x40] sm:$0xf]
        %v3690 = vld [vmem:[#allocation8 + $0x44] sm:$0xf]
        %v3691 = vld [vmem:[#allocation8 + $0x48] sm:$0xf]
        %v3692 = vld [vmem:[#allocation8 + $0x4c] sm:$0xf]
        %v3693 = vld [vmem:[#allocation8 + $0x50] sm:$0xf]
        %v3694 = vld [vmem:[#allocation8 + $0x54] sm:$0xf]
        %v3695 = vld [vmem:[#allocation8 + $0x58] sm:$0xf]
        %v3696 = vld [vmem:[#allocation8 + $0x5c] sm:$0xf]
        %v3697 = vld [vmem:[#allocation8 + $0x60] sm:$0xf]
        %v3698 = vld [vmem:[#allocation8 + $0x64] sm:$0xf]
        %v3699 = vld [vmem:[#allocation8 + $0x68] sm:$0xf]
        %v3700 = vld [vmem:[#allocation8 + $0x6c] sm:$0xf]
        %v3701 = vld [vmem:[#allocation8 + $0x70] sm:$0xf]
        %v3702 = vld [vmem:[#allocation8 + $0x74] sm:$0xf]
        %v3703 = vld [vmem:[#allocation8 + $0x78] sm:$0xf]
        %v3704 = vld [vmem:[#allocation8 + $0x7c] sm:$0xf]
        %v3705 = vld [vmem:[#allocation8 + $0x80] sm:$0xf]
        %v3706 = vld [vmem:[#allocation8 + $0x84] sm:$0xf]
        %v3707 = vld [vmem:[#allocation8 + $0x88] sm:$0xf]
        %v3708 = vld [vmem:[#allocation8 + $0x8c] sm:$0xf]
        %v3709 = vld [vmem:[#allocation8 + $0x90] sm:$0xf]
        %v3710 = vld [vmem:[#allocation8 + $0x94] sm:$0xf]
        %v3711 = vld [vmem:[#allocation8 + $0x98] sm:$0xf]
        %v3712 = vld [vmem:[#allocation8 + $0x9c] sm:$0xf]
        %v3713 = vld [vmem:[#allocation8 + $0xa0] sm:$0xf]
        %v3714 = vld [vmem:[#allocation8 + $0xa4] sm:$0xf]
        %v3715 = vld [vmem:[#allocation8 + $0xa8] sm:$0xf]
        %v3716 = vld [vmem:[#allocation8 + $0xac] sm:$0xf]
        %v3717 = vld [vmem:[#allocation8 + $0xb0] sm:$0xf]
        %v3718 = vld [vmem:[#allocation8 + $0xb4] sm:$0xf]
        %v3719 = vld [vmem:[#allocation8 + $0xb8] sm:$0xf]
        %v3720 = vld [vmem:[#allocation8 + $0xbc] sm:$0xf]
        %v3721 = vld [vmem:[#allocation8 + $0xc0] sm:$0xf]
        %v3722 = vld [vmem:[#allocation8 + $0xc4] sm:$0xf]
        %v3723 = vld [vmem:[#allocation8 + $0xc8] sm:$0xf]
        %v3724 = vld [vmem:[#allocation8 + $0xcc] sm:$0xf]
        %v3725 = vld [vmem:[#allocation8 + $0xd0] sm:$0xf]
        %v3726 = vld [vmem:[#allocation8 + $0xd4] sm:$0xf]
        %v3727 = vld [vmem:[#allocation8 + $0xd8] sm:$0xf]
        %v3728 = vld [vmem:[#allocation8 + $0xdc] sm:$0xf]
        %v3729 = vld [vmem:[#allocation8 + $0xe0] sm:$0xf]
        %v3730 = vld [vmem:[#allocation8 + $0xe4] sm:$0xf]
        %v3731 = vld [vmem:[#allocation8 + $0xe8] sm:$0xf]
        %v3732 = vld [vmem:[#allocation8 + $0xec] sm:$0xf]
        %v3733 = vld [vmem:[#allocation8 + $0xf0] sm:$0xf]
        %v3734 = vld [vmem:[#allocation8 + $0xf4] sm:$0xf]
        %v3735 = vld [vmem:[#allocation8 + $0xf8] sm:$0xf]
        %v3736 = vld [vmem:[#allocation8 + $0xfc] sm:$0xf]
        %v3801 = vunpack.c.l.b16 %v3673
        %v3802 = vunpack.c.l.b16 %v3674
        %v3803 = vunpack.c.l.b16 %v3675
        %v3804 = vunpack.c.l.b16 %v3676
        %v3805 = vunpack.c.l.b16 %v3677
        %v3806 = vunpack.c.l.b16 %v3678
        %v3807 = vunpack.c.l.b16 %v3679
        %v3808 = vunpack.c.l.b16 %v3680
        %v3809 = vunpack.c.l.b16 %v3681
        %v3810 = vunpack.c.l.b16 %v3682
        %v3811 = vunpack.c.l.b16 %v3683
        %v3812 = vunpack.c.l.b16 %v3684
        %v3813 = vunpack.c.l.b16 %v3685
        %v3814 = vunpack.c.l.b16 %v3686
        %v3815 = vunpack.c.l.b16 %v3687
        %v3816 = vunpack.c.l.b16 %v3688
        %v3817 = vunpack.c.l.b16 %v3689
        %v3818 = vunpack.c.l.b16 %v3690
        %v3819 = vunpack.c.l.b16 %v3691
        %v3820 = vunpack.c.l.b16 %v3692
        %v3821 = vunpack.c.l.b16 %v3693
        %v3822 = vunpack.c.l.b16 %v3694
        %v3823 = vunpack.c.l.b16 %v3695
        %v3824 = vunpack.c.l.b16 %v3696
        %v3825 = vunpack.c.l.b16 %v3697
        %v3826 = vunpack.c.l.b16 %v3698
        %v3827 = vunpack.c.l.b16 %v3699
        %v3828 = vunpack.c.l.b16 %v3700
        %v3829 = vunpack.c.l.b16 %v3701
        %v3830 = vunpack.c.l.b16 %v3702
        %v3831 = vunpack.c.l.b16 %v3703
        %v3832 = vunpack.c.l.b16 %v3704
        %v3833 = vunpack.c.l.b16 %v3705
        %v3834 = vunpack.c.l.b16 %v3706
        %v3835 = vunpack.c.l.b16 %v3707
        %v3836 = vunpack.c.l.b16 %v3708
        %v3837 = vunpack.c.l.b16 %v3709
        %v3838 = vunpack.c.l.b16 %v3710
        %v3839 = vunpack.c.l.b16 %v3711
        %v3840 = vunpack.c.l.b16 %v3712
        %v3841 = vunpack.c.l.b16 %v3713
        %v3842 = vunpack.c.l.b16 %v3714
        %v3843 = vunpack.c.l.b16 %v3715
        %v3844 = vunpack.c.l.b16 %v3716
        %v3845 = vunpack.c.l.b16 %v3717
        %v3846 = vunpack.c.l.b16 %v3718
        %v3847 = vunpack.c.l.b16 %v3719
        %v3848 = vunpack.c.l.b16 %v3720
        %v3849 = vunpack.c.l.b16 %v3721
        %v3850 = vunpack.c.l.b16 %v3722
        %v3851 = vunpack.c.l.b16 %v3723
        %v3852 = vunpack.c.l.b16 %v3724
        %v3853 = vunpack.c.l.b16 %v3725
        %v3854 = vunpack.c.l.b16 %v3726
        %v3855 = vunpack.c.l.b16 %v3727
        %v3856 = vunpack.c.l.b16 %v3728
        %v3857 = vunpack.c.l.b16 %v3729
        %v3858 = vunpack.c.l.b16 %v3730
        %v3859 = vunpack.c.l.b16 %v3731
        %v3860 = vunpack.c.l.b16 %v3732
        %v3861 = vunpack.c.l.b16 %v3733
        %v3862 = vunpack.c.l.b16 %v3734
        %v3863 = vunpack.c.l.b16 %v3735
        %v3864 = vunpack.c.l.b16 %v3736
        %v3865 = vpack.c.b16 %v3802, %v3801
        %v3866 = vpack.c.b16 %v3804, %v3803
        %v3867 = vpack.c.b16 %v3806, %v3805
        %v3868 = vpack.c.b16 %v3808, %v3807
        %v3869 = vpack.c.b16 %v3810, %v3809
        %v3870 = vpack.c.b16 %v3812, %v3811
        %v3871 = vpack.c.b16 %v3814, %v3813
        %v3872 = vpack.c.b16 %v3816, %v3815
        %v3873 = vpack.c.b16 %v3818, %v3817
        %v3874 = vpack.c.b16 %v3820, %v3819
        %v3875 = vpack.c.b16 %v3822, %v3821
        %v3876 = vpack.c.b16 %v3824, %v3823
        %v3877 = vpack.c.b16 %v3826, %v3825
        %v3878 = vpack.c.b16 %v3828, %v3827
        %v3879 = vpack.c.b16 %v3830, %v3829
        %v3880 = vpack.c.b16 %v3832, %v3831
        %v3881 = vpack.c.b16 %v3834, %v3833
        %v3882 = vpack.c.b16 %v3836, %v3835
        %v3883 = vpack.c.b16 %v3838, %v3837
        %v3884 = vpack.c.b16 %v3840, %v3839
        %v3885 = vpack.c.b16 %v3842, %v3841
        %v3886 = vpack.c.b16 %v3844, %v3843
        %v3887 = vpack.c.b16 %v3846, %v3845
        %v3888 = vpack.c.b16 %v3848, %v3847
        %v3889 = vpack.c.b16 %v3850, %v3849
        %v3890 = vpack.c.b16 %v3852, %v3851
        %v3891 = vpack.c.b16 %v3854, %v3853
        %v3892 = vpack.c.b16 %v3856, %v3855
        %v3893 = vpack.c.b16 %v3858, %v3857
        %v3894 = vpack.c.b16 %v3860, %v3859
        %v3895 = vpack.c.b16 %v3862, %v3861
        %v3896 = vpack.c.b16 %v3864, %v3863
        %3929 = vmatprep.subr.bf16.mxu0 0
        %3930 = vmatpush1.bf16.msra.mxu0 %v3872
        %3931 = vmatprep.subr.bf16.mxu0 0
        %3932 = vmatpush1.bf16.msra.mxu0 %v3871
        %3933 = vmatprep.subr.bf16.mxu0 0
        %3934 = vmatpush1.bf16.msra.mxu0 %v3870
        %3935 = vmatprep.subr.bf16.mxu0 0
        %3936 = vmatpush1.bf16.msra.mxu0 %v3869
        %3937 = vmatprep.subr.bf16.mxu0 0
        %3938 = vmatpush1.bf16.msra.mxu0 %v3868
        %3939 = vmatprep.subr.bf16.mxu0 0
        %3940 = vmatpush1.bf16.msra.mxu0 %v3867
        %3941 = vmatprep.subr.bf16.mxu0 0
        %3942 = vmatpush1.bf16.msra.mxu0 %v3866
        %3943 = vmatprep.subr.bf16.mxu0 0
        %3944 = vmatpush1.bf16.msra.mxu0 %v3865
        %3945 = vmatprep.subr.bf16.mxu0 0
        %3946 = vmatpush2.bf16.msra.mxu0 %v3880
        %3947 = vmatprep.subr.bf16.mxu0 0
        %3948 = vmatpush2.bf16.msra.mxu0 %v3879
        %3949 = vmatprep.subr.bf16.mxu0 0
        %3950 = vmatpush2.bf16.msra.mxu0 %v3878
        %3951 = vmatprep.subr.bf16.mxu0 0
        %3952 = vmatpush2.bf16.msra.mxu0 %v3877
        %3953 = vmatprep.subr.bf16.mxu0 0
        %3954 = vmatpush2.bf16.msra.mxu0 %v3876
        %3955 = vmatprep.subr.bf16.mxu0 0
        %3956 = vmatpush2.bf16.msra.mxu0 %v3875
        %3957 = vmatprep.subr.bf16.mxu0 0
        %3958 = vmatpush2.bf16.msra.mxu0 %v3874
        %3959 = vmatprep.subr.bf16.mxu0 0
        %3960 = vmatpush2.bf16.msra.mxu0 %v3873
        %3961 = vmatprep.mubr.bf16.mxu0 %v3658
        %3962 = vmatmul.mubr.bf16.gmra.mxu0 %v3657
        %v3963 = vpop.f32.mrf.mxu0
        %v3964 = vadd.f32 0.0, %v3963
        %v3965 = vpop.f32.mrf.mxu0
        %v3966 = vpop.f32.mrf.mxu0
        %v3967 = vadd.f32 0.0, %v3966
        %v3968 = vpop.f32.mrf.mxu0
        %3969 = vmatprep.mubr.bf16.mxu0 %v3662
        %3970 = vmatmul.mubr.bf16.gmra.mxu0 %v3661
        %v3971 = vpop.f32.mrf.mxu0
        %v3972 = vadd.f32 0.0, %v3971
        %v3973 = vpop.f32.mrf.mxu0
        %v3974 = vpop.f32.mrf.mxu0
        %v3975 = vadd.f32 0.0, %v3974
        %v3976 = vpop.f32.mrf.mxu0
        %3977 = vmatprep.mubr.bf16.mxu0 %v3666
        %3978 = vmatmul.mubr.bf16.gmra.mxu0 %v3665
        %v3979 = vpop.f32.mrf.mxu0
        %v3980 = vadd.f32 0.0, %v3979
        %v3981 = vpop.f32.mrf.mxu0
        %v3982 = vpop.f32.mrf.mxu0
        %v3983 = vadd.f32 0.0, %v3982
        %v3984 = vpop.f32.mrf.mxu0
        %3985 = vmatprep.mubr.bf16.mxu0 %v3670
        %3986 = vmatmul.mubr.bf16.gmra.mxu0 %v3669
        %v3987 = vpop.f32.mrf.mxu0
        %v3988 = vadd.f32 0.0, %v3987
        %v3989 = vpop.f32.mrf.mxu0
        %v3990 = vpop.f32.mrf.mxu0
        %v3991 = vadd.f32 0.0, %v3990
        %v3992 = vpop.f32.mrf.mxu0
        %3993 = vdwg.mxu0
        %3994 = vmatprep.subr.bf16.mxu0 0
        %3995 = vmatpush1.bf16.msra.mxu0 %v3888
        %3996 = vmatprep.subr.bf16.mxu0 0
        %3997 = vmatpush1.bf16.msra.mxu0 %v3887
        %3998 = vmatprep.subr.bf16.mxu0 0
        %3999 = vmatpush1.bf16.msra.mxu0 %v3886
        %4000 = vmatprep.subr.bf16.mxu0 0
        %4001 = vmatpush1.bf16.msra.mxu0 %v3885
        %4002 = vmatprep.subr.bf16.mxu0 0
        %4003 = vmatpush1.bf16.msra.mxu0 %v3884
        %4004 = vmatprep.subr.bf16.mxu0 0
        %4005 = vmatpush1.bf16.msra.mxu0 %v3883
        %4006 = vmatprep.subr.bf16.mxu0 0
        %4007 = vmatpush1.bf16.msra.mxu0 %v3882
        %4008 = vmatprep.subr.bf16.mxu0 0
        %4009 = vmatpush1.bf16.msra.mxu0 %v3881
        %4010 = vmatprep.subr.bf16.mxu0 0
        %4011 = vmatpush2.bf16.msra.mxu0 %v3896
        %4012 = vmatprep.subr.bf16.mxu0 0
        %4013 = vmatpush2.bf16.msra.mxu0 %v3895
        %4014 = vmatprep.subr.bf16.mxu0 0
        %4015 = vmatpush2.bf16.msra.mxu0 %v3894
        %4016 = vmatprep.subr.bf16.mxu0 0
        %4017 = vmatpush2.bf16.msra.mxu0 %v3893
        %4018 = vmatprep.subr.bf16.mxu0 0
        %4019 = vmatpush2.bf16.msra.mxu0 %v3892
        %4020 = vmatprep.subr.bf16.mxu0 0
        %4021 = vmatpush2.bf16.msra.mxu0 %v3891
        %4022 = vmatprep.subr.bf16.mxu0 0
        %4023 = vmatpush2.bf16.msra.mxu0 %v3890
        %4024 = vmatprep.subr.bf16.mxu0 0
        %4025 = vmatpush2.bf16.msra.mxu0 %v3889
        %4026 = vmatprep.mubr.bf16.mxu0 %v3660
        %4027 = vmatmul.mubr.bf16.gmra.mxu0 %v3659
        %v4028 = vpop.f32.mrf.mxu0
        %v4029 = vadd.f32 %v3964, %v4028
        %v4030 = vpop.f32.mrf.mxu0
        %v4031 = vpop.f32.mrf.mxu0
        %v4032 = vadd.f32 %v3967, %v4031
        %v4033 = vpop.f32.mrf.mxu0
        %4034 = vmatprep.mubr.bf16.mxu0 %v3664
        %4035 = vmatmul.mubr.bf16.gmra.mxu0 %v3663
        %v4036 = vpop.f32.mrf.mxu0
        %v4037 = vadd.f32 %v3972, %v4036
        %v4038 = vpop.f32.mrf.mxu0
        %v4039 = vpop.f32.mrf.mxu0
        %v4040 = vadd.f32 %v3975, %v4039
        %v4041 = vpop.f32.mrf.mxu0
        %4042 = vmatprep.mubr.bf16.mxu0 %v3668
        %4043 = vmatmul.mubr.bf16.gmra.mxu0 %v3667
        %v4044 = vpop.f32.mrf.mxu0
        %v4045 = vadd.f32 %v3980, %v4044
        %v4046 = vpop.f32.mrf.mxu0
        %v4047 = vpop.f32.mrf.mxu0
        %v4048 = vadd.f32 %v3983, %v4047
        %v4049 = vpop.f32.mrf.mxu0
        %4050 = vmatprep.mubr.bf16.mxu0 %v3672
        %4051 = vmatmul.mubr.bf16.gmra.mxu0 %v3671
        %v4052 = vpop.f32.mrf.mxu0
        %v4053 = vadd.f32 %v3988, %v4052
        %v4054 = vpop.f32.mrf.mxu0
        %v4055 = vpop.f32.mrf.mxu0
        %v4056 = vadd.f32 %v3991, %v4055
        %v4057 = vpop.f32.mrf.mxu0
        %4058 = vdwg.mxu0
        %4059 = vst [vmem:[%s295 + $0x40] sm:$0xff] %v4029
        %4060 = vst [vmem:[%s295 + $0x48] sm:$0xff] %v4032
        %4061 = vst [vmem:[%s295 + $0x50] sm:$0xff] %v4037
        %4062 = vst [vmem:[%s295 + $0x58] sm:$0xff] %v4040
        %4063 = vst [vmem:[%s295 + $0x60] sm:$0xff] %v4045
        %4064 = vst [vmem:[%s295 + $0x68] sm:$0xff] %v4048
        %4065 = vst [vmem:[%s295 + $0x70] sm:$0xff] %v4053
        %4066 = vst [vmem:[%s295 + $0x78] sm:$0xff] %v4056
        %s4067 = sand.u32 %s125, 1
        %s4068 = scalar_lea.sflag [#allocation4], %s4067
        %s4069 = sand.u32 %s125, 1
        %s4070 = smul.addr %s4069, 512
        %s4071 = scalar_lea.vmem [#allocation10], %s4070
        %s4072 = sand.u32 %s151, 1
        %s4073 = scalar_lea.sflag [#allocation12], %s4072
        %s4074 = sand.u32 %s151, 1
        %s4075 = smul.addr %s4074, 128
        %s4076 = scalar_lea.vmem [#allocation11], %s4075
        // Predicated region
        $region53: #{tpu_custom_call.1} parent=35 // pred_check
          %p4077 = pneg %p135
        $region54: #{tpu_custom_call.1} parent=35 // pred_check_branch
          %4079 = sbr.rel (%p4077) target = $region56
        $region55: #{tpu_custom_call.1} parent=35 // pred_region
          %s4080 = smul.u32 16, %s28
          %s4082 = ssub.s32 8192, 8192
          %4083 = vsyncadd %s4068, %s4082
          %s4084 = smul.addr %s4080, 4
          %s4085 = smul.addr %s4084, 128
          %s4086 = scalar_lea.hbm %s4, %s4085
          %s4087 = sshll.u32 %s4071, 4
          %s4088 = int_to_ptr.vmem [resolvable:$true] %s4087
          %4093 = dma.vmem_to_hbm [thread:$0]  %s4088, 8192, %s4086, %s4068, 512, 512, 32
        $region56: #{tpu_custom_call.1} parent=35 // pred_fallthru
          _
        // Predicated region
        $region57: #{tpu_custom_call.1} parent=35 // pred_check
          %p4094 = pneg %p161
        $region58: #{tpu_custom_call.1} parent=35 // pred_check_branch
          %4096 = sbr.rel (%p4094) target = $region60
        $region59: #{tpu_custom_call.1} parent=35 // pred_region
          %s4097 = smul.u32 16, %s28
          %s4099 = ssub.s32 2048, 2048
          %4100 = vsyncadd %s4073, %s4099
          %s4101 = smul.addr %s4097, 128
          %s4102 = scalar_lea.hbm %s5, %s4101
          %s4103 = sshll.u32 %s4076, 4
          %s4104 = int_to_ptr.vmem [resolvable:$true] %s4103
          %4109 = dma.vmem_to_hbm [thread:$0]  %s4104, 2048, %s4102, %s4073, 128, 128, 8
        $region60: #{tpu_custom_call.1} parent=35 // pred_fallthru
          _
      $region36: #{tpu_custom_call.1} parent=5 // pred_fallthru
        _
      %p4110 = scmp.le.s32.totalorder 2, %s23
      // Predicated region
      $region61: #{tpu_custom_call.1} parent=5 // pred_check
        %p4111 = pneg %p4110
      $region62: #{tpu_custom_call.1} parent=5 // pred_check_branch
        %4113 = sbr.rel (%p4111) target = $region64
      $region63: #{tpu_custom_call.1} parent=5 // pred_region
        %s4114 = ssub.s32 %s23, 2
        // Predicated region
        $region65: #{tpu_custom_call.1} parent=63 // pred_check
          %p4115 = pneg %p141
        $region66: #{tpu_custom_call.1} parent=63 // pred_check_branch
          %4117 = sbr.rel (%p4115) target = $region68
        $region67: #{tpu_custom_call.1} parent=63 // pred_region
          %s4118 = sand.u32 %s126, 1
          %s4119 = scalar_lea.sflag [#allocation4], %s4118
          %s4120 = sand.u32 %s126, 1
          %s4121 = smul.addr %s4120, 512
          %s4122 = scalar_lea.vmem [#allocation10], %s4121
          %4123 = dma.done %s4119, 8192
        $region68: #{tpu_custom_call.1} parent=63 // pred_fallthru
          _
        // Predicated region
        $region69: #{tpu_custom_call.1} parent=63 // pred_check
          %p4124 = pneg %p167
        $region70: #{tpu_custom_call.1} parent=63 // pred_check_branch
          %4126 = sbr.rel (%p4124) target = $region72
        $region71: #{tpu_custom_call.1} parent=63 // pred_region
          %s4127 = sand.u32 %s152, 1
          %s4128 = scalar_lea.sflag [#allocation12], %s4127
          %s4129 = sand.u32 %s152, 1
          %s4130 = smul.addr %s4129, 128
          %s4131 = scalar_lea.vmem [#allocation11], %s4130
          %4132 = dma.done %s4128, 2048
        $region72: #{tpu_custom_call.1} parent=63 // pred_fallthru
          _
      $region64: #{tpu_custom_call.1} parent=5 // pred_fallthru
        _
    $region6: #{tpu_custom_call.1} parent=1 // loop_footer
      %s27 = sadd.s32 1, %s23
    $region7: #{tpu_custom_call.1} parent=1 // loop_footer_branch
      %22 = sbr.rel target = $region3
    $region8: #{tpu_custom_call.1} parent=1 // loop_exit
      _
    %4133 = vsyncpa [#allocation3], 1
    %s4134 = scalar_lea.sflag [#allocation3], 1
    %4135 = vsyncpa %s4134, 1
    %4136 = vsyncpa [#allocation6], 1
    %4137 = vsyncpa [#allocation9], 1
    %4138 = vsyncpa [#allocation4], 1
    %s4139 = scalar_lea.sflag [#allocation4], 1
    %4140 = vsyncpa %s4139, 1
    %4141 = vsyncpa [#allocation12], 1
    %s4142 = scalar_lea.sflag [#allocation12], 1
    %4143 = vsyncpa %s4142, 1

// kernel: tpu_custom_call.1
$region0: #{tpu_custom_call.1}
  #allocation0 [shape = 'u32[]', space=smem, size = 0x4, offset = 0x4, fixed_abs, tag = 'smem constant byte address 0x4 - core index']
  #allocation1 [shape = 'u32[144,128]{1,0:T(1,128)}', space=vmem, size = 0x12000, scoped, tag = 'internal scratch']
  %s0 = inlined_call_operand.hbm [shape: bf16[256,128], index: 0, kind: input, shape index: {}]
  %s1 = inlined_call_operand.hbm [shape: bf16[128,512], index: 1, kind: input, shape index: {}]
  %s2 = inlined_call_operand.hbm [shape: f32[1,512], index: 2, kind: input, shape index: {}]
  %s3 = inlined_call_operand.hbm [shape: bf16[512,128], index: 3, kind: input, shape index: {}]
  %s4 = inlined_call_operand.hbm [shape: f32[256,512], index: 4, kind: output, shape index: {0}]
  %s5 = inlined_call_operand.hbm [shape: f32[256,128], index: 5, kind: output, shape index: {1}]
  %6 = xla_tuple %s4, %s5
  %s7 = sld [smem:[#allocation0]]
  $region73: #{tpu_custom_call.1} parent=0
    _
  %s9 = ssub.s32 1, %s7
  %s10 = scalar_select 0, %s9, %s7
  $region1: #{tpu_custom_call.1} parent=0
    #allocation2 [shape = 'u8[65536]{0}', space=vmem, size = 0x10000, scoped, tag = 'input window, operand 0']
    #allocation3 [shape = 's32[2]{0}', space=sflag, size = 0x8, scoped, tag = 'scoped memory for tpu_custom_call.1']
    #allocation4 [shape = 's32[2]{0}', space=sflag, size = 0x8, scoped, tag = 'scoped memory for tpu_custom_call.1']
    #allocation5 [shape = 'u8[131072]{0}', space=vmem, size = 0x20000, scoped, tag = 'input window, operand 1, single buffered']
    #allocation6 [shape = 's32[1]{0}', space=sflag, size = 0x4, scoped, tag = 'scoped memory for tpu_custom_call.1']
    #allocation7 [shape = 'u8[2048]{0}', space=vmem, size = 0x800, scoped, tag = 'input window, operand 2, single buffered']
    #allocation8 [shape = 'u8[131072]{0}', space=vmem, size = 0x20000, scoped, tag = 'input window, operand 3, single buffered']
    #allocation9 [shape = 's32[1]{0}', space=sflag, size = 0x4, scoped, tag = 'scoped memory for tpu_custom_call.1']
    #allocation10 [shape = 'u8[524288]{0}', space=vmem, size = 0x80000, scoped, tag = 'output window, operand 0']
    #allocation11 [shape = 'u8[131072]{0}', space=vmem, size = 0x20000, scoped, tag = 'output window, operand 1']
    #allocation12 [shape = 's32[2]{0}', space=sflag, size = 0x8, scoped, tag = 'scoped memory for tpu_custom_call.1']
    %11 = vsyncpa [#allocation3], 0
    %s12 = scalar_lea.sflag [#allocation3], 1
    %13 = vsyncpa %s12, 0
    %14 = vsyncpa [#allocation6], 0
    %15 = vsyncpa [#allocation9], 0
    %16 = vsyncpa [#allocation4], 0
    %s17 = scalar_lea.sflag [#allocation4], 1
    %18 = vsyncpa %s17, 0
    %19 = vsyncpa [#allocation12], 0
    %s20 = scalar_lea.sflag [#allocation12], 1
    %21 = vsyncpa %s20, 0
    loop: start=0, step=1, limit=4
    $region2: #{tpu_custom_call.1} parent=1 // loop_pre_header
      _
    $region3: #{tpu_custom_call.1} parent=1 // loop_header
      %s23 = sphi 0, %s27
      %p24 = scmp.ge.s32.totalorder %s23, 4
      %s33 = sphi 0, %s35
      %s36 = sphi 0, %s33
      %s37 = sphi 0, %s36
      %s53 = sphi 0, %s37
      %s57 = sphi 0, %s57
      %s59 = sphi 0, %s57
      %s60 = sphi 0, %s59
      %s74 = sphi 0, %s60
      %s78 = sphi 0, %s78
      %s80 = sphi 0, %s78
      %s81 = sphi 0, %s80
      %s95 = sphi 0, %s81
      %s99 = sphi 0, %s99
      %s101 = sphi 0, %s99
      %s102 = sphi 0, %s101
      %s116 = sphi 0, %s102
      %s122 = sphi 0, %s124
      %s125 = sphi 0, %s122
      %s126 = sphi 0, %s125
      %s142 = sphi 0, %s126
      %s148 = sphi 0, %s150
      %s151 = sphi 0, %s148
      %s152 = sphi 0, %s151
      %s168 = sphi 0, %s152
    $region4: #{tpu_custom_call.1} parent=1 // loop_header_branch
      %26 = sbr.rel (%p24) target = $region8
    $region5: #{tpu_custom_call.1} parent=1 // loop_body
      %s28 = ssub.s32 %s23, 1
      %s29 = ssub.s32 %s23, 2
      %s30 = sadd.s32 %s23, 1
      %s31 = ssub.s32 %s23, %s30
      %p32 = scmp.eq.s32.totalorder %s31, 0
      %s34 = sadd.s32 %s33, 1
      %s35 = scalar_select %p32, %s33, %s34
      %p38 = pneg %p32
      %p39 = scmp.eq.s32.totalorder %s23, 1
      %p40 = por %p38, %p39
      %p41 = scmp.ne.s32.totalorder %s33, %s36
      %p42 = scmp.eq.s32.totalorder %s23, 0
      %p43 = por %p41, %p42
      %p44 = scmp.ne.s32.totalorder %s33, %s36
      %p45 = scmp.eq.s32.totalorder %s28, 1
      %p46 = por %p44, %p45
      %p47 = scmp.ne.s32.totalorder %s36, %s37
      %p48 = scmp.eq.s32.totalorder %s28, 0
      %p49 = por %p47, %p48
      %p50 = scmp.ne.s32.totalorder %s36, %s37
      %p51 = scmp.eq.s32.totalorder %s29, 1
      %p52 = por %p50, %p51
      %p54 = scmp.ne.s32.totalorder %s37, %s53
      %p55 = scmp.eq.s32.totalorder %s29, 0
      %p56 = por %p54, %p55
      %s58 = sadd.s32 %s57, 1
      %p61 = scmp.eq.s32.totalorder %s23, 1
      %p62 = scmp.ne.s32.totalorder %s57, %s59
      %p63 = scmp.eq.s32.totalorder %s23, 0
      %p64 = por %p62, %p63
      %p65 = scmp.ne.s32.totalorder %s57, %s59
      %p66 = scmp.eq.s32.totalorder %s28, 1
      %p67 = por %p65, %p66
      %p68 = scmp.ne.s32.totalorder %s59, %s60
      %p69 = scmp.eq.s32.totalorder %s28, 0
      %p70 = por %p68, %p69
      %p71 = scmp.ne.s32.totalorder %s59, %s60
      %p72 = scmp.eq.s32.totalorder %s29, 1
      %p73 = por %p71, %p72
      %p75 = scmp.ne.s32.totalorder %s60, %s74
      %p76 = scmp.eq.s32.totalorder %s29, 0
      %p77 = por %p75, %p76
      %s79 = sadd.s32 %s78, 1
      %p82 = scmp.eq.s32.totalorder %s23, 1
      %p83 = scmp.ne.s32.totalorder %s78, %s80
      %p84 = scmp.eq.s32.totalorder %s23, 0
      %p85 = por %p83, %p84
      %p86 = scmp.ne.s32.totalorder %s78, %s80
      %p87 = scmp.eq.s32.totalorder %s28, 1
      %p88 = por %p86, %p87
      %p89 = scmp.ne.s32.totalorder %s80, %s81
      %p90 = scmp.eq.s32.totalorder %s28, 0
      %p91 = por %p89, %p90
      %p92 = scmp.ne.s32.totalorder %s80, %s81
      %p93 = scmp.eq.s32.totalorder %s29, 1
      %p94 = por %p92, %p93
      %p96 = scmp.ne.s32.totalorder %s81, %s95
      %p97 = scmp.eq.s32.totalorder %s29, 0
      %p98 = por %p96, %p97
      %s100 = sadd.s32 %s99, 1
      %p103 = scmp.eq.s32.totalorder %s23, 1
      %p104 = scmp.ne.s32.totalorder %s99, %s101
      %p105 = scmp.eq.s32.totalorder %s23, 0
      %p106 = por %p104, %p105
      %p107 = scmp.ne.s32.totalorder %s99, %s101
      %p108 = scmp.eq.s32.totalorder %s28, 1
      %p109 = por %p107, %p108
      %p110 = scmp.ne.s32.totalorder %s101, %s102
      %p111 = scmp.eq.s32.totalorder %s28, 0
      %p112 = por %p110, %p111
      %p113 = scmp.ne.s32.totalorder %s101, %s102
      %p114 = scmp.eq.s32.totalorder %s29, 1
      %p115 = por %p113, %p114
      %p117 = scmp.ne.s32.totalorder %s102, %s116
      %p118 = scmp.eq.s32.totalorder %s29, 0
      %p119 = por %p117, %p118
      %s120 = ssub.s32 %s23, %s30
      %p121 = scmp.eq.s32.totalorder %s120, 0
      %s123 = sadd.s32 %s122, 1
      %s124 = scalar_select %p121, %s122, %s123
      %p127 = pneg %p121
      %p128 = scmp.eq.s32.totalorder %s23, 1
      %p129 = por %p127, %p128
      %p130 = scmp.ne.s32.totalorder %s122, %s125
      %p131 = scmp.eq.s32.totalorder %s23, 0
      %p132 = por %p130, %p131
      %p133 = scmp.ne.s32.totalorder %s122, %s125
      %p134 = scmp.eq.s32.totalorder %s28, 1
      %p135 = por %p133, %p134
      %p136 = scmp.ne.s32.totalorder %s125, %s126
      %p137 = scmp.eq.s32.totalorder %s28, 0
      %p138 = por %p136, %p137
      %p139 = scmp.ne.s32.totalorder %s125, %s126
      %p140 = scmp.eq.s32.totalorder %s29, 1
      %p141 = por %p139, %p140
      %p143 = scmp.ne.s32.totalorder %s126, %s142
      %p144 = scmp.eq.s32.totalorder %s29, 0
      %p145 = por %p143, %p144
      %s146 = ssub.s32 %s23, %s30
      %p147 = scmp.eq.s32.totalorder %s146, 0
      %s149 = sadd.s32 %s148, 1
      %s150 = scalar_select %p147, %s148, %s149
      %p153 = pneg %p147
      %p154 = scmp.eq.s32.totalorder %s23, 1
      %p155 = por %p153, %p154
      %p156 = scmp.ne.s32.totalorder %s148, %s151
      %p157 = scmp.eq.s32.totalorder %s23, 0
      %p158 = por %p156, %p157
      %p159 = scmp.ne.s32.totalorder %s148, %s151
      %p160 = scmp.eq.s32.totalorder %s28, 1
      %p161 = por %p159, %p160
      %p162 = scmp.ne.s32.totalorder %s151, %s152
      %p163 = scmp.eq.s32.totalorder %s28, 0
      %p164 = por %p162, %p163
      %p165 = scmp.ne.s32.totalorder %s151, %s152
      %p166 = scmp.eq.s32.totalorder %s29, 1
      %p167 = por %p165, %p166
      %p169 = scmp.ne.s32.totalorder %s152, %s168
      %p170 = scmp.eq.s32.totalorder %s29, 0
      %p171 = por %p169, %p170
      %p172 = scmp.le.s32.totalorder 1, %s23
      %p173 = scmp.lt.s32.totalorder %s23, 3
      %p174 = pnand %p172, %p173
      %p175 = pneg %p174
      // Predicated region
      $region9: #{tpu_custom_call.1} parent=5 // pred_check
        _
      $region10: #{tpu_custom_call.1} parent=5 // pred_check_branch
        %177 = sbr.rel (%p174) target = $region12
      $region11: #{tpu_custom_call.1} parent=5 // pred_region
        %s178 = ssub.s32 %s23, 1
        // Predicated region
        $region13: #{tpu_custom_call.1} parent=11 // pred_check
          %p179 = pneg %p70
        $region14: #{tpu_custom_call.1} parent=11 // pred_check_branch
          %181 = sbr.rel (%p179) target = $region16
        $region15: #{tpu_custom_call.1} parent=11 // pred_region
          %s183 = ssub.s32 4096, 4096
          %184 = vsyncadd [#allocation6], %s183
          %s185 = sshll.u32 [#allocation5], 4
          %s186 = int_to_ptr.vmem [resolvable:$true] %s185
          %191 = dma.hbm_to_vmem [thread:$0]  %s1, 4096, %s186, [#allocation6], 256, 256, 16
        $region16: #{tpu_custom_call.1} parent=11 // pred_fallthru
          _
        // Predicated region
        $region17: #{tpu_custom_call.1} parent=11 // pred_check
          %p192 = pneg %p91
        $region18: #{tpu_custom_call.1} parent=11 // pred_check_branch
          %194 = sbr.rel (%p192) target = $region20
        $region19: #{tpu_custom_call.1} parent=11 // pred_region
          %s196 = ssub.s32 64, 64
          %197 = vsyncadd [#allocation6], %s196
          %s199 = sshll.u32 [#allocation7], 4
          %s200 = int_to_ptr.vmem [resolvable:$true] %s199
          %202 = dma.hbm_to_vmem [thread:$0]  %s2, 64, %s200, [#allocation6]
        $region20: #{tpu_custom_call.1} parent=11 // pred_fallthru
          _
        // Predicated region
        $region21: #{tpu_custom_call.1} parent=11 // pred_check
          %p203 = pneg %p112
        $region22: #{tpu_custom_call.1} parent=11 // pred_check_branch
          %205 = sbr.rel (%p203) target = $region24
        $region23: #{tpu_custom_call.1} parent=11 // pred_region
          %s207 = ssub.s32 4096, 4096
          %208 = vsyncadd [#allocation9], %s207
          %s209 = sshll.u32 [#allocation8], 4
          %s210 = int_to_ptr.vmem [resolvable:$true] %s209
          %215 = dma.hbm_to_vmem [thread:$0]  %s3, 4096, %s210, [#allocation9], 64, 64, 4
        $region24: #{tpu_custom_call.1} parent=11 // pred_fallthru
          _
      $region12: #{tpu_custom_call.1} parent=5 // pred_fallthru
        _
      %p216 = scmp.lt.s32.totalorder %s23, 2
      // Predicated region
      $region25: #{tpu_custom_call.1} parent=5 // pred_check
        %p217 = pneg %p216
      $region26: #{tpu_custom_call.1} parent=5 // pred_check_branch
        %219 = sbr.rel (%p217) target = $region28
      $region27: #{tpu_custom_call.1} parent=5 // pred_region
        // Predicated region
        $region29: #{tpu_custom_call.1} parent=27 // pred_check
          %p220 = pneg %p43
        $region30: #{tpu_custom_call.1} parent=27 // pred_check_branch
          %222 = sbr.rel (%p220) target = $region32
        $region31: #{tpu_custom_call.1} parent=27 // pred_region
          %s223 = sand.u32 %s33, 1
          %s224 = scalar_lea.sflag [#allocation3], %s223
          %s225 = sand.u32 %s33, 1
          %s226 = smul.addr %s225, 64
          %s227 = scalar_lea.vmem [#allocation2], %s226
          %s228 = smul.u32 16, %s23
          %s230 = ssub.s32 1024, 1024
          %231 = vsyncadd %s224, %s230
          %s232 = smul.addr %s228, 64
          %s233 = scalar_lea.hbm %s0, %s232
          %s234 = sshll.u32 %s227, 4
          %s235 = int_to_ptr.vmem [resolvable:$true] %s234
          %240 = dma.hbm_to_vmem [thread:$0]  %s233, 1024, %s235, %s224, 64, 64, 4
        $region32: #{tpu_custom_call.1} parent=27 // pred_fallthru
          _
      $region28: #{tpu_custom_call.1} parent=5 // pred_fallthru
        _
      %p241 = scmp.le.s32.totalorder 1, %s23
      %p242 = scmp.lt.s32.totalorder %s23, 3
      %p243 = pnand %p241, %p242
      %p244 = pneg %p243
      // Predicated region
      $region33: #{tpu_custom_call.1} parent=5 // pred_check
        _
      $region34: #{tpu_custom_call.1} parent=5 // pred_check_branch
        %246 = sbr.rel (%p243) target = $region36
      $region35: #{tpu_custom_call.1} parent=5 // pred_region
        %s247 = ssub.s32 %s23, 1
        %s248 = sand.u32 %s36, 1
        %s249 = scalar_lea.sflag [#allocation3], %s248
        %s250 = sand.u32 %s36, 1
        %s251 = smul.addr %s250, 64
        %s252 = scalar_lea.vmem [#allocation2], %s251
        // Predicated region
        $region37: #{tpu_custom_call.1} parent=35 // pred_check
          %p253 = pneg %p49
        $region38: #{tpu_custom_call.1} parent=35 // pred_check_branch
          %255 = sbr.rel (%p253) target = $region40
        $region39: #{tpu_custom_call.1} parent=35 // pred_region
          %256 = dma.done %s249, 1024
        $region40: #{tpu_custom_call.1} parent=35 // pred_fallthru
          _
        // Predicated region
        $region41: #{tpu_custom_call.1} parent=35 // pred_check
          %p257 = pneg %p70
        $region42: #{tpu_custom_call.1} parent=35 // pred_check_branch
          %259 = sbr.rel (%p257) target = $region44
        $region43: #{tpu_custom_call.1} parent=35 // pred_region
          %260 = dma.done [#allocation6], 4096
        $region44: #{tpu_custom_call.1} parent=35 // pred_fallthru
          _
        // Predicated region
        $region45: #{tpu_custom_call.1} parent=35 // pred_check
          %p261 = pneg %p91
        $region46: #{tpu_custom_call.1} parent=35 // pred_check_branch
          %263 = sbr.rel (%p261) target = $region48
        $region47: #{tpu_custom_call.1} parent=35 // pred_region
          %264 = dma.done [#allocation6], 64
        $region48: #{tpu_custom_call.1} parent=35 // pred_fallthru
          _
        // Predicated region
        $region49: #{tpu_custom_call.1} parent=35 // pred_check
          %p265 = pneg %p112
        $region50: #{tpu_custom_call.1} parent=35 // pred_check_branch
          %267 = sbr.rel (%p265) target = $region52
        $region51: #{tpu_custom_call.1} parent=35 // pred_region
          %268 = dma.done [#allocation9], 4096
        $region52: #{tpu_custom_call.1} parent=35 // pred_fallthru
          _
        %s269 = sand.u32 %s36, 1
        %s270 = scalar_lea.sflag [#allocation3], %s269
        %s271 = sand.u32 %s36, 1
        %s272 = smul.addr %s271, 64
        %s273 = scalar_lea.vmem [#allocation2], %s272
        %p274 = pneg %p49
        %p275 = pneg %p46
        %p276 = pneg %p70
        %p277 = pneg %p67
        %p278 = pneg %p91
        %p279 = pneg %p88
        %p280 = pneg %p112
        %p281 = pneg %p109
        %p282 = pneg %p138
        %p283 = pneg %p135
        %s284 = sand.u32 %s125, 1
        %s285 = scalar_lea.sflag [#allocation4], %s284
        %s286 = sand.u32 %s125, 1
        %s287 = smul.addr %s286, 512
        %s288 = scalar_lea.vmem [#allocation10], %s287
        %p289 = pneg %p164
        %p290 = pneg %p161
        %s291 = sand.u32 %s151, 1
        %s292 = scalar_lea.sflag [#allocation12], %s291
        %s293 = sand.u32 %s151, 1
        %s294 = smul.addr %s293, 128
        %s295 = scalar_lea.vmem [#allocation11], %s294
        %s296 = smul.u32 16, %s28
        %s297 = smul.u32 16, %s28
        %s298 = smul.u32 16, %s28
        %v300 = vlaneseq
        %v301 = vand.u32 %v300, 127
        %v302 = vadd.s32 %v301, 128
        %v303 = vadd.s32 %v301, 256
        %v304 = vadd.s32 %v301, 384
        %v305 = vsub.s32 511, %v301
        %v306 = vsub.s32 511, %v302
        %v307 = vsub.s32 511, %v303
        %v308 = vsub.s32 511, %v304
        %v309 = vld [vmem:[%s252] sm:$0xf]
        %v310 = vld [vmem:[%s252 + $0x4] sm:$0xf]
        %v311 = vld [vmem:[%s252 + $0x8] sm:$0xf]
        %v312 = vld [vmem:[%s252 + $0xc] sm:$0xf]
        %v313 = vld [vmem:[%s252 + $0x10] sm:$0xf]
        %v314 = vld [vmem:[%s252 + $0x14] sm:$0xf]
        %v315 = vld [vmem:[%s252 + $0x18] sm:$0xf]
        %v316 = vld [vmem:[%s252 + $0x1c] sm:$0xf]
        %v317 = vld [vmem:[#allocation5] sm:$0xff]
        %v318 = vld [vmem:[#allocation5 + $0x8] sm:$0xff]
        %v319 = vld [vmem:[#allocation5 + $0x10] sm:$0xff]
        %v320 = vld [vmem:[#allocation5 + $0x18] sm:$0xff]
        %v321 = vld [vmem:[#allocation5 + $0x20] sm:$0xff]
        %v322 = vld [vmem:[#allocation5 + $0x28] sm:$0xff]
        %v323 = vld [vmem:[#allocation5 + $0x30] sm:$0xff]
        %v324 = vld [vmem:[#allocation5 + $0x38] sm:$0xff]
        %v325 = vld [vmem:[#allocation5 + $0x40] sm:$0xff]
        %v326 = vld [vmem:[#allocation5 + $0x48] sm:$0xff]
        %v327 = vld [vmem:[#allocation5 + $0x50] sm:$0xff]
        %v328 = vld [vmem:[#allocation5 + $0x58] sm:$0xff]
        %v329 = vld [vmem:[#allocation5 + $0x60] sm:$0xff]
        %v330 = vld [vmem:[#allocation5 + $0x68] sm:$0xff]
        %v331 = vld [vmem:[#allocation5 + $0x70] sm:$0xff]
        %v332 = vld [vmem:[#allocation5 + $0x78] sm:$0xff]
        %v333 = vld [vmem:[#allocation5 + $0x80] sm:$0xff]
        %v334 = vld [vmem:[#allocation5 + $0x88] sm:$0xff]
        %v335 = vld [vmem:[#allocation5 + $0x90] sm:$0xff]
        %v336 = vld [vmem:[#allocation5 + $0x98] sm:$0xff]
        %v337 = vld [vmem:[#allocation5 + $0xa0] sm:$0xff]
        %v338 = vld [vmem:[#allocation5 + $0xa8] sm:$0xff]
        %v339 = vld [vmem:[#allocation5 + $0xb0] sm:$0xff]
        %v340 = vld [vmem:[#allocation5 + $0xb8] sm:$0xff]
        %v341 = vld [vmem:[#allocation5 + $0xc0] sm:$0xff]
        %v342 = vld [vmem:[#allocation5 + $0xc8] sm:$0xff]
        %v343 = vld [vmem:[#allocation5 + $0xd0] sm:$0xff]
        %v344 = vld [vmem:[#allocation5 + $0xd8] sm:$0xff]
        %v345 = vld [vmem:[#allocation5 + $0xe0] sm:$0xff]
        %v346 = vld [vmem:[#allocation5 + $0xe8] sm:$0xff]
        %v347 = vld [vmem:[#allocation5 + $0xf0] sm:$0xff]
        %v348 = vld [vmem:[#allocation5 + $0xf8] sm:$0xff]
        %v349 = vld [vmem:[#allocation7] sm:$0xf]
        %v351 = vlaneseq
        %v352 = vshrl.u32 %v351, 7
        %v353 = vsub.s32 0, %v352
        %v354 = vrot.slane %v349, %v353
        %v355 = vlaneseq
        %v356 = vshrl.u32 %v355, 7
        %v357 = vsub.s32 1, %v356
        %v358 = vrot.slane %v349, %v357
        %v359 = vlaneseq
        %v360 = vshrl.u32 %v359, 7
        %v361 = vsub.s32 2, %v360
        %v362 = vrot.slane %v349, %v361
        %v363 = vlaneseq
        %v364 = vshrl.u32 %v363, 7
        %v365 = vsub.s32 3, %v364
        %v366 = vrot.slane %v349, %v365
        %v379 = vunpack.c.l.b16 %v309
        %v380 = vunpack.c.l.b16 %v310
        %v381 = vunpack.c.l.b16 %v311
        %v382 = vunpack.c.l.b16 %v312
        %v383 = vunpack.c.l.b16 %v313
        %v384 = vunpack.c.l.b16 %v314
        %v385 = vunpack.c.l.b16 %v315
        %v386 = vunpack.c.l.b16 %v316
        %v387 = vpack.c.b16 %v380, %v379
        %v388 = vpack.c.b16 %v382, %v381
        %v389 = vpack.c.b16 %v384, %v383
        %v390 = vpack.c.b16 %v386, %v385
        %v427 = vunpack.c.l.b16 %v317
        %v428 = vunpack.c.h.b16 %v317
        %v429 = vunpack.c.l.b16 %v318
        %v430 = vunpack.c.h.b16 %v318
        %v431 = vunpack.c.l.b16 %v319
        %v432 = vunpack.c.h.b16 %v319
        %v433 = vunpack.c.l.b16 %v320
        %v434 = vunpack.c.h.b16 %v320
        %v435 = vunpack.c.l.b16 %v321
        %v436 = vunpack.c.h.b16 %v321
        %v437 = vunpack.c.l.b16 %v322
        %v438 = vunpack.c.h.b16 %v322
        %v439 = vunpack.c.l.b16 %v323
        %v440 = vunpack.c.h.b16 %v323
        %v441 = vunpack.c.l.b16 %v324
        %v442 = vunpack.c.h.b16 %v324
        %v443 = vunpack.c.l.b16 %v325
        %v444 = vunpack.c.h.b16 %v325
        %v445 = vunpack.c.l.b16 %v326
        %v446 = vunpack.c.h.b16 %v326
        %v447 = vunpack.c.l.b16 %v327
        %v448 = vunpack.c.h.b16 %v327
        %v449 = vunpack.c.l.b16 %v328
        %v450 = vunpack.c.h.b16 %v328
        %v451 = vunpack.c.l.b16 %v329
        %v452 = vunpack.c.h.b16 %v329
        %v453 = vunpack.c.l.b16 %v330
        %v454 = vunpack.c.h.b16 %v330
        %v455 = vunpack.c.l.b16 %v331
        %v456 = vunpack.c.h.b16 %v331
        %v457 = vunpack.c.l.b16 %v332
        %v458 = vunpack.c.h.b16 %v332
        %v459 = vunpack.c.l.b16 %v333
        %v460 = vunpack.c.h.b16 %v333
        %v461 = vunpack.c.l.b16 %v334
        %v462 = vunpack.c.h.b16 %v334
        %v463 = vunpack.c.l.b16 %v335
        %v464 = vunpack.c.h.b16 %v335
        %v465 = vunpack.c.l.b16 %v336
        %v466 = vunpack.c.h.b16 %v336
        %v467 = vunpack.c.l.b16 %v337
        %v468 = vunpack.c.h.b16 %v337
        %v469 = vunpack.c.l.b16 %v338
        %v470 = vunpack.c.h.b16 %v338
        %v471 = vunpack.c.l.b16 %v339
        %v472 = vunpack.c.h.b16 %v339
        %v473 = vunpack.c.l.b16 %v340
        %v474 = vunpack.c.h.b16 %v340
        %v475 = vunpack.c.l.b16 %v341
        %v476 = vunpack.c.h.b16 %v341
        %v477 = vunpack.c.l.b16 %v342
        %v478 = vunpack.c.h.b16 %v342
        %v479 = vunpack.c.l.b16 %v343
        %v480 = vunpack.c.h.b16 %v343
        %v481 = vunpack.c.l.b16 %v344
        %v482 = vunpack.c.h.b16 %v344
        %v483 = vunpack.c.l.b16 %v345
        %v484 = vunpack.c.h.b16 %v345
        %v485 = vunpack.c.l.b16 %v346
        %v486 = vunpack.c.h.b16 %v346
        %v487 = vunpack.c.l.b16 %v347
        %v488 = vunpack.c.h.b16 %v347
        %v489 = vunpack.c.l.b16 %v348
        %v490 = vunpack.c.h.b16 %v348
        %v491 = vpack.c.b16 %v431, %v427
        %v492 = vpack.c.b16 %v432, %v428
        %v493 = vpack.c.b16 %v433, %v429
        %v494 = vpack.c.b16 %v434, %v430
        %v495 = vpack.c.b16 %v439, %v435
        %v496 = vpack.c.b16 %v440, %v436
        %v497 = vpack.c.b16 %v441, %v437
        %v498 = vpack.c.b16 %v442, %v438
        %v499 = vpack.c.b16 %v447, %v443
        %v500 = vpack.c.b16 %v448, %v444
        %v501 = vpack.c.b16 %v449, %v445
        %v502 = vpack.c.b16 %v450, %v446
        %v503 = vpack.c.b16 %v455, %v451
        %v504 = vpack.c.b16 %v456, %v452
        %v505 = vpack.c.b16 %v457, %v453
        %v506 = vpack.c.b16 %v458, %v454
        %v507 = vpack.c.b16 %v463, %v459
        %v508 = vpack.c.b16 %v464, %v460
        %v509 = vpack.c.b16 %v465, %v461
        %v510 = vpack.c.b16 %v466, %v462
        %v511 = vpack.c.b16 %v471, %v467
        %v512 = vpack.c.b16 %v472, %v468
        %v513 = vpack.c.b16 %v473, %v469
        %v514 = vpack.c.b16 %v474, %v470
        %v515 = vpack.c.b16 %v479, %v475
        %v516 = vpack.c.b16 %v480, %v476
        %v517 = vpack.c.b16 %v481, %v477
        %v518 = vpack.c.b16 %v482, %v478
        %v519 = vpack.c.b16 %v487, %v483
        %v520 = vpack.c.b16 %v488, %v484
        %v521 = vpack.c.b16 %v489, %v485
        %v522 = vpack.c.b16 %v490, %v486
        %555 = vmatprep.subr.bf16.mxu0 %v520
        %556 = vmatpush1.bf16.msra.mxu0 %v519
        %557 = vmatprep.subr.bf16.mxu0 %v516
        %558 = vmatpush1.bf16.msra.mxu0 %v515
        %559 = vmatprep.subr.bf16.mxu0 %v512
        %560 = vmatpush1.bf16.msra.mxu0 %v511
        %561 = vmatprep.subr.bf16.mxu0 %v508
        %562 = vmatpush1.bf16.msra.mxu0 %v507
        %563 = vmatprep.subr.bf16.mxu0 %v504
        %564 = vmatpush1.bf16.msra.mxu0 %v503
        %565 = vmatprep.subr.bf16.mxu0 %v500
        %566 = vmatpush1.bf16.msra.mxu0 %v499
        %567 = vmatprep.subr.bf16.mxu0 %v496
        %568 = vmatpush1.bf16.msra.mxu0 %v495
        %569 = vmatprep.subr.bf16.mxu0 %v492
        %570 = vmatpush1.bf16.msra.mxu0 %v491
        %571 = vmatprep.subr.bf16.mxu0 0
        %572 = vmatpush2.bf16.msra.mxu0 0
        %573 = vmatprep.subr.bf16.mxu0 0
        %574 = vmatpush2.bf16.msra.mxu0 0
        %575 = vmatprep.subr.bf16.mxu0 0
        %576 = vmatpush2.bf16.msra.mxu0 0
        %577 = vmatprep.subr.bf16.mxu0 0
        %578 = vmatpush2.bf16.msra.mxu0 0
        %579 = vmatprep.subr.bf16.mxu0 0
        %580 = vmatpush2.bf16.msra.mxu0 0
        %581 = vmatprep.subr.bf16.mxu0 0
        %582 = vmatpush2.bf16.msra.mxu0 0
        %583 = vmatprep.subr.bf16.mxu0 0
        %584 = vmatpush2.bf16.msra.mxu0 0
        %585 = vmatprep.subr.bf16.mxu0 0
        %586 = vmatpush2.bf16.msra.mxu0 0
        %587 = vmatprep.mubr.bf16.mxu0 0
        %588 = vmatmul.mubr.bf16.gmra.mxu0 %v387
        %v589 = vpop.f32.mrf.mxu0
        %v590 = vadd.f32 %v354, %v589
        %v591 = vpop.f32.mrf.mxu0
        %v592 = vadd.f32 %v358, %v591
        %v593 = vpop.f32.mrf.mxu0
        %v594 = vadd.f32 %v354, %v593
        %v595 = vpop.f32.mrf.mxu0
        %v596 = vadd.f32 %v358, %v595
        %597 = vmatprep.mubr.bf16.mxu0 0
        %598 = vmatmul.mubr.bf16.gmra.mxu0 %v388
        %v599 = vpop.f32.mrf.mxu0
        %v600 = vadd.f32 %v354, %v599
        %v601 = vpop.f32.mrf.mxu0
        %v602 = vadd.f32 %v358, %v601
        %v603 = vpop.f32.mrf.mxu0
        %v604 = vadd.f32 %v354, %v603
        %v605 = vpop.f32.mrf.mxu0
        %v606 = vadd.f32 %v358, %v605
        %607 = vmatprep.mubr.bf16.mxu0 0
        %608 = vmatmul.mubr.bf16.gmra.mxu0 %v389
        %v609 = vpop.f32.mrf.mxu0
        %v610 = vadd.f32 %v354, %v609
        %v611 = vpop.f32.mrf.mxu0
        %v612 = vadd.f32 %v358, %v611
        %v613 = vpop.f32.mrf.mxu0
        %v614 = vadd.f32 %v354, %v613
        %v615 = vpop.f32.mrf.mxu0
        %v616 = vadd.f32 %v358, %v615
        %617 = vmatprep.mubr.bf16.mxu0 0
        %618 = vmatmul.mubr.bf16.gmra.mxu0 %v390
        %v619 = vpop.f32.mrf.mxu0
        %v620 = vadd.f32 %v354, %v619
        %v621 = vpop.f32.mrf.mxu0
        %v622 = vadd.f32 %v358, %v621
        %v623 = vpop.f32.mrf.mxu0
        %v624 = vadd.f32 %v354, %v623
        %v625 = vpop.f32.mrf.mxu0
        %v626 = vadd.f32 %v358, %v625
        %627 = vdwg.mxu0
        %628 = vmatprep.subr.bf16.mxu0 %v522
        %629 = vmatpush1.bf16.msra.mxu0 %v521
        %630 = vmatprep.subr.bf16.mxu0 %v518
        %631 = vmatpush1.bf16.msra.mxu0 %v517
        %632 = vmatprep.subr.bf16.mxu0 %v514
        %633 = vmatpush1.bf16.msra.mxu0 %v513
        %634 = vmatprep.subr.bf16.mxu0 %v510
        %635 = vmatpush1.bf16.msra.mxu0 %v509
        %636 = vmatprep.subr.bf16.mxu0 %v506
        %637 = vmatpush1.bf16.msra.mxu0 %v505
        %638 = vmatprep.subr.bf16.mxu0 %v502
        %639 = vmatpush1.bf16.msra.mxu0 %v501
        %640 = vmatprep.subr.bf16.mxu0 %v498
        %641 = vmatpush1.bf16.msra.mxu0 %v497
        %642 = vmatprep.subr.bf16.mxu0 %v494
        %643 = vmatpush1.bf16.msra.mxu0 %v493
        %644 = vmatprep.subr.bf16.mxu0 0
        %645 = vmatpush2.bf16.msra.mxu0 0
        %646 = vmatprep.subr.bf16.mxu0 0
        %647 = vmatpush2.bf16.msra.mxu0 0
        %648 = vmatprep.subr.bf16.mxu0 0
        %649 = vmatpush2.bf16.msra.mxu0 0
        %650 = vmatprep.subr.bf16.mxu0 0
        %651 = vmatpush2.bf16.msra.mxu0 0
        %652 = vmatprep.subr.bf16.mxu0 0
        %653 = vmatpush2.bf16.msra.mxu0 0
        %654 = vmatprep.subr.bf16.mxu0 0
        %655 = vmatpush2.bf16.msra.mxu0 0
        %656 = vmatprep.subr.bf16.mxu0 0
        %657 = vmatpush2.bf16.msra.mxu0 0
        %658 = vmatprep.subr.bf16.mxu0 0
        %659 = vmatpush2.bf16.msra.mxu0 0
        %660 = vmatprep.mubr.bf16.mxu0 0
        %661 = vmatmul.mubr.bf16.gmra.mxu0 %v387
        %v662 = vpop.f32.mrf.mxu0
        %v663 = vadd.f32 %v362, %v662
        %v664 = vpop.f32.mrf.mxu0
        %v665 = vadd.f32 %v366, %v664
        %v666 = vpop.f32.mrf.mxu0
        %v667 = vadd.f32 %v362, %v666
        %v668 = vpop.f32.mrf.mxu0
        %v669 = vadd.f32 %v366, %v668
        %670 = vmatprep.mubr.bf16.mxu0 0
        %671 = vmatmul.mubr.bf16.gmra.mxu0 %v388
        %v672 = vpop.f32.mrf.mxu0
        %v673 = vadd.f32 %v362, %v672
        %v674 = vpop.f32.mrf.mxu0
        %v675 = vadd.f32 %v366, %v674
        %v676 = vpop.f32.mrf.mxu0
        %v677 = vadd.f32 %v362, %v676
        %v678 = vpop.f32.mrf.mxu0
        %v679 = vadd.f32 %v366, %v678
        %680 = vmatprep.mubr.bf16.mxu0 0
        %681 = vmatmul.mubr.bf16.gmra.mxu0 %v389
        %v682 = vpop.f32.mrf.mxu0
        %v683 = vadd.f32 %v362, %v682
        %v684 = vpop.f32.mrf.mxu0
        %v685 = vadd.f32 %v366, %v684
        %v686 = vpop.f32.mrf.mxu0
        %v687 = vadd.f32 %v362, %v686
        %v688 = vpop.f32.mrf.mxu0
        %v689 = vadd.f32 %v366, %v688
        %690 = vmatprep.mubr.bf16.mxu0 0
        %691 = vmatmul.mubr.bf16.gmra.mxu0 %v390
        %v692 = vpop.f32.mrf.mxu0
        %v693 = vadd.f32 %v362, %v692
        %v694 = vpop.f32.mrf.mxu0
        %v695 = vadd.f32 %v366, %v694
        %v696 = vpop.f32.mrf.mxu0
        %v697 = vadd.f32 %v362, %v696
        %v698 = vpop.f32.mrf.mxu0
        %v699 = vadd.f32 %v366, %v698
        %700 = vdwg.mxu0
        %v701 = vmax.f32 %v590, 0.0
        %v702 = vmax.f32 %v592, 0.0
        %v703 = vmax.f32 %v663, 0.0
        %v704 = vmax.f32 %v665, 0.0
        %v705 = vmax.f32 %v594, 0.0
        %v706 = vmax.f32 %v596, 0.0
        %v707 = vmax.f32 %v667, 0.0
        %v708 = vmax.f32 %v669, 0.0
        %v709 = vmax.f32 %v600, 0.0
        %v710 = vmax.f32 %v602, 0.0
        %v711 = vmax.f32 %v673, 0.0
        %v712 = vmax.f32 %v675, 0.0
        %v713 = vmax.f32 %v604, 0.0
        %v714 = vmax.f32 %v606, 0.0
        %v715 = vmax.f32 %v677, 0.0
        %v716 = vmax.f32 %v679, 0.0
        %v717 = vmax.f32 %v610, 0.0
        %v718 = vmax.f32 %v612, 0.0
        %v719 = vmax.f32 %v683, 0.0
        %v720 = vmax.f32 %v685, 0.0
        %v721 = vmax.f32 %v614, 0.0
        %v722 = vmax.f32 %v616, 0.0
        %v723 = vmax.f32 %v687, 0.0
        %v724 = vmax.f32 %v689, 0.0
        %v725 = vmax.f32 %v620, 0.0
        %v726 = vmax.f32 %v622, 0.0
        %v727 = vmax.f32 %v693, 0.0
        %v728 = vmax.f32 %v695, 0.0
        %v729 = vmax.f32 %v624, 0.0
        %v730 = vmax.f32 %v626, 0.0
        %v731 = vmax.f32 %v697, 0.0
        %v732 = vmax.f32 %v699, 0.0
        %v733 = vld [vmem:[%s252 + $0x20] sm:$0xf]
        %v734 = vld [vmem:[%s252 + $0x24] sm:$0xf]
        %v735 = vld [vmem:[%s252 + $0x28] sm:$0xf]
        %v736 = vld [vmem:[%s252 + $0x2c] sm:$0xf]
        %v737 = vld [vmem:[%s252 + $0x30] sm:$0xf]
        %v738 = vld [vmem:[%s252 + $0x34] sm:$0xf]
        %v739 = vld [vmem:[%s252 + $0x38] sm:$0xf]
        %v740 = vld [vmem:[%s252 + $0x3c] sm:$0xf]
        %v749 = vunpack.c.l.b16 %v733
        %v750 = vunpack.c.l.b16 %v734
        %v751 = vunpack.c.l.b16 %v735
        %v752 = vunpack.c.l.b16 %v736
        %v753 = vunpack.c.l.b16 %v737
        %v754 = vunpack.c.l.b16 %v738
        %v755 = vunpack.c.l.b16 %v739
        %v756 = vunpack.c.l.b16 %v740
        %v757 = vpack.c.b16 %v750, %v749
        %v758 = vpack.c.b16 %v752, %v751
        %v759 = vpack.c.b16 %v754, %v753
        %v760 = vpack.c.b16 %v756, %v755
        %765 = vmatprep.subr.bf16.mxu0 %v520
        %766 = vmatpush1.bf16.msra.mxu0 %v519
        %767 = vmatprep.subr.bf16.mxu0 %v516
        %768 = vmatpush1.bf16.msra.mxu0 %v515
        %769 = vmatprep.subr.bf16.mxu0 %v512
        %770 = vmatpush1.bf16.msra.mxu0 %v511
        %771 = vmatprep.subr.bf16.mxu0 %v508
        %772 = vmatpush1.bf16.msra.mxu0 %v507
        %773 = vmatprep.subr.bf16.mxu0 %v504
        %774 = vmatpush1.bf16.msra.mxu0 %v503
        %775 = vmatprep.subr.bf16.mxu0 %v500
        %776 = vmatpush1.bf16.msra.mxu0 %v499
        %777 = vmatprep.subr.bf16.mxu0 %v496
        %778 = vmatpush1.bf16.msra.mxu0 %v495
        %779 = vmatprep.subr.bf16.mxu0 %v492
        %780 = vmatpush1.bf16.msra.mxu0 %v491
        %781 = vmatprep.subr.bf16.mxu0 0
        %782 = vmatpush2.bf16.msra.mxu0 0
        %783 = vmatprep.subr.bf16.mxu0 0
        %784 = vmatpush2.bf16.msra.mxu0 0
        %785 = vmatprep.subr.bf16.mxu0 0
        %786 = vmatpush2.bf16.msra.mxu0 0
        %787 = vmatprep.subr.bf16.mxu0 0
        %788 = vmatpush2.bf16.msra.mxu0 0
        %789 = vmatprep.subr.bf16.mxu0 0
        %790 = vmatpush2.bf16.msra.mxu0 0
        %791 = vmatprep.subr.bf16.mxu0 0
        %792 = vmatpush2.bf16.msra.mxu0 0
        %793 = vmatprep.subr.bf16.mxu0 0
        %794 = vmatpush2.bf16.msra.mxu0 0
        %795 = vmatprep.subr.bf16.mxu0 0
        %796 = vmatpush2.bf16.msra.mxu0 0
        %797 = vmatprep.mubr.bf16.mxu0 0
        %798 = vmatmul.mubr.bf16.gmra.mxu0 %v757
        %v799 = vpop.f32.mrf.mxu0
        %v800 = vadd.f32 %v354, %v799
        %v801 = vpop.f32.mrf.mxu0
        %v802 = vadd.f32 %v358, %v801
        %v803 = vpop.f32.mrf.mxu0
        %v804 = vadd.f32 %v354, %v803
        %v805 = vpop.f32.mrf.mxu0
        %v806 = vadd.f32 %v358, %v805
        %807 = vmatprep.mubr.bf16.mxu0 0
        %808 = vmatmul.mubr.bf16.gmra.mxu0 %v758
        %v809 = vpop.f32.mrf.mxu0
        %v810 = vadd.f32 %v354, %v809
        %v811 = vpop.f32.mrf.mxu0
        %v812 = vadd.f32 %v358, %v811
        %v813 = vpop.f32.mrf.mxu0
        %v814 = vadd.f32 %v354, %v813
        %v815 = vpop.f32.mrf.mxu0
        %v816 = vadd.f32 %v358, %v815
        %817 = vmatprep.mubr.bf16.mxu0 0
        %818 = vmatmul.mubr.bf16.gmra.mxu0 %v759
        %v819 = vpop.f32.mrf.mxu0
        %v820 = vadd.f32 %v354, %v819
        %v821 = vpop.f32.mrf.mxu0
        %v822 = vadd.f32 %v358, %v821
        %v823 = vpop.f32.mrf.mxu0
        %v824 = vadd.f32 %v354, %v823
        %v825 = vpop.f32.mrf.mxu0
        %v826 = vadd.f32 %v358, %v825
        %827 = vmatprep.mubr.bf16.mxu0 0
        %828 = vmatmul.mubr.bf16.gmra.mxu0 %v760
        %v829 = vpop.f32.mrf.mxu0
        %v830 = vadd.f32 %v354, %v829
        %v831 = vpop.f32.mrf.mxu0
        %v832 = vadd.f32 %v358, %v831
        %v833 = vpop.f32.mrf.mxu0
        %v834 = vadd.f32 %v354, %v833
        %v835 = vpop.f32.mrf.mxu0
        %v836 = vadd.f32 %v358, %v835
        %837 = vdwg.mxu0
        %838 = vmatprep.subr.bf16.mxu0 %v522
        %839 = vmatpush1.bf16.msra.mxu0 %v521
        %840 = vmatprep.subr.bf16.mxu0 %v518
        %841 = vmatpush1.bf16.msra.mxu0 %v517
        %842 = vmatprep.subr.bf16.mxu0 %v514
        %843 = vmatpush1.bf16.msra.mxu0 %v513
        %844 = vmatprep.subr.bf16.mxu0 %v510
        %845 = vmatpush1.bf16.msra.mxu0 %v509
        %846 = vmatprep.subr.bf16.mxu0 %v506
        %847 = vmatpush1.bf16.msra.mxu0 %v505
        %848 = vmatprep.subr.bf16.mxu0 %v502
        %849 = vmatpush1.bf16.msra.mxu0 %v501
        %850 = vmatprep.subr.bf16.mxu0 %v498
        %851 = vmatpush1.bf16.msra.mxu0 %v497
        %852 = vmatprep.subr.bf16.mxu0 %v494
        %853 = vmatpush1.bf16.msra.mxu0 %v493
        %854 = vmatprep.subr.bf16.mxu0 0
        %855 = vmatpush2.bf16.msra.mxu0 0
        %856 = vmatprep.subr.bf16.mxu0 0
        %857 = vmatpush2.bf16.msra.mxu0 0
        %858 = vmatprep.subr.bf16.mxu0 0
        %859 = vmatpush2.bf16.msra.mxu0 0
        %860 = vmatprep.subr.bf16.mxu0 0
        %861 = vmatpush2.bf16.msra.mxu0 0
        %862 = vmatprep.subr.bf16.mxu0 0
        %863 = vmatpush2.bf16.msra.mxu0 0
        %864 = vmatprep.subr.bf16.mxu0 0
        %865 = vmatpush2.bf16.msra.mxu0 0
        %866 = vmatprep.subr.bf16.mxu0 0
        %867 = vmatpush2.bf16.msra.mxu0 0
        %868 = vmatprep.subr.bf16.mxu0 0
        %869 = vmatpush2.bf16.msra.mxu0 0
        %870 = vmatprep.mubr.bf16.mxu0 0
        %871 = vmatmul.mubr.bf16.gmra.mxu0 %v757
        %v872 = vpop.f32.mrf.mxu0
        %v873 = vadd.f32 %v362, %v872
        %v874 = vpop.f32.mrf.mxu0
        %v875 = vadd.f32 %v366, %v874
        %v876 = vpop.f32.mrf.mxu0
        %v877 = vadd.f32 %v362, %v876
        %v878 = vpop.f32.mrf.mxu0
        %v879 = vadd.f32 %v366, %v878
        %880 = vmatprep.mubr.bf16.mxu0 0
        %881 = vmatmul.mubr.bf16.gmra.mxu0 %v758
        %v882 = vpop.f32.mrf.mxu0
        %v883 = vadd.f32 %v362, %v882
        %v884 = vpop.f32.mrf.mxu0
        %v885 = vadd.f32 %v366, %v884
        %v886 = vpop.f32.mrf.mxu0
        %v887 = vadd.f32 %v362, %v886
        %v888 = vpop.f32.mrf.mxu0
        %v889 = vadd.f32 %v366, %v888
        %890 = vmatprep.mubr.bf16.mxu0 0
        %891 = vmatmul.mubr.bf16.gmra.mxu0 %v759
        %v892 = vpop.f32.mrf.mxu0
        %v893 = vadd.f32 %v362, %v892
        %v894 = vpop.f32.mrf.mxu0
        %v895 = vadd.f32 %v366, %v894
        %v896 = vpop.f32.mrf.mxu0
        %v897 = vadd.f32 %v362, %v896
        %v898 = vpop.f32.mrf.mxu0
        %v899 = vadd.f32 %v366, %v898
        %900 = vmatprep.mubr.bf16.mxu0 0
        %901 = vmatmul.mubr.bf16.gmra.mxu0 %v760
        %v902 = vpop.f32.mrf.mxu0
        %v903 = vadd.f32 %v362, %v902
        %v904 = vpop.f32.mrf.mxu0
        %v905 = vadd.f32 %v366, %v904
        %v906 = vpop.f32.mrf.mxu0
        %v907 = vadd.f32 %v362, %v906
        %v908 = vpop.f32.mrf.mxu0
        %v909 = vadd.f32 %v366, %v908
        %910 = vdwg.mxu0
        %v911 = vmax.f32 %v800, 0.0
        %v912 = vmax.f32 %v802, 0.0
        %v913 = vmax.f32 %v873, 0.0
        %v914 = vmax.f32 %v875, 0.0
        %v915 = vmax.f32 %v804, 0.0
        %v916 = vmax.f32 %v806, 0.0
        %v917 = vmax.f32 %v877, 0.0
        %v918 = vmax.f32 %v879, 0.0
        %v919 = vmax.f32 %v810, 0.0
        %v920 = vmax.f32 %v812, 0.0
        %v921 = vmax.f32 %v883, 0.0
        %v922 = vmax.f32 %v885, 0.0
        %v923 = vmax.f32 %v814, 0.0
        %v924 = vmax.f32 %v816, 0.0
        %v925 = vmax.f32 %v887, 0.0
        %v926 = vmax.f32 %v889, 0.0
        %v927 = vmax.f32 %v820, 0.0
        %v928 = vmax.f32 %v822, 0.0
        %v929 = vmax.f32 %v893, 0.0
        %v930 = vmax.f32 %v895, 0.0
        %v931 = vmax.f32 %v824, 0.0
        %v932 = vmax.f32 %v826, 0.0
        %v933 = vmax.f32 %v897, 0.0
        %v934 = vmax.f32 %v899, 0.0
        %v935 = vmax.f32 %v830, 0.0
        %v936 = vmax.f32 %v832, 0.0
        %v937 = vmax.f32 %v903, 0.0
        %v938 = vmax.f32 %v905, 0.0
        %v939 = vmax.f32 %v834, 0.0
        %v940 = vmax.f32 %v836, 0.0
        %v941 = vmax.f32 %v907, 0.0
        %v942 = vmax.f32 %v909, 0.0
        %vm975 = vcmp.gt.s32.totalorder %v701, 0
        %v976 = vsel %vm975, %v701, 0
        %vm977 = vcmp.gt.s32.totalorder %v702, 0
        %v978 = vsel %vm977, %v702, 0
        %vm979 = vcmp.gt.s32.totalorder %v703, 0
        %v980 = vsel %vm979, %v703, 0
        %vm981 = vcmp.gt.s32.totalorder %v704, 0
        %v982 = vsel %vm981, %v704, 0
        %vm983 = vcmp.gt.s32.totalorder %v705, 0
        %v984 = vsel %vm983, %v705, 0
        %vm985 = vcmp.gt.s32.totalorder %v706, 0
        %v986 = vsel %vm985, %v706, 0
        %vm987 = vcmp.gt.s32.totalorder %v707, 0
        %v988 = vsel %vm987, %v707, 0
        %vm989 = vcmp.gt.s32.totalorder %v708, 0
        %v990 = vsel %vm989, %v708, 0
        %vm991 = vcmp.gt.s32.totalorder %v709, 0
        %v992 = vsel %vm991, %v709, 0
        %vm993 = vcmp.gt.s32.totalorder %v710, 0
        %v994 = vsel %vm993, %v710, 0
        %vm995 = vcmp.gt.s32.totalorder %v711, 0
        %v996 = vsel %vm995, %v711, 0
        %vm997 = vcmp.gt.s32.totalorder %v712, 0
        %v998 = vsel %vm997, %v712, 0
        %vm999 = vcmp.gt.s32.totalorder %v713, 0
        %v1000 = vsel %vm999, %v713, 0
        %vm1001 = vcmp.gt.s32.totalorder %v714, 0
        %v1002 = vsel %vm1001, %v714, 0
        %vm1003 = vcmp.gt.s32.totalorder %v715, 0
        %v1004 = vsel %vm1003, %v715, 0
        %vm1005 = vcmp.gt.s32.totalorder %v716, 0
        %v1006 = vsel %vm1005, %v716, 0
        %vm1007 = vcmp.gt.s32.totalorder %v717, 0
        %v1008 = vsel %vm1007, %v717, 0
        %vm1009 = vcmp.gt.s32.totalorder %v718, 0
        %v1010 = vsel %vm1009, %v718, 0
        %vm1011 = vcmp.gt.s32.totalorder %v719, 0
        %v1012 = vsel %vm1011, %v719, 0
        %vm1013 = vcmp.gt.s32.totalorder %v720, 0
        %v1014 = vsel %vm1013, %v720, 0
        %vm1015 = vcmp.gt.s32.totalorder %v721, 0
        %v1016 = vsel %vm1015, %v721, 0
        %vm1017 = vcmp.gt.s32.totalorder %v722, 0
        %v1018 = vsel %vm1017, %v722, 0
        %vm1019 = vcmp.gt.s32.totalorder %v723, 0
        %v1020 = vsel %vm1019, %v723, 0
        %vm1021 = vcmp.gt.s32.totalorder %v724, 0
        %v1022 = vsel %vm1021, %v724, 0
        %vm1023 = vcmp.gt.s32.totalorder %v725, 0
        %v1024 = vsel %vm1023, %v725, 0
        %vm1025 = vcmp.gt.s32.totalorder %v726, 0
        %v1026 = vsel %vm1025, %v726, 0
        %vm1027 = vcmp.gt.s32.totalorder %v727, 0
        %v1028 = vsel %vm1027, %v727, 0
        %vm1029 = vcmp.gt.s32.totalorder %v728, 0
        %v1030 = vsel %vm1029, %v728, 0
        %vm1031 = vcmp.gt.s32.totalorder %v729, 0
        %v1032 = vsel %vm1031, %v729, 0
        %vm1033 = vcmp.gt.s32.totalorder %v730, 0
        %v1034 = vsel %vm1033, %v730, 0
        %vm1035 = vcmp.gt.s32.totalorder %v731, 0
        %v1036 = vsel %vm1035, %v731, 0
        %vm1037 = vcmp.gt.s32.totalorder %v732, 0
        %v1038 = vsel %vm1037, %v732, 0
        %v1039 = vand.u32 %v976, 4294966784
        %v1040 = vand.u32 %v978, 4294966784
        %v1041 = vand.u32 %v980, 4294966784
        %v1042 = vand.u32 %v982, 4294966784
        %v1043 = vand.u32 %v984, 4294966784
        %v1044 = vand.u32 %v986, 4294966784
        %v1045 = vand.u32 %v988, 4294966784
        %v1046 = vand.u32 %v990, 4294966784
        %v1047 = vand.u32 %v992, 4294966784
        %v1048 = vand.u32 %v994, 4294966784
        %v1049 = vand.u32 %v996, 4294966784
        %v1050 = vand.u32 %v998, 4294966784
        %v1051 = vand.u32 %v1000, 4294966784
        %v1052 = vand.u32 %v1002, 4294966784
        %v1053 = vand.u32 %v1004, 4294966784
        %v1054 = vand.u32 %v1006, 4294966784
        %v1055 = vand.u32 %v1008, 4294966784
        %v1056 = vand.u32 %v1010, 4294966784
        %v1057 = vand.u32 %v1012, 4294966784
        %v1058 = vand.u32 %v1014, 4294966784
        %v1059 = vand.u32 %v1016, 4294966784
        %v1060 = vand.u32 %v1018, 4294966784
        %v1061 = vand.u32 %v1020, 4294966784
        %v1062 = vand.u32 %v1022, 4294966784
        %v1063 = vand.u32 %v1024, 4294966784
        %v1064 = vand.u32 %v1026, 4294966784
        %v1065 = vand.u32 %v1028, 4294966784
        %v1066 = vand.u32 %v1030, 4294966784
        %v1067 = vand.u32 %v1032, 4294966784
        %v1068 = vand.u32 %v1034, 4294966784
        %v1069 = vand.u32 %v1036, 4294966784
        %v1070 = vand.u32 %v1038, 4294966784
        %v1071 = vor.u32 %v1039, %v305
        %v1072 = vor.u32 %v1040, %v306
        %v1073 = vor.u32 %v1041, %v307
        %v1074 = vor.u32 %v1042, %v308
        %v1075 = vor.u32 %v1043, %v305
        %v1076 = vor.u32 %v1044, %v306
        %v1077 = vor.u32 %v1045, %v307
        %v1078 = vor.u32 %v1046, %v308
        %v1079 = vor.u32 %v1047, %v305
        %v1080 = vor.u32 %v1048, %v306
        %v1081 = vor.u32 %v1049, %v307
        %v1082 = vor.u32 %v1050, %v308
        %v1083 = vor.u32 %v1051, %v305
        %v1084 = vor.u32 %v1052, %v306
        %v1085 = vor.u32 %v1053, %v307
        %v1086 = vor.u32 %v1054, %v308
        %v1087 = vor.u32 %v1055, %v305
        %v1088 = vor.u32 %v1056, %v306
        %v1089 = vor.u32 %v1057, %v307
        %v1090 = vor.u32 %v1058, %v308
        %v1091 = vor.u32 %v1059, %v305
        %v1092 = vor.u32 %v1060, %v306
        %v1093 = vor.u32 %v1061, %v307
        %v1094 = vor.u32 %v1062, %v308
        %v1095 = vor.u32 %v1063, %v305
        %v1096 = vor.u32 %v1064, %v306
        %v1097 = vor.u32 %v1065, %v307
        %v1098 = vor.u32 %v1066, %v308
        %v1099 = vor.u32 %v1067, %v305
        %v1100 = vor.u32 %v1068, %v306
        %v1101 = vor.u32 %v1069, %v307
        %v1102 = vor.u32 %v1070, %v308
        %vm1103 = vcmp.gt.s32.totalorder %v1071, %v1072
        %v1104 = vsel %vm1103, %v1071, %v1072
        %vm1105 = vcmp.gt.s32.totalorder %v1104, %v1073
        %v1106 = vsel %vm1105, %v1104, %v1073
        %vm1107 = vcmp.gt.s32.totalorder %v1106, %v1074
        %v1108 = vsel %vm1107, %v1106, %v1074
        %v1109 = vand.u32 %v1108, 65535
        %v1110 = vshra.s32 %v1108, 16
        %v1111 = vcvt.s32.f32 %v1109
        %v1112 = vcvt.s32.f32 %v1110
        %1113 = vmax.xlane.f32.xlu0 %v1112
        %v1114 = vpop.xlane.xlu0 %1113
        %vm1115 = vcmp.eq.f32.partialorder %v1112, %v1114
        %v1116 = vsel %vm1115, %v1111, -inf
        %1117 = vmax.xlane.f32.xlu0 %v1116
        %v1118 = vpop.xlane.xlu0 %1117
        %v1119 = vcvt.f32.s32 %v1118
        %v1120 = vcvt.f32.s32 %v1114
        %v1121 = vshll.u32 %v1120, 16
        %v1122 = vadd.s32 %v1121, %v1119
        %vm1123 = vcmp.gt.s32.totalorder %v1075, %v1076
        %v1124 = vsel %vm1123, %v1075, %v1076
        %vm1125 = vcmp.gt.s32.totalorder %v1124, %v1077
        %v1126 = vsel %vm1125, %v1124, %v1077
        %vm1127 = vcmp.gt.s32.totalorder %v1126, %v1078
        %v1128 = vsel %vm1127, %v1126, %v1078
        %v1129 = vand.u32 %v1128, 65535
        %v1130 = vshra.s32 %v1128, 16
        %v1131 = vcvt.s32.f32 %v1129
        %v1132 = vcvt.s32.f32 %v1130
        %1133 = vmax.xlane.f32.xlu0 %v1132
        %v1134 = vpop.xlane.xlu0 %1133
        %vm1135 = vcmp.eq.f32.partialorder %v1132, %v1134
        %v1136 = vsel %vm1135, %v1131, -inf
        %1137 = vmax.xlane.f32.xlu0 %v1136
        %v1138 = vpop.xlane.xlu0 %1137
        %v1139 = vcvt.f32.s32 %v1138
        %v1140 = vcvt.f32.s32 %v1134
        %v1141 = vshll.u32 %v1140, 16
        %v1142 = vadd.s32 %v1141, %v1139
        %vm1143 = vcmp.gt.s32.totalorder %v1079, %v1080
        %v1144 = vsel %vm1143, %v1079, %v1080
        %vm1145 = vcmp.gt.s32.totalorder %v1144, %v1081
        %v1146 = vsel %vm1145, %v1144, %v1081
        %vm1147 = vcmp.gt.s32.totalorder %v1146, %v1082
        %v1148 = vsel %vm1147, %v1146, %v1082
        %v1149 = vand.u32 %v1148, 65535
        %v1150 = vshra.s32 %v1148, 16
        %v1151 = vcvt.s32.f32 %v1149
        %v1152 = vcvt.s32.f32 %v1150
        %1153 = vmax.xlane.f32.xlu0 %v1152
        %v1154 = vpop.xlane.xlu0 %1153
        %vm1155 = vcmp.eq.f32.partialorder %v1152, %v1154
        %v1156 = vsel %vm1155, %v1151, -inf
        %1157 = vmax.xlane.f32.xlu0 %v1156
        %v1158 = vpop.xlane.xlu0 %1157
        %v1159 = vcvt.f32.s32 %v1158
        %v1160 = vcvt.f32.s32 %v1154
        %v1161 = vshll.u32 %v1160, 16
        %v1162 = vadd.s32 %v1161, %v1159
        %vm1163 = vcmp.gt.s32.totalorder %v1083, %v1084
        %v1164 = vsel %vm1163, %v1083, %v1084
        %vm1165 = vcmp.gt.s32.totalorder %v1164, %v1085
        %v1166 = vsel %vm1165, %v1164, %v1085
        %vm1167 = vcmp.gt.s32.totalorder %v1166, %v1086
        %v1168 = vsel %vm1167, %v1166, %v1086
        %v1169 = vand.u32 %v1168, 65535
        %v1170 = vshra.s32 %v1168, 16
        %v1171 = vcvt.s32.f32 %v1169
        %v1172 = vcvt.s32.f32 %v1170
        %1173 = vmax.xlane.f32.xlu0 %v1172
        %v1174 = vpop.xlane.xlu0 %1173
        %vm1175 = vcmp.eq.f32.partialorder %v1172, %v1174
        %v1176 = vsel %vm1175, %v1171, -inf
        %1177 = vmax.xlane.f32.xlu0 %v1176
        %v1178 = vpop.xlane.xlu0 %1177
        %v1179 = vcvt.f32.s32 %v1178
        %v1180 = vcvt.f32.s32 %v1174
        %v1181 = vshll.u32 %v1180, 16
        %v1182 = vadd.s32 %v1181, %v1179
        %vm1183 = vcmp.gt.s32.totalorder %v1087, %v1088
        %v1184 = vsel %vm1183, %v1087, %v1088
        %vm1185 = vcmp.gt.s32.totalorder %v1184, %v1089
        %v1186 = vsel %vm1185, %v1184, %v1089
        %vm1187 = vcmp.gt.s32.totalorder %v1186, %v1090
        %v1188 = vsel %vm1187, %v1186, %v1090
        %v1189 = vand.u32 %v1188, 65535
        %v1190 = vshra.s32 %v1188, 16
        %v1191 = vcvt.s32.f32 %v1189
        %v1192 = vcvt.s32.f32 %v1190
        %1193 = vmax.xlane.f32.xlu0 %v1192
        %v1194 = vpop.xlane.xlu0 %1193
        %vm1195 = vcmp.eq.f32.partialorder %v1192, %v1194
        %v1196 = vsel %vm1195, %v1191, -inf
        %1197 = vmax.xlane.f32.xlu0 %v1196
        %v1198 = vpop.xlane.xlu0 %1197
        %v1199 = vcvt.f32.s32 %v1198
        %v1200 = vcvt.f32.s32 %v1194
        %v1201 = vshll.u32 %v1200, 16
        %v1202 = vadd.s32 %v1201, %v1199
        %vm1203 = vcmp.gt.s32.totalorder %v1091, %v1092
        %v1204 = vsel %vm1203, %v1091, %v1092
        %vm1205 = vcmp.gt.s32.totalorder %v1204, %v1093
        %v1206 = vsel %vm1205, %v1204, %v1093
        %vm1207 = vcmp.gt.s32.totalorder %v1206, %v1094
        %v1208 = vsel %vm1207, %v1206, %v1094
        %v1209 = vand.u32 %v1208, 65535
        %v1210 = vshra.s32 %v1208, 16
        %v1211 = vcvt.s32.f32 %v1209
        %v1212 = vcvt.s32.f32 %v1210
        %1213 = vmax.xlane.f32.xlu0 %v1212
        %v1214 = vpop.xlane.xlu0 %1213
        %vm1215 = vcmp.eq.f32.partialorder %v1212, %v1214
        %v1216 = vsel %vm1215, %v1211, -inf
        %1217 = vmax.xlane.f32.xlu0 %v1216
        %v1218 = vpop.xlane.xlu0 %1217
        %v1219 = vcvt.f32.s32 %v1218
        %v1220 = vcvt.f32.s32 %v1214
        %v1221 = vshll.u32 %v1220, 16
        %v1222 = vadd.s32 %v1221, %v1219
        %vm1223 = vcmp.gt.s32.totalorder %v1095, %v1096
        %v1224 = vsel %vm1223, %v1095, %v1096
        %vm1225 = vcmp.gt.s32.totalorder %v1224, %v1097
        %v1226 = vsel %vm1225, %v1224, %v1097
        %vm1227 = vcmp.gt.s32.totalorder %v1226, %v1098
        %v1228 = vsel %vm1227, %v1226, %v1098
        %v1229 = vand.u32 %v1228, 65535
        %v1230 = vshra.s32 %v1228, 16
        %v1231 = vcvt.s32.f32 %v1229
        %v1232 = vcvt.s32.f32 %v1230
        %1233 = vmax.xlane.f32.xlu0 %v1232
        %v1234 = vpop.xlane.xlu0 %1233
        %vm1235 = vcmp.eq.f32.partialorder %v1232, %v1234
        %v1236 = vsel %vm1235, %v1231, -inf
        %1237 = vmax.xlane.f32.xlu0 %v1236
        %v1238 = vpop.xlane.xlu0 %1237
        %v1239 = vcvt.f32.s32 %v1238
        %v1240 = vcvt.f32.s32 %v1234
        %v1241 = vshll.u32 %v1240, 16
        %v1242 = vadd.s32 %v1241, %v1239
        %vm1243 = vcmp.gt.s32.totalorder %v1099, %v1100
        %v1244 = vsel %vm1243, %v1099, %v1100
        %vm1245 = vcmp.gt.s32.totalorder %v1244, %v1101
        %v1246 = vsel %vm1245, %v1244, %v1101
        %vm1247 = vcmp.gt.s32.totalorder %v1246, %v1102
        %v1248 = vsel %vm1247, %v1246, %v1102
        %v1249 = vand.u32 %v1248, 65535
        %v1250 = vshra.s32 %v1248, 16
        %v1251 = vcvt.s32.f32 %v1249
        %v1252 = vcvt.s32.f32 %v1250
        %1253 = vmax.xlane.f32.xlu0 %v1252
        %v1254 = vpop.xlane.xlu0 %1253
        %vm1255 = vcmp.eq.f32.partialorder %v1252, %v1254
        %v1256 = vsel %vm1255, %v1251, -inf
        %1257 = vmax.xlane.f32.xlu0 %v1256
        %v1258 = vpop.xlane.xlu0 %1257
        %v1259 = vcvt.f32.s32 %v1258
        %v1260 = vcvt.f32.s32 %v1254
        %v1261 = vshll.u32 %v1260, 16
        %v1262 = vadd.s32 %v1261, %v1259
        %vm1263 = vcmp.eq.s32.totalorder %v1071, %v1122
        %vm1264 = vcmp.eq.s32.totalorder %v1072, %v1122
        %vm1265 = vcmp.eq.s32.totalorder %v1073, %v1122
        %vm1266 = vcmp.eq.s32.totalorder %v1074, %v1122
        %vm1267 = vcmp.eq.s32.totalorder %v1075, %v1142
        %vm1268 = vcmp.eq.s32.totalorder %v1076, %v1142
        %vm1269 = vcmp.eq.s32.totalorder %v1077, %v1142
        %vm1270 = vcmp.eq.s32.totalorder %v1078, %v1142
        %vm1271 = vcmp.eq.s32.totalorder %v1079, %v1162
        %vm1272 = vcmp.eq.s32.totalorder %v1080, %v1162
        %vm1273 = vcmp.eq.s32.totalorder %v1081, %v1162
        %vm1274 = vcmp.eq.s32.totalorder %v1082, %v1162
        %vm1275 = vcmp.eq.s32.totalorder %v1083, %v1182
        %vm1276 = vcmp.eq.s32.totalorder %v1084, %v1182
        %vm1277 = vcmp.eq.s32.totalorder %v1085, %v1182
        %vm1278 = vcmp.eq.s32.totalorder %v1086, %v1182
        %vm1279 = vcmp.eq.s32.totalorder %v1087, %v1202
        %vm1280 = vcmp.eq.s32.totalorder %v1088, %v1202
        %vm1281 = vcmp.eq.s32.totalorder %v1089, %v1202
        %vm1282 = vcmp.eq.s32.totalorder %v1090, %v1202
        %vm1283 = vcmp.eq.s32.totalorder %v1091, %v1222
        %vm1284 = vcmp.eq.s32.totalorder %v1092, %v1222
        %vm1285 = vcmp.eq.s32.totalorder %v1093, %v1222
        %vm1286 = vcmp.eq.s32.totalorder %v1094, %v1222
        %vm1287 = vcmp.eq.s32.totalorder %v1095, %v1242
        %vm1288 = vcmp.eq.s32.totalorder %v1096, %v1242
        %vm1289 = vcmp.eq.s32.totalorder %v1097, %v1242
        %vm1290 = vcmp.eq.s32.totalorder %v1098, %v1242
        %vm1291 = vcmp.eq.s32.totalorder %v1099, %v1262
        %vm1292 = vcmp.eq.s32.totalorder %v1100, %v1262
        %vm1293 = vcmp.eq.s32.totalorder %v1101, %v1262
        %vm1294 = vcmp.eq.s32.totalorder %v1102, %v1262
        %v1295 = vsel %vm1263, 4294967295, %v1071
        %v1296 = vsel %vm1264, 4294967295, %v1072
        %v1297 = vsel %vm1265, 4294967295, %v1073
        %v1298 = vsel %vm1266, 4294967295, %v1074
        %v1299 = vsel %vm1267, 4294967295, %v1075
        %v1300 = vsel %vm1268, 4294967295, %v1076
        %v1301 = vsel %vm1269, 4294967295, %v1077
        %v1302 = vsel %vm1270, 4294967295, %v1078
        %v1303 = vsel %vm1271, 4294967295, %v1079
        %v1304 = vsel %vm1272, 4294967295, %v1080
        %v1305 = vsel %vm1273, 4294967295, %v1081
        %v1306 = vsel %vm1274, 4294967295, %v1082
        %v1307 = vsel %vm1275, 4294967295, %v1083
        %v1308 = vsel %vm1276, 4294967295, %v1084
        %v1309 = vsel %vm1277, 4294967295, %v1085
        %v1310 = vsel %vm1278, 4294967295, %v1086
        %v1311 = vsel %vm1279, 4294967295, %v1087
        %v1312 = vsel %vm1280, 4294967295, %v1088
        %v1313 = vsel %vm1281, 4294967295, %v1089
        %v1314 = vsel %vm1282, 4294967295, %v1090
        %v1315 = vsel %vm1283, 4294967295, %v1091
        %v1316 = vsel %vm1284, 4294967295, %v1092
        %v1317 = vsel %vm1285, 4294967295, %v1093
        %v1318 = vsel %vm1286, 4294967295, %v1094
        %v1319 = vsel %vm1287, 4294967295, %v1095
        %v1320 = vsel %vm1288, 4294967295, %v1096
        %v1321 = vsel %vm1289, 4294967295, %v1097
        %v1322 = vsel %vm1290, 4294967295, %v1098
        %v1323 = vsel %vm1291, 4294967295, %v1099
        %v1324 = vsel %vm1292, 4294967295, %v1100
        %v1325 = vsel %vm1293, 4294967295, %v1101
        %v1326 = vsel %vm1294, 4294967295, %v1102
        %vm1327 = vcmp.gt.s32.totalorder %v1295, %v1296
        %v1328 = vsel %vm1327, %v1295, %v1296
        %vm1329 = vcmp.gt.s32.totalorder %v1328, %v1297
        %v1330 = vsel %vm1329, %v1328, %v1297
        %vm1331 = vcmp.gt.s32.totalorder %v1330, %v1298
        %v1332 = vsel %vm1331, %v1330, %v1298
        %v1333 = vand.u32 %v1332, 65535
        %v1334 = vshra.s32 %v1332, 16
        %v1335 = vcvt.s32.f32 %v1333
        %v1336 = vcvt.s32.f32 %v1334
        %1337 = vmax.xlane.f32.xlu0 %v1336
        %v1338 = vpop.xlane.xlu0 %1337
        %vm1339 = vcmp.eq.f32.partialorder %v1336, %v1338
        %v1340 = vsel %vm1339, %v1335, -inf
        %1341 = vmax.xlane.f32.xlu0 %v1340
        %v1342 = vpop.xlane.xlu0 %1341
        %v1343 = vcvt.f32.s32 %v1342
        %v1344 = vcvt.f32.s32 %v1338
        %v1345 = vshll.u32 %v1344, 16
        %v1346 = vadd.s32 %v1345, %v1343
        %vm1347 = vcmp.gt.s32.totalorder %v1299, %v1300
        %v1348 = vsel %vm1347, %v1299, %v1300
        %vm1349 = vcmp.gt.s32.totalorder %v1348, %v1301
        %v1350 = vsel %vm1349, %v1348, %v1301
        %vm1351 = vcmp.gt.s32.totalorder %v1350, %v1302
        %v1352 = vsel %vm1351, %v1350, %v1302
        %v1353 = vand.u32 %v1352, 65535
        %v1354 = vshra.s32 %v1352, 16
        %v1355 = vcvt.s32.f32 %v1353
        %v1356 = vcvt.s32.f32 %v1354
        %1357 = vmax.xlane.f32.xlu0 %v1356
        %v1358 = vpop.xlane.xlu0 %1357
        %vm1359 = vcmp.eq.f32.partialorder %v1356, %v1358
        %v1360 = vsel %vm1359, %v1355, -inf
        %1361 = vmax.xlane.f32.xlu0 %v1360
        %v1362 = vpop.xlane.xlu0 %1361
        %v1363 = vcvt.f32.s32 %v1362
        %v1364 = vcvt.f32.s32 %v1358
        %v1365 = vshll.u32 %v1364, 16
        %v1366 = vadd.s32 %v1365, %v1363
        %vm1367 = vcmp.gt.s32.totalorder %v1303, %v1304
        %v1368 = vsel %vm1367, %v1303, %v1304
        %vm1369 = vcmp.gt.s32.totalorder %v1368, %v1305
        %v1370 = vsel %vm1369, %v1368, %v1305
        %vm1371 = vcmp.gt.s32.totalorder %v1370, %v1306
        %v1372 = vsel %vm1371, %v1370, %v1306
        %v1373 = vand.u32 %v1372, 65535
        %v1374 = vshra.s32 %v1372, 16
        %v1375 = vcvt.s32.f32 %v1373
        %v1376 = vcvt.s32.f32 %v1374
        %1377 = vmax.xlane.f32.xlu0 %v1376
        %v1378 = vpop.xlane.xlu0 %1377
        %vm1379 = vcmp.eq.f32.partialorder %v1376, %v1378
        %v1380 = vsel %vm1379, %v1375, -inf
        %1381 = vmax.xlane.f32.xlu0 %v1380
        %v1382 = vpop.xlane.xlu0 %1381
        %v1383 = vcvt.f32.s32 %v1382
        %v1384 = vcvt.f32.s32 %v1378
        %v1385 = vshll.u32 %v1384, 16
        %v1386 = vadd.s32 %v1385, %v1383
        %vm1387 = vcmp.gt.s32.totalorder %v1307, %v1308
        %v1388 = vsel %vm1387, %v1307, %v1308
        %vm1389 = vcmp.gt.s32.totalorder %v1388, %v1309
        %v1390 = vsel %vm1389, %v1388, %v1309
        %vm1391 = vcmp.gt.s32.totalorder %v1390, %v1310
        %v1392 = vsel %vm1391, %v1390, %v1310
        %v1393 = vand.u32 %v1392, 65535
        %v1394 = vshra.s32 %v1392, 16
        %v1395 = vcvt.s32.f32 %v1393
        %v1396 = vcvt.s32.f32 %v1394
        %1397 = vmax.xlane.f32.xlu0 %v1396
        %v1398 = vpop.xlane.xlu0 %1397
        %vm1399 = vcmp.eq.f32.partialorder %v1396, %v1398
        %v1400 = vsel %vm1399, %v1395, -inf
        %1401 = vmax.xlane.f32.xlu0 %v1400
        %v1402 = vpop.xlane.xlu0 %1401
        %v1403 = vcvt.f32.s32 %v1402
        %v1404 = vcvt.f32.s32 %v1398
        %v1405 = vshll.u32 %v1404, 16
        %v1406 = vadd.s32 %v1405, %v1403
        %vm1407 = vcmp.gt.s32.totalorder %v1311, %v1312
        %v1408 = vsel %vm1407, %v1311, %v1312
        %vm1409 = vcmp.gt.s32.totalorder %v1408, %v1313
        %v1410 = vsel %vm1409, %v1408, %v1313
        %vm1411 = vcmp.gt.s32.totalorder %v1410, %v1314
        %v1412 = vsel %vm1411, %v1410, %v1314
        %v1413 = vand.u32 %v1412, 65535
        %v1414 = vshra.s32 %v1412, 16
        %v1415 = vcvt.s32.f32 %v1413
        %v1416 = vcvt.s32.f32 %v1414
        %1417 = vmax.xlane.f32.xlu0 %v1416
        %v1418 = vpop.xlane.xlu0 %1417
        %vm1419 = vcmp.eq.f32.partialorder %v1416, %v1418
        %v1420 = vsel %vm1419, %v1415, -inf
        %1421 = vmax.xlane.f32.xlu0 %v1420
        %v1422 = vpop.xlane.xlu0 %1421
        %v1423 = vcvt.f32.s32 %v1422
        %v1424 = vcvt.f32.s32 %v1418
        %v1425 = vshll.u32 %v1424, 16
        %v1426 = vadd.s32 %v1425, %v1423
        %vm1427 = vcmp.gt.s32.totalorder %v1315, %v1316
        %v1428 = vsel %vm1427, %v1315, %v1316
        %vm1429 = vcmp.gt.s32.totalorder %v1428, %v1317
        %v1430 = vsel %vm1429, %v1428, %v1317
        %vm1431 = vcmp.gt.s32.totalorder %v1430, %v1318
        %v1432 = vsel %vm1431, %v1430, %v1318
        %v1433 = vand.u32 %v1432, 65535
        %v1434 = vshra.s32 %v1432, 16
        %v1435 = vcvt.s32.f32 %v1433
        %v1436 = vcvt.s32.f32 %v1434
        %1437 = vmax.xlane.f32.xlu0 %v1436
        %v1438 = vpop.xlane.xlu0 %1437
        %vm1439 = vcmp.eq.f32.partialorder %v1436, %v1438
        %v1440 = vsel %vm1439, %v1435, -inf
        %1441 = vmax.xlane.f32.xlu0 %v1440
        %v1442 = vpop.xlane.xlu0 %1441
        %v1443 = vcvt.f32.s32 %v1442
        %v1444 = vcvt.f32.s32 %v1438
        %v1445 = vshll.u32 %v1444, 16
        %v1446 = vadd.s32 %v1445, %v1443
        %vm1447 = vcmp.gt.s32.totalorder %v1319, %v1320
        %v1448 = vsel %vm1447, %v1319, %v1320
        %vm1449 = vcmp.gt.s32.totalorder %v1448, %v1321
        %v1450 = vsel %vm1449, %v1448, %v1321
        %vm1451 = vcmp.gt.s32.totalorder %v1450, %v1322
        %v1452 = vsel %vm1451, %v1450, %v1322
        %v1453 = vand.u32 %v1452, 65535
        %v1454 = vshra.s32 %v1452, 16
        %v1455 = vcvt.s32.f32 %v1453
        %v1456 = vcvt.s32.f32 %v1454
        %1457 = vmax.xlane.f32.xlu0 %v1456
        %v1458 = vpop.xlane.xlu0 %1457
        %vm1459 = vcmp.eq.f32.partialorder %v1456, %v1458
        %v1460 = vsel %vm1459, %v1455, -inf
        %1461 = vmax.xlane.f32.xlu0 %v1460
        %v1462 = vpop.xlane.xlu0 %1461
        %v1463 = vcvt.f32.s32 %v1462
        %v1464 = vcvt.f32.s32 %v1458
        %v1465 = vshll.u32 %v1464, 16
        %v1466 = vadd.s32 %v1465, %v1463
        %vm1467 = vcmp.gt.s32.totalorder %v1323, %v1324
        %v1468 = vsel %vm1467, %v1323, %v1324
        %vm1469 = vcmp.gt.s32.totalorder %v1468, %v1325
        %v1470 = vsel %vm1469, %v1468, %v1325
        %vm1471 = vcmp.gt.s32.totalorder %v1470, %v1326
        %v1472 = vsel %vm1471, %v1470, %v1326
        %v1473 = vand.u32 %v1472, 65535
        %v1474 = vshra.s32 %v1472, 16
        %v1475 = vcvt.s32.f32 %v1473
        %v1476 = vcvt.s32.f32 %v1474
        %1477 = vmax.xlane.f32.xlu0 %v1476
        %v1478 = vpop.xlane.xlu0 %1477
        %vm1479 = vcmp.eq.f32.partialorder %v1476, %v1478
        %v1480 = vsel %vm1479, %v1475, -inf
        %1481 = vmax.xlane.f32.xlu0 %v1480
        %v1482 = vpop.xlane.xlu0 %1481
        %v1483 = vcvt.f32.s32 %v1482
        %v1484 = vcvt.f32.s32 %v1478
        %v1485 = vshll.u32 %v1484, 16
        %v1486 = vadd.s32 %v1485, %v1483
        %vm1487 = vcmp.eq.s32.totalorder %v1295, %v1346
        %vm1488 = vcmp.eq.s32.totalorder %v1296, %v1346
        %vm1489 = vcmp.eq.s32.totalorder %v1297, %v1346
        %vm1490 = vcmp.eq.s32.totalorder %v1298, %v1346
        %vm1491 = vcmp.eq.s32.totalorder %v1299, %v1366
        %vm1492 = vcmp.eq.s32.totalorder %v1300, %v1366
        %vm1493 = vcmp.eq.s32.totalorder %v1301, %v1366
        %vm1494 = vcmp.eq.s32.totalorder %v1302, %v1366
        %vm1495 = vcmp.eq.s32.totalorder %v1303, %v1386
        %vm1496 = vcmp.eq.s32.totalorder %v1304, %v1386
        %vm1497 = vcmp.eq.s32.totalorder %v1305, %v1386
        %vm1498 = vcmp.eq.s32.totalorder %v1306, %v1386
        %vm1499 = vcmp.eq.s32.totalorder %v1307, %v1406
        %vm1500 = vcmp.eq.s32.totalorder %v1308, %v1406
        %vm1501 = vcmp.eq.s32.totalorder %v1309, %v1406
        %vm1502 = vcmp.eq.s32.totalorder %v1310, %v1406
        %vm1503 = vcmp.eq.s32.totalorder %v1311, %v1426
        %vm1504 = vcmp.eq.s32.totalorder %v1312, %v1426
        %vm1505 = vcmp.eq.s32.totalorder %v1313, %v1426
        %vm1506 = vcmp.eq.s32.totalorder %v1314, %v1426
        %vm1507 = vcmp.eq.s32.totalorder %v1315, %v1446
        %vm1508 = vcmp.eq.s32.totalorder %v1316, %v1446
        %vm1509 = vcmp.eq.s32.totalorder %v1317, %v1446
        %vm1510 = vcmp.eq.s32.totalorder %v1318, %v1446
        %vm1511 = vcmp.eq.s32.totalorder %v1319, %v1466
        %vm1512 = vcmp.eq.s32.totalorder %v1320, %v1466
        %vm1513 = vcmp.eq.s32.totalorder %v1321, %v1466
        %vm1514 = vcmp.eq.s32.totalorder %v1322, %v1466
        %vm1515 = vcmp.eq.s32.totalorder %v1323, %v1486
        %vm1516 = vcmp.eq.s32.totalorder %v1324, %v1486
        %vm1517 = vcmp.eq.s32.totalorder %v1325, %v1486
        %vm1518 = vcmp.eq.s32.totalorder %v1326, %v1486
        %v1519 = vsel %vm1487, 4294967295, %v1295
        %v1520 = vsel %vm1488, 4294967295, %v1296
        %v1521 = vsel %vm1489, 4294967295, %v1297
        %v1522 = vsel %vm1490, 4294967295, %v1298
        %v1523 = vsel %vm1491, 4294967295, %v1299
        %v1524 = vsel %vm1492, 4294967295, %v1300
        %v1525 = vsel %vm1493, 4294967295, %v1301
        %v1526 = vsel %vm1494, 4294967295, %v1302
        %v1527 = vsel %vm1495, 4294967295, %v1303
        %v1528 = vsel %vm1496, 4294967295, %v1304
        %v1529 = vsel %vm1497, 4294967295, %v1305
        %v1530 = vsel %vm1498, 4294967295, %v1306
        %v1531 = vsel %vm1499, 4294967295, %v1307
        %v1532 = vsel %vm1500, 4294967295, %v1308
        %v1533 = vsel %vm1501, 4294967295, %v1309
        %v1534 = vsel %vm1502, 4294967295, %v1310
        %v1535 = vsel %vm1503, 4294967295, %v1311
        %v1536 = vsel %vm1504, 4294967295, %v1312
        %v1537 = vsel %vm1505, 4294967295, %v1313
        %v1538 = vsel %vm1506, 4294967295, %v1314
        %v1539 = vsel %vm1507, 4294967295, %v1315
        %v1540 = vsel %vm1508, 4294967295, %v1316
        %v1541 = vsel %vm1509, 4294967295, %v1317
        %v1542 = vsel %vm1510, 4294967295, %v1318
        %v1543 = vsel %vm1511, 4294967295, %v1319
        %v1544 = vsel %vm1512, 4294967295, %v1320
        %v1545 = vsel %vm1513, 4294967295, %v1321
        %v1546 = vsel %vm1514, 4294967295, %v1322
        %v1547 = vsel %vm1515, 4294967295, %v1323
        %v1548 = vsel %vm1516, 4294967295, %v1324
        %v1549 = vsel %vm1517, 4294967295, %v1325
        %v1550 = vsel %vm1518, 4294967295, %v1326
        %vm1551 = vcmp.gt.s32.totalorder %v1519, %v1520
        %v1552 = vsel %vm1551, %v1519, %v1520
        %vm1553 = vcmp.gt.s32.totalorder %v1552, %v1521
        %v1554 = vsel %vm1553, %v1552, %v1521
        %vm1555 = vcmp.gt.s32.totalorder %v1554, %v1522
        %v1556 = vsel %vm1555, %v1554, %v1522
        %v1557 = vand.u32 %v1556, 65535
        %v1558 = vshra.s32 %v1556, 16
        %v1559 = vcvt.s32.f32 %v1557
        %v1560 = vcvt.s32.f32 %v1558
        %1561 = vmax.xlane.f32.xlu0 %v1560
        %v1562 = vpop.xlane.xlu0 %1561
        %vm1563 = vcmp.eq.f32.partialorder %v1560, %v1562
        %v1564 = vsel %vm1563, %v1559, -inf
        %1565 = vmax.xlane.f32.xlu0 %v1564
        %v1566 = vpop.xlane.xlu0 %1565
        %v1567 = vcvt.f32.s32 %v1566
        %v1568 = vcvt.f32.s32 %v1562
        %v1569 = vshll.u32 %v1568, 16
        %v1570 = vadd.s32 %v1569, %v1567
        %vm1571 = vcmp.gt.s32.totalorder %v1523, %v1524
        %v1572 = vsel %vm1571, %v1523, %v1524
        %vm1573 = vcmp.gt.s32.totalorder %v1572, %v1525
        %v1574 = vsel %vm1573, %v1572, %v1525
        %vm1575 = vcmp.gt.s32.totalorder %v1574, %v1526
        %v1576 = vsel %vm1575, %v1574, %v1526
        %v1577 = vand.u32 %v1576, 65535
        %v1578 = vshra.s32 %v1576, 16
        %v1579 = vcvt.s32.f32 %v1577
        %v1580 = vcvt.s32.f32 %v1578
        %1581 = vmax.xlane.f32.xlu0 %v1580
        %v1582 = vpop.xlane.xlu0 %1581
        %vm1583 = vcmp.eq.f32.partialorder %v1580, %v1582
        %v1584 = vsel %vm1583, %v1579, -inf
        %1585 = vmax.xlane.f32.xlu0 %v1584
        %v1586 = vpop.xlane.xlu0 %1585
        %v1587 = vcvt.f32.s32 %v1586
        %v1588 = vcvt.f32.s32 %v1582
        %v1589 = vshll.u32 %v1588, 16
        %v1590 = vadd.s32 %v1589, %v1587
        %vm1591 = vcmp.gt.s32.totalorder %v1527, %v1528
        %v1592 = vsel %vm1591, %v1527, %v1528
        %vm1593 = vcmp.gt.s32.totalorder %v1592, %v1529
        %v1594 = vsel %vm1593, %v1592, %v1529
        %vm1595 = vcmp.gt.s32.totalorder %v1594, %v1530
        %v1596 = vsel %vm1595, %v1594, %v1530
        %v1597 = vand.u32 %v1596, 65535
        %v1598 = vshra.s32 %v1596, 16
        %v1599 = vcvt.s32.f32 %v1597
        %v1600 = vcvt.s32.f32 %v1598
        %1601 = vmax.xlane.f32.xlu0 %v1600
        %v1602 = vpop.xlane.xlu0 %1601
        %vm1603 = vcmp.eq.f32.partialorder %v1600, %v1602
        %v1604 = vsel %vm1603, %v1599, -inf
        %1605 = vmax.xlane.f32.xlu0 %v1604
        %v1606 = vpop.xlane.xlu0 %1605
        %v1607 = vcvt.f32.s32 %v1606
        %v1608 = vcvt.f32.s32 %v1602
        %v1609 = vshll.u32 %v1608, 16
        %v1610 = vadd.s32 %v1609, %v1607
        %vm1611 = vcmp.gt.s32.totalorder %v1531, %v1532
        %v1612 = vsel %vm1611, %v1531, %v1532
        %vm1613 = vcmp.gt.s32.totalorder %v1612, %v1533
        %v1614 = vsel %vm1613, %v1612, %v1533
        %vm1615 = vcmp.gt.s32.totalorder %v1614, %v1534
        %v1616 = vsel %vm1615, %v1614, %v1534
        %v1617 = vand.u32 %v1616, 65535
        %v1618 = vshra.s32 %v1616, 16
        %v1619 = vcvt.s32.f32 %v1617
        %v1620 = vcvt.s32.f32 %v1618
        %1621 = vmax.xlane.f32.xlu0 %v1620
        %v1622 = vpop.xlane.xlu0 %1621
        %vm1623 = vcmp.eq.f32.partialorder %v1620, %v1622
        %v1624 = vsel %vm1623, %v1619, -inf
        %1625 = vmax.xlane.f32.xlu0 %v1624
        %v1626 = vpop.xlane.xlu0 %1625
        %v1627 = vcvt.f32.s32 %v1626
        %v1628 = vcvt.f32.s32 %v1622
        %v1629 = vshll.u32 %v1628, 16
        %v1630 = vadd.s32 %v1629, %v1627
        %vm1631 = vcmp.gt.s32.totalorder %v1535, %v1536
        %v1632 = vsel %vm1631, %v1535, %v1536
        %vm1633 = vcmp.gt.s32.totalorder %v1632, %v1537
        %v1634 = vsel %vm1633, %v1632, %v1537
        %vm1635 = vcmp.gt.s32.totalorder %v1634, %v1538
        %v1636 = vsel %vm1635, %v1634, %v1538
        %v1637 = vand.u32 %v1636, 65535
        %v1638 = vshra.s32 %v1636, 16
        %v1639 = vcvt.s32.f32 %v1637
        %v1640 = vcvt.s32.f32 %v1638
        %1641 = vmax.xlane.f32.xlu0 %v1640
        %v1642 = vpop.xlane.xlu0 %1641
        %vm1643 = vcmp.eq.f32.partialorder %v1640, %v1642
        %v1644 = vsel %vm1643, %v1639, -inf
        %1645 = vmax.xlane.f32.xlu0 %v1644
        %v1646 = vpop.xlane.xlu0 %1645
        %v1647 = vcvt.f32.s32 %v1646
        %v1648 = vcvt.f32.s32 %v1642
        %v1649 = vshll.u32 %v1648, 16
        %v1650 = vadd.s32 %v1649, %v1647
        %vm1651 = vcmp.gt.s32.totalorder %v1539, %v1540
        %v1652 = vsel %vm1651, %v1539, %v1540
        %vm1653 = vcmp.gt.s32.totalorder %v1652, %v1541
        %v1654 = vsel %vm1653, %v1652, %v1541
        %vm1655 = vcmp.gt.s32.totalorder %v1654, %v1542
        %v1656 = vsel %vm1655, %v1654, %v1542
        %v1657 = vand.u32 %v1656, 65535
        %v1658 = vshra.s32 %v1656, 16
        %v1659 = vcvt.s32.f32 %v1657
        %v1660 = vcvt.s32.f32 %v1658
        %1661 = vmax.xlane.f32.xlu0 %v1660
        %v1662 = vpop.xlane.xlu0 %1661
        %vm1663 = vcmp.eq.f32.partialorder %v1660, %v1662
        %v1664 = vsel %vm1663, %v1659, -inf
        %1665 = vmax.xlane.f32.xlu0 %v1664
        %v1666 = vpop.xlane.xlu0 %1665
        %v1667 = vcvt.f32.s32 %v1666
        %v1668 = vcvt.f32.s32 %v1662
        %v1669 = vshll.u32 %v1668, 16
        %v1670 = vadd.s32 %v1669, %v1667
        %vm1671 = vcmp.gt.s32.totalorder %v1543, %v1544
        %v1672 = vsel %vm1671, %v1543, %v1544
        %vm1673 = vcmp.gt.s32.totalorder %v1672, %v1545
        %v1674 = vsel %vm1673, %v1672, %v1545
        %vm1675 = vcmp.gt.s32.totalorder %v1674, %v1546
        %v1676 = vsel %vm1675, %v1674, %v1546
        %v1677 = vand.u32 %v1676, 65535
        %v1678 = vshra.s32 %v1676, 16
        %v1679 = vcvt.s32.f32 %v1677
        %v1680 = vcvt.s32.f32 %v1678
        %1681 = vmax.xlane.f32.xlu0 %v1680
        %v1682 = vpop.xlane.xlu0 %1681
        %vm1683 = vcmp.eq.f32.partialorder %v1680, %v1682
        %v1684 = vsel %vm1683, %v1679, -inf
        %1685 = vmax.xlane.f32.xlu0 %v1684
        %v1686 = vpop.xlane.xlu0 %1685
        %v1687 = vcvt.f32.s32 %v1686
        %v1688 = vcvt.f32.s32 %v1682
        %v1689 = vshll.u32 %v1688, 16
        %v1690 = vadd.s32 %v1689, %v1687
        %vm1691 = vcmp.gt.s32.totalorder %v1547, %v1548
        %v1692 = vsel %vm1691, %v1547, %v1548
        %vm1693 = vcmp.gt.s32.totalorder %v1692, %v1549
        %v1694 = vsel %vm1693, %v1692, %v1549
        %vm1695 = vcmp.gt.s32.totalorder %v1694, %v1550
        %v1696 = vsel %vm1695, %v1694, %v1550
        %v1697 = vand.u32 %v1696, 65535
        %v1698 = vshra.s32 %v1696, 16
        %v1699 = vcvt.s32.f32 %v1697
        %v1700 = vcvt.s32.f32 %v1698
        %1701 = vmax.xlane.f32.xlu0 %v1700
        %v1702 = vpop.xlane.xlu0 %1701
        %vm1703 = vcmp.eq.f32.partialorder %v1700, %v1702
        %v1704 = vsel %vm1703, %v1699, -inf
        %1705 = vmax.xlane.f32.xlu0 %v1704
        %v1706 = vpop.xlane.xlu0 %1705
        %v1707 = vcvt.f32.s32 %v1706
        %v1708 = vcvt.f32.s32 %v1702
        %v1709 = vshll.u32 %v1708, 16
        %v1710 = vadd.s32 %v1709, %v1707
        %vm1711 = vcmp.eq.s32.totalorder %v1519, %v1570
        %vm1712 = vcmp.eq.s32.totalorder %v1520, %v1570
        %vm1713 = vcmp.eq.s32.totalorder %v1521, %v1570
        %vm1714 = vcmp.eq.s32.totalorder %v1522, %v1570
        %vm1715 = vcmp.eq.s32.totalorder %v1523, %v1590
        %vm1716 = vcmp.eq.s32.totalorder %v1524, %v1590
        %vm1717 = vcmp.eq.s32.totalorder %v1525, %v1590
        %vm1718 = vcmp.eq.s32.totalorder %v1526, %v1590
        %vm1719 = vcmp.eq.s32.totalorder %v1527, %v1610
        %vm1720 = vcmp.eq.s32.totalorder %v1528, %v1610
        %vm1721 = vcmp.eq.s32.totalorder %v1529, %v1610
        %vm1722 = vcmp.eq.s32.totalorder %v1530, %v1610
        %vm1723 = vcmp.eq.s32.totalorder %v1531, %v1630
        %vm1724 = vcmp.eq.s32.totalorder %v1532, %v1630
        %vm1725 = vcmp.eq.s32.totalorder %v1533, %v1630
        %vm1726 = vcmp.eq.s32.totalorder %v1534, %v1630
        %vm1727 = vcmp.eq.s32.totalorder %v1535, %v1650
        %vm1728 = vcmp.eq.s32.totalorder %v1536, %v1650
        %vm1729 = vcmp.eq.s32.totalorder %v1537, %v1650
        %vm1730 = vcmp.eq.s32.totalorder %v1538, %v1650
        %vm1731 = vcmp.eq.s32.totalorder %v1539, %v1670
        %vm1732 = vcmp.eq.s32.totalorder %v1540, %v1670
        %vm1733 = vcmp.eq.s32.totalorder %v1541, %v1670
        %vm1734 = vcmp.eq.s32.totalorder %v1542, %v1670
        %vm1735 = vcmp.eq.s32.totalorder %v1543, %v1690
        %vm1736 = vcmp.eq.s32.totalorder %v1544, %v1690
        %vm1737 = vcmp.eq.s32.totalorder %v1545, %v1690
        %vm1738 = vcmp.eq.s32.totalorder %v1546, %v1690
        %vm1739 = vcmp.eq.s32.totalorder %v1547, %v1710
        %vm1740 = vcmp.eq.s32.totalorder %v1548, %v1710
        %vm1741 = vcmp.eq.s32.totalorder %v1549, %v1710
        %vm1742 = vcmp.eq.s32.totalorder %v1550, %v1710
        %v1743 = vsel %vm1711, 4294967295, %v1519
        %v1744 = vsel %vm1712, 4294967295, %v1520
        %v1745 = vsel %vm1713, 4294967295, %v1521
        %v1746 = vsel %vm1714, 4294967295, %v1522
        %v1747 = vsel %vm1715, 4294967295, %v1523
        %v1748 = vsel %vm1716, 4294967295, %v1524
        %v1749 = vsel %vm1717, 4294967295, %v1525
        %v1750 = vsel %vm1718, 4294967295, %v1526
        %v1751 = vsel %vm1719, 4294967295, %v1527
        %v1752 = vsel %vm1720, 4294967295, %v1528
        %v1753 = vsel %vm1721, 4294967295, %v1529
        %v1754 = vsel %vm1722, 4294967295, %v1530
        %v1755 = vsel %vm1723, 4294967295, %v1531
        %v1756 = vsel %vm1724, 4294967295, %v1532
        %v1757 = vsel %vm1725, 4294967295, %v1533
        %v1758 = vsel %vm1726, 4294967295, %v1534
        %v1759 = vsel %vm1727, 4294967295, %v1535
        %v1760 = vsel %vm1728, 4294967295, %v1536
        %v1761 = vsel %vm1729, 4294967295, %v1537
        %v1762 = vsel %vm1730, 4294967295, %v1538
        %v1763 = vsel %vm1731, 4294967295, %v1539
        %v1764 = vsel %vm1732, 4294967295, %v1540
        %v1765 = vsel %vm1733, 4294967295, %v1541
        %v1766 = vsel %vm1734, 4294967295, %v1542
        %v1767 = vsel %vm1735, 4294967295, %v1543
        %v1768 = vsel %vm1736, 4294967295, %v1544
        %v1769 = vsel %vm1737, 4294967295, %v1545
        %v1770 = vsel %vm1738, 4294967295, %v1546
        %v1771 = vsel %vm1739, 4294967295, %v1547
        %v1772 = vsel %vm1740, 4294967295, %v1548
        %v1773 = vsel %vm1741, 4294967295, %v1549
        %v1774 = vsel %vm1742, 4294967295, %v1550
        %vm1775 = vcmp.gt.s32.totalorder %v1743, %v1744
        %v1776 = vsel %vm1775, %v1743, %v1744
        %vm1777 = vcmp.gt.s32.totalorder %v1776, %v1745
        %v1778 = vsel %vm1777, %v1776, %v1745
        %vm1779 = vcmp.gt.s32.totalorder %v1778, %v1746
        %v1780 = vsel %vm1779, %v1778, %v1746
        %v1781 = vand.u32 %v1780, 65535
        %v1782 = vshra.s32 %v1780, 16
        %v1783 = vcvt.s32.f32 %v1781
        %v1784 = vcvt.s32.f32 %v1782
        %1785 = vmax.xlane.f32.xlu0 %v1784
        %v1786 = vpop.xlane.xlu0 %1785
        %vm1787 = vcmp.eq.f32.partialorder %v1784, %v1786
        %v1788 = vsel %vm1787, %v1783, -inf
        %1789 = vmax.xlane.f32.xlu0 %v1788
        %v1790 = vpop.xlane.xlu0 %1789
        %v1791 = vcvt.f32.s32 %v1790
        %v1792 = vcvt.f32.s32 %v1786
        %v1793 = vshll.u32 %v1792, 16
        %v1794 = vadd.s32 %v1793, %v1791
        %vm1795 = vcmp.gt.s32.totalorder %v1747, %v1748
        %v1796 = vsel %vm1795, %v1747, %v1748
        %vm1797 = vcmp.gt.s32.totalorder %v1796, %v1749
        %v1798 = vsel %vm1797, %v1796, %v1749
        %vm1799 = vcmp.gt.s32.totalorder %v1798, %v1750
        %v1800 = vsel %vm1799, %v1798, %v1750
        %v1801 = vand.u32 %v1800, 65535
        %v1802 = vshra.s32 %v1800, 16
        %v1803 = vcvt.s32.f32 %v1801
        %v1804 = vcvt.s32.f32 %v1802
        %1805 = vmax.xlane.f32.xlu0 %v1804
        %v1806 = vpop.xlane.xlu0 %1805
        %vm1807 = vcmp.eq.f32.partialorder %v1804, %v1806
        %v1808 = vsel %vm1807, %v1803, -inf
        %1809 = vmax.xlane.f32.xlu0 %v1808
        %v1810 = vpop.xlane.xlu0 %1809
        %v1811 = vcvt.f32.s32 %v1810
        %v1812 = vcvt.f32.s32 %v1806
        %v1813 = vshll.u32 %v1812, 16
        %v1814 = vadd.s32 %v1813, %v1811
        %vm1815 = vcmp.gt.s32.totalorder %v1751, %v1752
        %v1816 = vsel %vm1815, %v1751, %v1752
        %vm1817 = vcmp.gt.s32.totalorder %v1816, %v1753
        %v1818 = vsel %vm1817, %v1816, %v1753
        %vm1819 = vcmp.gt.s32.totalorder %v1818, %v1754
        %v1820 = vsel %vm1819, %v1818, %v1754
        %v1821 = vand.u32 %v1820, 65535
        %v1822 = vshra.s32 %v1820, 16
        %v1823 = vcvt.s32.f32 %v1821
        %v1824 = vcvt.s32.f32 %v1822
        %1825 = vmax.xlane.f32.xlu0 %v1824
        %v1826 = vpop.xlane.xlu0 %1825
        %vm1827 = vcmp.eq.f32.partialorder %v1824, %v1826
        %v1828 = vsel %vm1827, %v1823, -inf
        %1829 = vmax.xlane.f32.xlu0 %v1828
        %v1830 = vpop.xlane.xlu0 %1829
        %v1831 = vcvt.f32.s32 %v1830
        %v1832 = vcvt.f32.s32 %v1826
        %v1833 = vshll.u32 %v1832, 16
        %v1834 = vadd.s32 %v1833, %v1831
        %vm1835 = vcmp.gt.s32.totalorder %v1755, %v1756
        %v1836 = vsel %vm1835, %v1755, %v1756
        %vm1837 = vcmp.gt.s32.totalorder %v1836, %v1757
        %v1838 = vsel %vm1837, %v1836, %v1757
        %vm1839 = vcmp.gt.s32.totalorder %v1838, %v1758
        %v1840 = vsel %vm1839, %v1838, %v1758
        %v1841 = vand.u32 %v1840, 65535
        %v1842 = vshra.s32 %v1840, 16
        %v1843 = vcvt.s32.f32 %v1841
        %v1844 = vcvt.s32.f32 %v1842
        %1845 = vmax.xlane.f32.xlu0 %v1844
        %v1846 = vpop.xlane.xlu0 %1845
        %vm1847 = vcmp.eq.f32.partialorder %v1844, %v1846
        %v1848 = vsel %vm1847, %v1843, -inf
        %1849 = vmax.xlane.f32.xlu0 %v1848
        %v1850 = vpop.xlane.xlu0 %1849
        %v1851 = vcvt.f32.s32 %v1850
        %v1852 = vcvt.f32.s32 %v1846
        %v1853 = vshll.u32 %v1852, 16
        %v1854 = vadd.s32 %v1853, %v1851
        %vm1855 = vcmp.gt.s32.totalorder %v1759, %v1760
        %v1856 = vsel %vm1855, %v1759, %v1760
        %vm1857 = vcmp.gt.s32.totalorder %v1856, %v1761
        %v1858 = vsel %vm1857, %v1856, %v1761
        %vm1859 = vcmp.gt.s32.totalorder %v1858, %v1762
        %v1860 = vsel %vm1859, %v1858, %v1762
        %v1861 = vand.u32 %v1860, 65535
        %v1862 = vshra.s32 %v1860, 16
        %v1863 = vcvt.s32.f32 %v1861
        %v1864 = vcvt.s32.f32 %v1862
        %1865 = vmax.xlane.f32.xlu0 %v1864
        %v1866 = vpop.xlane.xlu0 %1865
        %vm1867 = vcmp.eq.f32.partialorder %v1864, %v1866
        %v1868 = vsel %vm1867, %v1863, -inf
        %1869 = vmax.xlane.f32.xlu0 %v1868
        %v1870 = vpop.xlane.xlu0 %1869
        %v1871 = vcvt.f32.s32 %v1870
        %v1872 = vcvt.f32.s32 %v1866
        %v1873 = vshll.u32 %v1872, 16
        %v1874 = vadd.s32 %v1873, %v1871
        %vm1875 = vcmp.gt.s32.totalorder %v1763, %v1764
        %v1876 = vsel %vm1875, %v1763, %v1764
        %vm1877 = vcmp.gt.s32.totalorder %v1876, %v1765
        %v1878 = vsel %vm1877, %v1876, %v1765
        %vm1879 = vcmp.gt.s32.totalorder %v1878, %v1766
        %v1880 = vsel %vm1879, %v1878, %v1766
        %v1881 = vand.u32 %v1880, 65535
        %v1882 = vshra.s32 %v1880, 16
        %v1883 = vcvt.s32.f32 %v1881
        %v1884 = vcvt.s32.f32 %v1882
        %1885 = vmax.xlane.f32.xlu0 %v1884
        %v1886 = vpop.xlane.xlu0 %1885
        %vm1887 = vcmp.eq.f32.partialorder %v1884, %v1886
        %v1888 = vsel %vm1887, %v1883, -inf
        %1889 = vmax.xlane.f32.xlu0 %v1888
        %v1890 = vpop.xlane.xlu0 %1889
        %v1891 = vcvt.f32.s32 %v1890
        %v1892 = vcvt.f32.s32 %v1886
        %v1893 = vshll.u32 %v1892, 16
        %v1894 = vadd.s32 %v1893, %v1891
        %vm1895 = vcmp.gt.s32.totalorder %v1767, %v1768
        %v1896 = vsel %vm1895, %v1767, %v1768
        %vm1897 = vcmp.gt.s32.totalorder %v1896, %v1769
        %v1898 = vsel %vm1897, %v1896, %v1769
        %vm1899 = vcmp.gt.s32.totalorder %v1898, %v1770
        %v1900 = vsel %vm1899, %v1898, %v1770
        %v1901 = vand.u32 %v1900, 65535
        %v1902 = vshra.s32 %v1900, 16
        %v1903 = vcvt.s32.f32 %v1901
        %v1904 = vcvt.s32.f32 %v1902
        %1905 = vmax.xlane.f32.xlu0 %v1904
        %v1906 = vpop.xlane.xlu0 %1905
        %vm1907 = vcmp.eq.f32.partialorder %v1904, %v1906
        %v1908 = vsel %vm1907, %v1903, -inf
        %1909 = vmax.xlane.f32.xlu0 %v1908
        %v1910 = vpop.xlane.xlu0 %1909
        %v1911 = vcvt.f32.s32 %v1910
        %v1912 = vcvt.f32.s32 %v1906
        %v1913 = vshll.u32 %v1912, 16
        %v1914 = vadd.s32 %v1913, %v1911
        %vm1915 = vcmp.gt.s32.totalorder %v1771, %v1772
        %v1916 = vsel %vm1915, %v1771, %v1772
        %vm1917 = vcmp.gt.s32.totalorder %v1916, %v1773
        %v1918 = vsel %vm1917, %v1916, %v1773
        %vm1919 = vcmp.gt.s32.totalorder %v1918, %v1774
        %v1920 = vsel %vm1919, %v1918, %v1774
        %v1921 = vand.u32 %v1920, 65535
        %v1922 = vshra.s32 %v1920, 16
        %v1923 = vcvt.s32.f32 %v1921
        %v1924 = vcvt.s32.f32 %v1922
        %1925 = vmax.xlane.f32.xlu0 %v1924
        %v1926 = vpop.xlane.xlu0 %1925
        %vm1927 = vcmp.eq.f32.partialorder %v1924, %v1926
        %v1928 = vsel %vm1927, %v1923, -inf
        %1929 = vmax.xlane.f32.xlu0 %v1928
        %v1930 = vpop.xlane.xlu0 %1929
        %v1931 = vcvt.f32.s32 %v1930
        %v1932 = vcvt.f32.s32 %v1926
        %v1933 = vshll.u32 %v1932, 16
        %v1934 = vadd.s32 %v1933, %v1931
        %vm1935 = vcmp.eq.s32.totalorder %v1743, %v1794
        %vm1936 = vcmp.eq.s32.totalorder %v1744, %v1794
        %vm1937 = vcmp.eq.s32.totalorder %v1745, %v1794
        %vm1938 = vcmp.eq.s32.totalorder %v1746, %v1794
        %vm1939 = vcmp.eq.s32.totalorder %v1747, %v1814
        %vm1940 = vcmp.eq.s32.totalorder %v1748, %v1814
        %vm1941 = vcmp.eq.s32.totalorder %v1749, %v1814
        %vm1942 = vcmp.eq.s32.totalorder %v1750, %v1814
        %vm1943 = vcmp.eq.s32.totalorder %v1751, %v1834
        %vm1944 = vcmp.eq.s32.totalorder %v1752, %v1834
        %vm1945 = vcmp.eq.s32.totalorder %v1753, %v1834
        %vm1946 = vcmp.eq.s32.totalorder %v1754, %v1834
        %vm1947 = vcmp.eq.s32.totalorder %v1755, %v1854
        %vm1948 = vcmp.eq.s32.totalorder %v1756, %v1854
        %vm1949 = vcmp.eq.s32.totalorder %v1757, %v1854
        %vm1950 = vcmp.eq.s32.totalorder %v1758, %v1854
        %vm1951 = vcmp.eq.s32.totalorder %v1759, %v1874
        %vm1952 = vcmp.eq.s32.totalorder %v1760, %v1874
        %vm1953 = vcmp.eq.s32.totalorder %v1761, %v1874
        %vm1954 = vcmp.eq.s32.totalorder %v1762, %v1874
        %vm1955 = vcmp.eq.s32.totalorder %v1763, %v1894
        %vm1956 = vcmp.eq.s32.totalorder %v1764, %v1894
        %vm1957 = vcmp.eq.s32.totalorder %v1765, %v1894
        %vm1958 = vcmp.eq.s32.totalorder %v1766, %v1894
        %vm1959 = vcmp.eq.s32.totalorder %v1767, %v1914
        %vm1960 = vcmp.eq.s32.totalorder %v1768, %v1914
        %vm1961 = vcmp.eq.s32.totalorder %v1769, %v1914
        %vm1962 = vcmp.eq.s32.totalorder %v1770, %v1914
        %vm1963 = vcmp.eq.s32.totalorder %v1771, %v1934
        %vm1964 = vcmp.eq.s32.totalorder %v1772, %v1934
        %vm1965 = vcmp.eq.s32.totalorder %v1773, %v1934
        %vm1966 = vcmp.eq.s32.totalorder %v1774, %v1934
        %v1967 = vsel %vm1935, 4294967295, %v1743
        %v1968 = vsel %vm1936, 4294967295, %v1744
        %v1969 = vsel %vm1937, 4294967295, %v1745
        %v1970 = vsel %vm1938, 4294967295, %v1746
        %v1971 = vsel %vm1939, 4294967295, %v1747
        %v1972 = vsel %vm1940, 4294967295, %v1748
        %v1973 = vsel %vm1941, 4294967295, %v1749
        %v1974 = vsel %vm1942, 4294967295, %v1750
        %v1975 = vsel %vm1943, 4294967295, %v1751
        %v1976 = vsel %vm1944, 4294967295, %v1752
        %v1977 = vsel %vm1945, 4294967295, %v1753
        %v1978 = vsel %vm1946, 4294967295, %v1754
        %v1979 = vsel %vm1947, 4294967295, %v1755
        %v1980 = vsel %vm1948, 4294967295, %v1756
        %v1981 = vsel %vm1949, 4294967295, %v1757
        %v1982 = vsel %vm1950, 4294967295, %v1758
        %v1983 = vsel %vm1951, 4294967295, %v1759
        %v1984 = vsel %vm1952, 4294967295, %v1760
        %v1985 = vsel %vm1953, 4294967295, %v1761
        %v1986 = vsel %vm1954, 4294967295, %v1762
        %v1987 = vsel %vm1955, 4294967295, %v1763
        %v1988 = vsel %vm1956, 4294967295, %v1764
        %v1989 = vsel %vm1957, 4294967295, %v1765
        %v1990 = vsel %vm1958, 4294967295, %v1766
        %v1991 = vsel %vm1959, 4294967295, %v1767
        %v1992 = vsel %vm1960, 4294967295, %v1768
        %v1993 = vsel %vm1961, 4294967295, %v1769
        %v1994 = vsel %vm1962, 4294967295, %v1770
        %v1995 = vsel %vm1963, 4294967295, %v1771
        %v1996 = vsel %vm1964, 4294967295, %v1772
        %v1997 = vsel %vm1965, 4294967295, %v1773
        %v1998 = vsel %vm1966, 4294967295, %v1774
        %vm1999 = vcmp.lt.s32.totalorder %v1967, 0
        %vm2000 = vcmp.lt.s32.totalorder %v1968, 0
        %vm2001 = vcmp.lt.s32.totalorder %v1969, 0
        %vm2002 = vcmp.lt.s32.totalorder %v1970, 0
        %vm2003 = vcmp.lt.s32.totalorder %v1971, 0
        %vm2004 = vcmp.lt.s32.totalorder %v1972, 0
        %vm2005 = vcmp.lt.s32.totalorder %v1973, 0
        %vm2006 = vcmp.lt.s32.totalorder %v1974, 0
        %vm2007 = vcmp.lt.s32.totalorder %v1975, 0
        %vm2008 = vcmp.lt.s32.totalorder %v1976, 0
        %vm2009 = vcmp.lt.s32.totalorder %v1977, 0
        %vm2010 = vcmp.lt.s32.totalorder %v1978, 0
        %vm2011 = vcmp.lt.s32.totalorder %v1979, 0
        %vm2012 = vcmp.lt.s32.totalorder %v1980, 0
        %vm2013 = vcmp.lt.s32.totalorder %v1981, 0
        %vm2014 = vcmp.lt.s32.totalorder %v1982, 0
        %vm2015 = vcmp.lt.s32.totalorder %v1983, 0
        %vm2016 = vcmp.lt.s32.totalorder %v1984, 0
        %vm2017 = vcmp.lt.s32.totalorder %v1985, 0
        %vm2018 = vcmp.lt.s32.totalorder %v1986, 0
        %vm2019 = vcmp.lt.s32.totalorder %v1987, 0
        %vm2020 = vcmp.lt.s32.totalorder %v1988, 0
        %vm2021 = vcmp.lt.s32.totalorder %v1989, 0
        %vm2022 = vcmp.lt.s32.totalorder %v1990, 0
        %vm2023 = vcmp.lt.s32.totalorder %v1991, 0
        %vm2024 = vcmp.lt.s32.totalorder %v1992, 0
        %vm2025 = vcmp.lt.s32.totalorder %v1993, 0
        %vm2026 = vcmp.lt.s32.totalorder %v1994, 0
        %vm2027 = vcmp.lt.s32.totalorder %v1995, 0
        %vm2028 = vcmp.lt.s32.totalorder %v1996, 0
        %vm2029 = vcmp.lt.s32.totalorder %v1997, 0
        %vm2030 = vcmp.lt.s32.totalorder %v1998, 0
        %v2031 = vsel %vm1999, %v701, 0.0
        %v2032 = vsel %vm2000, %v702, 0.0
        %v2033 = vsel %vm2001, %v703, 0.0
        %v2034 = vsel %vm2002, %v704, 0.0
        %v2035 = vsel %vm2003, %v705, 0.0
        %v2036 = vsel %vm2004, %v706, 0.0
        %v2037 = vsel %vm2005, %v707, 0.0
        %v2038 = vsel %vm2006, %v708, 0.0
        %v2039 = vsel %vm2007, %v709, 0.0
        %v2040 = vsel %vm2008, %v710, 0.0
        %v2041 = vsel %vm2009, %v711, 0.0
        %v2042 = vsel %vm2010, %v712, 0.0
        %v2043 = vsel %vm2011, %v713, 0.0
        %v2044 = vsel %vm2012, %v714, 0.0
        %v2045 = vsel %vm2013, %v715, 0.0
        %v2046 = vsel %vm2014, %v716, 0.0
        %v2047 = vsel %vm2015, %v717, 0.0
        %v2048 = vsel %vm2016, %v718, 0.0
        %v2049 = vsel %vm2017, %v719, 0.0
        %v2050 = vsel %vm2018, %v720, 0.0
        %v2051 = vsel %vm2019, %v721, 0.0
        %v2052 = vsel %vm2020, %v722, 0.0
        %v2053 = vsel %vm2021, %v723, 0.0
        %v2054 = vsel %vm2022, %v724, 0.0
        %v2055 = vsel %vm2023, %v725, 0.0
        %v2056 = vsel %vm2024, %v726, 0.0
        %v2057 = vsel %vm2025, %v727, 0.0
        %v2058 = vsel %vm2026, %v728, 0.0
        %v2059 = vsel %vm2027, %v729, 0.0
        %v2060 = vsel %vm2028, %v730, 0.0
        %v2061 = vsel %vm2029, %v731, 0.0
        %v2062 = vsel %vm2030, %v732, 0.0
        %2063 = vst [vmem:[%s288] sm:$0xff] %v2031
        %2064 = vst [vmem:[%s288 + $0x8] sm:$0xff] %v2032
        %2065 = vst [vmem:[%s288 + $0x10] sm:$0xff] %v2033
        %2066 = vst [vmem:[%s288 + $0x18] sm:$0xff] %v2034
        %2067 = vst [vmem:[%s288 + $0x20] sm:$0xff] %v2035
        %2068 = vst [vmem:[%s288 + $0x28] sm:$0xff] %v2036
        %2069 = vst [vmem:[%s288 + $0x30] sm:$0xff] %v2037
        %2070 = vst [vmem:[%s288 + $0x38] sm:$0xff] %v2038
        %2071 = vst [vmem:[%s288 + $0x40] sm:$0xff] %v2039
        %2072 = vst [vmem:[%s288 + $0x48] sm:$0xff] %v2040
        %2073 = vst [vmem:[%s288 + $0x50] sm:$0xff] %v2041
        %2074 = vst [vmem:[%s288 + $0x58] sm:$0xff] %v2042
        %2075 = vst [vmem:[%s288 + $0x60] sm:$0xff] %v2043
        %2076 = vst [vmem:[%s288 + $0x68] sm:$0xff] %v2044
        %2077 = vst [vmem:[%s288 + $0x70] sm:$0xff] %v2045
        %2078 = vst [vmem:[%s288 + $0x78] sm:$0xff] %v2046
        %2079 = vst [vmem:[%s288 + $0x80] sm:$0xff] %v2047
        %2080 = vst [vmem:[%s288 + $0x88] sm:$0xff] %v2048
        %2081 = vst [vmem:[%s288 + $0x90] sm:$0xff] %v2049
        %2082 = vst [vmem:[%s288 + $0x98] sm:$0xff] %v2050
        %2083 = vst [vmem:[%s288 + $0xa0] sm:$0xff] %v2051
        %2084 = vst [vmem:[%s288 + $0xa8] sm:$0xff] %v2052
        %2085 = vst [vmem:[%s288 + $0xb0] sm:$0xff] %v2053
        %2086 = vst [vmem:[%s288 + $0xb8] sm:$0xff] %v2054
        %2087 = vst [vmem:[%s288 + $0xc0] sm:$0xff] %v2055
        %2088 = vst [vmem:[%s288 + $0xc8] sm:$0xff] %v2056
        %2089 = vst [vmem:[%s288 + $0xd0] sm:$0xff] %v2057
        %2090 = vst [vmem:[%s288 + $0xd8] sm:$0xff] %v2058
        %2091 = vst [vmem:[%s288 + $0xe0] sm:$0xff] %v2059
        %2092 = vst [vmem:[%s288 + $0xe8] sm:$0xff] %v2060
        %2093 = vst [vmem:[%s288 + $0xf0] sm:$0xff] %v2061
        %2094 = vst [vmem:[%s288 + $0xf8] sm:$0xff] %v2062
        %v2095 = vpack.c.bf16 %v2035, %v2031
        %v2096 = vpack.c.bf16 %v2036, %v2032
        %v2097 = vpack.c.bf16 %v2037, %v2033
        %v2098 = vpack.c.bf16 %v2038, %v2034
        %v2099 = vpack.c.bf16 %v2043, %v2039
        %v2100 = vpack.c.bf16 %v2044, %v2040
        %v2101 = vpack.c.bf16 %v2045, %v2041
        %v2102 = vpack.c.bf16 %v2046, %v2042
        %v2103 = vpack.c.bf16 %v2051, %v2047
        %v2104 = vpack.c.bf16 %v2052, %v2048
        %v2105 = vpack.c.bf16 %v2053, %v2049
        %v2106 = vpack.c.bf16 %v2054, %v2050
        %v2107 = vpack.c.bf16 %v2059, %v2055
        %v2108 = vpack.c.bf16 %v2060, %v2056
        %v2109 = vpack.c.bf16 %v2061, %v2057
        %v2110 = vpack.c.bf16 %v2062, %v2058
        %v2111 = vld [vmem:[#allocation8] sm:$0xf]
        %v2112 = vld [vmem:[#allocation8 + $0x4] sm:$0xf]
        %v2113 = vld [vmem:[#allocation8 + $0x8] sm:$0xf]
        %v2114 = vld [vmem:[#allocation8 + $0xc] sm:$0xf]
        %v2115 = vld [vmem:[#allocation8 + $0x10] sm:$0xf]
        %v2116 = vld [vmem:[#allocation8 + $0x14] sm:$0xf]
        %v2117 = vld [vmem:[#allocation8 + $0x18] sm:$0xf]
        %v2118 = vld [vmem:[#allocation8 + $0x1c] sm:$0xf]
        %v2119 = vld [vmem:[#allocation8 + $0x20] sm:$0xf]
        %v2120 = vld [vmem:[#allocation8 + $0x24] sm:$0xf]
        %v2121 = vld [vmem:[#allocation8 + $0x28] sm:$0xf]
        %v2122 = vld [vmem:[#allocation8 + $0x2c] sm:$0xf]
        %v2123 = vld [vmem:[#allocation8 + $0x30] sm:$0xf]
        %v2124 = vld [vmem:[#allocation8 + $0x34] sm:$0xf]
        %v2125 = vld [vmem:[#allocation8 + $0x38] sm:$0xf]
        %v2126 = vld [vmem:[#allocation8 + $0x3c] sm:$0xf]
        %v2127 = vld [vmem:[#allocation8 + $0x40] sm:$0xf]
        %v2128 = vld [vmem:[#allocation8 + $0x44] sm:$0xf]
        %v2129 = vld [vmem:[#allocation8 + $0x48] sm:$0xf]
        %v2130 = vld [vmem:[#allocation8 + $0x4c] sm:$0xf]
        %v2131 = vld [vmem:[#allocation8 + $0x50] sm:$0xf]
        %v2132 = vld [vmem:[#allocation8 + $0x54] sm:$0xf]
        %v2133 = vld [vmem:[#allocation8 + $0x58] sm:$0xf]
        %v2134 = vld [vmem:[#allocation8 + $0x5c] sm:$0xf]
        %v2135 = vld [vmem:[#allocation8 + $0x60] sm:$0xf]
        %v2136 = vld [vmem:[#allocation8 + $0x64] sm:$0xf]
        %v2137 = vld [vmem:[#allocation8 + $0x68] sm:$0xf]
        %v2138 = vld [vmem:[#allocation8 + $0x6c] sm:$0xf]
        %v2139 = vld [vmem:[#allocation8 + $0x70] sm:$0xf]
        %v2140 = vld [vmem:[#allocation8 + $0x74] sm:$0xf]
        %v2141 = vld [vmem:[#allocation8 + $0x78] sm:$0xf]
        %v2142 = vld [vmem:[#allocation8 + $0x7c] sm:$0xf]
        %v2143 = vld [vmem:[#allocation8 + $0x80] sm:$0xf]
        %v2144 = vld [vmem:[#allocation8 + $0x84] sm:$0xf]
        %v2145 = vld [vmem:[#allocation8 + $0x88] sm:$0xf]
        %v2146 = vld [vmem:[#allocation8 + $0x8c] sm:$0xf]
        %v2147 = vld [vmem:[#allocation8 + $0x90] sm:$0xf]
        %v2148 = vld [vmem:[#allocation8 + $0x94] sm:$0xf]
        %v2149 = vld [vmem:[#allocation8 + $0x98] sm:$0xf]
        %v2150 = vld [vmem:[#allocation8 + $0x9c] sm:$0xf]
        %v2151 = vld [vmem:[#allocation8 + $0xa0] sm:$0xf]
        %v2152 = vld [vmem:[#allocation8 + $0xa4] sm:$0xf]
        %v2153 = vld [vmem:[#allocation8 + $0xa8] sm:$0xf]
        %v2154 = vld [vmem:[#allocation8 + $0xac] sm:$0xf]
        %v2155 = vld [vmem:[#allocation8 + $0xb0] sm:$0xf]
        %v2156 = vld [vmem:[#allocation8 + $0xb4] sm:$0xf]
        %v2157 = vld [vmem:[#allocation8 + $0xb8] sm:$0xf]
        %v2158 = vld [vmem:[#allocation8 + $0xbc] sm:$0xf]
        %v2159 = vld [vmem:[#allocation8 + $0xc0] sm:$0xf]
        %v2160 = vld [vmem:[#allocation8 + $0xc4] sm:$0xf]
        %v2161 = vld [vmem:[#allocation8 + $0xc8] sm:$0xf]
        %v2162 = vld [vmem:[#allocation8 + $0xcc] sm:$0xf]
        %v2163 = vld [vmem:[#allocation8 + $0xd0] sm:$0xf]
        %v2164 = vld [vmem:[#allocation8 + $0xd4] sm:$0xf]
        %v2165 = vld [vmem:[#allocation8 + $0xd8] sm:$0xf]
        %v2166 = vld [vmem:[#allocation8 + $0xdc] sm:$0xf]
        %v2167 = vld [vmem:[#allocation8 + $0xe0] sm:$0xf]
        %v2168 = vld [vmem:[#allocation8 + $0xe4] sm:$0xf]
        %v2169 = vld [vmem:[#allocation8 + $0xe8] sm:$0xf]
        %v2170 = vld [vmem:[#allocation8 + $0xec] sm:$0xf]
        %v2171 = vld [vmem:[#allocation8 + $0xf0] sm:$0xf]
        %v2172 = vld [vmem:[#allocation8 + $0xf4] sm:$0xf]
        %v2173 = vld [vmem:[#allocation8 + $0xf8] sm:$0xf]
        %v2174 = vld [vmem:[#allocation8 + $0xfc] sm:$0xf]
        %v2239 = vunpack.c.l.b16 %v2111
        %v2240 = vunpack.c.l.b16 %v2112
        %v2241 = vunpack.c.l.b16 %v2113
        %v2242 = vunpack.c.l.b16 %v2114
        %v2243 = vunpack.c.l.b16 %v2115
        %v2244 = vunpack.c.l.b16 %v2116
        %v2245 = vunpack.c.l.b16 %v2117
        %v2246 = vunpack.c.l.b16 %v2118
        %v2247 = vunpack.c.l.b16 %v2119
        %v2248 = vunpack.c.l.b16 %v2120
        %v2249 = vunpack.c.l.b16 %v2121
        %v2250 = vunpack.c.l.b16 %v2122
        %v2251 = vunpack.c.l.b16 %v2123
        %v2252 = vunpack.c.l.b16 %v2124
        %v2253 = vunpack.c.l.b16 %v2125
        %v2254 = vunpack.c.l.b16 %v2126
        %v2255 = vunpack.c.l.b16 %v2127
        %v2256 = vunpack.c.l.b16 %v2128
        %v2257 = vunpack.c.l.b16 %v2129
        %v2258 = vunpack.c.l.b16 %v2130
        %v2259 = vunpack.c.l.b16 %v2131
        %v2260 = vunpack.c.l.b16 %v2132
        %v2261 = vunpack.c.l.b16 %v2133
        %v2262 = vunpack.c.l.b16 %v2134
        %v2263 = vunpack.c.l.b16 %v2135
        %v2264 = vunpack.c.l.b16 %v2136
        %v2265 = vunpack.c.l.b16 %v2137
        %v2266 = vunpack.c.l.b16 %v2138
        %v2267 = vunpack.c.l.b16 %v2139
        %v2268 = vunpack.c.l.b16 %v2140
        %v2269 = vunpack.c.l.b16 %v2141
        %v2270 = vunpack.c.l.b16 %v2142
        %v2271 = vunpack.c.l.b16 %v2143
        %v2272 = vunpack.c.l.b16 %v2144
        %v2273 = vunpack.c.l.b16 %v2145
        %v2274 = vunpack.c.l.b16 %v2146
        %v2275 = vunpack.c.l.b16 %v2147
        %v2276 = vunpack.c.l.b16 %v2148
        %v2277 = vunpack.c.l.b16 %v2149
        %v2278 = vunpack.c.l.b16 %v2150
        %v2279 = vunpack.c.l.b16 %v2151
        %v2280 = vunpack.c.l.b16 %v2152
        %v2281 = vunpack.c.l.b16 %v2153
        %v2282 = vunpack.c.l.b16 %v2154
        %v2283 = vunpack.c.l.b16 %v2155
        %v2284 = vunpack.c.l.b16 %v2156
        %v2285 = vunpack.c.l.b16 %v2157
        %v2286 = vunpack.c.l.b16 %v2158
        %v2287 = vunpack.c.l.b16 %v2159
        %v2288 = vunpack.c.l.b16 %v2160
        %v2289 = vunpack.c.l.b16 %v2161
        %v2290 = vunpack.c.l.b16 %v2162
        %v2291 = vunpack.c.l.b16 %v2163
        %v2292 = vunpack.c.l.b16 %v2164
        %v2293 = vunpack.c.l.b16 %v2165
        %v2294 = vunpack.c.l.b16 %v2166
        %v2295 = vunpack.c.l.b16 %v2167
        %v2296 = vunpack.c.l.b16 %v2168
        %v2297 = vunpack.c.l.b16 %v2169
        %v2298 = vunpack.c.l.b16 %v2170
        %v2299 = vunpack.c.l.b16 %v2171
        %v2300 = vunpack.c.l.b16 %v2172
        %v2301 = vunpack.c.l.b16 %v2173
        %v2302 = vunpack.c.l.b16 %v2174
        %v2303 = vpack.c.b16 %v2240, %v2239
        %v2304 = vpack.c.b16 %v2242, %v2241
        %v2305 = vpack.c.b16 %v2244, %v2243
        %v2306 = vpack.c.b16 %v2246, %v2245
        %v2307 = vpack.c.b16 %v2248, %v2247
        %v2308 = vpack.c.b16 %v2250, %v2249
        %v2309 = vpack.c.b16 %v2252, %v2251
        %v2310 = vpack.c.b16 %v2254, %v2253
        %v2311 = vpack.c.b16 %v2256, %v2255
        %v2312 = vpack.c.b16 %v2258, %v2257
        %v2313 = vpack.c.b16 %v2260, %v2259
        %v2314 = vpack.c.b16 %v2262, %v2261
        %v2315 = vpack.c.b16 %v2264, %v2263
        %v2316 = vpack.c.b16 %v2266, %v2265
        %v2317 = vpack.c.b16 %v2268, %v2267
        %v2318 = vpack.c.b16 %v2270, %v2269
        %v2319 = vpack.c.b16 %v2272, %v2271
        %v2320 = vpack.c.b16 %v2274, %v2273
        %v2321 = vpack.c.b16 %v2276, %v2275
        %v2322 = vpack.c.b16 %v2278, %v2277
        %v2323 = vpack.c.b16 %v2280, %v2279
        %v2324 = vpack.c.b16 %v2282, %v2281
        %v2325 = vpack.c.b16 %v2284, %v2283
        %v2326 = vpack.c.b16 %v2286, %v2285
        %v2327 = vpack.c.b16 %v2288, %v2287
        %v2328 = vpack.c.b16 %v2290, %v2289
        %v2329 = vpack.c.b16 %v2292, %v2291
        %v2330 = vpack.c.b16 %v2294, %v2293
        %v2331 = vpack.c.b16 %v2296, %v2295
        %v2332 = vpack.c.b16 %v2298, %v2297
        %v2333 = vpack.c.b16 %v2300, %v2299
        %v2334 = vpack.c.b16 %v2302, %v2301
        %2367 = vmatprep.subr.bf16.mxu0 0
        %2368 = vmatpush1.bf16.msra.mxu0 %v2310
        %2369 = vmatprep.subr.bf16.mxu0 0
        %2370 = vmatpush1.bf16.msra.mxu0 %v2309
        %2371 = vmatprep.subr.bf16.mxu0 0
        %2372 = vmatpush1.bf16.msra.mxu0 %v2308
        %2373 = vmatprep.subr.bf16.mxu0 0
        %2374 = vmatpush1.bf16.msra.mxu0 %v2307
        %2375 = vmatprep.subr.bf16.mxu0 0
        %2376 = vmatpush1.bf16.msra.mxu0 %v2306
        %2377 = vmatprep.subr.bf16.mxu0 0
        %2378 = vmatpush1.bf16.msra.mxu0 %v2305
        %2379 = vmatprep.subr.bf16.mxu0 0
        %2380 = vmatpush1.bf16.msra.mxu0 %v2304
        %2381 = vmatprep.subr.bf16.mxu0 0
        %2382 = vmatpush1.bf16.msra.mxu0 %v2303
        %2383 = vmatprep.subr.bf16.mxu0 0
        %2384 = vmatpush2.bf16.msra.mxu0 %v2318
        %2385 = vmatprep.subr.bf16.mxu0 0
        %2386 = vmatpush2.bf16.msra.mxu0 %v2317
        %2387 = vmatprep.subr.bf16.mxu0 0
        %2388 = vmatpush2.bf16.msra.mxu0 %v2316
        %2389 = vmatprep.subr.bf16.mxu0 0
        %2390 = vmatpush2.bf16.msra.mxu0 %v2315
        %2391 = vmatprep.subr.bf16.mxu0 0
        %2392 = vmatpush2.bf16.msra.mxu0 %v2314
        %2393 = vmatprep.subr.bf16.mxu0 0
        %2394 = vmatpush2.bf16.msra.mxu0 %v2313
        %2395 = vmatprep.subr.bf16.mxu0 0
        %2396 = vmatpush2.bf16.msra.mxu0 %v2312
        %2397 = vmatprep.subr.bf16.mxu0 0
        %2398 = vmatpush2.bf16.msra.mxu0 %v2311
        %2399 = vmatprep.mubr.bf16.mxu0 %v2096
        %2400 = vmatmul.mubr.bf16.gmra.mxu0 %v2095
        %v2401 = vpop.f32.mrf.mxu0
        %v2402 = vadd.f32 0.0, %v2401
        %v2403 = vpop.f32.mrf.mxu0
        %v2404 = vpop.f32.mrf.mxu0
        %v2405 = vadd.f32 0.0, %v2404
        %v2406 = vpop.f32.mrf.mxu0
        %2407 = vmatprep.mubr.bf16.mxu0 %v2100
        %2408 = vmatmul.mubr.bf16.gmra.mxu0 %v2099
        %v2409 = vpop.f32.mrf.mxu0
        %v2410 = vadd.f32 0.0, %v2409
        %v2411 = vpop.f32.mrf.mxu0
        %v2412 = vpop.f32.mrf.mxu0
        %v2413 = vadd.f32 0.0, %v2412
        %v2414 = vpop.f32.mrf.mxu0
        %2415 = vmatprep.mubr.bf16.mxu0 %v2104
        %2416 = vmatmul.mubr.bf16.gmra.mxu0 %v2103
        %v2417 = vpop.f32.mrf.mxu0
        %v2418 = vadd.f32 0.0, %v2417
        %v2419 = vpop.f32.mrf.mxu0
        %v2420 = vpop.f32.mrf.mxu0
        %v2421 = vadd.f32 0.0, %v2420
        %v2422 = vpop.f32.mrf.mxu0
        %2423 = vmatprep.mubr.bf16.mxu0 %v2108
        %2424 = vmatmul.mubr.bf16.gmra.mxu0 %v2107
        %v2425 = vpop.f32.mrf.mxu0
        %v2426 = vadd.f32 0.0, %v2425
        %v2427 = vpop.f32.mrf.mxu0
        %v2428 = vpop.f32.mrf.mxu0
        %v2429 = vadd.f32 0.0, %v2428
        %v2430 = vpop.f32.mrf.mxu0
        %2431 = vdwg.mxu0
        %2432 = vmatprep.subr.bf16.mxu0 0
        %2433 = vmatpush1.bf16.msra.mxu0 %v2326
        %2434 = vmatprep.subr.bf16.mxu0 0
        %2435 = vmatpush1.bf16.msra.mxu0 %v2325
        %2436 = vmatprep.subr.bf16.mxu0 0
        %2437 = vmatpush1.bf16.msra.mxu0 %v2324
        %2438 = vmatprep.subr.bf16.mxu0 0
        %2439 = vmatpush1.bf16.msra.mxu0 %v2323
        %2440 = vmatprep.subr.bf16.mxu0 0
        %2441 = vmatpush1.bf16.msra.mxu0 %v2322
        %2442 = vmatprep.subr.bf16.mxu0 0
        %2443 = vmatpush1.bf16.msra.mxu0 %v2321
        %2444 = vmatprep.subr.bf16.mxu0 0
        %2445 = vmatpush1.bf16.msra.mxu0 %v2320
        %2446 = vmatprep.subr.bf16.mxu0 0
        %2447 = vmatpush1.bf16.msra.mxu0 %v2319
        %2448 = vmatprep.subr.bf16.mxu0 0
        %2449 = vmatpush2.bf16.msra.mxu0 %v2334
        %2450 = vmatprep.subr.bf16.mxu0 0
        %2451 = vmatpush2.bf16.msra.mxu0 %v2333
        %2452 = vmatprep.subr.bf16.mxu0 0
        %2453 = vmatpush2.bf16.msra.mxu0 %v2332
        %2454 = vmatprep.subr.bf16.mxu0 0
        %2455 = vmatpush2.bf16.msra.mxu0 %v2331
        %2456 = vmatprep.subr.bf16.mxu0 0
        %2457 = vmatpush2.bf16.msra.mxu0 %v2330
        %2458 = vmatprep.subr.bf16.mxu0 0
        %2459 = vmatpush2.bf16.msra.mxu0 %v2329
        %2460 = vmatprep.subr.bf16.mxu0 0
        %2461 = vmatpush2.bf16.msra.mxu0 %v2328
        %2462 = vmatprep.subr.bf16.mxu0 0
        %2463 = vmatpush2.bf16.msra.mxu0 %v2327
        %2464 = vmatprep.mubr.bf16.mxu0 %v2098
        %2465 = vmatmul.mubr.bf16.gmra.mxu0 %v2097
        %v2466 = vpop.f32.mrf.mxu0
        %v2467 = vadd.f32 %v2402, %v2466
        %v2468 = vpop.f32.mrf.mxu0
        %v2469 = vpop.f32.mrf.mxu0
        %v2470 = vadd.f32 %v2405, %v2469
        %v2471 = vpop.f32.mrf.mxu0
        %2472 = vmatprep.mubr.bf16.mxu0 %v2102
        %2473 = vmatmul.mubr.bf16.gmra.mxu0 %v2101
        %v2474 = vpop.f32.mrf.mxu0
        %v2475 = vadd.f32 %v2410, %v2474
        %v2476 = vpop.f32.mrf.mxu0
        %v2477 = vpop.f32.mrf.mxu0
        %v2478 = vadd.f32 %v2413, %v2477
        %v2479 = vpop.f32.mrf.mxu0
        %2480 = vmatprep.mubr.bf16.mxu0 %v2106
        %2481 = vmatmul.mubr.bf16.gmra.mxu0 %v2105
        %v2482 = vpop.f32.mrf.mxu0
        %v2483 = vadd.f32 %v2418, %v2482
        %v2484 = vpop.f32.mrf.mxu0
        %v2485 = vpop.f32.mrf.mxu0
        %v2486 = vadd.f32 %v2421, %v2485
        %v2487 = vpop.f32.mrf.mxu0
        %2488 = vmatprep.mubr.bf16.mxu0 %v2110
        %2489 = vmatmul.mubr.bf16.gmra.mxu0 %v2109
        %v2490 = vpop.f32.mrf.mxu0
        %v2491 = vadd.f32 %v2426, %v2490
        %v2492 = vpop.f32.mrf.mxu0
        %v2493 = vpop.f32.mrf.mxu0
        %v2494 = vadd.f32 %v2429, %v2493
        %v2495 = vpop.f32.mrf.mxu0
        %2496 = vdwg.mxu0
        %2497 = vst [vmem:[%s295] sm:$0xff] %v2467
        %2498 = vst [vmem:[%s295 + $0x8] sm:$0xff] %v2470
        %2499 = vst [vmem:[%s295 + $0x10] sm:$0xff] %v2475
        %2500 = vst [vmem:[%s295 + $0x18] sm:$0xff] %v2478
        %2501 = vst [vmem:[%s295 + $0x20] sm:$0xff] %v2483
        %2502 = vst [vmem:[%s295 + $0x28] sm:$0xff] %v2486
        %2503 = vst [vmem:[%s295 + $0x30] sm:$0xff] %v2491
        %2504 = vst [vmem:[%s295 + $0x38] sm:$0xff] %v2494
        %vm2537 = vcmp.gt.s32.totalorder %v911, 0
        %v2538 = vsel %vm2537, %v911, 0
        %vm2539 = vcmp.gt.s32.totalorder %v912, 0
        %v2540 = vsel %vm2539, %v912, 0
        %vm2541 = vcmp.gt.s32.totalorder %v913, 0
        %v2542 = vsel %vm2541, %v913, 0
        %vm2543 = vcmp.gt.s32.totalorder %v914, 0
        %v2544 = vsel %vm2543, %v914, 0
        %vm2545 = vcmp.gt.s32.totalorder %v915, 0
        %v2546 = vsel %vm2545, %v915, 0
        %vm2547 = vcmp.gt.s32.totalorder %v916, 0
        %v2548 = vsel %vm2547, %v916, 0
        %vm2549 = vcmp.gt.s32.totalorder %v917, 0
        %v2550 = vsel %vm2549, %v917, 0
        %vm2551 = vcmp.gt.s32.totalorder %v918, 0
        %v2552 = vsel %vm2551, %v918, 0
        %vm2553 = vcmp.gt.s32.totalorder %v919, 0
        %v2554 = vsel %vm2553, %v919, 0
        %vm2555 = vcmp.gt.s32.totalorder %v920, 0
        %v2556 = vsel %vm2555, %v920, 0
        %vm2557 = vcmp.gt.s32.totalorder %v921, 0
        %v2558 = vsel %vm2557, %v921, 0
        %vm2559 = vcmp.gt.s32.totalorder %v922, 0
        %v2560 = vsel %vm2559, %v922, 0
        %vm2561 = vcmp.gt.s32.totalorder %v923, 0
        %v2562 = vsel %vm2561, %v923, 0
        %vm2563 = vcmp.gt.s32.totalorder %v924, 0
        %v2564 = vsel %vm2563, %v924, 0
        %vm2565 = vcmp.gt.s32.totalorder %v925, 0
        %v2566 = vsel %vm2565, %v925, 0
        %vm2567 = vcmp.gt.s32.totalorder %v926, 0
        %v2568 = vsel %vm2567, %v926, 0
        %vm2569 = vcmp.gt.s32.totalorder %v927, 0
        %v2570 = vsel %vm2569, %v927, 0
        %vm2571 = vcmp.gt.s32.totalorder %v928, 0
        %v2572 = vsel %vm2571, %v928, 0
        %vm2573 = vcmp.gt.s32.totalorder %v929, 0
        %v2574 = vsel %vm2573, %v929, 0
        %vm2575 = vcmp.gt.s32.totalorder %v930, 0
        %v2576 = vsel %vm2575, %v930, 0
        %vm2577 = vcmp.gt.s32.totalorder %v931, 0
        %v2578 = vsel %vm2577, %v931, 0
        %vm2579 = vcmp.gt.s32.totalorder %v932, 0
        %v2580 = vsel %vm2579, %v932, 0
        %vm2581 = vcmp.gt.s32.totalorder %v933, 0
        %v2582 = vsel %vm2581, %v933, 0
        %vm2583 = vcmp.gt.s32.totalorder %v934, 0
        %v2584 = vsel %vm2583, %v934, 0
        %vm2585 = vcmp.gt.s32.totalorder %v935, 0
        %v2586 = vsel %vm2585, %v935, 0
        %vm2587 = vcmp.gt.s32.totalorder %v936, 0
        %v2588 = vsel %vm2587, %v936, 0
        %vm2589 = vcmp.gt.s32.totalorder %v937, 0
        %v2590 = vsel %vm2589, %v937, 0
        %vm2591 = vcmp.gt.s32.totalorder %v938, 0
        %v2592 = vsel %vm2591, %v938, 0
        %vm2593 = vcmp.gt.s32.totalorder %v939, 0
        %v2594 = vsel %vm2593, %v939, 0
        %vm2595 = vcmp.gt.s32.totalorder %v940, 0
        %v2596 = vsel %vm2595, %v940, 0
        %vm2597 = vcmp.gt.s32.totalorder %v941, 0
        %v2598 = vsel %vm2597, %v941, 0
        %vm2599 = vcmp.gt.s32.totalorder %v942, 0
        %v2600 = vsel %vm2599, %v942, 0
        %v2601 = vand.u32 %v2538, 4294966784
        %v2602 = vand.u32 %v2540, 4294966784
        %v2603 = vand.u32 %v2542, 4294966784
        %v2604 = vand.u32 %v2544, 4294966784
        %v2605 = vand.u32 %v2546, 4294966784
        %v2606 = vand.u32 %v2548, 4294966784
        %v2607 = vand.u32 %v2550, 4294966784
        %v2608 = vand.u32 %v2552, 4294966784
        %v2609 = vand.u32 %v2554, 4294966784
        %v2610 = vand.u32 %v2556, 4294966784
        %v2611 = vand.u32 %v2558, 4294966784
        %v2612 = vand.u32 %v2560, 4294966784
        %v2613 = vand.u32 %v2562, 4294966784
        %v2614 = vand.u32 %v2564, 4294966784
        %v2615 = vand.u32 %v2566, 4294966784
        %v2616 = vand.u32 %v2568, 4294966784
        %v2617 = vand.u32 %v2570, 4294966784
        %v2618 = vand.u32 %v2572, 4294966784
        %v2619 = vand.u32 %v2574, 4294966784
        %v2620 = vand.u32 %v2576, 4294966784
        %v2621 = vand.u32 %v2578, 4294966784
        %v2622 = vand.u32 %v2580, 4294966784
        %v2623 = vand.u32 %v2582, 4294966784
        %v2624 = vand.u32 %v2584, 4294966784
        %v2625 = vand.u32 %v2586, 4294966784
        %v2626 = vand.u32 %v2588, 4294966784
        %v2627 = vand.u32 %v2590, 4294966784
        %v2628 = vand.u32 %v2592, 4294966784
        %v2629 = vand.u32 %v2594, 4294966784
        %v2630 = vand.u32 %v2596, 4294966784
        %v2631 = vand.u32 %v2598, 4294966784
        %v2632 = vand.u32 %v2600, 4294966784
        %v2633 = vor.u32 %v2601, %v305
        %v2634 = vor.u32 %v2602, %v306
        %v2635 = vor.u32 %v2603, %v307
        %v2636 = vor.u32 %v2604, %v308
        %v2637 = vor.u32 %v2605, %v305
        %v2638 = vor.u32 %v2606, %v306
        %v2639 = vor.u32 %v2607, %v307
        %v2640 = vor.u32 %v2608, %v308
        %v2641 = vor.u32 %v2609, %v305
        %v2642 = vor.u32 %v2610, %v306
        %v2643 = vor.u32 %v2611, %v307
        %v2644 = vor.u32 %v2612, %v308
        %v2645 = vor.u32 %v2613, %v305
        %v2646 = vor.u32 %v2614, %v306
        %v2647 = vor.u32 %v2615, %v307
        %v2648 = vor.u32 %v2616, %v308
        %v2649 = vor.u32 %v2617, %v305
        %v2650 = vor.u32 %v2618, %v306
        %v2651 = vor.u32 %v2619, %v307
        %v2652 = vor.u32 %v2620, %v308
        %v2653 = vor.u32 %v2621, %v305
        %v2654 = vor.u32 %v2622, %v306
        %v2655 = vor.u32 %v2623, %v307
        %v2656 = vor.u32 %v2624, %v308
        %v2657 = vor.u32 %v2625, %v305
        %v2658 = vor.u32 %v2626, %v306
        %v2659 = vor.u32 %v2627, %v307
        %v2660 = vor.u32 %v2628, %v308
        %v2661 = vor.u32 %v2629, %v305
        %v2662 = vor.u32 %v2630, %v306
        %v2663 = vor.u32 %v2631, %v307
        %v2664 = vor.u32 %v2632, %v308
        %vm2665 = vcmp.gt.s32.totalorder %v2633, %v2634
        %v2666 = vsel %vm2665, %v2633, %v2634
        %vm2667 = vcmp.gt.s32.totalorder %v2666, %v2635
        %v2668 = vsel %vm2667, %v2666, %v2635
        %vm2669 = vcmp.gt.s32.totalorder %v2668, %v2636
        %v2670 = vsel %vm2669, %v2668, %v2636
        %v2671 = vand.u32 %v2670, 65535
        %v2672 = vshra.s32 %v2670, 16
        %v2673 = vcvt.s32.f32 %v2671
        %v2674 = vcvt.s32.f32 %v2672
        %2675 = vmax.xlane.f32.xlu0 %v2674
        %v2676 = vpop.xlane.xlu0 %2675
        %vm2677 = vcmp.eq.f32.partialorder %v2674, %v2676
        %v2678 = vsel %vm2677, %v2673, -inf
        %2679 = vmax.xlane.f32.xlu0 %v2678
        %v2680 = vpop.xlane.xlu0 %2679
        %v2681 = vcvt.f32.s32 %v2680
        %v2682 = vcvt.f32.s32 %v2676
        %v2683 = vshll.u32 %v2682, 16
        %v2684 = vadd.s32 %v2683, %v2681
        %vm2685 = vcmp.gt.s32.totalorder %v2637, %v2638
        %v2686 = vsel %vm2685, %v2637, %v2638
        %vm2687 = vcmp.gt.s32.totalorder %v2686, %v2639
        %v2688 = vsel %vm2687, %v2686, %v2639
        %vm2689 = vcmp.gt.s32.totalorder %v2688, %v2640
        %v2690 = vsel %vm2689, %v2688, %v2640
        %v2691 = vand.u32 %v2690, 65535
        %v2692 = vshra.s32 %v2690, 16
        %v2693 = vcvt.s32.f32 %v2691
        %v2694 = vcvt.s32.f32 %v2692
        %2695 = vmax.xlane.f32.xlu0 %v2694
        %v2696 = vpop.xlane.xlu0 %2695
        %vm2697 = vcmp.eq.f32.partialorder %v2694, %v2696
        %v2698 = vsel %vm2697, %v2693, -inf
        %2699 = vmax.xlane.f32.xlu0 %v2698
        %v2700 = vpop.xlane.xlu0 %2699
        %v2701 = vcvt.f32.s32 %v2700
        %v2702 = vcvt.f32.s32 %v2696
        %v2703 = vshll.u32 %v2702, 16
        %v2704 = vadd.s32 %v2703, %v2701
        %vm2705 = vcmp.gt.s32.totalorder %v2641, %v2642
        %v2706 = vsel %vm2705, %v2641, %v2642
        %vm2707 = vcmp.gt.s32.totalorder %v2706, %v2643
        %v2708 = vsel %vm2707, %v2706, %v2643
        %vm2709 = vcmp.gt.s32.totalorder %v2708, %v2644
        %v2710 = vsel %vm2709, %v2708, %v2644
        %v2711 = vand.u32 %v2710, 65535
        %v2712 = vshra.s32 %v2710, 16
        %v2713 = vcvt.s32.f32 %v2711
        %v2714 = vcvt.s32.f32 %v2712
        %2715 = vmax.xlane.f32.xlu0 %v2714
        %v2716 = vpop.xlane.xlu0 %2715
        %vm2717 = vcmp.eq.f32.partialorder %v2714, %v2716
        %v2718 = vsel %vm2717, %v2713, -inf
        %2719 = vmax.xlane.f32.xlu0 %v2718
        %v2720 = vpop.xlane.xlu0 %2719
        %v2721 = vcvt.f32.s32 %v2720
        %v2722 = vcvt.f32.s32 %v2716
        %v2723 = vshll.u32 %v2722, 16
        %v2724 = vadd.s32 %v2723, %v2721
        %vm2725 = vcmp.gt.s32.totalorder %v2645, %v2646
        %v2726 = vsel %vm2725, %v2645, %v2646
        %vm2727 = vcmp.gt.s32.totalorder %v2726, %v2647
        %v2728 = vsel %vm2727, %v2726, %v2647
        %vm2729 = vcmp.gt.s32.totalorder %v2728, %v2648
        %v2730 = vsel %vm2729, %v2728, %v2648
        %v2731 = vand.u32 %v2730, 65535
        %v2732 = vshra.s32 %v2730, 16
        %v2733 = vcvt.s32.f32 %v2731
        %v2734 = vcvt.s32.f32 %v2732
        %2735 = vmax.xlane.f32.xlu0 %v2734
        %v2736 = vpop.xlane.xlu0 %2735
        %vm2737 = vcmp.eq.f32.partialorder %v2734, %v2736
        %v2738 = vsel %vm2737, %v2733, -inf
        %2739 = vmax.xlane.f32.xlu0 %v2738
        %v2740 = vpop.xlane.xlu0 %2739
        %v2741 = vcvt.f32.s32 %v2740
        %v2742 = vcvt.f32.s32 %v2736
        %v2743 = vshll.u32 %v2742, 16
        %v2744 = vadd.s32 %v2743, %v2741
        %vm2745 = vcmp.gt.s32.totalorder %v2649, %v2650
        %v2746 = vsel %vm2745, %v2649, %v2650
        %vm2747 = vcmp.gt.s32.totalorder %v2746, %v2651
        %v2748 = vsel %vm2747, %v2746, %v2651
        %vm2749 = vcmp.gt.s32.totalorder %v2748, %v2652
        %v2750 = vsel %vm2749, %v2748, %v2652
        %v2751 = vand.u32 %v2750, 65535
        %v2752 = vshra.s32 %v2750, 16
        %v2753 = vcvt.s32.f32 %v2751
        %v2754 = vcvt.s32.f32 %v2752
        %2755 = vmax.xlane.f32.xlu0 %v2754
        %v2756 = vpop.xlane.xlu0 %2755
        %vm2757 = vcmp.eq.f32.partialorder %v2754, %v2756
        %v2758 = vsel %vm2757, %v2753, -inf
        %2759 = vmax.xlane.f32.xlu0 %v2758
        %v2760 = vpop.xlane.xlu0 %2759
        %v2761 = vcvt.f32.s32 %v2760
        %v2762 = vcvt.f32.s32 %v2756
        %v2763 = vshll.u32 %v2762, 16
        %v2764 = vadd.s32 %v2763, %v2761
        %vm2765 = vcmp.gt.s32.totalorder %v2653, %v2654
        %v2766 = vsel %vm2765, %v2653, %v2654
        %vm2767 = vcmp.gt.s32.totalorder %v2766, %v2655
        %v2768 = vsel %vm2767, %v2766, %v2655
        %vm2769 = vcmp.gt.s32.totalorder %v2768, %v2656
        %v2770 = vsel %vm2769, %v2768, %v2656
        %v2771 = vand.u32 %v2770, 65535
        %v2772 = vshra.s32 %v2770, 16
        %v2773 = vcvt.s32.f32 %v2771
        %v2774 = vcvt.s32.f32 %v2772
        %2775 = vmax.xlane.f32.xlu0 %v2774
        %v2776 = vpop.xlane.xlu0 %2775
        %vm2777 = vcmp.eq.f32.partialorder %v2774, %v2776
        %v2778 = vsel %vm2777, %v2773, -inf
        %2779 = vmax.xlane.f32.xlu0 %v2778
        %v2780 = vpop.xlane.xlu0 %2779
        %v2781 = vcvt.f32.s32 %v2780
        %v2782 = vcvt.f32.s32 %v2776
        %v2783 = vshll.u32 %v2782, 16
        %v2784 = vadd.s32 %v2783, %v2781
        %vm2785 = vcmp.gt.s32.totalorder %v2657, %v2658
        %v2786 = vsel %vm2785, %v2657, %v2658
        %vm2787 = vcmp.gt.s32.totalorder %v2786, %v2659
        %v2788 = vsel %vm2787, %v2786, %v2659
        %vm2789 = vcmp.gt.s32.totalorder %v2788, %v2660
        %v2790 = vsel %vm2789, %v2788, %v2660
        %v2791 = vand.u32 %v2790, 65535
        %v2792 = vshra.s32 %v2790, 16
        %v2793 = vcvt.s32.f32 %v2791
        %v2794 = vcvt.s32.f32 %v2792
        %2795 = vmax.xlane.f32.xlu0 %v2794
        %v2796 = vpop.xlane.xlu0 %2795
        %vm2797 = vcmp.eq.f32.partialorder %v2794, %v2796
        %v2798 = vsel %vm2797, %v2793, -inf
        %2799 = vmax.xlane.f32.xlu0 %v2798
        %v2800 = vpop.xlane.xlu0 %2799
        %v2801 = vcvt.f32.s32 %v2800
        %v2802 = vcvt.f32.s32 %v2796
        %v2803 = vshll.u32 %v2802, 16
        %v2804 = vadd.s32 %v2803, %v2801
        %vm2805 = vcmp.gt.s32.totalorder %v2661, %v2662
        %v2806 = vsel %vm2805, %v2661, %v2662
        %vm2807 = vcmp.gt.s32.totalorder %v2806, %v2663
        %v2808 = vsel %vm2807, %v2806, %v2663
        %vm2809 = vcmp.gt.s32.totalorder %v2808, %v2664
        %v2810 = vsel %vm2809, %v2808, %v2664
        %v2811 = vand.u32 %v2810, 65535
        %v2812 = vshra.s32 %v2810, 16
        %v2813 = vcvt.s32.f32 %v2811
        %v2814 = vcvt.s32.f32 %v2812
        %2815 = vmax.xlane.f32.xlu0 %v2814
        %v2816 = vpop.xlane.xlu0 %2815
        %vm2817 = vcmp.eq.f32.partialorder %v2814, %v2816
        %v2818 = vsel %vm2817, %v2813, -inf
        %2819 = vmax.xlane.f32.xlu0 %v2818
        %v2820 = vpop.xlane.xlu0 %2819
        %v2821 = vcvt.f32.s32 %v2820
        %v2822 = vcvt.f32.s32 %v2816
        %v2823 = vshll.u32 %v2822, 16
        %v2824 = vadd.s32 %v2823, %v2821
        %vm2825 = vcmp.eq.s32.totalorder %v2633, %v2684
        %vm2826 = vcmp.eq.s32.totalorder %v2634, %v2684
        %vm2827 = vcmp.eq.s32.totalorder %v2635, %v2684
        %vm2828 = vcmp.eq.s32.totalorder %v2636, %v2684
        %vm2829 = vcmp.eq.s32.totalorder %v2637, %v2704
        %vm2830 = vcmp.eq.s32.totalorder %v2638, %v2704
        %vm2831 = vcmp.eq.s32.totalorder %v2639, %v2704
        %vm2832 = vcmp.eq.s32.totalorder %v2640, %v2704
        %vm2833 = vcmp.eq.s32.totalorder %v2641, %v2724
        %vm2834 = vcmp.eq.s32.totalorder %v2642, %v2724
        %vm2835 = vcmp.eq.s32.totalorder %v2643, %v2724
        %vm2836 = vcmp.eq.s32.totalorder %v2644, %v2724
        %vm2837 = vcmp.eq.s32.totalorder %v2645, %v2744
        %vm2838 = vcmp.eq.s32.totalorder %v2646, %v2744
        %vm2839 = vcmp.eq.s32.totalorder %v2647, %v2744
        %vm2840 = vcmp.eq.s32.totalorder %v2648, %v2744
        %vm2841 = vcmp.eq.s32.totalorder %v2649, %v2764
        %vm2842 = vcmp.eq.s32.totalorder %v2650, %v2764
        %vm2843 = vcmp.eq.s32.totalorder %v2651, %v2764
        %vm2844 = vcmp.eq.s32.totalorder %v2652, %v2764
        %vm2845 = vcmp.eq.s32.totalorder %v2653, %v2784
        %vm2846 = vcmp.eq.s32.totalorder %v2654, %v2784
        %vm2847 = vcmp.eq.s32.totalorder %v2655, %v2784
        %vm2848 = vcmp.eq.s32.totalorder %v2656, %v2784
        %vm2849 = vcmp.eq.s32.totalorder %v2657, %v2804
        %vm2850 = vcmp.eq.s32.totalorder %v2658, %v2804
        %vm2851 = vcmp.eq.s32.totalorder %v2659, %v2804
        %vm2852 = vcmp.eq.s32.totalorder %v2660, %v2804
        %vm2853 = vcmp.eq.s32.totalorder %v2661, %v2824
        %vm2854 = vcmp.eq.s32.totalorder %v2662, %v2824
        %vm2855 = vcmp.eq.s32.totalorder %v2663, %v2824
        %vm2856 = vcmp.eq.s32.totalorder %v2664, %v2824
        %v2857 = vsel %vm2825, 4294967295, %v2633
        %v2858 = vsel %vm2826, 4294967295, %v2634
        %v2859 = vsel %vm2827, 4294967295, %v2635
        %v2860 = vsel %vm2828, 4294967295, %v2636
        %v2861 = vsel %vm2829, 4294967295, %v2637
        %v2862 = vsel %vm2830, 4294967295, %v2638
        %v2863 = vsel %vm2831, 4294967295, %v2639
        %v2864 = vsel %vm2832, 4294967295, %v2640
        %v2865 = vsel %vm2833, 4294967295, %v2641
        %v2866 = vsel %vm2834, 4294967295, %v2642
        %v2867 = vsel %vm2835, 4294967295, %v2643
        %v2868 = vsel %vm2836, 4294967295, %v2644
        %v2869 = vsel %vm2837, 4294967295, %v2645
        %v2870 = vsel %vm2838, 4294967295, %v2646
        %v2871 = vsel %vm2839, 4294967295, %v2647
        %v2872 = vsel %vm2840, 4294967295, %v2648
        %v2873 = vsel %vm2841, 4294967295, %v2649
        %v2874 = vsel %vm2842, 4294967295, %v2650
        %v2875 = vsel %vm2843, 4294967295, %v2651
        %v2876 = vsel %vm2844, 4294967295, %v2652
        %v2877 = vsel %vm2845, 4294967295, %v2653
        %v2878 = vsel %vm2846, 4294967295, %v2654
        %v2879 = vsel %vm2847, 4294967295, %v2655
        %v2880 = vsel %vm2848, 4294967295, %v2656
        %v2881 = vsel %vm2849, 4294967295, %v2657
        %v2882 = vsel %vm2850, 4294967295, %v2658
        %v2883 = vsel %vm2851, 4294967295, %v2659
        %v2884 = vsel %vm2852, 4294967295, %v2660
        %v2885 = vsel %vm2853, 4294967295, %v2661
        %v2886 = vsel %vm2854, 4294967295, %v2662
        %v2887 = vsel %vm2855, 4294967295, %v2663
        %v2888 = vsel %vm2856, 4294967295, %v2664
        %vm2889 = vcmp.gt.s32.totalorder %v2857, %v2858
        %v2890 = vsel %vm2889, %v2857, %v2858
        %vm2891 = vcmp.gt.s32.totalorder %v2890, %v2859
        %v2892 = vsel %vm2891, %v2890, %v2859
        %vm2893 = vcmp.gt.s32.totalorder %v2892, %v2860
        %v2894 = vsel %vm2893, %v2892, %v2860
        %v2895 = vand.u32 %v2894, 65535
        %v2896 = vshra.s32 %v2894, 16
        %v2897 = vcvt.s32.f32 %v2895
        %v2898 = vcvt.s32.f32 %v2896
        %2899 = vmax.xlane.f32.xlu0 %v2898
        %v2900 = vpop.xlane.xlu0 %2899
        %vm2901 = vcmp.eq.f32.partialorder %v2898, %v2900
        %v2902 = vsel %vm2901, %v2897, -inf
        %2903 = vmax.xlane.f32.xlu0 %v2902
        %v2904 = vpop.xlane.xlu0 %2903
        %v2905 = vcvt.f32.s32 %v2904
        %v2906 = vcvt.f32.s32 %v2900
        %v2907 = vshll.u32 %v2906, 16
        %v2908 = vadd.s32 %v2907, %v2905
        %vm2909 = vcmp.gt.s32.totalorder %v2861, %v2862
        %v2910 = vsel %vm2909, %v2861, %v2862
        %vm2911 = vcmp.gt.s32.totalorder %v2910, %v2863
        %v2912 = vsel %vm2911, %v2910, %v2863
        %vm2913 = vcmp.gt.s32.totalorder %v2912, %v2864
        %v2914 = vsel %vm2913, %v2912, %v2864
        %v2915 = vand.u32 %v2914, 65535
        %v2916 = vshra.s32 %v2914, 16
        %v2917 = vcvt.s32.f32 %v2915
        %v2918 = vcvt.s32.f32 %v2916
        %2919 = vmax.xlane.f32.xlu0 %v2918
        %v2920 = vpop.xlane.xlu0 %2919
        %vm2921 = vcmp.eq.f32.partialorder %v2918, %v2920
        %v2922 = vsel %vm2921, %v2917, -inf
        %2923 = vmax.xlane.f32.xlu0 %v2922
        %v2924 = vpop.xlane.xlu0 %2923
        %v2925 = vcvt.f32.s32 %v2924
        %v2926 = vcvt.f32.s32 %v2920
        %v2927 = vshll.u32 %v2926, 16
        %v2928 = vadd.s32 %v2927, %v2925
        %vm2929 = vcmp.gt.s32.totalorder %v2865, %v2866
        %v2930 = vsel %vm2929, %v2865, %v2866
        %vm2931 = vcmp.gt.s32.totalorder %v2930, %v2867
        %v2932 = vsel %vm2931, %v2930, %v2867
        %vm2933 = vcmp.gt.s32.totalorder %v2932, %v2868
        %v2934 = vsel %vm2933, %v2932, %v2868
        %v2935 = vand.u32 %v2934, 65535
        %v2936 = vshra.s32 %v2934, 16
        %v2937 = vcvt.s32.f32 %v2935
        %v2938 = vcvt.s32.f32 %v2936
        %2939 = vmax.xlane.f32.xlu0 %v2938
        %v2940 = vpop.xlane.xlu0 %2939
        %vm2941 = vcmp.eq.f32.partialorder %v2938, %v2940
        %v2942 = vsel %vm2941, %v2937, -inf
        %2943 = vmax.xlane.f32.xlu0 %v2942
        %v2944 = vpop.xlane.xlu0 %2943
        %v2945 = vcvt.f32.s32 %v2944
        %v2946 = vcvt.f32.s32 %v2940
        %v2947 = vshll.u32 %v2946, 16
        %v2948 = vadd.s32 %v2947, %v2945
        %vm2949 = vcmp.gt.s32.totalorder %v2869, %v2870
        %v2950 = vsel %vm2949, %v2869, %v2870
        %vm2951 = vcmp.gt.s32.totalorder %v2950, %v2871
        %v2952 = vsel %vm2951, %v2950, %v2871
        %vm2953 = vcmp.gt.s32.totalorder %v2952, %v2872
        %v2954 = vsel %vm2953, %v2952, %v2872
        %v2955 = vand.u32 %v2954, 65535
        %v2956 = vshra.s32 %v2954, 16
        %v2957 = vcvt.s32.f32 %v2955
        %v2958 = vcvt.s32.f32 %v2956
        %2959 = vmax.xlane.f32.xlu0 %v2958
        %v2960 = vpop.xlane.xlu0 %2959
        %vm2961 = vcmp.eq.f32.partialorder %v2958, %v2960
        %v2962 = vsel %vm2961, %v2957, -inf
        %2963 = vmax.xlane.f32.xlu0 %v2962
        %v2964 = vpop.xlane.xlu0 %2963
        %v2965 = vcvt.f32.s32 %v2964
        %v2966 = vcvt.f32.s32 %v2960
        %v2967 = vshll.u32 %v2966, 16
        %v2968 = vadd.s32 %v2967, %v2965
        %vm2969 = vcmp.gt.s32.totalorder %v2873, %v2874
        %v2970 = vsel %vm2969, %v2873, %v2874
        %vm2971 = vcmp.gt.s32.totalorder %v2970, %v2875
        %v2972 = vsel %vm2971, %v2970, %v2875
        %vm2973 = vcmp.gt.s32.totalorder %v2972, %v2876
        %v2974 = vsel %vm2973, %v2972, %v2876
        %v2975 = vand.u32 %v2974, 65535
        %v2976 = vshra.s32 %v2974, 16
        %v2977 = vcvt.s32.f32 %v2975
        %v2978 = vcvt.s32.f32 %v2976
        %2979 = vmax.xlane.f32.xlu0 %v2978
        %v2980 = vpop.xlane.xlu0 %2979
        %vm2981 = vcmp.eq.f32.partialorder %v2978, %v2980
        %v2982 = vsel %vm2981, %v2977, -inf
        %2983 = vmax.xlane.f32.xlu0 %v2982
        %v2984 = vpop.xlane.xlu0 %2983
        %v2985 = vcvt.f32.s32 %v2984
        %v2986 = vcvt.f32.s32 %v2980
        %v2987 = vshll.u32 %v2986, 16
        %v2988 = vadd.s32 %v2987, %v2985
        %vm2989 = vcmp.gt.s32.totalorder %v2877, %v2878
        %v2990 = vsel %vm2989, %v2877, %v2878
        %vm2991 = vcmp.gt.s32.totalorder %v2990, %v2879
        %v2992 = vsel %vm2991, %v2990, %v2879
        %vm2993 = vcmp.gt.s32.totalorder %v2992, %v2880
        %v2994 = vsel %vm2993, %v2992, %v2880
        %v2995 = vand.u32 %v2994, 65535
        %v2996 = vshra.s32 %v2994, 16
        %v2997 = vcvt.s32.f32 %v2995
        %v2998 = vcvt.s32.f32 %v2996
        %2999 = vmax.xlane.f32.xlu0 %v2998
        %v3000 = vpop.xlane.xlu0 %2999
        %vm3001 = vcmp.eq.f32.partialorder %v2998, %v3000
        %v3002 = vsel %vm3001, %v2997, -inf
        %3003 = vmax.xlane.f32.xlu0 %v3002
        %v3004 = vpop.xlane.xlu0 %3003
        %v3005 = vcvt.f32.s32 %v3004
        %v3006 = vcvt.f32.s32 %v3000
        %v3007 = vshll.u32 %v3006, 16
        %v3008 = vadd.s32 %v3007, %v3005
        %vm3009 = vcmp.gt.s32.totalorder %v2881, %v2882
        %v3010 = vsel %vm3009, %v2881, %v2882
        %vm3011 = vcmp.gt.s32.totalorder %v3010, %v2883
        %v3012 = vsel %vm3011, %v3010, %v2883
        %vm3013 = vcmp.gt.s32.totalorder %v3012, %v2884
        %v3014 = vsel %vm3013, %v3012, %v2884
        %v3015 = vand.u32 %v3014, 65535
        %v3016 = vshra.s32 %v3014, 16
        %v3017 = vcvt.s32.f32 %v3015
        %v3018 = vcvt.s32.f32 %v3016
        %3019 = vmax.xlane.f32.xlu0 %v3018
        %v3020 = vpop.xlane.xlu0 %3019
        %vm3021 = vcmp.eq.f32.partialorder %v3018, %v3020
        %v3022 = vsel %vm3021, %v3017, -inf
        %3023 = vmax.xlane.f32.xlu0 %v3022
        %v3024 = vpop.xlane.xlu0 %3023
        %v3025 = vcvt.f32.s32 %v3024
        %v3026 = vcvt.f32.s32 %v3020
        %v3027 = vshll.u32 %v3026, 16
        %v3028 = vadd.s32 %v3027, %v3025
        %vm3029 = vcmp.gt.s32.totalorder %v2885, %v2886
        %v3030 = vsel %vm3029, %v2885, %v2886
        %vm3031 = vcmp.gt.s32.totalorder %v3030, %v2887
        %v3032 = vsel %vm3031, %v3030, %v2887
        %vm3033 = vcmp.gt.s32.totalorder %v3032, %v2888
        %v3034 = vsel %vm3033, %v3032, %v2888
        %v3035 = vand.u32 %v3034, 65535
        %v3036 = vshra.s32 %v3034, 16
        %v3037 = vcvt.s32.f32 %v3035
        %v3038 = vcvt.s32.f32 %v3036
        %3039 = vmax.xlane.f32.xlu0 %v3038
        %v3040 = vpop.xlane.xlu0 %3039
        %vm3041 = vcmp.eq.f32.partialorder %v3038, %v3040
        %v3042 = vsel %vm3041, %v3037, -inf
        %3043 = vmax.xlane.f32.xlu0 %v3042
        %v3044 = vpop.xlane.xlu0 %3043
        %v3045 = vcvt.f32.s32 %v3044
        %v3046 = vcvt.f32.s32 %v3040
        %v3047 = vshll.u32 %v3046, 16
        %v3048 = vadd.s32 %v3047, %v3045
        %vm3049 = vcmp.eq.s32.totalorder %v2857, %v2908
        %vm3050 = vcmp.eq.s32.totalorder %v2858, %v2908
        %vm3051 = vcmp.eq.s32.totalorder %v2859, %v2908
        %vm3052 = vcmp.eq.s32.totalorder %v2860, %v2908
        %vm3053 = vcmp.eq.s32.totalorder %v2861, %v2928
        %vm3054 = vcmp.eq.s32.totalorder %v2862, %v2928
        %vm3055 = vcmp.eq.s32.totalorder %v2863, %v2928
        %vm3056 = vcmp.eq.s32.totalorder %v2864, %v2928
        %vm3057 = vcmp.eq.s32.totalorder %v2865, %v2948
        %vm3058 = vcmp.eq.s32.totalorder %v2866, %v2948
        %vm3059 = vcmp.eq.s32.totalorder %v2867, %v2948
        %vm3060 = vcmp.eq.s32.totalorder %v2868, %v2948
        %vm3061 = vcmp.eq.s32.totalorder %v2869, %v2968
        %vm3062 = vcmp.eq.s32.totalorder %v2870, %v2968
        %vm3063 = vcmp.eq.s32.totalorder %v2871, %v2968
        %vm3064 = vcmp.eq.s32.totalorder %v2872, %v2968
        %vm3065 = vcmp.eq.s32.totalorder %v2873, %v2988
        %vm3066 = vcmp.eq.s32.totalorder %v2874, %v2988
        %vm3067 = vcmp.eq.s32.totalorder %v2875, %v2988
        %vm3068 = vcmp.eq.s32.totalorder %v2876, %v2988
        %vm3069 = vcmp.eq.s32.totalorder %v2877, %v3008
        %vm3070 = vcmp.eq.s32.totalorder %v2878, %v3008
        %vm3071 = vcmp.eq.s32.totalorder %v2879, %v3008
        %vm3072 = vcmp.eq.s32.totalorder %v2880, %v3008
        %vm3073 = vcmp.eq.s32.totalorder %v2881, %v3028
        %vm3074 = vcmp.eq.s32.totalorder %v2882, %v3028
        %vm3075 = vcmp.eq.s32.totalorder %v2883, %v3028
        %vm3076 = vcmp.eq.s32.totalorder %v2884, %v3028
        %vm3077 = vcmp.eq.s32.totalorder %v2885, %v3048
        %vm3078 = vcmp.eq.s32.totalorder %v2886, %v3048
        %vm3079 = vcmp.eq.s32.totalorder %v2887, %v3048
        %vm3080 = vcmp.eq.s32.totalorder %v2888, %v3048
        %v3081 = vsel %vm3049, 4294967295, %v2857
        %v3082 = vsel %vm3050, 4294967295, %v2858
        %v3083 = vsel %vm3051, 4294967295, %v2859
        %v3084 = vsel %vm3052, 4294967295, %v2860
        %v3085 = vsel %vm3053, 4294967295, %v2861
        %v3086 = vsel %vm3054, 4294967295, %v2862
        %v3087 = vsel %vm3055, 4294967295, %v2863
        %v3088 = vsel %vm3056, 4294967295, %v2864
        %v3089 = vsel %vm3057, 4294967295, %v2865
        %v3090 = vsel %vm3058, 4294967295, %v2866
        %v3091 = vsel %vm3059, 4294967295, %v2867
        %v3092 = vsel %vm3060, 4294967295, %v2868
        %v3093 = vsel %vm3061, 4294967295, %v2869
        %v3094 = vsel %vm3062, 4294967295, %v2870
        %v3095 = vsel %vm3063, 4294967295, %v2871
        %v3096 = vsel %vm3064, 4294967295, %v2872
        %v3097 = vsel %vm3065, 4294967295, %v2873
        %v3098 = vsel %vm3066, 4294967295, %v2874
        %v3099 = vsel %vm3067, 4294967295, %v2875
        %v3100 = vsel %vm3068, 4294967295, %v2876
        %v3101 = vsel %vm3069, 4294967295, %v2877
        %v3102 = vsel %vm3070, 4294967295, %v2878
        %v3103 = vsel %vm3071, 4294967295, %v2879
        %v3104 = vsel %vm3072, 4294967295, %v2880
        %v3105 = vsel %vm3073, 4294967295, %v2881
        %v3106 = vsel %vm3074, 4294967295, %v2882
        %v3107 = vsel %vm3075, 4294967295, %v2883
        %v3108 = vsel %vm3076, 4294967295, %v2884
        %v3109 = vsel %vm3077, 4294967295, %v2885
        %v3110 = vsel %vm3078, 4294967295, %v2886
        %v3111 = vsel %vm3079, 4294967295, %v2887
        %v3112 = vsel %vm3080, 4294967295, %v2888
        %vm3113 = vcmp.gt.s32.totalorder %v3081, %v3082
        %v3114 = vsel %vm3113, %v3081, %v3082
        %vm3115 = vcmp.gt.s32.totalorder %v3114, %v3083
        %v3116 = vsel %vm3115, %v3114, %v3083
        %vm3117 = vcmp.gt.s32.totalorder %v3116, %v3084
        %v3118 = vsel %vm3117, %v3116, %v3084
        %v3119 = vand.u32 %v3118, 65535
        %v3120 = vshra.s32 %v3118, 16
        %v3121 = vcvt.s32.f32 %v3119
        %v3122 = vcvt.s32.f32 %v3120
        %3123 = vmax.xlane.f32.xlu0 %v3122
        %v3124 = vpop.xlane.xlu0 %3123
        %vm3125 = vcmp.eq.f32.partialorder %v3122, %v3124
        %v3126 = vsel %vm3125, %v3121, -inf
        %3127 = vmax.xlane.f32.xlu0 %v3126
        %v3128 = vpop.xlane.xlu0 %3127
        %v3129 = vcvt.f32.s32 %v3128
        %v3130 = vcvt.f32.s32 %v3124
        %v3131 = vshll.u32 %v3130, 16
        %v3132 = vadd.s32 %v3131, %v3129
        %vm3133 = vcmp.gt.s32.totalorder %v3085, %v3086
        %v3134 = vsel %vm3133, %v3085, %v3086
        %vm3135 = vcmp.gt.s32.totalorder %v3134, %v3087
        %v3136 = vsel %vm3135, %v3134, %v3087
        %vm3137 = vcmp.gt.s32.totalorder %v3136, %v3088
        %v3138 = vsel %vm3137, %v3136, %v3088
        %v3139 = vand.u32 %v3138, 65535
        %v3140 = vshra.s32 %v3138, 16
        %v3141 = vcvt.s32.f32 %v3139
        %v3142 = vcvt.s32.f32 %v3140
        %3143 = vmax.xlane.f32.xlu0 %v3142
        %v3144 = vpop.xlane.xlu0 %3143
        %vm3145 = vcmp.eq.f32.partialorder %v3142, %v3144
        %v3146 = vsel %vm3145, %v3141, -inf
        %3147 = vmax.xlane.f32.xlu0 %v3146
        %v3148 = vpop.xlane.xlu0 %3147
        %v3149 = vcvt.f32.s32 %v3148
        %v3150 = vcvt.f32.s32 %v3144
        %v3151 = vshll.u32 %v3150, 16
        %v3152 = vadd.s32 %v3151, %v3149
        %vm3153 = vcmp.gt.s32.totalorder %v3089, %v3090
        %v3154 = vsel %vm3153, %v3089, %v3090
        %vm3155 = vcmp.gt.s32.totalorder %v3154, %v3091
        %v3156 = vsel %vm3155, %v3154, %v3091
        %vm3157 = vcmp.gt.s32.totalorder %v3156, %v3092
        %v3158 = vsel %vm3157, %v3156, %v3092
        %v3159 = vand.u32 %v3158, 65535
        %v3160 = vshra.s32 %v3158, 16
        %v3161 = vcvt.s32.f32 %v3159
        %v3162 = vcvt.s32.f32 %v3160
        %3163 = vmax.xlane.f32.xlu0 %v3162
        %v3164 = vpop.xlane.xlu0 %3163
        %vm3165 = vcmp.eq.f32.partialorder %v3162, %v3164
        %v3166 = vsel %vm3165, %v3161, -inf
        %3167 = vmax.xlane.f32.xlu0 %v3166
        %v3168 = vpop.xlane.xlu0 %3167
        %v3169 = vcvt.f32.s32 %v3168
        %v3170 = vcvt.f32.s32 %v3164
        %v3171 = vshll.u32 %v3170, 16
        %v3172 = vadd.s32 %v3171, %v3169
        %vm3173 = vcmp.gt.s32.totalorder %v3093, %v3094
        %v3174 = vsel %vm3173, %v3093, %v3094
        %vm3175 = vcmp.gt.s32.totalorder %v3174, %v3095
        %v3176 = vsel %vm3175, %v3174, %v3095
        %vm3177 = vcmp.gt.s32.totalorder %v3176, %v3096
        %v3178 = vsel %vm3177, %v3176, %v3096
        %v3179 = vand.u32 %v3178, 65535
        %v3180 = vshra.s32 %v3178, 16
        %v3181 = vcvt.s32.f32 %v3179
        %v3182 = vcvt.s32.f32 %v3180
        %3183 = vmax.xlane.f32.xlu0 %v3182
        %v3184 = vpop.xlane.xlu0 %3183
        %vm3185 = vcmp.eq.f32.partialorder %v3182, %v3184
        %v3186 = vsel %vm3185, %v3181, -inf
        %3187 = vmax.xlane.f32.xlu0 %v3186
        %v3188 = vpop.xlane.xlu0 %3187
        %v3189 = vcvt.f32.s32 %v3188
        %v3190 = vcvt.f32.s32 %v3184
        %v3191 = vshll.u32 %v3190, 16
        %v3192 = vadd.s32 %v3191, %v3189
        %vm3193 = vcmp.gt.s32.totalorder %v3097, %v3098
        %v3194 = vsel %vm3193, %v3097, %v3098
        %vm3195 = vcmp.gt.s32.totalorder %v3194, %v3099
        %v3196 = vsel %vm3195, %v3194, %v3099
        %vm3197 = vcmp.gt.s32.totalorder %v3196, %v3100
        %v3198 = vsel %vm3197, %v3196, %v3100
        %v3199 = vand.u32 %v3198, 65535
        %v3200 = vshra.s32 %v3198, 16
        %v3201 = vcvt.s32.f32 %v3199
        %v3202 = vcvt.s32.f32 %v3200
        %3203 = vmax.xlane.f32.xlu0 %v3202
        %v3204 = vpop.xlane.xlu0 %3203
        %vm3205 = vcmp.eq.f32.partialorder %v3202, %v3204
        %v3206 = vsel %vm3205, %v3201, -inf
        %3207 = vmax.xlane.f32.xlu0 %v3206
        %v3208 = vpop.xlane.xlu0 %3207
        %v3209 = vcvt.f32.s32 %v3208
        %v3210 = vcvt.f32.s32 %v3204
        %v3211 = vshll.u32 %v3210, 16
        %v3212 = vadd.s32 %v3211, %v3209
        %vm3213 = vcmp.gt.s32.totalorder %v3101, %v3102
        %v3214 = vsel %vm3213, %v3101, %v3102
        %vm3215 = vcmp.gt.s32.totalorder %v3214, %v3103
        %v3216 = vsel %vm3215, %v3214, %v3103
        %vm3217 = vcmp.gt.s32.totalorder %v3216, %v3104
        %v3218 = vsel %vm3217, %v3216, %v3104
        %v3219 = vand.u32 %v3218, 65535
        %v3220 = vshra.s32 %v3218, 16
        %v3221 = vcvt.s32.f32 %v3219
        %v3222 = vcvt.s32.f32 %v3220
        %3223 = vmax.xlane.f32.xlu0 %v3222
        %v3224 = vpop.xlane.xlu0 %3223
        %vm3225 = vcmp.eq.f32.partialorder %v3222, %v3224
        %v3226 = vsel %vm3225, %v3221, -inf
        %3227 = vmax.xlane.f32.xlu0 %v3226
        %v3228 = vpop.xlane.xlu0 %3227
        %v3229 = vcvt.f32.s32 %v3228
        %v3230 = vcvt.f32.s32 %v3224
        %v3231 = vshll.u32 %v3230, 16
        %v3232 = vadd.s32 %v3231, %v3229
        %vm3233 = vcmp.gt.s32.totalorder %v3105, %v3106
        %v3234 = vsel %vm3233, %v3105, %v3106
        %vm3235 = vcmp.gt.s32.totalorder %v3234, %v3107
        %v3236 = vsel %vm3235, %v3234, %v3107
        %vm3237 = vcmp.gt.s32.totalorder %v3236, %v3108
        %v3238 = vsel %vm3237, %v3236, %v3108
        %v3239 = vand.u32 %v3238, 65535
        %v3240 = vshra.s32 %v3238, 16
        %v3241 = vcvt.s32.f32 %v3239
        %v3242 = vcvt.s32.f32 %v3240
        %3243 = vmax.xlane.f32.xlu0 %v3242
        %v3244 = vpop.xlane.xlu0 %3243
        %vm3245 = vcmp.eq.f32.partialorder %v3242, %v3244
        %v3246 = vsel %vm3245, %v3241, -inf
        %3247 = vmax.xlane.f32.xlu0 %v3246
        %v3248 = vpop.xlane.xlu0 %3247
        %v3249 = vcvt.f32.s32 %v3248
        %v3250 = vcvt.f32.s32 %v3244
        %v3251 = vshll.u32 %v3250, 16
        %v3252 = vadd.s32 %v3251, %v3249
        %vm3253 = vcmp.gt.s32.totalorder %v3109, %v3110
        %v3254 = vsel %vm3253, %v3109, %v3110
        %vm3255 = vcmp.gt.s32.totalorder %v3254, %v3111
        %v3256 = vsel %vm3255, %v3254, %v3111
        %vm3257 = vcmp.gt.s32.totalorder %v3256, %v3112
        %v3258 = vsel %vm3257, %v3256, %v3112
        %v3259 = vand.u32 %v3258, 65535
        %v3260 = vshra.s32 %v3258, 16
        %v3261 = vcvt.s32.f32 %v3259
        %v3262 = vcvt.s32.f32 %v3260
        %3263 = vmax.xlane.f32.xlu0 %v3262
        %v3264 = vpop.xlane.xlu0 %3263
        %vm3265 = vcmp.eq.f32.partialorder %v3262, %v3264
        %v3266 = vsel %vm3265, %v3261, -inf
        %3267 = vmax.xlane.f32.xlu0 %v3266
        %v3268 = vpop.xlane.xlu0 %3267
        %v3269 = vcvt.f32.s32 %v3268
        %v3270 = vcvt.f32.s32 %v3264
        %v3271 = vshll.u32 %v3270, 16
        %v3272 = vadd.s32 %v3271, %v3269
        %vm3273 = vcmp.eq.s32.totalorder %v3081, %v3132
        %vm3274 = vcmp.eq.s32.totalorder %v3082, %v3132
        %vm3275 = vcmp.eq.s32.totalorder %v3083, %v3132
        %vm3276 = vcmp.eq.s32.totalorder %v3084, %v3132
        %vm3277 = vcmp.eq.s32.totalorder %v3085, %v3152
        %vm3278 = vcmp.eq.s32.totalorder %v3086, %v3152
        %vm3279 = vcmp.eq.s32.totalorder %v3087, %v3152
        %vm3280 = vcmp.eq.s32.totalorder %v3088, %v3152
        %vm3281 = vcmp.eq.s32.totalorder %v3089, %v3172
        %vm3282 = vcmp.eq.s32.totalorder %v3090, %v3172
        %vm3283 = vcmp.eq.s32.totalorder %v3091, %v3172
        %vm3284 = vcmp.eq.s32.totalorder %v3092, %v3172
        %vm3285 = vcmp.eq.s32.totalorder %v3093, %v3192
        %vm3286 = vcmp.eq.s32.totalorder %v3094, %v3192
        %vm3287 = vcmp.eq.s32.totalorder %v3095, %v3192
        %vm3288 = vcmp.eq.s32.totalorder %v3096, %v3192
        %vm3289 = vcmp.eq.s32.totalorder %v3097, %v3212
        %vm3290 = vcmp.eq.s32.totalorder %v3098, %v3212
        %vm3291 = vcmp.eq.s32.totalorder %v3099, %v3212
        %vm3292 = vcmp.eq.s32.totalorder %v3100, %v3212
        %vm3293 = vcmp.eq.s32.totalorder %v3101, %v3232
        %vm3294 = vcmp.eq.s32.totalorder %v3102, %v3232
        %vm3295 = vcmp.eq.s32.totalorder %v3103, %v3232
        %vm3296 = vcmp.eq.s32.totalorder %v3104, %v3232
        %vm3297 = vcmp.eq.s32.totalorder %v3105, %v3252
        %vm3298 = vcmp.eq.s32.totalorder %v3106, %v3252
        %vm3299 = vcmp.eq.s32.totalorder %v3107, %v3252
        %vm3300 = vcmp.eq.s32.totalorder %v3108, %v3252
        %vm3301 = vcmp.eq.s32.totalorder %v3109, %v3272
        %vm3302 = vcmp.eq.s32.totalorder %v3110, %v3272
        %vm3303 = vcmp.eq.s32.totalorder %v3111, %v3272
        %vm3304 = vcmp.eq.s32.totalorder %v3112, %v3272
        %v3305 = vsel %vm3273, 4294967295, %v3081
        %v3306 = vsel %vm3274, 4294967295, %v3082
        %v3307 = vsel %vm3275, 4294967295, %v3083
        %v3308 = vsel %vm3276, 4294967295, %v3084
        %v3309 = vsel %vm3277, 4294967295, %v3085
        %v3310 = vsel %vm3278, 4294967295, %v3086
        %v3311 = vsel %vm3279, 4294967295, %v3087
        %v3312 = vsel %vm3280, 4294967295, %v3088
        %v3313 = vsel %vm3281, 4294967295, %v3089
        %v3314 = vsel %vm3282, 4294967295, %v3090
        %v3315 = vsel %vm3283, 4294967295, %v3091
        %v3316 = vsel %vm3284, 4294967295, %v3092
        %v3317 = vsel %vm3285, 4294967295, %v3093
        %v3318 = vsel %vm3286, 4294967295, %v3094
        %v3319 = vsel %vm3287, 4294967295, %v3095
        %v3320 = vsel %vm3288, 4294967295, %v3096
        %v3321 = vsel %vm3289, 4294967295, %v3097
        %v3322 = vsel %vm3290, 4294967295, %v3098
        %v3323 = vsel %vm3291, 4294967295, %v3099
        %v3324 = vsel %vm3292, 4294967295, %v3100
        %v3325 = vsel %vm3293, 4294967295, %v3101
        %v3326 = vsel %vm3294, 4294967295, %v3102
        %v3327 = vsel %vm3295, 4294967295, %v3103
        %v3328 = vsel %vm3296, 4294967295, %v3104
        %v3329 = vsel %vm3297, 4294967295, %v3105
        %v3330 = vsel %vm3298, 4294967295, %v3106
        %v3331 = vsel %vm3299, 4294967295, %v3107
        %v3332 = vsel %vm3300, 4294967295, %v3108
        %v3333 = vsel %vm3301, 4294967295, %v3109
        %v3334 = vsel %vm3302, 4294967295, %v3110
        %v3335 = vsel %vm3303, 4294967295, %v3111
        %v3336 = vsel %vm3304, 4294967295, %v3112
        %vm3337 = vcmp.gt.s32.totalorder %v3305, %v3306
        %v3338 = vsel %vm3337, %v3305, %v3306
        %vm3339 = vcmp.gt.s32.totalorder %v3338, %v3307
        %v3340 = vsel %vm3339, %v3338, %v3307
        %vm3341 = vcmp.gt.s32.totalorder %v3340, %v3308
        %v3342 = vsel %vm3341, %v3340, %v3308
        %v3343 = vand.u32 %v3342, 65535
        %v3344 = vshra.s32 %v3342, 16
        %v3345 = vcvt.s32.f32 %v3343
        %v3346 = vcvt.s32.f32 %v3344
        %3347 = vmax.xlane.f32.xlu0 %v3346
        %v3348 = vpop.xlane.xlu0 %3347
        %vm3349 = vcmp.eq.f32.partialorder %v3346, %v3348
        %v3350 = vsel %vm3349, %v3345, -inf
        %3351 = vmax.xlane.f32.xlu0 %v3350
        %v3352 = vpop.xlane.xlu0 %3351
        %v3353 = vcvt.f32.s32 %v3352
        %v3354 = vcvt.f32.s32 %v3348
        %v3355 = vshll.u32 %v3354, 16
        %v3356 = vadd.s32 %v3355, %v3353
        %vm3357 = vcmp.gt.s32.totalorder %v3309, %v3310
        %v3358 = vsel %vm3357, %v3309, %v3310
        %vm3359 = vcmp.gt.s32.totalorder %v3358, %v3311
        %v3360 = vsel %vm3359, %v3358, %v3311
        %vm3361 = vcmp.gt.s32.totalorder %v3360, %v3312
        %v3362 = vsel %vm3361, %v3360, %v3312
        %v3363 = vand.u32 %v3362, 65535
        %v3364 = vshra.s32 %v3362, 16
        %v3365 = vcvt.s32.f32 %v3363
        %v3366 = vcvt.s32.f32 %v3364
        %3367 = vmax.xlane.f32.xlu0 %v3366
        %v3368 = vpop.xlane.xlu0 %3367
        %vm3369 = vcmp.eq.f32.partialorder %v3366, %v3368
        %v3370 = vsel %vm3369, %v3365, -inf
        %3371 = vmax.xlane.f32.xlu0 %v3370
        %v3372 = vpop.xlane.xlu0 %3371
        %v3373 = vcvt.f32.s32 %v3372
        %v3374 = vcvt.f32.s32 %v3368
        %v3375 = vshll.u32 %v3374, 16
        %v3376 = vadd.s32 %v3375, %v3373
        %vm3377 = vcmp.gt.s32.totalorder %v3313, %v3314
        %v3378 = vsel %vm3377, %v3313, %v3314
        %vm3379 = vcmp.gt.s32.totalorder %v3378, %v3315
        %v3380 = vsel %vm3379, %v3378, %v3315
        %vm3381 = vcmp.gt.s32.totalorder %v3380, %v3316
        %v3382 = vsel %vm3381, %v3380, %v3316
        %v3383 = vand.u32 %v3382, 65535
        %v3384 = vshra.s32 %v3382, 16
        %v3385 = vcvt.s32.f32 %v3383
        %v3386 = vcvt.s32.f32 %v3384
        %3387 = vmax.xlane.f32.xlu0 %v3386
        %v3388 = vpop.xlane.xlu0 %3387
        %vm3389 = vcmp.eq.f32.partialorder %v3386, %v3388
        %v3390 = vsel %vm3389, %v3385, -inf
        %3391 = vmax.xlane.f32.xlu0 %v3390
        %v3392 = vpop.xlane.xlu0 %3391
        %v3393 = vcvt.f32.s32 %v3392
        %v3394 = vcvt.f32.s32 %v3388
        %v3395 = vshll.u32 %v3394, 16
        %v3396 = vadd.s32 %v3395, %v3393
        %vm3397 = vcmp.gt.s32.totalorder %v3317, %v3318
        %v3398 = vsel %vm3397, %v3317, %v3318
        %vm3399 = vcmp.gt.s32.totalorder %v3398, %v3319
        %v3400 = vsel %vm3399, %v3398, %v3319
        %vm3401 = vcmp.gt.s32.totalorder %v3400, %v3320
        %v3402 = vsel %vm3401, %v3400, %v3320
        %v3403 = vand.u32 %v3402, 65535
        %v3404 = vshra.s32 %v3402, 16
        %v3405 = vcvt.s32.f32 %v3403
        %v3406 = vcvt.s32.f32 %v3404
        %3407 = vmax.xlane.f32.xlu0 %v3406
        %v3408 = vpop.xlane.xlu0 %3407
        %vm3409 = vcmp.eq.f32.partialorder %v3406, %v3408
        %v3410 = vsel %vm3409, %v3405, -inf
        %3411 = vmax.xlane.f32.xlu0 %v3410
        %v3412 = vpop.xlane.xlu0 %3411
        %v3413 = vcvt.f32.s32 %v3412
        %v3414 = vcvt.f32.s32 %v3408
        %v3415 = vshll.u32 %v3414, 16
        %v3416 = vadd.s32 %v3415, %v3413
        %vm3417 = vcmp.gt.s32.totalorder %v3321, %v3322
        %v3418 = vsel %vm3417, %v3321, %v3322
        %vm3419 = vcmp.gt.s32.totalorder %v3418, %v3323
        %v3420 = vsel %vm3419, %v3418, %v3323
        %vm3421 = vcmp.gt.s32.totalorder %v3420, %v3324
        %v3422 = vsel %vm3421, %v3420, %v3324
        %v3423 = vand.u32 %v3422, 65535
        %v3424 = vshra.s32 %v3422, 16
        %v3425 = vcvt.s32.f32 %v3423
        %v3426 = vcvt.s32.f32 %v3424
        %3427 = vmax.xlane.f32.xlu0 %v3426
        %v3428 = vpop.xlane.xlu0 %3427
        %vm3429 = vcmp.eq.f32.partialorder %v3426, %v3428
        %v3430 = vsel %vm3429, %v3425, -inf
        %3431 = vmax.xlane.f32.xlu0 %v3430
        %v3432 = vpop.xlane.xlu0 %3431
        %v3433 = vcvt.f32.s32 %v3432
        %v3434 = vcvt.f32.s32 %v3428
        %v3435 = vshll.u32 %v3434, 16
        %v3436 = vadd.s32 %v3435, %v3433
        %vm3437 = vcmp.gt.s32.totalorder %v3325, %v3326
        %v3438 = vsel %vm3437, %v3325, %v3326
        %vm3439 = vcmp.gt.s32.totalorder %v3438, %v3327
        %v3440 = vsel %vm3439, %v3438, %v3327
        %vm3441 = vcmp.gt.s32.totalorder %v3440, %v3328
        %v3442 = vsel %vm3441, %v3440, %v3328
        %v3443 = vand.u32 %v3442, 65535
        %v3444 = vshra.s32 %v3442, 16
        %v3445 = vcvt.s32.f32 %v3443
        %v3446 = vcvt.s32.f32 %v3444
        %3447 = vmax.xlane.f32.xlu0 %v3446
        %v3448 = vpop.xlane.xlu0 %3447
        %vm3449 = vcmp.eq.f32.partialorder %v3446, %v3448
        %v3450 = vsel %vm3449, %v3445, -inf
        %3451 = vmax.xlane.f32.xlu0 %v3450
        %v3452 = vpop.xlane.xlu0 %3451
        %v3453 = vcvt.f32.s32 %v3452
        %v3454 = vcvt.f32.s32 %v3448
        %v3455 = vshll.u32 %v3454, 16
        %v3456 = vadd.s32 %v3455, %v3453
        %vm3457 = vcmp.gt.s32.totalorder %v3329, %v3330
        %v3458 = vsel %vm3457, %v3329, %v3330
        %vm3459 = vcmp.gt.s32.totalorder %v3458, %v3331
        %v3460 = vsel %vm3459, %v3458, %v3331
        %vm3461 = vcmp.gt.s32.totalorder %v3460, %v3332
        %v3462 = vsel %vm3461, %v3460, %v3332
        %v3463 = vand.u32 %v3462, 65535
        %v3464 = vshra.s32 %v3462, 16
        %v3465 = vcvt.s32.f32 %v3463
        %v3466 = vcvt.s32.f32 %v3464
        %3467 = vmax.xlane.f32.xlu0 %v3466
        %v3468 = vpop.xlane.xlu0 %3467
        %vm3469 = vcmp.eq.f32.partialorder %v3466, %v3468
        %v3470 = vsel %vm3469, %v3465, -inf
        %3471 = vmax.xlane.f32.xlu0 %v3470
        %v3472 = vpop.xlane.xlu0 %3471
        %v3473 = vcvt.f32.s32 %v3472
        %v3474 = vcvt.f32.s32 %v3468
        %v3475 = vshll.u32 %v3474, 16
        %v3476 = vadd.s32 %v3475, %v3473
        %vm3477 = vcmp.gt.s32.totalorder %v3333, %v3334
        %v3478 = vsel %vm3477, %v3333, %v3334
        %vm3479 = vcmp.gt.s32.totalorder %v3478, %v3335
        %v3480 = vsel %vm3479, %v3478, %v3335
        %vm3481 = vcmp.gt.s32.totalorder %v3480, %v3336
        %v3482 = vsel %vm3481, %v3480, %v3336
        %v3483 = vand.u32 %v3482, 65535
        %v3484 = vshra.s32 %v3482, 16
        %v3485 = vcvt.s32.f32 %v3483
        %v3486 = vcvt.s32.f32 %v3484
        %3487 = vmax.xlane.f32.xlu0 %v3486
        %v3488 = vpop.xlane.xlu0 %3487
        %vm3489 = vcmp.eq.f32.partialorder %v3486, %v3488
        %v3490 = vsel %vm3489, %v3485, -inf
        %3491 = vmax.xlane.f32.xlu0 %v3490
        %v3492 = vpop.xlane.xlu0 %3491
        %v3493 = vcvt.f32.s32 %v3492
        %v3494 = vcvt.f32.s32 %v3488
        %v3495 = vshll.u32 %v3494, 16
        %v3496 = vadd.s32 %v3495, %v3493
        %vm3497 = vcmp.eq.s32.totalorder %v3305, %v3356
        %vm3498 = vcmp.eq.s32.totalorder %v3306, %v3356
        %vm3499 = vcmp.eq.s32.totalorder %v3307, %v3356
        %vm3500 = vcmp.eq.s32.totalorder %v3308, %v3356
        %vm3501 = vcmp.eq.s32.totalorder %v3309, %v3376
        %vm3502 = vcmp.eq.s32.totalorder %v3310, %v3376
        %vm3503 = vcmp.eq.s32.totalorder %v3311, %v3376
        %vm3504 = vcmp.eq.s32.totalorder %v3312, %v3376
        %vm3505 = vcmp.eq.s32.totalorder %v3313, %v3396
        %vm3506 = vcmp.eq.s32.totalorder %v3314, %v3396
        %vm3507 = vcmp.eq.s32.totalorder %v3315, %v3396
        %vm3508 = vcmp.eq.s32.totalorder %v3316, %v3396
        %vm3509 = vcmp.eq.s32.totalorder %v3317, %v3416
        %vm3510 = vcmp.eq.s32.totalorder %v3318, %v3416
        %vm3511 = vcmp.eq.s32.totalorder %v3319, %v3416
        %vm3512 = vcmp.eq.s32.totalorder %v3320, %v3416
        %vm3513 = vcmp.eq.s32.totalorder %v3321, %v3436
        %vm3514 = vcmp.eq.s32.totalorder %v3322, %v3436
        %vm3515 = vcmp.eq.s32.totalorder %v3323, %v3436
        %vm3516 = vcmp.eq.s32.totalorder %v3324, %v3436
        %vm3517 = vcmp.eq.s32.totalorder %v3325, %v3456
        %vm3518 = vcmp.eq.s32.totalorder %v3326, %v3456
        %vm3519 = vcmp.eq.s32.totalorder %v3327, %v3456
        %vm3520 = vcmp.eq.s32.totalorder %v3328, %v3456
        %vm3521 = vcmp.eq.s32.totalorder %v3329, %v3476
        %vm3522 = vcmp.eq.s32.totalorder %v3330, %v3476
        %vm3523 = vcmp.eq.s32.totalorder %v3331, %v3476
        %vm3524 = vcmp.eq.s32.totalorder %v3332, %v3476
        %vm3525 = vcmp.eq.s32.totalorder %v3333, %v3496
        %vm3526 = vcmp.eq.s32.totalorder %v3334, %v3496
        %vm3527 = vcmp.eq.s32.totalorder %v3335, %v3496
        %vm3528 = vcmp.eq.s32.totalorder %v3336, %v3496
        %v3529 = vsel %vm3497, 4294967295, %v3305
        %v3530 = vsel %vm3498, 4294967295, %v3306
        %v3531 = vsel %vm3499, 4294967295, %v3307
        %v3532 = vsel %vm3500, 4294967295, %v3308
        %v3533 = vsel %vm3501, 4294967295, %v3309
        %v3534 = vsel %vm3502, 4294967295, %v3310
        %v3535 = vsel %vm3503, 4294967295, %v3311
        %v3536 = vsel %vm3504, 4294967295, %v3312
        %v3537 = vsel %vm3505, 4294967295, %v3313
        %v3538 = vsel %vm3506, 4294967295, %v3314
        %v3539 = vsel %vm3507, 4294967295, %v3315
        %v3540 = vsel %vm3508, 4294967295, %v3316
        %v3541 = vsel %vm3509, 4294967295, %v3317
        %v3542 = vsel %vm3510, 4294967295, %v3318
        %v3543 = vsel %vm3511, 4294967295, %v3319
        %v3544 = vsel %vm3512, 4294967295, %v3320
        %v3545 = vsel %vm3513, 4294967295, %v3321
        %v3546 = vsel %vm3514, 4294967295, %v3322
        %v3547 = vsel %vm3515, 4294967295, %v3323
        %v3548 = vsel %vm3516, 4294967295, %v3324
        %v3549 = vsel %vm3517, 4294967295, %v3325
        %v3550 = vsel %vm3518, 4294967295, %v3326
        %v3551 = vsel %vm3519, 4294967295, %v3327
        %v3552 = vsel %vm3520, 4294967295, %v3328
        %v3553 = vsel %vm3521, 4294967295, %v3329
        %v3554 = vsel %vm3522, 4294967295, %v3330
        %v3555 = vsel %vm3523, 4294967295, %v3331
        %v3556 = vsel %vm3524, 4294967295, %v3332
        %v3557 = vsel %vm3525, 4294967295, %v3333
        %v3558 = vsel %vm3526, 4294967295, %v3334
        %v3559 = vsel %vm3527, 4294967295, %v3335
        %v3560 = vsel %vm3528, 4294967295, %v3336
        %vm3561 = vcmp.lt.s32.totalorder %v3529, 0
        %vm3562 = vcmp.lt.s32.totalorder %v3530, 0
        %vm3563 = vcmp.lt.s32.totalorder %v3531, 0
        %vm3564 = vcmp.lt.s32.totalorder %v3532, 0
        %vm3565 = vcmp.lt.s32.totalorder %v3533, 0
        %vm3566 = vcmp.lt.s32.totalorder %v3534, 0
        %vm3567 = vcmp.lt.s32.totalorder %v3535, 0
        %vm3568 = vcmp.lt.s32.totalorder %v3536, 0
        %vm3569 = vcmp.lt.s32.totalorder %v3537, 0
        %vm3570 = vcmp.lt.s32.totalorder %v3538, 0
        %vm3571 = vcmp.lt.s32.totalorder %v3539, 0
        %vm3572 = vcmp.lt.s32.totalorder %v3540, 0
        %vm3573 = vcmp.lt.s32.totalorder %v3541, 0
        %vm3574 = vcmp.lt.s32.totalorder %v3542, 0
        %vm3575 = vcmp.lt.s32.totalorder %v3543, 0
        %vm3576 = vcmp.lt.s32.totalorder %v3544, 0
        %vm3577 = vcmp.lt.s32.totalorder %v3545, 0
        %vm3578 = vcmp.lt.s32.totalorder %v3546, 0
        %vm3579 = vcmp.lt.s32.totalorder %v3547, 0
        %vm3580 = vcmp.lt.s32.totalorder %v3548, 0
        %vm3581 = vcmp.lt.s32.totalorder %v3549, 0
        %vm3582 = vcmp.lt.s32.totalorder %v3550, 0
        %vm3583 = vcmp.lt.s32.totalorder %v3551, 0
        %vm3584 = vcmp.lt.s32.totalorder %v3552, 0
        %vm3585 = vcmp.lt.s32.totalorder %v3553, 0
        %vm3586 = vcmp.lt.s32.totalorder %v3554, 0
        %vm3587 = vcmp.lt.s32.totalorder %v3555, 0
        %vm3588 = vcmp.lt.s32.totalorder %v3556, 0
        %vm3589 = vcmp.lt.s32.totalorder %v3557, 0
        %vm3590 = vcmp.lt.s32.totalorder %v3558, 0
        %vm3591 = vcmp.lt.s32.totalorder %v3559, 0
        %vm3592 = vcmp.lt.s32.totalorder %v3560, 0
        %v3593 = vsel %vm3561, %v911, 0.0
        %v3594 = vsel %vm3562, %v912, 0.0
        %v3595 = vsel %vm3563, %v913, 0.0
        %v3596 = vsel %vm3564, %v914, 0.0
        %v3597 = vsel %vm3565, %v915, 0.0
        %v3598 = vsel %vm3566, %v916, 0.0
        %v3599 = vsel %vm3567, %v917, 0.0
        %v3600 = vsel %vm3568, %v918, 0.0
        %v3601 = vsel %vm3569, %v919, 0.0
        %v3602 = vsel %vm3570, %v920, 0.0
        %v3603 = vsel %vm3571, %v921, 0.0
        %v3604 = vsel %vm3572, %v922, 0.0
        %v3605 = vsel %vm3573, %v923, 0.0
        %v3606 = vsel %vm3574, %v924, 0.0
        %v3607 = vsel %vm3575, %v925, 0.0
        %v3608 = vsel %vm3576, %v926, 0.0
        %v3609 = vsel %vm3577, %v927, 0.0
        %v3610 = vsel %vm3578, %v928, 0.0
        %v3611 = vsel %vm3579, %v929, 0.0
        %v3612 = vsel %vm3580, %v930, 0.0
        %v3613 = vsel %vm3581, %v931, 0.0
        %v3614 = vsel %vm3582, %v932, 0.0
        %v3615 = vsel %vm3583, %v933, 0.0
        %v3616 = vsel %vm3584, %v934, 0.0
        %v3617 = vsel %vm3585, %v935, 0.0
        %v3618 = vsel %vm3586, %v936, 0.0
        %v3619 = vsel %vm3587, %v937, 0.0
        %v3620 = vsel %vm3588, %v938, 0.0
        %v3621 = vsel %vm3589, %v939, 0.0
        %v3622 = vsel %vm3590, %v940, 0.0
        %v3623 = vsel %vm3591, %v941, 0.0
        %v3624 = vsel %vm3592, %v942, 0.0
        %3625 = vst [vmem:[%s288 + $0x100] sm:$0xff] %v3593
        %3626 = vst [vmem:[%s288 + $0x108] sm:$0xff] %v3594
        %3627 = vst [vmem:[%s288 + $0x110] sm:$0xff] %v3595
        %3628 = vst [vmem:[%s288 + $0x118] sm:$0xff] %v3596
        %3629 = vst [vmem:[%s288 + $0x120] sm:$0xff] %v3597
        %3630 = vst [vmem:[%s288 + $0x128] sm:$0xff] %v3598
        %3631 = vst [vmem:[%s288 + $0x130] sm:$0xff] %v3599
        %3632 = vst [vmem:[%s288 + $0x138] sm:$0xff] %v3600
        %3633 = vst [vmem:[%s288 + $0x140] sm:$0xff] %v3601
        %3634 = vst [vmem:[%s288 + $0x148] sm:$0xff] %v3602
        %3635 = vst [vmem:[%s288 + $0x150] sm:$0xff] %v3603
        %3636 = vst [vmem:[%s288 + $0x158] sm:$0xff] %v3604
        %3637 = vst [vmem:[%s288 + $0x160] sm:$0xff] %v3605
        %3638 = vst [vmem:[%s288 + $0x168] sm:$0xff] %v3606
        %3639 = vst [vmem:[%s288 + $0x170] sm:$0xff] %v3607
        %3640 = vst [vmem:[%s288 + $0x178] sm:$0xff] %v3608
        %3641 = vst [vmem:[%s288 + $0x180] sm:$0xff] %v3609
        %3642 = vst [vmem:[%s288 + $0x188] sm:$0xff] %v3610
        %3643 = vst [vmem:[%s288 + $0x190] sm:$0xff] %v3611
        %3644 = vst [vmem:[%s288 + $0x198] sm:$0xff] %v3612
        %3645 = vst [vmem:[%s288 + $0x1a0] sm:$0xff] %v3613
        %3646 = vst [vmem:[%s288 + $0x1a8] sm:$0xff] %v3614
        %3647 = vst [vmem:[%s288 + $0x1b0] sm:$0xff] %v3615
        %3648 = vst [vmem:[%s288 + $0x1b8] sm:$0xff] %v3616
        %3649 = vst [vmem:[%s288 + $0x1c0] sm:$0xff] %v3617
        %3650 = vst [vmem:[%s288 + $0x1c8] sm:$0xff] %v3618
        %3651 = vst [vmem:[%s288 + $0x1d0] sm:$0xff] %v3619
        %3652 = vst [vmem:[%s288 + $0x1d8] sm:$0xff] %v3620
        %3653 = vst [vmem:[%s288 + $0x1e0] sm:$0xff] %v3621
        %3654 = vst [vmem:[%s288 + $0x1e8] sm:$0xff] %v3622
        %3655 = vst [vmem:[%s288 + $0x1f0] sm:$0xff] %v3623
        %3656 = vst [vmem:[%s288 + $0x1f8] sm:$0xff] %v3624
        %v3657 = vpack.c.bf16 %v3597, %v3593
        %v3658 = vpack.c.bf16 %v3598, %v3594
        %v3659 = vpack.c.bf16 %v3599, %v3595
        %v3660 = vpack.c.bf16 %v3600, %v3596
        %v3661 = vpack.c.bf16 %v3605, %v3601
        %v3662 = vpack.c.bf16 %v3606, %v3602
        %v3663 = vpack.c.bf16 %v3607, %v3603
        %v3664 = vpack.c.bf16 %v3608, %v3604
        %v3665 = vpack.c.bf16 %v3613, %v3609
        %v3666 = vpack.c.bf16 %v3614, %v3610
        %v3667 = vpack.c.bf16 %v3615, %v3611
        %v3668 = vpack.c.bf16 %v3616, %v3612
        %v3669 = vpack.c.bf16 %v3621, %v3617
        %v3670 = vpack.c.bf16 %v3622, %v3618
        %v3671 = vpack.c.bf16 %v3623, %v3619
        %v3672 = vpack.c.bf16 %v3624, %v3620
        %v3673 = vld [vmem:[#allocation8] sm:$0xf]
        %v3674 = vld [vmem:[#allocation8 + $0x4] sm:$0xf]
        %v3675 = vld [vmem:[#allocation8 + $0x8] sm:$0xf]
        %v3676 = vld [vmem:[#allocation8 + $0xc] sm:$0xf]
        %v3677 = vld [vmem:[#allocation8 + $0x10] sm:$0xf]
        %v3678 = vld [vmem:[#allocation8 + $0x14] sm:$0xf]
        %v3679 = vld [vmem:[#allocation8 + $0x18] sm:$0xf]
        %v3680 = vld [vmem:[#allocation8 + $0x1c] sm:$0xf]
        %v3681 = vld [vmem:[#allocation8 + $0x20] sm:$0xf]
        %v3682 = vld [vmem:[#allocation8 + $0x24] sm:$0xf]
        %v3683 = vld [vmem:[#allocation8 + $0x28] sm:$0xf]
        %v3684 = vld [vmem:[#allocation8 + $0x2c] sm:$0xf]
        %v3685 = vld [vmem:[#allocation8 + $0x30] sm:$0xf]
        %v3686 = vld [vmem:[#allocation8 + $0x34] sm:$0xf]
        %v3687 = vld [vmem:[#allocation8 + $0x38] sm:$0xf]
        %v3688 = vld [vmem:[#allocation8 + $0x3c] sm:$0xf]
        %v3689 = vld [vmem:[#allocation8 + $0x40] sm:$0xf]
        %v3690 = vld [vmem:[#allocation8 + $0x44] sm:$0xf]
        %v3691 = vld [vmem:[#allocation8 + $0x48] sm:$0xf]
        %v3692 = vld [vmem:[#allocation8 + $0x4c] sm:$0xf]
        %v3693 = vld [vmem:[#allocation8 + $0x50] sm:$0xf]
        %v3694 = vld [vmem:[#allocation8 + $0x54] sm:$0xf]
        %v3695 = vld [vmem:[#allocation8 + $0x58] sm:$0xf]
        %v3696 = vld [vmem:[#allocation8 + $0x5c] sm:$0xf]
        %v3697 = vld [vmem:[#allocation8 + $0x60] sm:$0xf]
        %v3698 = vld [vmem:[#allocation8 + $0x64] sm:$0xf]
        %v3699 = vld [vmem:[#allocation8 + $0x68] sm:$0xf]
        %v3700 = vld [vmem:[#allocation8 + $0x6c] sm:$0xf]
        %v3701 = vld [vmem:[#allocation8 + $0x70] sm:$0xf]
        %v3702 = vld [vmem:[#allocation8 + $0x74] sm:$0xf]
        %v3703 = vld [vmem:[#allocation8 + $0x78] sm:$0xf]
        %v3704 = vld [vmem:[#allocation8 + $0x7c] sm:$0xf]
        %v3705 = vld [vmem:[#allocation8 + $0x80] sm:$0xf]
        %v3706 = vld [vmem:[#allocation8 + $0x84] sm:$0xf]
        %v3707 = vld [vmem:[#allocation8 + $0x88] sm:$0xf]
        %v3708 = vld [vmem:[#allocation8 + $0x8c] sm:$0xf]
        %v3709 = vld [vmem:[#allocation8 + $0x90] sm:$0xf]
        %v3710 = vld [vmem:[#allocation8 + $0x94] sm:$0xf]
        %v3711 = vld [vmem:[#allocation8 + $0x98] sm:$0xf]
        %v3712 = vld [vmem:[#allocation8 + $0x9c] sm:$0xf]
        %v3713 = vld [vmem:[#allocation8 + $0xa0] sm:$0xf]
        %v3714 = vld [vmem:[#allocation8 + $0xa4] sm:$0xf]
        %v3715 = vld [vmem:[#allocation8 + $0xa8] sm:$0xf]
        %v3716 = vld [vmem:[#allocation8 + $0xac] sm:$0xf]
        %v3717 = vld [vmem:[#allocation8 + $0xb0] sm:$0xf]
        %v3718 = vld [vmem:[#allocation8 + $0xb4] sm:$0xf]
        %v3719 = vld [vmem:[#allocation8 + $0xb8] sm:$0xf]
        %v3720 = vld [vmem:[#allocation8 + $0xbc] sm:$0xf]
        %v3721 = vld [vmem:[#allocation8 + $0xc0] sm:$0xf]
        %v3722 = vld [vmem:[#allocation8 + $0xc4] sm:$0xf]
        %v3723 = vld [vmem:[#allocation8 + $0xc8] sm:$0xf]
        %v3724 = vld [vmem:[#allocation8 + $0xcc] sm:$0xf]
        %v3725 = vld [vmem:[#allocation8 + $0xd0] sm:$0xf]
        %v3726 = vld [vmem:[#allocation8 + $0xd4] sm:$0xf]
        %v3727 = vld [vmem:[#allocation8 + $0xd8] sm:$0xf]
        %v3728 = vld [vmem:[#allocation8 + $0xdc] sm:$0xf]
        %v3729 = vld [vmem:[#allocation8 + $0xe0] sm:$0xf]
        %v3730 = vld [vmem:[#allocation8 + $0xe4] sm:$0xf]
        %v3731 = vld [vmem:[#allocation8 + $0xe8] sm:$0xf]
        %v3732 = vld [vmem:[#allocation8 + $0xec] sm:$0xf]
        %v3733 = vld [vmem:[#allocation8 + $0xf0] sm:$0xf]
        %v3734 = vld [vmem:[#allocation8 + $0xf4] sm:$0xf]
        %v3735 = vld [vmem:[#allocation8 + $0xf8] sm:$0xf]
        %v3736 = vld [vmem:[#allocation8 + $0xfc] sm:$0xf]
        %v3801 = vunpack.c.l.b16 %v3673
        %v3802 = vunpack.c.l.b16 %v3674
        %v3803 = vunpack.c.l.b16 %v3675
        %v3804 = vunpack.c.l.b16 %v3676
        %v3805 = vunpack.c.l.b16 %v3677
        %v3806 = vunpack.c.l.b16 %v3678
        %v3807 = vunpack.c.l.b16 %v3679
        %v3808 = vunpack.c.l.b16 %v3680
        %v3809 = vunpack.c.l.b16 %v3681
        %v3810 = vunpack.c.l.b16 %v3682
        %v3811 = vunpack.c.l.b16 %v3683
        %v3812 = vunpack.c.l.b16 %v3684
        %v3813 = vunpack.c.l.b16 %v3685
        %v3814 = vunpack.c.l.b16 %v3686
        %v3815 = vunpack.c.l.b16 %v3687
        %v3816 = vunpack.c.l.b16 %v3688
        %v3817 = vunpack.c.l.b16 %v3689
        %v3818 = vunpack.c.l.b16 %v3690
        %v3819 = vunpack.c.l.b16 %v3691
        %v3820 = vunpack.c.l.b16 %v3692
        %v3821 = vunpack.c.l.b16 %v3693
        %v3822 = vunpack.c.l.b16 %v3694
        %v3823 = vunpack.c.l.b16 %v3695
        %v3824 = vunpack.c.l.b16 %v3696
        %v3825 = vunpack.c.l.b16 %v3697
        %v3826 = vunpack.c.l.b16 %v3698
        %v3827 = vunpack.c.l.b16 %v3699
        %v3828 = vunpack.c.l.b16 %v3700
        %v3829 = vunpack.c.l.b16 %v3701
        %v3830 = vunpack.c.l.b16 %v3702
        %v3831 = vunpack.c.l.b16 %v3703
        %v3832 = vunpack.c.l.b16 %v3704
        %v3833 = vunpack.c.l.b16 %v3705
        %v3834 = vunpack.c.l.b16 %v3706
        %v3835 = vunpack.c.l.b16 %v3707
        %v3836 = vunpack.c.l.b16 %v3708
        %v3837 = vunpack.c.l.b16 %v3709
        %v3838 = vunpack.c.l.b16 %v3710
        %v3839 = vunpack.c.l.b16 %v3711
        %v3840 = vunpack.c.l.b16 %v3712
        %v3841 = vunpack.c.l.b16 %v3713
        %v3842 = vunpack.c.l.b16 %v3714
        %v3843 = vunpack.c.l.b16 %v3715
        %v3844 = vunpack.c.l.b16 %v3716
        %v3845 = vunpack.c.l.b16 %v3717
        %v3846 = vunpack.c.l.b16 %v3718
        %v3847 = vunpack.c.l.b16 %v3719
        %v3848 = vunpack.c.l.b16 %v3720
        %v3849 = vunpack.c.l.b16 %v3721
        %v3850 = vunpack.c.l.b16 %v3722
        %v3851 = vunpack.c.l.b16 %v3723
        %v3852 = vunpack.c.l.b16 %v3724
        %v3853 = vunpack.c.l.b16 %v3725
        %v3854 = vunpack.c.l.b16 %v3726
        %v3855 = vunpack.c.l.b16 %v3727
        %v3856 = vunpack.c.l.b16 %v3728
        %v3857 = vunpack.c.l.b16 %v3729
        %v3858 = vunpack.c.l.b16 %v3730
        %v3859 = vunpack.c.l.b16 %v3731
        %v3860 = vunpack.c.l.b16 %v3732
        %v3861 = vunpack.c.l.b16 %v3733
        %v3862 = vunpack.c.l.b16 %v3734
        %v3863 = vunpack.c.l.b16 %v3735
        %v3864 = vunpack.c.l.b16 %v3736
        %v3865 = vpack.c.b16 %v3802, %v3801
        %v3866 = vpack.c.b16 %v3804, %v3803
        %v3867 = vpack.c.b16 %v3806, %v3805
        %v3868 = vpack.c.b16 %v3808, %v3807
        %v3869 = vpack.c.b16 %v3810, %v3809
        %v3870 = vpack.c.b16 %v3812, %v3811
        %v3871 = vpack.c.b16 %v3814, %v3813
        %v3872 = vpack.c.b16 %v3816, %v3815
        %v3873 = vpack.c.b16 %v3818, %v3817
        %v3874 = vpack.c.b16 %v3820, %v3819
        %v3875 = vpack.c.b16 %v3822, %v3821
        %v3876 = vpack.c.b16 %v3824, %v3823
        %v3877 = vpack.c.b16 %v3826, %v3825
        %v3878 = vpack.c.b16 %v3828, %v3827
        %v3879 = vpack.c.b16 %v3830, %v3829
        %v3880 = vpack.c.b16 %v3832, %v3831
        %v3881 = vpack.c.b16 %v3834, %v3833
        %v3882 = vpack.c.b16 %v3836, %v3835
        %v3883 = vpack.c.b16 %v3838, %v3837
        %v3884 = vpack.c.b16 %v3840, %v3839
        %v3885 = vpack.c.b16 %v3842, %v3841
        %v3886 = vpack.c.b16 %v3844, %v3843
        %v3887 = vpack.c.b16 %v3846, %v3845
        %v3888 = vpack.c.b16 %v3848, %v3847
        %v3889 = vpack.c.b16 %v3850, %v3849
        %v3890 = vpack.c.b16 %v3852, %v3851
        %v3891 = vpack.c.b16 %v3854, %v3853
        %v3892 = vpack.c.b16 %v3856, %v3855
        %v3893 = vpack.c.b16 %v3858, %v3857
        %v3894 = vpack.c.b16 %v3860, %v3859
        %v3895 = vpack.c.b16 %v3862, %v3861
        %v3896 = vpack.c.b16 %v3864, %v3863
        %3929 = vmatprep.subr.bf16.mxu0 0
        %3930 = vmatpush1.bf16.msra.mxu0 %v3872
        %3931 = vmatprep.subr.bf16.mxu0 0
        %3932 = vmatpush1.bf16.msra.mxu0 %v3871
        %3933 = vmatprep.subr.bf16.mxu0 0
        %3934 = vmatpush1.bf16.msra.mxu0 %v3870
        %3935 = vmatprep.subr.bf16.mxu0 0
        %3936 = vmatpush1.bf16.msra.mxu0 %v3869
        %3937 = vmatprep.subr.bf16.mxu0 0
        %3938 = vmatpush1.bf16.msra.mxu0 %v3868
        %3939 = vmatprep.subr.bf16.mxu0 0
        %3940 = vmatpush1.bf16.msra.mxu0 %v3867
        %3941 = vmatprep.subr.bf16.mxu0 0
        %3942 = vmatpush1.bf16.msra.mxu0 %v3866
        %3943 = vmatprep.subr.bf16.mxu0 0
        %3944 = vmatpush1.bf16.msra.mxu0 %v3865
        %3945 = vmatprep.subr.bf16.mxu0 0
        %3946 = vmatpush2.bf16.msra.mxu0 %v3880
        %3947 = vmatprep.subr.bf16.mxu0 0
        %3948 = vmatpush2.bf16.msra.mxu0 %v3879
        %3949 = vmatprep.subr.bf16.mxu0 0
        %3950 = vmatpush2.bf16.msra.mxu0 %v3878
        %3951 = vmatprep.subr.bf16.mxu0 0
        %3952 = vmatpush2.bf16.msra.mxu0 %v3877
        %3953 = vmatprep.subr.bf16.mxu0 0
        %3954 = vmatpush2.bf16.msra.mxu0 %v3876
        %3955 = vmatprep.subr.bf16.mxu0 0
        %3956 = vmatpush2.bf16.msra.mxu0 %v3875
        %3957 = vmatprep.subr.bf16.mxu0 0
        %3958 = vmatpush2.bf16.msra.mxu0 %v3874
        %3959 = vmatprep.subr.bf16.mxu0 0
        %3960 = vmatpush2.bf16.msra.mxu0 %v3873
        %3961 = vmatprep.mubr.bf16.mxu0 %v3658
        %3962 = vmatmul.mubr.bf16.gmra.mxu0 %v3657
        %v3963 = vpop.f32.mrf.mxu0
        %v3964 = vadd.f32 0.0, %v3963
        %v3965 = vpop.f32.mrf.mxu0
        %v3966 = vpop.f32.mrf.mxu0
        %v3967 = vadd.f32 0.0, %v3966
        %v3968 = vpop.f32.mrf.mxu0
        %3969 = vmatprep.mubr.bf16.mxu0 %v3662
        %3970 = vmatmul.mubr.bf16.gmra.mxu0 %v3661
        %v3971 = vpop.f32.mrf.mxu0
        %v3972 = vadd.f32 0.0, %v3971
        %v3973 = vpop.f32.mrf.mxu0
        %v3974 = vpop.f32.mrf.mxu0
        %v3975 = vadd.f32 0.0, %v3974
        %v3976 = vpop.f32.mrf.mxu0
        %3977 = vmatprep.mubr.bf16.mxu0 %v3666
        %3978 = vmatmul.mubr.bf16.gmra.mxu0 %v3665
        %v3979 = vpop.f32.mrf.mxu0
        %v3980 = vadd.f32 0.0, %v3979
        %v3981 = vpop.f32.mrf.mxu0
        %v3982 = vpop.f32.mrf.mxu0
        %v3983 = vadd.f32 0.0, %v3982
        %v3984 = vpop.f32.mrf.mxu0
        %3985 = vmatprep.mubr.bf16.mxu0 %v3670
        %3986 = vmatmul.mubr.bf16.gmra.mxu0 %v3669
        %v3987 = vpop.f32.mrf.mxu0
        %v3988 = vadd.f32 0.0, %v3987
        %v3989 = vpop.f32.mrf.mxu0
        %v3990 = vpop.f32.mrf.mxu0
        %v3991 = vadd.f32 0.0, %v3990
        %v3992 = vpop.f32.mrf.mxu0
        %3993 = vdwg.mxu0
        %3994 = vmatprep.subr.bf16.mxu0 0
        %3995 = vmatpush1.bf16.msra.mxu0 %v3888
        %3996 = vmatprep.subr.bf16.mxu0 0
        %3997 = vmatpush1.bf16.msra.mxu0 %v3887
        %3998 = vmatprep.subr.bf16.mxu0 0
        %3999 = vmatpush1.bf16.msra.mxu0 %v3886
        %4000 = vmatprep.subr.bf16.mxu0 0
        %4001 = vmatpush1.bf16.msra.mxu0 %v3885
        %4002 = vmatprep.subr.bf16.mxu0 0
        %4003 = vmatpush1.bf16.msra.mxu0 %v3884
        %4004 = vmatprep.subr.bf16.mxu0 0
        %4005 = vmatpush1.bf16.msra.mxu0 %v3883
        %4006 = vmatprep.subr.bf16.mxu0 0
        %4007 = vmatpush1.bf16.msra.mxu0 %v3882
        %4008 = vmatprep.subr.bf16.mxu0 0
        %4009 = vmatpush1.bf16.msra.mxu0 %v3881
        %4010 = vmatprep.subr.bf16.mxu0 0
        %4011 = vmatpush2.bf16.msra.mxu0 %v3896
        %4012 = vmatprep.subr.bf16.mxu0 0
        %4013 = vmatpush2.bf16.msra.mxu0 %v3895
        %4014 = vmatprep.subr.bf16.mxu0 0
        %4015 = vmatpush2.bf16.msra.mxu0 %v3894
        %4016 = vmatprep.subr.bf16.mxu0 0
        %4017 = vmatpush2.bf16.msra.mxu0 %v3893
        %4018 = vmatprep.subr.bf16.mxu0 0
        %4019 = vmatpush2.bf16.msra.mxu0 %v3892
        %4020 = vmatprep.subr.bf16.mxu0 0
        %4021 = vmatpush2.bf16.msra.mxu0 %v3891
        %4022 = vmatprep.subr.bf16.mxu0 0
        %4023 = vmatpush2.bf16.msra.mxu0 %v3890
        %4024 = vmatprep.subr.bf16.mxu0 0
        %4025 = vmatpush2.bf16.msra.mxu0 %v3889
        %4026 = vmatprep.mubr.bf16.mxu0 %v3660
        %4027 = vmatmul.mubr.bf16.gmra.mxu0 %v3659
        %v4028 = vpop.f32.mrf.mxu0
        %v4029 = vadd.f32 %v3964, %v4028
        %v4030 = vpop.f32.mrf.mxu0
        %v4031 = vpop.f32.mrf.mxu0
        %v4032 = vadd.f32 %v3967, %v4031
        %v4033 = vpop.f32.mrf.mxu0
        %4034 = vmatprep.mubr.bf16.mxu0 %v3664
        %4035 = vmatmul.mubr.bf16.gmra.mxu0 %v3663
        %v4036 = vpop.f32.mrf.mxu0
        %v4037 = vadd.f32 %v3972, %v4036
        %v4038 = vpop.f32.mrf.mxu0
        %v4039 = vpop.f32.mrf.mxu0
        %v4040 = vadd.f32 %v3975, %v4039
        %v4041 = vpop.f32.mrf.mxu0
        %4042 = vmatprep.mubr.bf16.mxu0 %v3668
        %4043 = vmatmul.mubr.bf16.gmra.mxu0 %v3667
        %v4044 = vpop.f32.mrf.mxu0
        %v4045 = vadd.f32 %v3980, %v4044
        %v4046 = vpop.f32.mrf.mxu0
        %v4047 = vpop.f32.mrf.mxu0
        %v4048 = vadd.f32 %v3983, %v4047
        %v4049 = vpop.f32.mrf.mxu0
        %4050 = vmatprep.mubr.bf16.mxu0 %v3672
        %4051 = vmatmul.mubr.bf16.gmra.mxu0 %v3671
        %v4052 = vpop.f32.mrf.mxu0
        %v4053 = vadd.f32 %v3988, %v4052
        %v4054 = vpop.f32.mrf.mxu0
        %v4055 = vpop.f32.mrf.mxu0
        %v4056 = vadd.f32 %v3991, %v4055
        %v4057 = vpop.f32.mrf.mxu0
        %4058 = vdwg.mxu0
        %4059 = vst [vmem:[%s295 + $0x40] sm:$0xff] %v4029
        %4060 = vst [vmem:[%s295 + $0x48] sm:$0xff] %v4032
        %4061 = vst [vmem:[%s295 + $0x50] sm:$0xff] %v4037
        %4062 = vst [vmem:[%s295 + $0x58] sm:$0xff] %v4040
        %4063 = vst [vmem:[%s295 + $0x60] sm:$0xff] %v4045
        %4064 = vst [vmem:[%s295 + $0x68] sm:$0xff] %v4048
        %4065 = vst [vmem:[%s295 + $0x70] sm:$0xff] %v4053
        %4066 = vst [vmem:[%s295 + $0x78] sm:$0xff] %v4056
        %s4067 = sand.u32 %s125, 1
        %s4068 = scalar_lea.sflag [#allocation4], %s4067
        %s4069 = sand.u32 %s125, 1
        %s4070 = smul.addr %s4069, 512
        %s4071 = scalar_lea.vmem [#allocation10], %s4070
        %s4072 = sand.u32 %s151, 1
        %s4073 = scalar_lea.sflag [#allocation12], %s4072
        %s4074 = sand.u32 %s151, 1
        %s4075 = smul.addr %s4074, 128
        %s4076 = scalar_lea.vmem [#allocation11], %s4075
        // Predicated region
        $region53: #{tpu_custom_call.1} parent=35 // pred_check
          %p4077 = pneg %p135
        $region54: #{tpu_custom_call.1} parent=35 // pred_check_branch
          %4079 = sbr.rel (%p4077) target = $region56
        $region55: #{tpu_custom_call.1} parent=35 // pred_region
          %s4080 = smul.u32 16, %s28
          %s4082 = ssub.s32 8192, 8192
          %4083 = vsyncadd %s4068, %s4082
          %s4084 = smul.addr %s4080, 4
          %s4085 = smul.addr %s4084, 128
          %s4086 = scalar_lea.hbm %s4, %s4085
          %s4087 = sshll.u32 %s4071, 4
          %s4088 = int_to_ptr.vmem [resolvable:$true] %s4087
          %4093 = dma.vmem_to_hbm [thread:$0]  %s4088, 8192, %s4086, %s4068, 512, 512, 32
        $region56: #{tpu_custom_call.1} parent=35 // pred_fallthru
          _
        // Predicated region
        $region57: #{tpu_custom_call.1} parent=35 // pred_check
          %p4094 = pneg %p161
        $region58: #{tpu_custom_call.1} parent=35 // pred_check_branch
          %4096 = sbr.rel (%p4094) target = $region60
        $region59: #{tpu_custom_call.1} parent=35 // pred_region
          %s4097 = smul.u32 16, %s28
          %s4099 = ssub.s32 2048, 2048
          %4100 = vsyncadd %s4073, %s4099
          %s4101 = smul.addr %s4097, 128
          %s4102 = scalar_lea.hbm %s5, %s4101
          %s4103 = sshll.u32 %s4076, 4
          %s4104 = int_to_ptr.vmem [resolvable:$true] %s4103
          %4109 = dma.vmem_to_hbm [thread:$0]  %s4104, 2048, %s4102, %s4073, 128, 128, 8
        $region60: #{tpu_custom_call.1} parent=35 // pred_fallthru
          _
      $region36: #{tpu_custom_call.1} parent=5 // pred_fallthru
        _
      %p4110 = scmp.le.s32.totalorder 2, %s23
      // Predicated region
      $region61: #{tpu_custom_call.1} parent=5 // pred_check
        %p4111 = pneg %p4110
      $region62: #{tpu_custom_call.1} parent=5 // pred_check_branch
        %4113 = sbr.rel (%p4111) target = $region64
      $region63: #{tpu_custom_call.1} parent=5 // pred_region
        %s4114 = ssub.s32 %s23, 2
        // Predicated region
        $region65: #{tpu_custom_call.1} parent=63 // pred_check
          %p4115 = pneg %p141
        $region66: #{tpu_custom_call.1} parent=63 // pred_check_branch
          %4117 = sbr.rel (%p4115) target = $region68
        $region67: #{tpu_custom_call.1} parent=63 // pred_region
          %s4118 = sand.u32 %s126, 1
          %s4119 = scalar_lea.sflag [#allocation4], %s4118
          %s4120 = sand.u32 %s126, 1
          %s4121 = smul.addr %s4120, 512
          %s4122 = scalar_lea.vmem [#allocation10], %s4121
          %4123 = dma.done %s4119, 8192
        $region68: #{tpu_custom_call.1} parent=63 // pred_fallthru
          _
        // Predicated region
        $region69: #{tpu_custom_call.1} parent=63 // pred_check
          %p4124 = pneg %p167
        $region70: #{tpu_custom_call.1} parent=63 // pred_check_branch
          %4126 = sbr.rel (%p4124) target = $region72
        $region71: #{tpu_custom_call.1} parent=63 // pred_region
          %s4127 = sand.u32 %s152, 1
          %s4128 = scalar_lea.sflag [#allocation12], %s4127
          %s4129 = sand.u32 %s152, 1
          %s4130 = smul.addr %s4129, 128
          %s4131 = scalar_lea.vmem [#allocation11], %s4130
          %4132 = dma.done %s4128, 2048
        $region72: #{tpu_custom_call.1} parent=63 // pred_fallthru
          _
      $region64: #{tpu_custom_call.1} parent=5 // pred_fallthru
        _
    $region6: #{tpu_custom_call.1} parent=1 // loop_footer
      %s27 = sadd.s32 1, %s23
    $region7: #{tpu_custom_call.1} parent=1 // loop_footer_branch
      %22 = sbr.rel target = $region3
    $region8: #{tpu_custom_call.1} parent=1 // loop_exit
      _
    %4133 = vsyncpa [#allocation3], 1
    %s4134 = scalar_lea.sflag [#allocation3], 1
    %4135 = vsyncpa %s4134, 1
    %4136 = vsyncpa [#allocation6], 1
    %4137 = vsyncpa [#allocation9], 1
    %4138 = vsyncpa [#allocation4], 1
    %s4139 = scalar_lea.sflag [#allocation4], 1
    %4140 = vsyncpa %s4139, 1
    %4141 = vsyncpa [#allocation12], 1
    %s4142 = scalar_lea.sflag [#allocation12], 1
    %4143 = vsyncpa %s4142, 1

</llo_original>
